<compile_context>
chip_gen: v5e
topology: v5e:2x2
jax: 0.10.0
libtpu: 0.0.40
codegen_flags: <defaults>
</compile_context>

<pallas_src>
import functools

import numpy as np
import jax
import jax.numpy as jnp
from jax.experimental import pallas as pl
from jax.experimental.pallas import tpu as pltpu

F32 = jnp.float32
BN_EPS = 1e-5

_CONV_CFG = {              # name -> (stride, padding, dilation); all 3x3, C->C, bias=False
    "conv1": (2, 1, 1), "conv2": (2, 1, 1), "conv3": (2, 1, 1), "conv4": (2, 1, 1),
    "conv5": (1, 2, 2),
    "rev1": (1, 1, 1), "rev2": (1, 1, 1), "rev3": (1, 1, 1), "rev4": (1, 1, 1),
    "sum":  (1, 1, 1),
}


# ----------------------------- operator building ---------------------------- #

def _conv_out_size(n, k=3, stride=1, pad=1, dil=1):
    return (n + 2 * pad - dil * (k - 1) - 1) // stride + 1


def _fold_bn(w, gamma, beta, mean, var, eps=BN_EPS):
    """Fold eval-mode BatchNorm2d into the bias-free 3x3 conv (exact)."""
    scale = (gamma / np.sqrt(var + eps)).astype(np.float32)     # (C,)
    wf = (w * scale[:, None, None, None]).astype(np.float32)    # (C, C, 3, 3)
    bf = (beta - mean * scale).astype(np.float32)               # (C,)
    return wf, bf


def _conv_operators_t(wf, bf, hin, win, stride, pad, dil):
    """BasicConv as transposed operators on T = X^T of shape (W, C*H).

    Y^T = [.. St_kx @ T ..] @ Lt + bias_row, with all-zero taps pruned.
    Returns Lt (n_active*C*hin, C*hout), [St_kx (wout, win)], bias_row (1, C*hout).
    """
    C = wf.shape[0]
    hout = _conv_out_size(hin, 3, stride, pad, dil)
    wout = _conv_out_size(win, 3, stride, pad, dil)
    lt_blocks, sts = [], []
    for kx in range(3):
        L = np.zeros((C * hout, C * hin), np.float32)
        for ky in range(3):
            R = np.zeros((hout, hin), np.float32)
            for y in range(hout):
                h = stride * y + ky * dil - pad
                if 0 <= h < hin:
                    R[y, h] = 1.0
            L += np.kron(wf[:, :, ky, kx], R)
        St = np.zeros((wout, win), np.float32)
        for x in range(wout):
            w = stride * x + kx * dil - pad
            if 0 <= w < win:
                St[x, w] = 1.0
        if np.any(St):                       # prune taps that always fall in the padding
            lt_blocks.append(L.T)            # (C*hin, C*hout)
            sts.append(St)
    Lt = np.concatenate(lt_blocks, axis=0)   # (n_active*C*hin, C*hout)
    b_row = np.repeat(bf, hout)[None, :].astype(np.float32)     # (1, C*hout)
    return Lt, sts, b_row


def _bilinear_matrix(n_in, n_out):
    """align_corners=True 1-D bilinear resampling matrix (n_out, n_in)."""
    A = np.zeros((n_out, n_in), np.float32)
    for o in range(n_out):
        src = o * (n_in - 1) / (n_out - 1) if n_out > 1 else 0.0
        i0 = int(np.floor(src)); i1 = min(i0 + 1, n_in - 1); f = src - i0
        A[o, i0] += 1.0 - f
        A[o, i1] += f
    return A


def _interp_operators_t(C, hin, win, hout, wout):
    """Bilinear resize as Y^T = Vt @ T @ Ut; identity axes return None (skipped)."""
    Ut = None if hin == hout else np.kron(np.eye(C, dtype=np.float32),
                                          _bilinear_matrix(hin, hout).T)   # (C*hin, C*hout)
    Vt = None if win == wout else _bilinear_matrix(win, wout).astype(np.float32)  # (wout, win)
    return Ut, Vt


# ----------------------------- parameter packing ---------------------------- #

def _round_up(n, m):
    return (n + m - 1) // m * m


class _Packer:
    """Row-stacks matrices into per-width f32 slabs (one DMA each, minimal zero padding)."""

    def __init__(self):
        self._buckets = {}                           # slab width -> [(name, array)]

    def add(self, name, arr):
        arr = np.asarray(arr, np.float32)
        self._buckets.setdefault(_round_up(arr.shape[1], 128), []).append((name, arr))

    def finalize(self):
        slabs, meta = [], {}
        for si, width in enumerate(sorted(self._buckets)):
            row, placed = 0, []
            for name, a in self._buckets[width]:
                meta[name] = (si, row, a.shape[0], a.shape[1])   # static Python ints
                placed.append((row, a))
                row += _round_up(a.shape[0], 8)                  # 8-row aligned blocks
            slab = np.zeros((_round_up(row, 8), width), np.float32)
            for r0, a in placed:
                slab[r0:r0 + a.shape[0], :a.shape[1]] = a
            slabs.append(jnp.asarray(slab))
        return slabs, meta


def build_usrm5_params(raw, C, x_hw, high_hw, gi_hw):
    """raw: name -> (w, gamma, beta, mean, var) numpy arrays.  Returns ([slabs], meta)."""
    def out_hw(hw, cfg):
        s, p, d = cfg
        return (_conv_out_size(hw[0], 3, s, p, d), _conv_out_size(hw[1], 3, s, p, d))

    s_x = x_hw
    s1 = out_hw(s_x, _CONV_CFG["conv1"])
    s2 = out_hw(s1, _CONV_CFG["conv2"])
    s3 = out_hw(s2, _CONV_CFG["conv3"])
    s4 = out_hw(s3, _CONV_CFG["conv4"])
    s5 = out_hw(s4, _CONV_CFG["conv5"])

    conv_in_hw = {"conv1": s_x, "conv2": s1, "conv3": s2, "conv4": s3, "conv5": s4,
                  "rev1": s4, "rev2": s3, "rev3": s2, "rev4": s1, "sum": s_x}

    pk = _Packer()
    for name, cfg in _CONV_CFG.items():
        wf, bf = _fold_bn(*raw[name])
        hin, win = conv_in_hw[name]
        Lt, sts, b = _conv_operators_t(wf, bf, hin, win, *cfg)
        pk.add(f"{name}_Lt", Lt)
        for k, St in enumerate(sts):
            pk.add(f"{name}_St{k}", St)
        pk.add(f"{name}_b", b)

    interps = {"ih": (high_hw, s1), "ig": (gi_hw, s2), "i44": (s5, s4),
               "i43": (s4, s3), "i32": (s3, s2), "i21": (s2, s1), "i10": (s1, s_x)}
    for name, (src, dst) in interps.items():
        Ut, Vt = _interp_operators_t(C, src[0], src[1], dst[0], dst[1])
        if Ut is not None:
            pk.add(f"{name}_Ut", Ut)
        if Vt is not None:
            pk.add(f"{name}_Vt", Vt)

    return pk.finalize()


# ------------------------------- Pallas kernel ------------------------------ #

def _usrm5_kernel(x_ref, high_ref, gi_ref, *refs, meta, n_slabs):
    slab_refs = refs[:n_slabs]
    o_ref = refs[n_slabs]

    def getp(name, row_off=0, nrows=None):          # static, 8-row-aligned slab slice
        si, r0, nr, nc = meta[name]
        nrows = nr if nrows is None else nrows
        return slab_refs[si][r0 + row_off:r0 + row_off + nrows, 0:nc]

    def mm(a, b):
        return jnp.dot(a, b, preferred_element_type=jnp.float32)

    def conv(t, name):                               # 3x3 conv + folded BN (transposed form)
        chin = t.shape[1]
        parts, k = [], 0
        while f"{name}_St{k}" in meta:               # active kx taps (W-axis selections)
            parts.append(mm(getp(f"{name}_St{k}"), t))
            k += 1
        bias = getp(f"{name}_b")                     # (1, C*Hout), broadcasts over sublanes
        if len(parts) > 1 and chin % 128 == 0:
            # lane-tile-aligned: fuse all kx taps into ONE wide-K MXU matmul
            return mm(jnp.concatenate(parts, axis=1), getp(f"{name}_Lt")) + bias
        acc = bias + mm(parts[0], getp(f"{name}_Lt", 0, chin))
        for j in range(1, len(parts)):
            acc = acc + mm(parts[j], getp(f"{name}_Lt", j * chin, chin))
        return acc

    def interp(t, name):                             # bilinear, align_corners=True
        if f"{name}_Vt" in meta:                     # identity axes were pruned at build time
            t = mm(getp(f"{name}_Vt"), t)
        if f"{name}_Ut" in meta:
            t = mm(t, getp(f"{name}_Ut"))
        return t

    x = x_ref[0]                                     # (W, C*H): lane axis is C*H
    y1 = conv(x, "conv1") + interp(high_ref[0], "ih")
    y2 = conv(y1, "conv2") + interp(gi_ref[0], "ig")
    y3 = conv(y2, "conv3")
    y4 = conv(y3, "conv4")
    y5 = conv(y4, "conv5")
    y4 = conv(y4 + interp(y5, "i44"), "rev1")        # i44 is an exact identity -> pruned
    y3 = conv(y3 + interp(y4, "i43"), "rev2")
    y2 = conv(y2 + interp(y3, "i32"), "rev3")
    y1 = conv(y1 + interp(y2, "i21"), "rev4")
    y = interp(y1, "i10")
    o_ref[0] = conv(jnp.maximum(x + y, 0.0), "sum")


def _param_spec(shape, single_buffer):
    idx = lambda n: (0,) * len(shape)
    if single_buffer:
        # grid-invariant parameter slab: don't double-buffer it in VMEM
        return pl.BlockSpec(shape, idx, pipeline_mode=pl.Buffered(1))
    return pl.BlockSpec(shape, idx)


def usrm5_forward(x, high, gi, slabs, meta):
    N, C, H, W = x.shape
    _, _, Hh, Wh = high.shape
    _, _, Hg, Wg = gi.shape
    # transposed, lane-dense layout: (N, W, C*H)
    xt = jnp.transpose(x, (0, 3, 1, 2)).reshape(N, W, C * H)
    ht = jnp.transpose(high, (0, 3, 1, 2)).reshape(N, Wh, C * Hh)
    gt = jnp.transpose(gi, (0, 3, 1, 2)).reshape(N, Wg, C * Hg)
    kernel = functools.partial(_usrm5_kernel, meta=meta, n_slabs=len(slabs))

    def call(single_buffer):
        return pl.pallas_call(
            kernel,
            out_shape=jax.ShapeDtypeStruct((N, W, C * H), jnp.float32),
            grid=(N,),
            in_specs=[pl.BlockSpec((1, W, C * H), lambda n: (n, 0, 0)),
                      pl.BlockSpec((1, Wh, C * Hh), lambda n: (n, 0, 0)),
                      pl.BlockSpec((1, Wg, C * Hg), lambda n: (n, 0, 0))]
                     + [_param_spec(s.shape, single_buffer) for s in slabs],
            out_specs=pl.BlockSpec((1, W, C * H), lambda n: (n, 0, 0)),
            compiler_params=pltpu.CompilerParams(
                dimension_semantics=("parallel",),       # v7x: one image per TensorCore
                vmem_limit_bytes=32 * 1024 * 1024),
        )(xt, ht, gt, *slabs)

    try:
        out_t = call(True)          # single-buffered resident parameter slabs
    except Exception:               # fallback if pl.Buffered(1) unsupported on this build
        out_t = call(False)
    return out_t.reshape(N, W, C, H).transpose(0, 2, 3, 1)


# ------------------------------- JAX reference ------------------------------ #

def _basic_conv_ref(x, w, gamma, beta, mean, var, stride, pad, dil):
    y = jax.lax.conv_general_dilated(
        x, jnp.asarray(w), window_strides=(stride, stride),
        padding=[(pad, pad), (pad, pad)], rhs_dilation=(dil, dil),
        dimension_numbers=("NCHW", "OIHW", "NCHW"),
        precision=jax.lax.Precision.HIGHEST)
    scale = gamma / jnp.sqrt(var + BN_EPS)
    return y * scale[None, :, None, None] + (beta - mean * scale)[None, :, None, None]


def _bilinear_ref(x, out_hw):
    N, C, H, W = x.shape
    Ho, Wo = out_hw
    ys = jnp.linspace(0.0, H - 1.0, Ho) if Ho > 1 else jnp.zeros((Ho,), F32)
    xs = jnp.linspace(0.0, W - 1.0, Wo) if Wo > 1 else jnp.zeros((Wo,), F32)
    y0 = jnp.floor(ys).astype(jnp.int32); y1 = jnp.minimum(y0 + 1, H - 1)
    x0 = jnp.floor(xs).astype(jnp.int32); x1 = jnp.minimum(x0 + 1, W - 1)
    fy = (ys - y0)[None, None, :, None]
    fx = (xs - x0)[None, None, None, :]
    g = lambda yi, xi: x[:, :, yi, :][:, :, :, xi]
    return (g(y0, x0) * (1 - fy) * (1 - fx) + g(y0, x1) * (1 - fy) * fx
            + g(y1, x0) * fy * (1 - fx) + g(y1, x1) * fy * fx)


def usrm5_ref(x, high, gi, raw):
    def bc(t, name):
        s, p, d = _CONV_CFG[name]
        return _basic_conv_ref(t, *raw[name], s, p, d)

    y1 = bc(x, "conv1")
    y1 = y1 + _bilinear_ref(high, y1.shape[2:])
    y2 = bc(y1, "conv2")
    y2 = y2 + _bilinear_ref(gi, y2.shape[2:])
    y3 = bc(y2, "conv3")
    y4 = bc(y3, "conv4")
    y5 = bc(y4, "conv5")
    y4 = bc(y4 + _bilinear_ref(y5, y4.shape[2:]), "rev1")
    y3 = bc(y3 + _bilinear_ref(y4, y3.shape[2:]), "rev2")
    y2 = bc(y2 + _bilinear_ref(y3, y2.shape[2:]), "rev3")
    y1 = bc(y1 + _bilinear_ref(y2, y1.shape[2:]), "rev4")
    y = _bilinear_ref(y1, x.shape[2:])
    return bc(jax.nn.relu(x + y), "sum")


# ----------------------------------- main ----------------------------------- #

if __name__ == "__main__":
    key = jax.random.PRNGKey(0)

    N, C, H, W = 2, 8, 32, 32      # x; y1=16x16, y2=8x8, y3=4x4, y4=y5=2x2
    Hh, Wh = 8, 8                  # `high`, bilinearly upsampled onto y1 (16x16)
    Hg, Wg = 4, 4                  # `gi`,   bilinearly upsampled onto y2 (8x8)

    keys = jax.random.split(key, 3 + 5 * len(_CONV_CFG))
    x = jax.random.normal(keys[0], (N, C, H, W), F32)
    high = jax.random.normal(keys[1], (N, C, Hh, Wh), F32)
    gi = jax.random.normal(keys[2], (N, C, Hg, Wg), F32)

    raw = {}
    ki = 3
    for name in _CONV_CFG:
        kw, kg, kb, km, kv = keys[ki:ki + 5]; ki += 5
        w = np.asarray(jax.random.normal(kw, (C, C, 3, 3), F32)) / np.sqrt(C * 9.0)
        gamma = 1.0 + 0.1 * np.asarray(jax.random.normal(kg, (C,), F32))
        beta = 0.1 * np.asarray(jax.random.normal(kb, (C,), F32))
        mean = 0.1 * np.asarray(jax.random.normal(km, (C,), F32))
        var = np.abs(np.asarray(jax.random.normal(kv, (C,), F32))) + 0.5
        raw[name] = tuple(a.astype(np.float32) for a in (w, gamma, beta, mean, var))

    slabs, meta = build_usrm5_params(raw, C, (H, W), (Hh, Wh), (Hg, Wg))

    out = jax.block_until_ready(usrm5_forward(x, high, gi, slabs, meta))
    ref = jax.block_until_ready(usrm5_ref(x, high, gi, raw))

    assert out.shape == (N, C, H, W), out.shape
    max_err = float(jnp.max(jnp.abs(out - ref)))
    assert max_err < 2e-3, f"mismatch vs reference: {max_err}"

    print("KERNEL_OK")
</pallas_src>

<mosaic_0001>
module attributes {stable_mosaic.version = 11 : i64} {
  func.func @_usrm5_kernel(%arg0: i32, %arg1: memref<1x32x256xf32, #tpu.memory_space<vmem>>, %arg2: memref<1x8x64xf32, #tpu.memory_space<vmem>>, %arg3: memref<1x4x32xf32, #tpu.memory_space<vmem>>, %arg4: memref<2888x128xf32, #tpu.memory_space<vmem>>, %arg5: memref<904x256xf32, #tpu.memory_space<vmem>>, %arg6: memref<1x32x256xf32, #tpu.memory_space<vmem>>) attributes {dimension_semantics = [#tpu.dimension_semantics<parallel>], iteration_bounds = array<i64: 2>, scalar_prefetch = 0 : i64, scratch_operands = 0 : i64, tpu.core_type = #tpu.core_type<tc>, window_params = [{transform_indices = @transform_0, window_bounds = array<i64: 1, 32, 256>}, {transform_indices = @transform_1, window_bounds = array<i64: 1, 8, 64>}, {transform_indices = @transform_2, window_bounds = array<i64: 1, 4, 32>}, {pipeline_mode = #tpu.pipeline_mode<synchronous>, transform_indices = @transform_3, window_bounds = array<i64: 2888, 128>}, {pipeline_mode = #tpu.pipeline_mode<synchronous>, transform_indices = @transform_4, window_bounds = array<i64: 904, 256>}, {transform_indices = @transform_5, window_bounds = array<i64: 1, 32, 256>}]} {
    %c0 = arith.constant 0 : index
    %c0_0 = arith.constant 0 : index
    %c0_1 = arith.constant 0 : index
    %0 = vector.load %arg1[%c0, %c0_0, %c0_1] : memref<1x32x256xf32, #tpu.memory_space<vmem>>, vector<1x32x256xf32>
    %1 = vector.shape_cast %0 : vector<1x32x256xf32> to vector<32x256xf32>
    %c768 = arith.constant 768 : index
    %c0_2 = arith.constant 0 : index
    %2 = vector.load %arg4[%c768, %c0_2] : memref<2888x128xf32, #tpu.memory_space<vmem>>, vector<16x32xf32>
    %cst = arith.constant dense<0.000000e+00> : vector<16x256xf32>
    %3 = tpu.matmul %2, %1, %cst {dimension_numbers = #tpu.dot_dimension_numbers<[1], [0], [0], [1], [0, 0, 1, 1], [], []>} : vector<16x32xf32>, vector<32x256xf32>, vector<16x256xf32> -> vector<16x256xf32>
    %c784 = arith.constant 784 : index
    %c0_3 = arith.constant 0 : index
    %4 = vector.load %arg4[%c784, %c0_3] : memref<2888x128xf32, #tpu.memory_space<vmem>>, vector<16x32xf32>
    %cst_4 = arith.constant dense<0.000000e+00> : vector<16x256xf32>
    %5 = tpu.matmul %4, %1, %cst_4 {dimension_numbers = #tpu.dot_dimension_numbers<[1], [0], [0], [1], [0, 0, 1, 1], [], []>} : vector<16x32xf32>, vector<32x256xf32>, vector<16x256xf32> -> vector<16x256xf32>
    %c800 = arith.constant 800 : index
    %c0_5 = arith.constant 0 : index
    %6 = vector.load %arg4[%c800, %c0_5] : memref<2888x128xf32, #tpu.memory_space<vmem>>, vector<16x32xf32>
    %cst_6 = arith.constant dense<0.000000e+00> : vector<16x256xf32>
    %7 = tpu.matmul %6, %1, %cst_6 {dimension_numbers = #tpu.dot_dimension_numbers<[1], [0], [0], [1], [0, 0, 1, 1], [], []>} : vector<16x32xf32>, vector<32x256xf32>, vector<16x256xf32> -> vector<16x256xf32>
    %c816 = arith.constant 816 : index
    %c0_7 = arith.constant 0 : index
    %8 = vector.load %arg4[%c816, %c0_7] : memref<2888x128xf32, #tpu.memory_space<vmem>>, vector<1x128xf32>
    %9 = tpu.concatenate %3, %5, %7 in 1 : vector<16x256xf32>, vector<16x256xf32>, vector<16x256xf32> -> vector<16x768xf32>
    %c0_8 = arith.constant 0 : index
    %c0_9 = arith.constant 0 : index
    %10 = vector.load %arg4[%c0_8, %c0_9] : memref<2888x128xf32, #tpu.memory_space<vmem>>, vector<768x128xf32>
    %cst_10 = arith.constant dense<0.000000e+00> : vector<16x128xf32>
    %11 = tpu.matmul %9, %10, %cst_10 {dimension_numbers = #tpu.dot_dimension_numbers<[1], [0], [0], [1], [0, 0, 1, 1], [], []>} : vector<16x768xf32>, vector<768x128xf32>, vector<16x128xf32> -> vector<16x128xf32>
    %12 = vector.broadcast %8 : vector<1x128xf32> to vector<16x128xf32>
    %13 = arith.addf %11, %12 : vector<16x128xf32>
    %c0_11 = arith.constant 0 : index
    %c0_12 = arith.constant 0 : index
    %c0_13 = arith.constant 0 : index
    %14 = vector.load %arg2[%c0_11, %c0_12, %c0_13] : memref<1x8x64xf32, #tpu.memory_space<vmem>>, vector<1x8x64xf32>
    %15 = vector.shape_cast %14 : vector<1x8x64xf32> to vector<8x64xf32>
    %c2656 = arith.constant 2656 : index
    %c0_14 = arith.constant 0 : index
    %16 = vector.load %arg4[%c2656, %c0_14] : memref<2888x128xf32, #tpu.memory_space<vmem>>, vector<16x8xf32>
    %cst_15 = arith.constant dense<0.000000e+00> : vector<16x64xf32>
    %17 = tpu.matmul %16, %15, %cst_15 {dimension_numbers = #tpu.dot_dimension_numbers<[1], [0], [0], [1], [0, 0, 1, 1], [], []>} : vector<16x8xf32>, vector<8x64xf32>, vector<16x64xf32> -> vector<16x64xf32>
    %c2592 = arith.constant 2592 : index
    %c0_16 = arith.constant 0 : index
    %18 = vector.load %arg4[%c2592, %c0_16] : memref<2888x128xf32, #tpu.memory_space<vmem>>, vector<64x128xf32>
    %cst_17 = arith.constant dense<0.000000e+00> : vector<16x128xf32>
    %19 = tpu.matmul %17, %18, %cst_17 {dimension_numbers = #tpu.dot_dimension_numbers<[1], [0], [0], [1], [0, 0, 1, 1], [], []>} : vector<16x64xf32>, vector<64x128xf32>, vector<16x128xf32> -> vector<16x128xf32>
    %20 = arith.addf %13, %19 : vector<16x128xf32>
    %c1208 = arith.constant 1208 : index
    %c0_18 = arith.constant 0 : index
    %21 = vector.load %arg4[%c1208, %c0_18] : memref<2888x128xf32, #tpu.memory_space<vmem>>, vector<8x16xf32>
    %cst_19 = arith.constant dense<0.000000e+00> : vector<8x128xf32>
    %22 = tpu.matmul %21, %20, %cst_19 {dimension_numbers = #tpu.dot_dimension_numbers<[1], [0], [0], [1], [0, 0, 1, 1], [], []>} : vector<8x16xf32>, vector<16x128xf32>, vector<8x128xf32> -> vector<8x128xf32>
    %c1216 = arith.constant 1216 : index
    %c0_20 = arith.constant 0 : index
    %23 = vector.load %arg4[%c1216, %c0_20] : memref<2888x128xf32, #tpu.memory_space<vmem>>, vector<8x16xf32>
    %cst_21 = arith.constant dense<0.000000e+00> : vector<8x128xf32>
    %24 = tpu.matmul %23, %20, %cst_21 {dimension_numbers = #tpu.dot_dimension_numbers<[1], [0], [0], [1], [0, 0, 1, 1], [], []>} : vector<8x16xf32>, vector<16x128xf32>, vector<8x128xf32> -> vector<8x128xf32>
    %c1224 = arith.constant 1224 : index
    %c0_22 = arith.constant 0 : index
    %25 = vector.load %arg4[%c1224, %c0_22] : memref<2888x128xf32, #tpu.memory_space<vmem>>, vector<8x16xf32>
    %cst_23 = arith.constant dense<0.000000e+00> : vector<8x128xf32>
    %26 = tpu.matmul %25, %20, %cst_23 {dimension_numbers = #tpu.dot_dimension_numbers<[1], [0], [0], [1], [0, 0, 1, 1], [], []>} : vector<8x16xf32>, vector<16x128xf32>, vector<8x128xf32> -> vector<8x128xf32>
    %c1232 = arith.constant 1232 : index
    %c0_24 = arith.constant 0 : index
    %27 = vector.load %arg4[%c1232, %c0_24] : memref<2888x128xf32, #tpu.memory_space<vmem>>, vector<1x64xf32>
    %28 = tpu.concatenate %22, %24, %26 in 1 : vector<8x128xf32>, vector<8x128xf32>, vector<8x128xf32> -> vector<8x384xf32>
    %c824 = arith.constant 824 : index
    %c0_25 = arith.constant 0 : index
    %29 = vector.load %arg4[%c824, %c0_25] : memref<2888x128xf32, #tpu.memory_space<vmem>>, vector<384x64xf32>
    %cst_26 = arith.constant dense<0.000000e+00> : vector<8x64xf32>
    %30 = tpu.matmul %28, %29, %cst_26 {dimension_numbers = #tpu.dot_dimension_numbers<[1], [0], [0], [1], [0, 0, 1, 1], [], []>} : vector<8x384xf32>, vector<384x64xf32>, vector<8x64xf32> -> vector<8x64xf32>
    %31 = vector.broadcast %27 : vector<1x64xf32> to vector<8x64xf32>
    %32 = arith.addf %30, %31 : vector<8x64xf32>
    %c0_27 = arith.constant 0 : index
    %c0_28 = arith.constant 0 : index
    %c0_29 = arith.constant 0 : index
    %33 = vector.load %arg3[%c0_27, %c0_28, %c0_29] : memref<1x4x32xf32, #tpu.memory_space<vmem>>, vector<1x4x32xf32>
    %34 = vector.shape_cast %33 : vector<1x4x32xf32> to vector<4x32xf32>
    %c2704 = arith.constant 2704 : index
    %c0_30 = arith.constant 0 : index
    %35 = vector.load %arg4[%c2704, %c0_30] : memref<2888x128xf32, #tpu.memory_space<vmem>>, vector<8x4xf32>
    %cst_31 = arith.constant dense<0.000000e+00> : vector<8x32xf32>
    %36 = tpu.matmul %35, %34, %cst_31 {dimension_numbers = #tpu.dot_dimension_numbers<[1], [0], [0], [1], [0, 0, 1, 1], [], []>} : vector<8x4xf32>, vector<4x32xf32>, vector<8x32xf32> -> vector<8x32xf32>
    %c2672 = arith.constant 2672 : index
    %c0_32 = arith.constant 0 : index
    %37 = vector.load %arg4[%c2672, %c0_32] : memref<2888x128xf32, #tpu.memory_space<vmem>>, vector<32x64xf32>
    %cst_33 = arith.constant dense<0.000000e+00> : vector<8x64xf32>
    %38 = tpu.matmul %36, %37, %cst_33 {dimension_numbers = #tpu.dot_dimension_numbers<[1], [0], [0], [1], [0, 0, 1, 1], [], []>} : vector<8x32xf32>, vector<32x64xf32>, vector<8x64xf32> -> vector<8x64xf32>
    %39 = arith.addf %32, %38 : vector<8x64xf32>
    %c1432 = arith.constant 1432 : index
    %c0_34 = arith.constant 0 : index
    %40 = vector.load %arg4[%c1432, %c0_34] : memref<2888x128xf32, #tpu.memory_space<vmem>>, vector<4x8xf32>
    %cst_35 = arith.constant dense<0.000000e+00> : vector<4x64xf32>
    %41 = tpu.matmul %40, %39, %cst_35 {dimension_numbers = #tpu.dot_dimension_numbers<[1], [0], [0], [1], [0, 0, 1, 1], [], []>} : vector<4x8xf32>, vector<8x64xf32>, vector<4x64xf32> -> vector<4x64xf32>
    %c1440 = arith.constant 1440 : index
    %c0_36 = arith.constant 0 : index
    %42 = vector.load %arg4[%c1440, %c0_36] : memref<2888x128xf32, #tpu.memory_space<vmem>>, vector<4x8xf32>
    %cst_37 = arith.constant dense<0.000000e+00> : vector<4x64xf32>
    %43 = tpu.matmul %42, %39, %cst_37 {dimension_numbers = #tpu.dot_dimension_numbers<[1], [0], [0], [1], [0, 0, 1, 1], [], []>} : vector<4x8xf32>, vector<8x64xf32>, vector<4x64xf32> -> vector<4x64xf32>
    %c1448 = arith.constant 1448 : index
    %c0_38 = arith.constant 0 : index
    %44 = vector.load %arg4[%c1448, %c0_38] : memref<2888x128xf32, #tpu.memory_space<vmem>>, vector<4x8xf32>
    %cst_39 = arith.constant dense<0.000000e+00> : vector<4x64xf32>
    %45 = tpu.matmul %44, %39, %cst_39 {dimension_numbers = #tpu.dot_dimension_numbers<[1], [0], [0], [1], [0, 0, 1, 1], [], []>} : vector<4x8xf32>, vector<8x64xf32>, vector<4x64xf32> -> vector<4x64xf32>
    %c1456 = arith.constant 1456 : index
    %c0_40 = arith.constant 0 : index
    %46 = vector.load %arg4[%c1456, %c0_40] : memref<2888x128xf32, #tpu.memory_space<vmem>>, vector<1x32xf32>
    %c1240 = arith.constant 1240 : index
    %c0_41 = arith.constant 0 : index
    %47 = vector.load %arg4[%c1240, %c0_41] : memref<2888x128xf32, #tpu.memory_space<vmem>>, vector<64x32xf32>
    %cst_42 = arith.constant dense<0.000000e+00> : vector<4x32xf32>
    %48 = tpu.matmul %41, %47, %cst_42 {dimension_numbers = #tpu.dot_dimension_numbers<[1], [0], [0], [1], [0, 0, 1, 1], [], []>} : vector<4x64xf32>, vector<64x32xf32>, vector<4x32xf32> -> vector<4x32xf32>
    %49 = vector.broadcast %46 : vector<1x32xf32> to vector<4x32xf32>
    %50 = arith.addf %49, %48 : vector<4x32xf32>
    %c1304 = arith.constant 1304 : index
    %c0_43 = arith.constant 0 : index
    %51 = vector.load %arg4[%c1304, %c0_43] : memref<2888x128xf32, #tpu.memory_space<vmem>>, vector<64x32xf32>
    %cst_44 = arith.constant dense<0.000000e+00> : vector<4x32xf32>
    %52 = tpu.matmul %43, %51, %cst_44 {dimension_numbers = #tpu.dot_dimension_numbers<[1], [0], [0], [1], [0, 0, 1, 1], [], []>} : vector<4x64xf32>, vector<64x32xf32>, vector<4x32xf32> -> vector<4x32xf32>
    %53 = arith.addf %50, %52 : vector<4x32xf32>
    %c1368 = arith.constant 1368 : index
    %c0_45 = arith.constant 0 : index
    %54 = vector.load %arg4[%c1368, %c0_45] : memref<2888x128xf32, #tpu.memory_space<vmem>>, vector<64x32xf32>
    %cst_46 = arith.constant dense<0.000000e+00> : vector<4x32xf32>
    %55 = tpu.matmul %45, %54, %cst_46 {dimension_numbers = #tpu.dot_dimension_numbers<[1], [0], [0], [1], [0, 0, 1, 1], [], []>} : vector<4x64xf32>, vector<64x32xf32>, vector<4x32xf32> -> vector<4x32xf32>
    %56 = arith.addf %53, %55 : vector<4x32xf32>
    %c1560 = arith.constant 1560 : index
    %c0_47 = arith.constant 0 : index
    %57 = vector.load %arg4[%c1560, %c0_47] : memref<2888x128xf32, #tpu.memory_space<vmem>>, vector<2x4xf32>
    %cst_48 = arith.constant dense<0.000000e+00> : vector<2x32xf32>
    %58 = tpu.matmul %57, %56, %cst_48 {dimension_numbers = #tpu.dot_dimension_numbers<[1], [0], [0], [1], [0, 0, 1, 1], [], []>} : vector<2x4xf32>, vector<4x32xf32>, vector<2x32xf32> -> vector<2x32xf32>
    %c1568 = arith.constant 1568 : index
    %c0_49 = arith.constant 0 : index
    %59 = vector.load %arg4[%c1568, %c0_49] : memref<2888x128xf32, #tpu.memory_space<vmem>>, vector<2x4xf32>
    %cst_50 = arith.constant dense<0.000000e+00> : vector<2x32xf32>
    %60 = tpu.matmul %59, %56, %cst_50 {dimension_numbers = #tpu.dot_dimension_numbers<[1], [0], [0], [1], [0, 0, 1, 1], [], []>} : vector<2x4xf32>, vector<4x32xf32>, vector<2x32xf32> -> vector<2x32xf32>
    %c1576 = arith.constant 1576 : index
    %c0_51 = arith.constant 0 : index
    %61 = vector.load %arg4[%c1576, %c0_51] : memref<2888x128xf32, #tpu.memory_space<vmem>>, vector<2x4xf32>
    %cst_52 = arith.constant dense<0.000000e+00> : vector<2x32xf32>
    %62 = tpu.matmul %61, %56, %cst_52 {dimension_numbers = #tpu.dot_dimension_numbers<[1], [0], [0], [1], [0, 0, 1, 1], [], []>} : vector<2x4xf32>, vector<4x32xf32>, vector<2x32xf32> -> vector<2x32xf32>
    %c1584 = arith.constant 1584 : index
    %c0_53 = arith.constant 0 : index
    %63 = vector.load %arg4[%c1584, %c0_53] : memref<2888x128xf32, #tpu.memory_space<vmem>>, vector<1x16xf32>
    %c1464 = arith.constant 1464 : index
    %c0_54 = arith.constant 0 : index
    %64 = vector.load %arg4[%c1464, %c0_54] : memref<2888x128xf32, #tpu.memory_space<vmem>>, vector<32x16xf32>
    %cst_55 = arith.constant dense<0.000000e+00> : vector<2x16xf32>
    %65 = tpu.matmul %58, %64, %cst_55 {dimension_numbers = #tpu.dot_dimension_numbers<[1], [0], [0], [1], [0, 0, 1, 1], [], []>} : vector<2x32xf32>, vector<32x16xf32>, vector<2x16xf32> -> vector<2x16xf32>
    %66 = vector.broadcast %63 : vector<1x16xf32> to vector<2x16xf32>
    %67 = arith.addf %66, %65 : vector<2x16xf32>
    %c1496 = arith.constant 1496 : index
    %c0_56 = arith.constant 0 : index
    %68 = vector.load %arg4[%c1496, %c0_56] : memref<2888x128xf32, #tpu.memory_space<vmem>>, vector<32x16xf32>
    %cst_57 = arith.constant dense<0.000000e+00> : vector<2x16xf32>
    %69 = tpu.matmul %60, %68, %cst_57 {dimension_numbers = #tpu.dot_dimension_numbers<[1], [0], [0], [1], [0, 0, 1, 1], [], []>} : vector<2x32xf32>, vector<32x16xf32>, vector<2x16xf32> -> vector<2x16xf32>
    %70 = arith.addf %67, %69 : vector<2x16xf32>
    %c1528 = arith.constant 1528 : index
    %c0_58 = arith.constant 0 : index
    %71 = vector.load %arg4[%c1528, %c0_58] : memref<2888x128xf32, #tpu.memory_space<vmem>>, vector<32x16xf32>
    %cst_59 = arith.constant dense<0.000000e+00> : vector<2x16xf32>
    %72 = tpu.matmul %62, %71, %cst_59 {dimension_numbers = #tpu.dot_dimension_numbers<[1], [0], [0], [1], [0, 0, 1, 1], [], []>} : vector<2x32xf32>, vector<32x16xf32>, vector<2x16xf32> -> vector<2x16xf32>
    %73 = arith.addf %70, %72 : vector<2x16xf32>
    %c1608 = arith.constant 1608 : index
    %c0_60 = arith.constant 0 : index
    %74 = vector.load %arg4[%c1608, %c0_60] : memref<2888x128xf32, #tpu.memory_space<vmem>>, vector<2x2xf32>
    %cst_61 = arith.constant dense<0.000000e+00> : vector<2x16xf32>
    %75 = tpu.matmul %74, %73, %cst_61 {dimension_numbers = #tpu.dot_dimension_numbers<[1], [0], [0], [1], [0, 0, 1, 1], [], []>} : vector<2x2xf32>, vector<2x16xf32>, vector<2x16xf32> -> vector<2x16xf32>
    %c1616 = arith.constant 1616 : index
    %c0_62 = arith.constant 0 : index
    %76 = vector.load %arg4[%c1616, %c0_62] : memref<2888x128xf32, #tpu.memory_space<vmem>>, vector<1x16xf32>
    %c1592 = arith.constant 1592 : index
    %c0_63 = arith.constant 0 : index
    %77 = vector.load %arg4[%c1592, %c0_63] : memref<2888x128xf32, #tpu.memory_space<vmem>>, vector<16x16xf32>
    %cst_64 = arith.constant dense<0.000000e+00> : vector<2x16xf32>
    %78 = tpu.matmul %75, %77, %cst_64 {dimension_numbers = #tpu.dot_dimension_numbers<[1], [0], [0], [1], [0, 0, 1, 1], [], []>} : vector<2x16xf32>, vector<16x16xf32>, vector<2x16xf32> -> vector<2x16xf32>
    %79 = vector.broadcast %76 : vector<1x16xf32> to vector<2x16xf32>
    %80 = arith.addf %79, %78 : vector<2x16xf32>
    %81 = arith.addf %73, %80 : vector<2x16xf32>
    %c1672 = arith.constant 1672 : index
    %c0_65 = arith.constant 0 : index
    %82 = vector.load %arg4[%c1672, %c0_65] : memref<2888x128xf32, #tpu.memory_space<vmem>>, vector<2x2xf32>
    %cst_66 = arith.constant dense<0.000000e+00> : vector<2x16xf32>
    %83 = tpu.matmul %82, %81, %cst_66 {dimension_numbers = #tpu.dot_dimension_numbers<[1], [0], [0], [1], [0, 0, 1, 1], [], []>} : vector<2x2xf32>, vector<2x16xf32>, vector<2x16xf32> -> vector<2x16xf32>
    %c1680 = arith.constant 1680 : index
    %c0_67 = arith.constant 0 : index
    %84 = vector.load %arg4[%c1680, %c0_67] : memref<2888x128xf32, #tpu.memory_space<vmem>>, vector<2x2xf32>
    %cst_68 = arith.constant dense<0.000000e+00> : vector<2x16xf32>
    %85 = tpu.matmul %84, %81, %cst_68 {dimension_numbers = #tpu.dot_dimension_numbers<[1], [0], [0], [1], [0, 0, 1, 1], [], []>} : vector<2x2xf32>, vector<2x16xf32>, vector<2x16xf32> -> vector<2x16xf32>
    %c1688 = arith.constant 1688 : index
    %c0_69 = arith.constant 0 : index
    %86 = vector.load %arg4[%c1688, %c0_69] : memref<2888x128xf32, #tpu.memory_space<vmem>>, vector<2x2xf32>
    %cst_70 = arith.constant dense<0.000000e+00> : vector<2x16xf32>
    %87 = tpu.matmul %86, %81, %cst_70 {dimension_numbers = #tpu.dot_dimension_numbers<[1], [0], [0], [1], [0, 0, 1, 1], [], []>} : vector<2x2xf32>, vector<2x16xf32>, vector<2x16xf32> -> vector<2x16xf32>
    %c1696 = arith.constant 1696 : index
    %c0_71 = arith.constant 0 : index
    %88 = vector.load %arg4[%c1696, %c0_71] : memref<2888x128xf32, #tpu.memory_space<vmem>>, vector<1x16xf32>
    %c1624 = arith.constant 1624 : index
    %c0_72 = arith.constant 0 : index
    %89 = vector.load %arg4[%c1624, %c0_72] : memref<2888x128xf32, #tpu.memory_space<vmem>>, vector<16x16xf32>
    %cst_73 = arith.constant dense<0.000000e+00> : vector<2x16xf32>
    %90 = tpu.matmul %83, %89, %cst_73 {dimension_numbers = #tpu.dot_dimension_numbers<[1], [0], [0], [1], [0, 0, 1, 1], [], []>} : vector<2x16xf32>, vector<16x16xf32>, vector<2x16xf32> -> vector<2x16xf32>
    %91 = vector.broadcast %88 : vector<1x16xf32> to vector<2x16xf32>
    %92 = arith.addf %91, %90 : vector<2x16xf32>
    %c1640 = arith.constant 1640 : index
    %c0_74 = arith.constant 0 : index
    %93 = vector.load %arg4[%c1640, %c0_74] : memref<2888x128xf32, #tpu.memory_space<vmem>>, vector<16x16xf32>
    %cst_75 = arith.constant dense<0.000000e+00> : vector<2x16xf32>
    %94 = tpu.matmul %85, %93, %cst_75 {dimension_numbers = #tpu.dot_dimension_numbers<[1], [0], [0], [1], [0, 0, 1, 1], [], []>} : vector<2x16xf32>, vector<16x16xf32>, vector<2x16xf32> -> vector<2x16xf32>
    %95 = arith.addf %92, %94 : vector<2x16xf32>
    %c1656 = arith.constant 1656 : index
    %c0_76 = arith.constant 0 : index
    %96 = vector.load %arg4[%c1656, %c0_76] : memref<2888x128xf32, #tpu.memory_space<vmem>>, vector<16x16xf32>
    %cst_77 = arith.constant dense<0.000000e+00> : vector<2x16xf32>
    %97 = tpu.matmul %87, %96, %cst_77 {dimension_numbers = #tpu.dot_dimension_numbers<[1], [0], [0], [1], [0, 0, 1, 1], [], []>} : vector<2x16xf32>, vector<16x16xf32>, vector<2x16xf32> -> vector<2x16xf32>
    %98 = arith.addf %95, %97 : vector<2x16xf32>
    %c2728 = arith.constant 2728 : index
    %c0_78 = arith.constant 0 : index
    %99 = vector.load %arg4[%c2728, %c0_78] : memref<2888x128xf32, #tpu.memory_space<vmem>>, vector<4x2xf32>
    %cst_79 = arith.constant dense<0.000000e+00> : vector<4x16xf32>
    %100 = tpu.matmul %99, %98, %cst_79 {dimension_numbers = #tpu.dot_dimension_numbers<[1], [0], [0], [1], [0, 0, 1, 1], [], []>} : vector<4x2xf32>, vector<2x16xf32>, vector<4x16xf32> -> vector<4x16xf32>
    %c2712 = arith.constant 2712 : index
    %c0_80 = arith.constant 0 : index
    %101 = vector.load %arg4[%c2712, %c0_80] : memref<2888x128xf32, #tpu.memory_space<vmem>>, vector<16x32xf32>
    %cst_81 = arith.constant dense<0.000000e+00> : vector<4x32xf32>
    %102 = tpu.matmul %100, %101, %cst_81 {dimension_numbers = #tpu.dot_dimension_numbers<[1], [0], [0], [1], [0, 0, 1, 1], [], []>} : vector<4x16xf32>, vector<16x32xf32>, vector<4x32xf32> -> vector<4x32xf32>
    %103 = arith.addf %56, %102 : vector<4x32xf32>
    %c1800 = arith.constant 1800 : index
    %c0_82 = arith.constant 0 : index
    %104 = vector.load %arg4[%c1800, %c0_82] : memref<2888x128xf32, #tpu.memory_space<vmem>>, vector<4x4xf32>
    %cst_83 = arith.constant dense<0.000000e+00> : vector<4x32xf32>
    %105 = tpu.matmul %104, %103, %cst_83 {dimension_numbers = #tpu.dot_dimension_numbers<[1], [0], [0], [1], [0, 0, 1, 1], [], []>} : vector<4x4xf32>, vector<4x32xf32>, vector<4x32xf32> -> vector<4x32xf32>
    %c1808 = arith.constant 1808 : index
    %c0_84 = arith.constant 0 : index
    %106 = vector.load %arg4[%c1808, %c0_84] : memref<2888x128xf32, #tpu.memory_space<vmem>>, vector<4x4xf32>
    %cst_85 = arith.constant dense<0.000000e+00> : vector<4x32xf32>
    %107 = tpu.matmul %106, %103, %cst_85 {dimension_numbers = #tpu.dot_dimension_numbers<[1], [0], [0], [1], [0, 0, 1, 1], [], []>} : vector<4x4xf32>, vector<4x32xf32>, vector<4x32xf32> -> vector<4x32xf32>
    %c1816 = arith.constant 1816 : index
    %c0_86 = arith.constant 0 : index
    %108 = vector.load %arg4[%c1816, %c0_86] : memref<2888x128xf32, #tpu.memory_space<vmem>>, vector<4x4xf32>
    %cst_87 = arith.constant dense<0.000000e+00> : vector<4x32xf32>
    %109 = tpu.matmul %108, %103, %cst_87 {dimension_numbers = #tpu.dot_dimension_numbers<[1], [0], [0], [1], [0, 0, 1, 1], [], []>} : vector<4x4xf32>, vector<4x32xf32>, vector<4x32xf32> -> vector<4x32xf32>
    %c1824 = arith.constant 1824 : index
    %c0_88 = arith.constant 0 : index
    %110 = vector.load %arg4[%c1824, %c0_88] : memref<2888x128xf32, #tpu.memory_space<vmem>>, vector<1x32xf32>
    %c1704 = arith.constant 1704 : index
    %c0_89 = arith.constant 0 : index
    %111 = vector.load %arg4[%c1704, %c0_89] : memref<2888x128xf32, #tpu.memory_space<vmem>>, vector<32x32xf32>
    %cst_90 = arith.constant dense<0.000000e+00> : vector<4x32xf32>
    %112 = tpu.matmul %105, %111, %cst_90 {dimension_numbers = #tpu.dot_dimension_numbers<[1], [0], [0], [1], [0, 0, 1, 1], [], []>} : vector<4x32xf32>, vector<32x32xf32>, vector<4x32xf32> -> vector<4x32xf32>
    %113 = vector.broadcast %110 : vector<1x32xf32> to vector<4x32xf32>
    %114 = arith.addf %113, %112 : vector<4x32xf32>
    %c1736 = arith.constant 1736 : index
    %c0_91 = arith.constant 0 : index
    %115 = vector.load %arg4[%c1736, %c0_91] : memref<2888x128xf32, #tpu.memory_space<vmem>>, vector<32x32xf32>
    %cst_92 = arith.constant dense<0.000000e+00> : vector<4x32xf32>
    %116 = tpu.matmul %107, %115, %cst_92 {dimension_numbers = #tpu.dot_dimension_numbers<[1], [0], [0], [1], [0, 0, 1, 1], [], []>} : vector<4x32xf32>, vector<32x32xf32>, vector<4x32xf32> -> vector<4x32xf32>
    %117 = arith.addf %114, %116 : vector<4x32xf32>
    %c1768 = arith.constant 1768 : index
    %c0_93 = arith.constant 0 : index
    %118 = vector.load %arg4[%c1768, %c0_93] : memref<2888x128xf32, #tpu.memory_space<vmem>>, vector<32x32xf32>
    %cst_94 = arith.constant dense<0.000000e+00> : vector<4x32xf32>
    %119 = tpu.matmul %109, %118, %cst_94 {dimension_numbers = #tpu.dot_dimension_numbers<[1], [0], [0], [1], [0, 0, 1, 1], [], []>} : vector<4x32xf32>, vector<32x32xf32>, vector<4x32xf32> -> vector<4x32xf32>
    %120 = arith.addf %117, %119 : vector<4x32xf32>
    %c2768 = arith.constant 2768 : index
    %c0_95 = arith.constant 0 : index
    %121 = vector.load %arg4[%c2768, %c0_95] : memref<2888x128xf32, #tpu.memory_space<vmem>>, vector<8x4xf32>
    %cst_96 = arith.constant dense<0.000000e+00> : vector<8x32xf32>
    %122 = tpu.matmul %121, %120, %cst_96 {dimension_numbers = #tpu.dot_dimension_numbers<[1], [0], [0], [1], [0, 0, 1, 1], [], []>} : vector<8x4xf32>, vector<4x32xf32>, vector<8x32xf32> -> vector<8x32xf32>
    %c2736 = arith.constant 2736 : index
    %c0_97 = arith.constant 0 : index
    %123 = vector.load %arg4[%c2736, %c0_97] : memref<2888x128xf32, #tpu.memory_space<vmem>>, vector<32x64xf32>
    %cst_98 = arith.constant dense<0.000000e+00> : vector<8x64xf32>
    %124 = tpu.matmul %122, %123, %cst_98 {dimension_numbers = #tpu.dot_dimension_numbers<[1], [0], [0], [1], [0, 0, 1, 1], [], []>} : vector<8x32xf32>, vector<32x64xf32>, vector<8x64xf32> -> vector<8x64xf32>
    %125 = arith.addf %39, %124 : vector<8x64xf32>
    %c2024 = arith.constant 2024 : index
    %c0_99 = arith.constant 0 : index
    %126 = vector.load %arg4[%c2024, %c0_99] : memref<2888x128xf32, #tpu.memory_space<vmem>>, vector<8x8xf32>
    %cst_100 = arith.constant dense<0.000000e+00> : vector<8x64xf32>
    %127 = tpu.matmul %126, %125, %cst_100 {dimension_numbers = #tpu.dot_dimension_numbers<[1], [0], [0], [1], [0, 0, 1, 1], [], []>} : vector<8x8xf32>, vector<8x64xf32>, vector<8x64xf32> -> vector<8x64xf32>
    %c2032 = arith.constant 2032 : index
    %c0_101 = arith.constant 0 : index
    %128 = vector.load %arg4[%c2032, %c0_101] : memref<2888x128xf32, #tpu.memory_space<vmem>>, vector<8x8xf32>
    %cst_102 = arith.constant dense<0.000000e+00> : vector<8x64xf32>
    %129 = tpu.matmul %128, %125, %cst_102 {dimension_numbers = #tpu.dot_dimension_numbers<[1], [0], [0], [1], [0, 0, 1, 1], [], []>} : vector<8x8xf32>, vector<8x64xf32>, vector<8x64xf32> -> vector<8x64xf32>
    %c2040 = arith.constant 2040 : index
    %c0_103 = arith.constant 0 : index
    %130 = vector.load %arg4[%c2040, %c0_103] : memref<2888x128xf32, #tpu.memory_space<vmem>>, vector<8x8xf32>
    %cst_104 = arith.constant dense<0.000000e+00> : vector<8x64xf32>
    %131 = tpu.matmul %130, %125, %cst_104 {dimension_numbers = #tpu.dot_dimension_numbers<[1], [0], [0], [1], [0, 0, 1, 1], [], []>} : vector<8x8xf32>, vector<8x64xf32>, vector<8x64xf32> -> vector<8x64xf32>
    %c2048 = arith.constant 2048 : index
    %c0_105 = arith.constant 0 : index
    %132 = vector.load %arg4[%c2048, %c0_105] : memref<2888x128xf32, #tpu.memory_space<vmem>>, vector<1x64xf32>
    %c1832 = arith.constant 1832 : index
    %c0_106 = arith.constant 0 : index
    %133 = vector.load %arg4[%c1832, %c0_106] : memref<2888x128xf32, #tpu.memory_space<vmem>>, vector<64x64xf32>
    %cst_107 = arith.constant dense<0.000000e+00> : vector<8x64xf32>
    %134 = tpu.matmul %127, %133, %cst_107 {dimension_numbers = #tpu.dot_dimension_numbers<[1], [0], [0], [1], [0, 0, 1, 1], [], []>} : vector<8x64xf32>, vector<64x64xf32>, vector<8x64xf32> -> vector<8x64xf32>
    %135 = vector.broadcast %132 : vector<1x64xf32> to vector<8x64xf32>
    %136 = arith.addf %135, %134 : vector<8x64xf32>
    %c1896 = arith.constant 1896 : index
    %c0_108 = arith.constant 0 : index
    %137 = vector.load %arg4[%c1896, %c0_108] : memref<2888x128xf32, #tpu.memory_space<vmem>>, vector<64x64xf32>
    %cst_109 = arith.constant dense<0.000000e+00> : vector<8x64xf32>
    %138 = tpu.matmul %129, %137, %cst_109 {dimension_numbers = #tpu.dot_dimension_numbers<[1], [0], [0], [1], [0, 0, 1, 1], [], []>} : vector<8x64xf32>, vector<64x64xf32>, vector<8x64xf32> -> vector<8x64xf32>
    %139 = arith.addf %136, %138 : vector<8x64xf32>
    %c1960 = arith.constant 1960 : index
    %c0_110 = arith.constant 0 : index
    %140 = vector.load %arg4[%c1960, %c0_110] : memref<2888x128xf32, #tpu.memory_space<vmem>>, vector<64x64xf32>
    %cst_111 = arith.constant dense<0.000000e+00> : vector<8x64xf32>
    %141 = tpu.matmul %131, %140, %cst_111 {dimension_numbers = #tpu.dot_dimension_numbers<[1], [0], [0], [1], [0, 0, 1, 1], [], []>} : vector<8x64xf32>, vector<64x64xf32>, vector<8x64xf32> -> vector<8x64xf32>
    %142 = arith.addf %139, %141 : vector<8x64xf32>
    %c2840 = arith.constant 2840 : index
    %c0_112 = arith.constant 0 : index
    %143 = vector.load %arg4[%c2840, %c0_112] : memref<2888x128xf32, #tpu.memory_space<vmem>>, vector<16x8xf32>
    %cst_113 = arith.constant dense<0.000000e+00> : vector<16x64xf32>
    %144 = tpu.matmul %143, %142, %cst_113 {dimension_numbers = #tpu.dot_dimension_numbers<[1], [0], [0], [1], [0, 0, 1, 1], [], []>} : vector<16x8xf32>, vector<8x64xf32>, vector<16x64xf32> -> vector<16x64xf32>
    %c2776 = arith.constant 2776 : index
    %c0_114 = arith.constant 0 : index
    %145 = vector.load %arg4[%c2776, %c0_114] : memref<2888x128xf32, #tpu.memory_space<vmem>>, vector<64x128xf32>
    %cst_115 = arith.constant dense<0.000000e+00> : vector<16x128xf32>
    %146 = tpu.matmul %144, %145, %cst_115 {dimension_numbers = #tpu.dot_dimension_numbers<[1], [0], [0], [1], [0, 0, 1, 1], [], []>} : vector<16x64xf32>, vector<64x128xf32>, vector<16x128xf32> -> vector<16x128xf32>
    %147 = arith.addf %20, %146 : vector<16x128xf32>
    %c2440 = arith.constant 2440 : index
    %c0_116 = arith.constant 0 : index
    %148 = vector.load %arg4[%c2440, %c0_116] : memref<2888x128xf32, #tpu.memory_space<vmem>>, vector<16x16xf32>
    %cst_117 = arith.constant dense<0.000000e+00> : vector<16x128xf32>
    %149 = tpu.matmul %148, %147, %cst_117 {dimension_numbers = #tpu.dot_dimension_numbers<[1], [0], [0], [1], [0, 0, 1, 1], [], []>} : vector<16x16xf32>, vector<16x128xf32>, vector<16x128xf32> -> vector<16x128xf32>
    %c2456 = arith.constant 2456 : index
    %c0_118 = arith.constant 0 : index
    %150 = vector.load %arg4[%c2456, %c0_118] : memref<2888x128xf32, #tpu.memory_space<vmem>>, vector<16x16xf32>
    %cst_119 = arith.constant dense<0.000000e+00> : vector<16x128xf32>
    %151 = tpu.matmul %150, %147, %cst_119 {dimension_numbers = #tpu.dot_dimension_numbers<[1], [0], [0], [1], [0, 0, 1, 1], [], []>} : vector<16x16xf32>, vector<16x128xf32>, vector<16x128xf32> -> vector<16x128xf32>
    %c2472 = arith.constant 2472 : index
    %c0_120 = arith.constant 0 : index
    %152 = vector.load %arg4[%c2472, %c0_120] : memref<2888x128xf32, #tpu.memory_space<vmem>>, vector<16x16xf32>
    %cst_121 = arith.constant dense<0.000000e+00> : vector<16x128xf32>
    %153 = tpu.matmul %152, %147, %cst_121 {dimension_numbers = #tpu.dot_dimension_numbers<[1], [0], [0], [1], [0, 0, 1, 1], [], []>} : vector<16x16xf32>, vector<16x128xf32>, vector<16x128xf32> -> vector<16x128xf32>
    %c2488 = arith.constant 2488 : index
    %c0_122 = arith.constant 0 : index
    %154 = vector.load %arg4[%c2488, %c0_122] : memref<2888x128xf32, #tpu.memory_space<vmem>>, vector<1x128xf32>
    %155 = tpu.concatenate %149, %151, %153 in 1 : vector<16x128xf32>, vector<16x128xf32>, vector<16x128xf32> -> vector<16x384xf32>
    %c2056 = arith.constant 2056 : index
    %c0_123 = arith.constant 0 : index
    %156 = vector.load %arg4[%c2056, %c0_123] : memref<2888x128xf32, #tpu.memory_space<vmem>>, vector<384x128xf32>
    %cst_124 = arith.constant dense<0.000000e+00> : vector<16x128xf32>
    %157 = tpu.matmul %155, %156, %cst_124 {dimension_numbers = #tpu.dot_dimension_numbers<[1], [0], [0], [1], [0, 0, 1, 1], [], []>} : vector<16x384xf32>, vector<384x128xf32>, vector<16x128xf32> -> vector<16x128xf32>
    %158 = vector.broadcast %154 : vector<1x128xf32> to vector<16x128xf32>
    %159 = arith.addf %157, %158 : vector<16x128xf32>
    %c2856 = arith.constant 2856 : index
    %c0_125 = arith.constant 0 : index
    %160 = vector.load %arg4[%c2856, %c0_125] : memref<2888x128xf32, #tpu.memory_space<vmem>>, vector<32x16xf32>
    %cst_126 = arith.constant dense<0.000000e+00> : vector<32x128xf32>
    %161 = tpu.matmul %160, %159, %cst_126 {dimension_numbers = #tpu.dot_dimension_numbers<[1], [0], [0], [1], [0, 0, 1, 1], [], []>} : vector<32x16xf32>, vector<16x128xf32>, vector<32x128xf32> -> vector<32x128xf32>
    %c776 = arith.constant 776 : index
    %c0_127 = arith.constant 0 : index
    %162 = vector.load %arg5[%c776, %c0_127] : memref<904x256xf32, #tpu.memory_space<vmem>>, vector<128x256xf32>
    %cst_128 = arith.constant dense<0.000000e+00> : vector<32x256xf32>
    %163 = tpu.matmul %161, %162, %cst_128 {dimension_numbers = #tpu.dot_dimension_numbers<[1], [0], [0], [1], [0, 0, 1, 1], [], []>} : vector<32x128xf32>, vector<128x256xf32>, vector<32x256xf32> -> vector<32x256xf32>
    %164 = arith.addf %1, %163 : vector<32x256xf32>
    %cst_129 = arith.constant 0.000000e+00 : f32
    %165 = vector.broadcast %cst_129 : f32 to vector<32x256xf32>
    %166 = arith.maximumf %164, %165 : vector<32x256xf32>
    %c2496 = arith.constant 2496 : index
    %c0_130 = arith.constant 0 : index
    %167 = vector.load %arg4[%c2496, %c0_130] : memref<2888x128xf32, #tpu.memory_space<vmem>>, vector<32x32xf32>
    %cst_131 = arith.constant dense<0.000000e+00> : vector<32x256xf32>
    %168 = tpu.matmul %167, %166, %cst_131 {dimension_numbers = #tpu.dot_dimension_numbers<[1], [0], [0], [1], [0, 0, 1, 1], [], []>} : vector<32x32xf32>, vector<32x256xf32>, vector<32x256xf32> -> vector<32x256xf32>
    %c2528 = arith.constant 2528 : index
    %c0_132 = arith.constant 0 : index
    %169 = vector.load %arg4[%c2528, %c0_132] : memref<2888x128xf32, #tpu.memory_space<vmem>>, vector<32x32xf32>
    %cst_133 = arith.constant dense<0.000000e+00> : vector<32x256xf32>
    %170 = tpu.matmul %169, %166, %cst_133 {dimension_numbers = #tpu.dot_dimension_numbers<[1], [0], [0], [1], [0, 0, 1, 1], [], []>} : vector<32x32xf32>, vector<32x256xf32>, vector<32x256xf32> -> vector<32x256xf32>
    %c2560 = arith.constant 2560 : index
    %c0_134 = arith.constant 0 : index
    %171 = vector.load %arg4[%c2560, %c0_134] : memref<2888x128xf32, #tpu.memory_space<vmem>>, vector<32x32xf32>
    %cst_135 = arith.constant dense<0.000000e+00> : vector<32x256xf32>
    %172 = tpu.matmul %171, %166, %cst_135 {dimension_numbers = #tpu.dot_dimension_numbers<[1], [0], [0], [1], [0, 0, 1, 1], [], []>} : vector<32x32xf32>, vector<32x256xf32>, vector<32x256xf32> -> vector<32x256xf32>
    %c768_136 = arith.constant 768 : index
    %c0_137 = arith.constant 0 : index
    %173 = vector.load %arg5[%c768_136, %c0_137] : memref<904x256xf32, #tpu.memory_space<vmem>>, vector<1x256xf32>
    %174 = tpu.concatenate %168, %170, %172 in 1 : vector<32x256xf32>, vector<32x256xf32>, vector<32x256xf32> -> vector<32x768xf32>
    %c0_138 = arith.constant 0 : index
    %c0_139 = arith.constant 0 : index
    %175 = vector.load %arg5[%c0_138, %c0_139] : memref<904x256xf32, #tpu.memory_space<vmem>>, vector<768x256xf32>
    %cst_140 = arith.constant dense<0.000000e+00> : vector<32x256xf32>
    %176 = tpu.matmul %174, %175, %cst_140 {dimension_numbers = #tpu.dot_dimension_numbers<[1], [0], [0], [1], [0, 0, 1, 1], [], []>} : vector<32x768xf32>, vector<768x256xf32>, vector<32x256xf32> -> vector<32x256xf32>
    %177 = vector.broadcast %173 : vector<1x256xf32> to vector<32x256xf32>
    %178 = arith.addf %176, %177 : vector<32x256xf32>
    %c0_141 = arith.constant 0 : index
    %c0_142 = arith.constant 0 : index
    %c0_143 = arith.constant 0 : index
    %179 = vector.load %arg6[%c0_141, %c0_142, %c0_143] : memref<1x32x256xf32, #tpu.memory_space<vmem>>, vector<1x32x256xf32>
    %180 = vector.shape_cast %179 : vector<1x32x256xf32> to vector<32x256xf32>
    %181 = vector.shape_cast %178 : vector<32x256xf32> to vector<1x32x256xf32>
    tpu.vector_store %arg6[%c0_141, %c0_142, %c0_143], %181 {strides = array<i32>} : memref<1x32x256xf32, #tpu.memory_space<vmem>>, vector<1x32x256xf32>,
    return
  }
  func.func @transform_0(%arg0: i32) -> (i32, i32, i32) {
    %c0_i32 = arith.constant 0 : i32
    %c0_i32_0 = arith.constant 0 : i32
    %c0_i32_1 = arith.constant 0 : i32
    return %arg0, %c0_i32, %c0_i32_0 : i32, i32, i32
  }
  func.func @transform_1(%arg0: i32) -> (i32, i32, i32) {
    %c0_i32 = arith.constant 0 : i32
    %c0_i32_0 = arith.constant 0 : i32
    %c0_i32_1 = arith.constant 0 : i32
    return %arg0, %c0_i32, %c0_i32_0 : i32, i32, i32
  }
  func.func @transform_2(%arg0: i32) -> (i32, i32, i32) {
    %c0_i32 = arith.constant 0 : i32
    %c0_i32_0 = arith.constant 0 : i32
    %c0_i32_1 = arith.constant 0 : i32
    return %arg0, %c0_i32, %c0_i32_0 : i32, i32, i32
  }
  func.func @transform_3(%arg0: i32) -> (i32, i32) {
    %c0_i32 = arith.constant 0 : i32
    %c0_i32_0 = arith.constant 0 : i32
    %c0_i32_1 = arith.constant 0 : i32
    return %c0_i32, %c0_i32_0 : i32, i32
  }
  func.func @transform_4(%arg0: i32) -> (i32, i32) {
    %c0_i32 = arith.constant 0 : i32
    %c0_i32_0 = arith.constant 0 : i32
    %c0_i32_1 = arith.constant 0 : i32
    return %c0_i32, %c0_i32_0 : i32, i32
  }
  func.func @transform_5(%arg0: i32) -> (i32, i32, i32) {
    %c0_i32 = arith.constant 0 : i32
    %c0_i32_0 = arith.constant 0 : i32
    %c0_i32_1 = arith.constant 0 : i32
    return %arg0, %c0_i32, %c0_i32_0 : i32, i32, i32
  }
}

module attributes {stable_mosaic.version = 11 : i64} {
  func.func @_usrm5_kernel(%arg0: i32, %arg1: memref<1x32x256xf32, #tpu.memory_space<vmem>>, %arg2: memref<1x8x64xf32, #tpu.memory_space<vmem>>, %arg3: memref<1x4x32xf32, #tpu.memory_space<vmem>>, %arg4: memref<2888x128xf32, #tpu.memory_space<vmem>>, %arg5: memref<904x256xf32, #tpu.memory_space<vmem>>, %arg6: memref<1x32x256xf32, #tpu.memory_space<vmem>>) attributes {dimension_semantics = [#tpu.dimension_semantics<parallel>], iteration_bounds = array<i64: 2>, scalar_prefetch = 0 : i64, scratch_operands = 0 : i64, tpu.core_type = #tpu.core_type<tc>, window_params = [{transform_indices = @transform_0, window_bounds = array<i64: 1, 32, 256>}, {transform_indices = @transform_1, window_bounds = array<i64: 1, 8, 64>}, {transform_indices = @transform_2, window_bounds = array<i64: 1, 4, 32>}, {pipeline_mode = #tpu.pipeline_mode<synchronous>, transform_indices = @transform_3, window_bounds = array<i64: 2888, 128>}, {pipeline_mode = #tpu.pipeline_mode<synchronous>, transform_indices = @transform_4, window_bounds = array<i64: 904, 256>}, {transform_indices = @transform_5, window_bounds = array<i64: 1, 32, 256>}]} {
    %c0 = arith.constant 0 : index
    %c0_0 = arith.constant 0 : index
    %c0_1 = arith.constant 0 : index
    %0 = vector.load %arg1[%c0, %c0_0, %c0_1] : memref<1x32x256xf32, #tpu.memory_space<vmem>>, vector<1x32x256xf32>
    %1 = vector.shape_cast %0 : vector<1x32x256xf32> to vector<32x256xf32>
    %c768 = arith.constant 768 : index
    %c0_2 = arith.constant 0 : index
    %2 = vector.load %arg4[%c768, %c0_2] : memref<2888x128xf32, #tpu.memory_space<vmem>>, vector<16x32xf32>
    %cst = arith.constant dense<0.000000e+00> : vector<16x256xf32>
    %3 = tpu.matmul %2, %1, %cst {dimension_numbers = #tpu.dot_dimension_numbers<[1], [0], [0], [1], [0, 0, 1, 1], [], []>} : vector<16x32xf32>, vector<32x256xf32>, vector<16x256xf32> -> vector<16x256xf32>
    %c784 = arith.constant 784 : index
    %c0_3 = arith.constant 0 : index
    %4 = vector.load %arg4[%c784, %c0_3] : memref<2888x128xf32, #tpu.memory_space<vmem>>, vector<16x32xf32>
    %cst_4 = arith.constant dense<0.000000e+00> : vector<16x256xf32>
    %5 = tpu.matmul %4, %1, %cst_4 {dimension_numbers = #tpu.dot_dimension_numbers<[1], [0], [0], [1], [0, 0, 1, 1], [], []>} : vector<16x32xf32>, vector<32x256xf32>, vector<16x256xf32> -> vector<16x256xf32>
    %c800 = arith.constant 800 : index
    %c0_5 = arith.constant 0 : index
    %6 = vector.load %arg4[%c800, %c0_5] : memref<2888x128xf32, #tpu.memory_space<vmem>>, vector<16x32xf32>
    %cst_6 = arith.constant dense<0.000000e+00> : vector<16x256xf32>
    %7 = tpu.matmul %6, %1, %cst_6 {dimension_numbers = #tpu.dot_dimension_numbers<[1], [0], [0], [1], [0, 0, 1, 1], [], []>} : vector<16x32xf32>, vector<32x256xf32>, vector<16x256xf32> -> vector<16x256xf32>
    %c816 = arith.constant 816 : index
    %c0_7 = arith.constant 0 : index
    %8 = vector.load %arg4[%c816, %c0_7] : memref<2888x128xf32, #tpu.memory_space<vmem>>, vector<1x128xf32>
    %9 = tpu.concatenate %3, %5, %7 in 1 : vector<16x256xf32>, vector<16x256xf32>, vector<16x256xf32> -> vector<16x768xf32>
    %c0_8 = arith.constant 0 : index
    %c0_9 = arith.constant 0 : index
    %10 = vector.load %arg4[%c0_8, %c0_9] : memref<2888x128xf32, #tpu.memory_space<vmem>>, vector<768x128xf32>
    %cst_10 = arith.constant dense<0.000000e+00> : vector<16x128xf32>
    %11 = tpu.matmul %9, %10, %cst_10 {dimension_numbers = #tpu.dot_dimension_numbers<[1], [0], [0], [1], [0, 0, 1, 1], [], []>} : vector<16x768xf32>, vector<768x128xf32>, vector<16x128xf32> -> vector<16x128xf32>
    %12 = vector.broadcast %8 : vector<1x128xf32> to vector<16x128xf32>
    %13 = arith.addf %11, %12 : vector<16x128xf32>
    %c0_11 = arith.constant 0 : index
    %c0_12 = arith.constant 0 : index
    %c0_13 = arith.constant 0 : index
    %14 = vector.load %arg2[%c0_11, %c0_12, %c0_13] : memref<1x8x64xf32, #tpu.memory_space<vmem>>, vector<1x8x64xf32>
    %15 = vector.shape_cast %14 : vector<1x8x64xf32> to vector<8x64xf32>
    %c2656 = arith.constant 2656 : index
    %c0_14 = arith.constant 0 : index
    %16 = vector.load %arg4[%c2656, %c0_14] : memref<2888x128xf32, #tpu.memory_space<vmem>>, vector<16x8xf32>
    %cst_15 = arith.constant dense<0.000000e+00> : vector<16x64xf32>
    %17 = tpu.matmul %16, %15, %cst_15 {dimension_numbers = #tpu.dot_dimension_numbers<[1], [0], [0], [1], [0, 0, 1, 1], [], []>} : vector<16x8xf32>, vector<8x64xf32>, vector<16x64xf32> -> vector<16x64xf32>
    %c2592 = arith.constant 2592 : index
    %c0_16 = arith.constant 0 : index
    %18 = vector.load %arg4[%c2592, %c0_16] : memref<2888x128xf32, #tpu.memory_space<vmem>>, vector<64x128xf32>
    %cst_17 = arith.constant dense<0.000000e+00> : vector<16x128xf32>
    %19 = tpu.matmul %17, %18, %cst_17 {dimension_numbers = #tpu.dot_dimension_numbers<[1], [0], [0], [1], [0, 0, 1, 1], [], []>} : vector<16x64xf32>, vector<64x128xf32>, vector<16x128xf32> -> vector<16x128xf32>
    %20 = arith.addf %13, %19 : vector<16x128xf32>
    %c1208 = arith.constant 1208 : index
    %c0_18 = arith.constant 0 : index
    %21 = vector.load %arg4[%c1208, %c0_18] : memref<2888x128xf32, #tpu.memory_space<vmem>>, vector<8x16xf32>
    %cst_19 = arith.constant dense<0.000000e+00> : vector<8x128xf32>
    %22 = tpu.matmul %21, %20, %cst_19 {dimension_numbers = #tpu.dot_dimension_numbers<[1], [0], [0], [1], [0, 0, 1, 1], [], []>} : vector<8x16xf32>, vector<16x128xf32>, vector<8x128xf32> -> vector<8x128xf32>
    %c1216 = arith.constant 1216 : index
    %c0_20 = arith.constant 0 : index
    %23 = vector.load %arg4[%c1216, %c0_20] : memref<2888x128xf32, #tpu.memory_space<vmem>>, vector<8x16xf32>
    %cst_21 = arith.constant dense<0.000000e+00> : vector<8x128xf32>
    %24 = tpu.matmul %23, %20, %cst_21 {dimension_numbers = #tpu.dot_dimension_numbers<[1], [0], [0], [1], [0, 0, 1, 1], [], []>} : vector<8x16xf32>, vector<16x128xf32>, vector<8x128xf32> -> vector<8x128xf32>
    %c1224 = arith.constant 1224 : index
    %c0_22 = arith.constant 0 : index
    %25 = vector.load %arg4[%c1224, %c0_22] : memref<2888x128xf32, #tpu.memory_space<vmem>>, vector<8x16xf32>
    %cst_23 = arith.constant dense<0.000000e+00> : vector<8x128xf32>
    %26 = tpu.matmul %25, %20, %cst_23 {dimension_numbers = #tpu.dot_dimension_numbers<[1], [0], [0], [1], [0, 0, 1, 1], [], []>} : vector<8x16xf32>, vector<16x128xf32>, vector<8x128xf32> -> vector<8x128xf32>
    %c1232 = arith.constant 1232 : index
    %c0_24 = arith.constant 0 : index
    %27 = vector.load %arg4[%c1232, %c0_24] : memref<2888x128xf32, #tpu.memory_space<vmem>>, vector<1x64xf32>
    %28 = tpu.concatenate %22, %24, %26 in 1 : vector<8x128xf32>, vector<8x128xf32>, vector<8x128xf32> -> vector<8x384xf32>
    %c824 = arith.constant 824 : index
    %c0_25 = arith.constant 0 : index
    %29 = vector.load %arg4[%c824, %c0_25] : memref<2888x128xf32, #tpu.memory_space<vmem>>, vector<384x64xf32>
    %cst_26 = arith.constant dense<0.000000e+00> : vector<8x64xf32>
    %30 = tpu.matmul %28, %29, %cst_26 {dimension_numbers = #tpu.dot_dimension_numbers<[1], [0], [0], [1], [0, 0, 1, 1], [], []>} : vector<8x384xf32>, vector<384x64xf32>, vector<8x64xf32> -> vector<8x64xf32>
    %31 = vector.broadcast %27 : vector<1x64xf32> to vector<8x64xf32>
    %32 = arith.addf %30, %31 : vector<8x64xf32>
    %c0_27 = arith.constant 0 : index
    %c0_28 = arith.constant 0 : index
    %c0_29 = arith.constant 0 : index
    %33 = vector.load %arg3[%c0_27, %c0_28, %c0_29] : memref<1x4x32xf32, #tpu.memory_space<vmem>>, vector<1x4x32xf32>
    %34 = vector.shape_cast %33 : vector<1x4x32xf32> to vector<4x32xf32>
    %c2704 = arith.constant 2704 : index
    %c0_30 = arith.constant 0 : index
    %35 = vector.load %arg4[%c2704, %c0_30] : memref<2888x128xf32, #tpu.memory_space<vmem>>, vector<8x4xf32>
    %cst_31 = arith.constant dense<0.000000e+00> : vector<8x32xf32>
    %36 = tpu.matmul %35, %34, %cst_31 {dimension_numbers = #tpu.dot_dimension_numbers<[1], [0], [0], [1], [0, 0, 1, 1], [], []>} : vector<8x4xf32>, vector<4x32xf32>, vector<8x32xf32> -> vector<8x32xf32>
    %c2672 = arith.constant 2672 : index
    %c0_32 = arith.constant 0 : index
    %37 = vector.load %arg4[%c2672, %c0_32] : memref<2888x128xf32, #tpu.memory_space<vmem>>, vector<32x64xf32>
    %cst_33 = arith.constant dense<0.000000e+00> : vector<8x64xf32>
    %38 = tpu.matmul %36, %37, %cst_33 {dimension_numbers = #tpu.dot_dimension_numbers<[1], [0], [0], [1], [0, 0, 1, 1], [], []>} : vector<8x32xf32>, vector<32x64xf32>, vector<8x64xf32> -> vector<8x64xf32>
    %39 = arith.addf %32, %38 : vector<8x64xf32>
    %c1432 = arith.constant 1432 : index
    %c0_34 = arith.constant 0 : index
    %40 = vector.load %arg4[%c1432, %c0_34] : memref<2888x128xf32, #tpu.memory_space<vmem>>, vector<4x8xf32>
    %cst_35 = arith.constant dense<0.000000e+00> : vector<4x64xf32>
    %41 = tpu.matmul %40, %39, %cst_35 {dimension_numbers = #tpu.dot_dimension_numbers<[1], [0], [0], [1], [0, 0, 1, 1], [], []>} : vector<4x8xf32>, vector<8x64xf32>, vector<4x64xf32> -> vector<4x64xf32>
    %c1440 = arith.constant 1440 : index
    %c0_36 = arith.constant 0 : index
    %42 = vector.load %arg4[%c1440, %c0_36] : memref<2888x128xf32, #tpu.memory_space<vmem>>, vector<4x8xf32>
    %cst_37 = arith.constant dense<0.000000e+00> : vector<4x64xf32>
    %43 = tpu.matmul %42, %39, %cst_37 {dimension_numbers = #tpu.dot_dimension_numbers<[1], [0], [0], [1], [0, 0, 1, 1], [], []>} : vector<4x8xf32>, vector<8x64xf32>, vector<4x64xf32> -> vector<4x64xf32>
    %c1448 = arith.constant 1448 : index
    %c0_38 = arith.constant 0 : index
    %44 = vector.load %arg4[%c1448, %c0_38] : memref<2888x128xf32, #tpu.memory_space<vmem>>, vector<4x8xf32>
    %cst_39 = arith.constant dense<0.000000e+00> : vector<4x64xf32>
    %45 = tpu.matmul %44, %39, %cst_39 {dimension_numbers = #tpu.dot_dimension_numbers<[1], [0], [0], [1], [0, 0, 1, 1], [], []>} : vector<4x8xf32>, vector<8x64xf32>, vector<4x64xf32> -> vector<4x64xf32>
    %c1456 = arith.constant 1456 : index
    %c0_40 = arith.constant 0 : index
    %46 = vector.load %arg4[%c1456, %c0_40] : memref<2888x128xf32, #tpu.memory_space<vmem>>, vector<1x32xf32>
    %c1240 = arith.constant 1240 : index
    %c0_41 = arith.constant 0 : index
    %47 = vector.load %arg4[%c1240, %c0_41] : memref<2888x128xf32, #tpu.memory_space<vmem>>, vector<64x32xf32>
    %cst_42 = arith.constant dense<0.000000e+00> : vector<4x32xf32>
    %48 = tpu.matmul %41, %47, %cst_42 {dimension_numbers = #tpu.dot_dimension_numbers<[1], [0], [0], [1], [0, 0, 1, 1], [], []>} : vector<4x64xf32>, vector<64x32xf32>, vector<4x32xf32> -> vector<4x32xf32>
    %49 = vector.broadcast %46 : vector<1x32xf32> to vector<4x32xf32>
    %50 = arith.addf %49, %48 : vector<4x32xf32>
    %c1304 = arith.constant 1304 : index
    %c0_43 = arith.constant 0 : index
    %51 = vector.load %arg4[%c1304, %c0_43] : memref<2888x128xf32, #tpu.memory_space<vmem>>, vector<64x32xf32>
    %cst_44 = arith.constant dense<0.000000e+00> : vector<4x32xf32>
    %52 = tpu.matmul %43, %51, %cst_44 {dimension_numbers = #tpu.dot_dimension_numbers<[1], [0], [0], [1], [0, 0, 1, 1], [], []>} : vector<4x64xf32>, vector<64x32xf32>, vector<4x32xf32> -> vector<4x32xf32>
    %53 = arith.addf %50, %52 : vector<4x32xf32>
    %c1368 = arith.constant 1368 : index
    %c0_45 = arith.constant 0 : index
    %54 = vector.load %arg4[%c1368, %c0_45] : memref<2888x128xf32, #tpu.memory_space<vmem>>, vector<64x32xf32>
    %cst_46 = arith.constant dense<0.000000e+00> : vector<4x32xf32>
    %55 = tpu.matmul %45, %54, %cst_46 {dimension_numbers = #tpu.dot_dimension_numbers<[1], [0], [0], [1], [0, 0, 1, 1], [], []>} : vector<4x64xf32>, vector<64x32xf32>, vector<4x32xf32> -> vector<4x32xf32>
    %56 = arith.addf %53, %55 : vector<4x32xf32>
    %c1560 = arith.constant 1560 : index
    %c0_47 = arith.constant 0 : index
    %57 = vector.load %arg4[%c1560, %c0_47] : memref<2888x128xf32, #tpu.memory_space<vmem>>, vector<2x4xf32>
    %cst_48 = arith.constant dense<0.000000e+00> : vector<2x32xf32>
    %58 = tpu.matmul %57, %56, %cst_48 {dimension_numbers = #tpu.dot_dimension_numbers<[1], [0], [0], [1], [0, 0, 1, 1], [], []>} : vector<2x4xf32>, vector<4x32xf32>, vector<2x32xf32> -> vector<2x32xf32>
    %c1568 = arith.constant 1568 : index
    %c0_49 = arith.constant 0 : index
    %59 = vector.load %arg4[%c1568, %c0_49] : memref<2888x128xf32, #tpu.memory_space<vmem>>, vector<2x4xf32>
    %cst_50 = arith.constant dense<0.000000e+00> : vector<2x32xf32>
    %60 = tpu.matmul %59, %56, %cst_50 {dimension_numbers = #tpu.dot_dimension_numbers<[1], [0], [0], [1], [0, 0, 1, 1], [], []>} : vector<2x4xf32>, vector<4x32xf32>, vector<2x32xf32> -> vector<2x32xf32>
    %c1576 = arith.constant 1576 : index
    %c0_51 = arith.constant 0 : index
    %61 = vector.load %arg4[%c1576, %c0_51] : memref<2888x128xf32, #tpu.memory_space<vmem>>, vector<2x4xf32>
    %cst_52 = arith.constant dense<0.000000e+00> : vector<2x32xf32>
    %62 = tpu.matmul %61, %56, %cst_52 {dimension_numbers = #tpu.dot_dimension_numbers<[1], [0], [0], [1], [0, 0, 1, 1], [], []>} : vector<2x4xf32>, vector<4x32xf32>, vector<2x32xf32> -> vector<2x32xf32>
    %c1584 = arith.constant 1584 : index
    %c0_53 = arith.constant 0 : index
    %63 = vector.load %arg4[%c1584, %c0_53] : memref<2888x128xf32, #tpu.memory_space<vmem>>, vector<1x16xf32>
    %c1464 = arith.constant 1464 : index
    %c0_54 = arith.constant 0 : index
    %64 = vector.load %arg4[%c1464, %c0_54] : memref<2888x128xf32, #tpu.memory_space<vmem>>, vector<32x16xf32>
    %cst_55 = arith.constant dense<0.000000e+00> : vector<2x16xf32>
    %65 = tpu.matmul %58, %64, %cst_55 {dimension_numbers = #tpu.dot_dimension_numbers<[1], [0], [0], [1], [0, 0, 1, 1], [], []>} : vector<2x32xf32>, vector<32x16xf32>, vector<2x16xf32> -> vector<2x16xf32>
    %66 = vector.broadcast %63 : vector<1x16xf32> to vector<2x16xf32>
    %67 = arith.addf %66, %65 : vector<2x16xf32>
    %c1496 = arith.constant 1496 : index
    %c0_56 = arith.constant 0 : index
    %68 = vector.load %arg4[%c1496, %c0_56] : memref<2888x128xf32, #tpu.memory_space<vmem>>, vector<32x16xf32>
    %cst_57 = arith.constant dense<0.000000e+00> : vector<2x16xf32>
    %69 = tpu.matmul %60, %68, %cst_57 {dimension_numbers = #tpu.dot_dimension_numbers<[1], [0], [0], [1], [0, 0, 1, 1], [], []>} : vector<2x32xf32>, vector<32x16xf32>, vector<2x16xf32> -> vector<2x16xf32>
    %70 = arith.addf %67, %69 : vector<2x16xf32>
    %c1528 = arith.constant 1528 : index
    %c0_58 = arith.constant 0 : index
    %71 = vector.load %arg4[%c1528, %c0_58] : memref<2888x128xf32, #tpu.memory_space<vmem>>, vector<32x16xf32>
    %cst_59 = arith.constant dense<0.000000e+00> : vector<2x16xf32>
    %72 = tpu.matmul %62, %71, %cst_59 {dimension_numbers = #tpu.dot_dimension_numbers<[1], [0], [0], [1], [0, 0, 1, 1], [], []>} : vector<2x32xf32>, vector<32x16xf32>, vector<2x16xf32> -> vector<2x16xf32>
    %73 = arith.addf %70, %72 : vector<2x16xf32>
    %c1608 = arith.constant 1608 : index
    %c0_60 = arith.constant 0 : index
    %74 = vector.load %arg4[%c1608, %c0_60] : memref<2888x128xf32, #tpu.memory_space<vmem>>, vector<2x2xf32>
    %cst_61 = arith.constant dense<0.000000e+00> : vector<2x16xf32>
    %75 = tpu.matmul %74, %73, %cst_61 {dimension_numbers = #tpu.dot_dimension_numbers<[1], [0], [0], [1], [0, 0, 1, 1], [], []>} : vector<2x2xf32>, vector<2x16xf32>, vector<2x16xf32> -> vector<2x16xf32>
    %c1616 = arith.constant 1616 : index
    %c0_62 = arith.constant 0 : index
    %76 = vector.load %arg4[%c1616, %c0_62] : memref<2888x128xf32, #tpu.memory_space<vmem>>, vector<1x16xf32>
    %c1592 = arith.constant 1592 : index
    %c0_63 = arith.constant 0 : index
    %77 = vector.load %arg4[%c1592, %c0_63] : memref<2888x128xf32, #tpu.memory_space<vmem>>, vector<16x16xf32>
    %cst_64 = arith.constant dense<0.000000e+00> : vector<2x16xf32>
    %78 = tpu.matmul %75, %77, %cst_64 {dimension_numbers = #tpu.dot_dimension_numbers<[1], [0], [0], [1], [0, 0, 1, 1], [], []>} : vector<2x16xf32>, vector<16x16xf32>, vector<2x16xf32> -> vector<2x16xf32>
    %79 = vector.broadcast %76 : vector<1x16xf32> to vector<2x16xf32>
    %80 = arith.addf %79, %78 : vector<2x16xf32>
    %81 = arith.addf %73, %80 : vector<2x16xf32>
    %c1672 = arith.constant 1672 : index
    %c0_65 = arith.constant 0 : index
    %82 = vector.load %arg4[%c1672, %c0_65] : memref<2888x128xf32, #tpu.memory_space<vmem>>, vector<2x2xf32>
    %cst_66 = arith.constant dense<0.000000e+00> : vector<2x16xf32>
    %83 = tpu.matmul %82, %81, %cst_66 {dimension_numbers = #tpu.dot_dimension_numbers<[1], [0], [0], [1], [0, 0, 1, 1], [], []>} : vector<2x2xf32>, vector<2x16xf32>, vector<2x16xf32> -> vector<2x16xf32>
    %c1680 = arith.constant 1680 : index
    %c0_67 = arith.constant 0 : index
    %84 = vector.load %arg4[%c1680, %c0_67] : memref<2888x128xf32, #tpu.memory_space<vmem>>, vector<2x2xf32>
    %cst_68 = arith.constant dense<0.000000e+00> : vector<2x16xf32>
    %85 = tpu.matmul %84, %81, %cst_68 {dimension_numbers = #tpu.dot_dimension_numbers<[1], [0], [0], [1], [0, 0, 1, 1], [], []>} : vector<2x2xf32>, vector<2x16xf32>, vector<2x16xf32> -> vector<2x16xf32>
    %c1688 = arith.constant 1688 : index
    %c0_69 = arith.constant 0 : index
    %86 = vector.load %arg4[%c1688, %c0_69] : memref<2888x128xf32, #tpu.memory_space<vmem>>, vector<2x2xf32>
    %cst_70 = arith.constant dense<0.000000e+00> : vector<2x16xf32>
    %87 = tpu.matmul %86, %81, %cst_70 {dimension_numbers = #tpu.dot_dimension_numbers<[1], [0], [0], [1], [0, 0, 1, 1], [], []>} : vector<2x2xf32>, vector<2x16xf32>, vector<2x16xf32> -> vector<2x16xf32>
    %c1696 = arith.constant 1696 : index
    %c0_71 = arith.constant 0 : index
    %88 = vector.load %arg4[%c1696, %c0_71] : memref<2888x128xf32, #tpu.memory_space<vmem>>, vector<1x16xf32>
    %c1624 = arith.constant 1624 : index
    %c0_72 = arith.constant 0 : index
    %89 = vector.load %arg4[%c1624, %c0_72] : memref<2888x128xf32, #tpu.memory_space<vmem>>, vector<16x16xf32>
    %cst_73 = arith.constant dense<0.000000e+00> : vector<2x16xf32>
    %90 = tpu.matmul %83, %89, %cst_73 {dimension_numbers = #tpu.dot_dimension_numbers<[1], [0], [0], [1], [0, 0, 1, 1], [], []>} : vector<2x16xf32>, vector<16x16xf32>, vector<2x16xf32> -> vector<2x16xf32>
    %91 = vector.broadcast %88 : vector<1x16xf32> to vector<2x16xf32>
    %92 = arith.addf %91, %90 : vector<2x16xf32>
    %c1640 = arith.constant 1640 : index
    %c0_74 = arith.constant 0 : index
    %93 = vector.load %arg4[%c1640, %c0_74] : memref<2888x128xf32, #tpu.memory_space<vmem>>, vector<16x16xf32>
    %cst_75 = arith.constant dense<0.000000e+00> : vector<2x16xf32>
    %94 = tpu.matmul %85, %93, %cst_75 {dimension_numbers = #tpu.dot_dimension_numbers<[1], [0], [0], [1], [0, 0, 1, 1], [], []>} : vector<2x16xf32>, vector<16x16xf32>, vector<2x16xf32> -> vector<2x16xf32>
    %95 = arith.addf %92, %94 : vector<2x16xf32>
    %c1656 = arith.constant 1656 : index
    %c0_76 = arith.constant 0 : index
    %96 = vector.load %arg4[%c1656, %c0_76] : memref<2888x128xf32, #tpu.memory_space<vmem>>, vector<16x16xf32>
    %cst_77 = arith.constant dense<0.000000e+00> : vector<2x16xf32>
    %97 = tpu.matmul %87, %96, %cst_77 {dimension_numbers = #tpu.dot_dimension_numbers<[1], [0], [0], [1], [0, 0, 1, 1], [], []>} : vector<2x16xf32>, vector<16x16xf32>, vector<2x16xf32> -> vector<2x16xf32>
    %98 = arith.addf %95, %97 : vector<2x16xf32>
    %c2728 = arith.constant 2728 : index
    %c0_78 = arith.constant 0 : index
    %99 = vector.load %arg4[%c2728, %c0_78] : memref<2888x128xf32, #tpu.memory_space<vmem>>, vector<4x2xf32>
    %cst_79 = arith.constant dense<0.000000e+00> : vector<4x16xf32>
    %100 = tpu.matmul %99, %98, %cst_79 {dimension_numbers = #tpu.dot_dimension_numbers<[1], [0], [0], [1], [0, 0, 1, 1], [], []>} : vector<4x2xf32>, vector<2x16xf32>, vector<4x16xf32> -> vector<4x16xf32>
    %c2712 = arith.constant 2712 : index
    %c0_80 = arith.constant 0 : index
    %101 = vector.load %arg4[%c2712, %c0_80] : memref<2888x128xf32, #tpu.memory_space<vmem>>, vector<16x32xf32>
    %cst_81 = arith.constant dense<0.000000e+00> : vector<4x32xf32>
    %102 = tpu.matmul %100, %101, %cst_81 {dimension_numbers = #tpu.dot_dimension_numbers<[1], [0], [0], [1], [0, 0, 1, 1], [], []>} : vector<4x16xf32>, vector<16x32xf32>, vector<4x32xf32> -> vector<4x32xf32>
    %103 = arith.addf %56, %102 : vector<4x32xf32>
    %c1800 = arith.constant 1800 : index
    %c0_82 = arith.constant 0 : index
    %104 = vector.load %arg4[%c1800, %c0_82] : memref<2888x128xf32, #tpu.memory_space<vmem>>, vector<4x4xf32>
    %cst_83 = arith.constant dense<0.000000e+00> : vector<4x32xf32>
    %105 = tpu.matmul %104, %103, %cst_83 {dimension_numbers = #tpu.dot_dimension_numbers<[1], [0], [0], [1], [0, 0, 1, 1], [], []>} : vector<4x4xf32>, vector<4x32xf32>, vector<4x32xf32> -> vector<4x32xf32>
    %c1808 = arith.constant 1808 : index
    %c0_84 = arith.constant 0 : index
    %106 = vector.load %arg4[%c1808, %c0_84] : memref<2888x128xf32, #tpu.memory_space<vmem>>, vector<4x4xf32>
    %cst_85 = arith.constant dense<0.000000e+00> : vector<4x32xf32>
    %107 = tpu.matmul %106, %103, %cst_85 {dimension_numbers = #tpu.dot_dimension_numbers<[1], [0], [0], [1], [0, 0, 1, 1], [], []>} : vector<4x4xf32>, vector<4x32xf32>, vector<4x32xf32> -> vector<4x32xf32>
    %c1816 = arith.constant 1816 : index
    %c0_86 = arith.constant 0 : index
    %108 = vector.load %arg4[%c1816, %c0_86] : memref<2888x128xf32, #tpu.memory_space<vmem>>, vector<4x4xf32>
    %cst_87 = arith.constant dense<0.000000e+00> : vector<4x32xf32>
    %109 = tpu.matmul %108, %103, %cst_87 {dimension_numbers = #tpu.dot_dimension_numbers<[1], [0], [0], [1], [0, 0, 1, 1], [], []>} : vector<4x4xf32>, vector<4x32xf32>, vector<4x32xf32> -> vector<4x32xf32>
    %c1824 = arith.constant 1824 : index
    %c0_88 = arith.constant 0 : index
    %110 = vector.load %arg4[%c1824, %c0_88] : memref<2888x128xf32, #tpu.memory_space<vmem>>, vector<1x32xf32>
    %c1704 = arith.constant 1704 : index
    %c0_89 = arith.constant 0 : index
    %111 = vector.load %arg4[%c1704, %c0_89] : memref<2888x128xf32, #tpu.memory_space<vmem>>, vector<32x32xf32>
    %cst_90 = arith.constant dense<0.000000e+00> : vector<4x32xf32>
    %112 = tpu.matmul %105, %111, %cst_90 {dimension_numbers = #tpu.dot_dimension_numbers<[1], [0], [0], [1], [0, 0, 1, 1], [], []>} : vector<4x32xf32>, vector<32x32xf32>, vector<4x32xf32> -> vector<4x32xf32>
    %113 = vector.broadcast %110 : vector<1x32xf32> to vector<4x32xf32>
    %114 = arith.addf %113, %112 : vector<4x32xf32>
    %c1736 = arith.constant 1736 : index
    %c0_91 = arith.constant 0 : index
    %115 = vector.load %arg4[%c1736, %c0_91] : memref<2888x128xf32, #tpu.memory_space<vmem>>, vector<32x32xf32>
    %cst_92 = arith.constant dense<0.000000e+00> : vector<4x32xf32>
    %116 = tpu.matmul %107, %115, %cst_92 {dimension_numbers = #tpu.dot_dimension_numbers<[1], [0], [0], [1], [0, 0, 1, 1], [], []>} : vector<4x32xf32>, vector<32x32xf32>, vector<4x32xf32> -> vector<4x32xf32>
    %117 = arith.addf %114, %116 : vector<4x32xf32>
    %c1768 = arith.constant 1768 : index
    %c0_93 = arith.constant 0 : index
    %118 = vector.load %arg4[%c1768, %c0_93] : memref<2888x128xf32, #tpu.memory_space<vmem>>, vector<32x32xf32>
    %cst_94 = arith.constant dense<0.000000e+00> : vector<4x32xf32>
    %119 = tpu.matmul %109, %118, %cst_94 {dimension_numbers = #tpu.dot_dimension_numbers<[1], [0], [0], [1], [0, 0, 1, 1], [], []>} : vector<4x32xf32>, vector<32x32xf32>, vector<4x32xf32> -> vector<4x32xf32>
    %120 = arith.addf %117, %119 : vector<4x32xf32>
    %c2768 = arith.constant 2768 : index
    %c0_95 = arith.constant 0 : index
    %121 = vector.load %arg4[%c2768, %c0_95] : memref<2888x128xf32, #tpu.memory_space<vmem>>, vector<8x4xf32>
    %cst_96 = arith.constant dense<0.000000e+00> : vector<8x32xf32>
    %122 = tpu.matmul %121, %120, %cst_96 {dimension_numbers = #tpu.dot_dimension_numbers<[1], [0], [0], [1], [0, 0, 1, 1], [], []>} : vector<8x4xf32>, vector<4x32xf32>, vector<8x32xf32> -> vector<8x32xf32>
    %c2736 = arith.constant 2736 : index
    %c0_97 = arith.constant 0 : index
    %123 = vector.load %arg4[%c2736, %c0_97] : memref<2888x128xf32, #tpu.memory_space<vmem>>, vector<32x64xf32>
    %cst_98 = arith.constant dense<0.000000e+00> : vector<8x64xf32>
    %124 = tpu.matmul %122, %123, %cst_98 {dimension_numbers = #tpu.dot_dimension_numbers<[1], [0], [0], [1], [0, 0, 1, 1], [], []>} : vector<8x32xf32>, vector<32x64xf32>, vector<8x64xf32> -> vector<8x64xf32>
    %125 = arith.addf %39, %124 : vector<8x64xf32>
    %c2024 = arith.constant 2024 : index
    %c0_99 = arith.constant 0 : index
    %126 = vector.load %arg4[%c2024, %c0_99] : memref<2888x128xf32, #tpu.memory_space<vmem>>, vector<8x8xf32>
    %cst_100 = arith.constant dense<0.000000e+00> : vector<8x64xf32>
    %127 = tpu.matmul %126, %125, %cst_100 {dimension_numbers = #tpu.dot_dimension_numbers<[1], [0], [0], [1], [0, 0, 1, 1], [], []>} : vector<8x8xf32>, vector<8x64xf32>, vector<8x64xf32> -> vector<8x64xf32>
    %c2032 = arith.constant 2032 : index
    %c0_101 = arith.constant 0 : index
    %128 = vector.load %arg4[%c2032, %c0_101] : memref<2888x128xf32, #tpu.memory_space<vmem>>, vector<8x8xf32>
    %cst_102 = arith.constant dense<0.000000e+00> : vector<8x64xf32>
    %129 = tpu.matmul %128, %125, %cst_102 {dimension_numbers = #tpu.dot_dimension_numbers<[1], [0], [0], [1], [0, 0, 1, 1], [], []>} : vector<8x8xf32>, vector<8x64xf32>, vector<8x64xf32> -> vector<8x64xf32>
    %c2040 = arith.constant 2040 : index
    %c0_103 = arith.constant 0 : index
    %130 = vector.load %arg4[%c2040, %c0_103] : memref<2888x128xf32, #tpu.memory_space<vmem>>, vector<8x8xf32>
    %cst_104 = arith.constant dense<0.000000e+00> : vector<8x64xf32>
    %131 = tpu.matmul %130, %125, %cst_104 {dimension_numbers = #tpu.dot_dimension_numbers<[1], [0], [0], [1], [0, 0, 1, 1], [], []>} : vector<8x8xf32>, vector<8x64xf32>, vector<8x64xf32> -> vector<8x64xf32>
    %c2048 = arith.constant 2048 : index
    %c0_105 = arith.constant 0 : index
    %132 = vector.load %arg4[%c2048, %c0_105] : memref<2888x128xf32, #tpu.memory_space<vmem>>, vector<1x64xf32>
    %c1832 = arith.constant 1832 : index
    %c0_106 = arith.constant 0 : index
    %133 = vector.load %arg4[%c1832, %c0_106] : memref<2888x128xf32, #tpu.memory_space<vmem>>, vector<64x64xf32>
    %cst_107 = arith.constant dense<0.000000e+00> : vector<8x64xf32>
    %134 = tpu.matmul %127, %133, %cst_107 {dimension_numbers = #tpu.dot_dimension_numbers<[1], [0], [0], [1], [0, 0, 1, 1], [], []>} : vector<8x64xf32>, vector<64x64xf32>, vector<8x64xf32> -> vector<8x64xf32>
    %135 = vector.broadcast %132 : vector<1x64xf32> to vector<8x64xf32>
    %136 = arith.addf %135, %134 : vector<8x64xf32>
    %c1896 = arith.constant 1896 : index
    %c0_108 = arith.constant 0 : index
    %137 = vector.load %arg4[%c1896, %c0_108] : memref<2888x128xf32, #tpu.memory_space<vmem>>, vector<64x64xf32>
    %cst_109 = arith.constant dense<0.000000e+00> : vector<8x64xf32>
    %138 = tpu.matmul %129, %137, %cst_109 {dimension_numbers = #tpu.dot_dimension_numbers<[1], [0], [0], [1], [0, 0, 1, 1], [], []>} : vector<8x64xf32>, vector<64x64xf32>, vector<8x64xf32> -> vector<8x64xf32>
    %139 = arith.addf %136, %138 : vector<8x64xf32>
    %c1960 = arith.constant 1960 : index
    %c0_110 = arith.constant 0 : index
    %140 = vector.load %arg4[%c1960, %c0_110] : memref<2888x128xf32, #tpu.memory_space<vmem>>, vector<64x64xf32>
    %cst_111 = arith.constant dense<0.000000e+00> : vector<8x64xf32>
    %141 = tpu.matmul %131, %140, %cst_111 {dimension_numbers = #tpu.dot_dimension_numbers<[1], [0], [0], [1], [0, 0, 1, 1], [], []>} : vector<8x64xf32>, vector<64x64xf32>, vector<8x64xf32> -> vector<8x64xf32>
    %142 = arith.addf %139, %141 : vector<8x64xf32>
    %c2840 = arith.constant 2840 : index
    %c0_112 = arith.constant 0 : index
    %143 = vector.load %arg4[%c2840, %c0_112] : memref<2888x128xf32, #tpu.memory_space<vmem>>, vector<16x8xf32>
    %cst_113 = arith.constant dense<0.000000e+00> : vector<16x64xf32>
    %144 = tpu.matmul %143, %142, %cst_113 {dimension_numbers = #tpu.dot_dimension_numbers<[1], [0], [0], [1], [0, 0, 1, 1], [], []>} : vector<16x8xf32>, vector<8x64xf32>, vector<16x64xf32> -> vector<16x64xf32>
    %c2776 = arith.constant 2776 : index
    %c0_114 = arith.constant 0 : index
    %145 = vector.load %arg4[%c2776, %c0_114] : memref<2888x128xf32, #tpu.memory_space<vmem>>, vector<64x128xf32>
    %cst_115 = arith.constant dense<0.000000e+00> : vector<16x128xf32>
    %146 = tpu.matmul %144, %145, %cst_115 {dimension_numbers = #tpu.dot_dimension_numbers<[1], [0], [0], [1], [0, 0, 1, 1], [], []>} : vector<16x64xf32>, vector<64x128xf32>, vector<16x128xf32> -> vector<16x128xf32>
    %147 = arith.addf %20, %146 : vector<16x128xf32>
    %c2440 = arith.constant 2440 : index
    %c0_116 = arith.constant 0 : index
    %148 = vector.load %arg4[%c2440, %c0_116] : memref<2888x128xf32, #tpu.memory_space<vmem>>, vector<16x16xf32>
    %cst_117 = arith.constant dense<0.000000e+00> : vector<16x128xf32>
    %149 = tpu.matmul %148, %147, %cst_117 {dimension_numbers = #tpu.dot_dimension_numbers<[1], [0], [0], [1], [0, 0, 1, 1], [], []>} : vector<16x16xf32>, vector<16x128xf32>, vector<16x128xf32> -> vector<16x128xf32>
    %c2456 = arith.constant 2456 : index
    %c0_118 = arith.constant 0 : index
    %150 = vector.load %arg4[%c2456, %c0_118] : memref<2888x128xf32, #tpu.memory_space<vmem>>, vector<16x16xf32>
    %cst_119 = arith.constant dense<0.000000e+00> : vector<16x128xf32>
    %151 = tpu.matmul %150, %147, %cst_119 {dimension_numbers = #tpu.dot_dimension_numbers<[1], [0], [0], [1], [0, 0, 1, 1], [], []>} : vector<16x16xf32>, vector<16x128xf32>, vector<16x128xf32> -> vector<16x128xf32>
    %c2472 = arith.constant 2472 : index
    %c0_120 = arith.constant 0 : index
    %152 = vector.load %arg4[%c2472, %c0_120] : memref<2888x128xf32, #tpu.memory_space<vmem>>, vector<16x16xf32>
    %cst_121 = arith.constant dense<0.000000e+00> : vector<16x128xf32>
    %153 = tpu.matmul %152, %147, %cst_121 {dimension_numbers = #tpu.dot_dimension_numbers<[1], [0], [0], [1], [0, 0, 1, 1], [], []>} : vector<16x16xf32>, vector<16x128xf32>, vector<16x128xf32> -> vector<16x128xf32>
    %c2488 = arith.constant 2488 : index
    %c0_122 = arith.constant 0 : index
    %154 = vector.load %arg4[%c2488, %c0_122] : memref<2888x128xf32, #tpu.memory_space<vmem>>, vector<1x128xf32>
    %155 = tpu.concatenate %149, %151, %153 in 1 : vector<16x128xf32>, vector<16x128xf32>, vector<16x128xf32> -> vector<16x384xf32>
    %c2056 = arith.constant 2056 : index
    %c0_123 = arith.constant 0 : index
    %156 = vector.load %arg4[%c2056, %c0_123] : memref<2888x128xf32, #tpu.memory_space<vmem>>, vector<384x128xf32>
    %cst_124 = arith.constant dense<0.000000e+00> : vector<16x128xf32>
    %157 = tpu.matmul %155, %156, %cst_124 {dimension_numbers = #tpu.dot_dimension_numbers<[1], [0], [0], [1], [0, 0, 1, 1], [], []>} : vector<16x384xf32>, vector<384x128xf32>, vector<16x128xf32> -> vector<16x128xf32>
    %158 = vector.broadcast %154 : vector<1x128xf32> to vector<16x128xf32>
    %159 = arith.addf %157, %158 : vector<16x128xf32>
    %c2856 = arith.constant 2856 : index
    %c0_125 = arith.constant 0 : index
    %160 = vector.load %arg4[%c2856, %c0_125] : memref<2888x128xf32, #tpu.memory_space<vmem>>, vector<32x16xf32>
    %cst_126 = arith.constant dense<0.000000e+00> : vector<32x128xf32>
    %161 = tpu.matmul %160, %159, %cst_126 {dimension_numbers = #tpu.dot_dimension_numbers<[1], [0], [0], [1], [0, 0, 1, 1], [], []>} : vector<32x16xf32>, vector<16x128xf32>, vector<32x128xf32> -> vector<32x128xf32>
    %c776 = arith.constant 776 : index
    %c0_127 = arith.constant 0 : index
    %162 = vector.load %arg5[%c776, %c0_127] : memref<904x256xf32, #tpu.memory_space<vmem>>, vector<128x256xf32>
    %cst_128 = arith.constant dense<0.000000e+00> : vector<32x256xf32>
    %163 = tpu.matmul %161, %162, %cst_128 {dimension_numbers = #tpu.dot_dimension_numbers<[1], [0], [0], [1], [0, 0, 1, 1], [], []>} : vector<32x128xf32>, vector<128x256xf32>, vector<32x256xf32> -> vector<32x256xf32>
    %164 = arith.addf %1, %163 : vector<32x256xf32>
    %cst_129 = arith.constant 0.000000e+00 : f32
    %165 = vector.broadcast %cst_129 : f32 to vector<32x256xf32>
    %166 = arith.maximumf %164, %165 : vector<32x256xf32>
    %c2496 = arith.constant 2496 : index
    %c0_130 = arith.constant 0 : index
    %167 = vector.load %arg4[%c2496, %c0_130] : memref<2888x128xf32, #tpu.memory_space<vmem>>, vector<32x32xf32>
    %cst_131 = arith.constant dense<0.000000e+00> : vector<32x256xf32>
    %168 = tpu.matmul %167, %166, %cst_131 {dimension_numbers = #tpu.dot_dimension_numbers<[1], [0], [0], [1], [0, 0, 1, 1], [], []>} : vector<32x32xf32>, vector<32x256xf32>, vector<32x256xf32> -> vector<32x256xf32>
    %c2528 = arith.constant 2528 : index
    %c0_132 = arith.constant 0 : index
    %169 = vector.load %arg4[%c2528, %c0_132] : memref<2888x128xf32, #tpu.memory_space<vmem>>, vector<32x32xf32>
    %cst_133 = arith.constant dense<0.000000e+00> : vector<32x256xf32>
    %170 = tpu.matmul %169, %166, %cst_133 {dimension_numbers = #tpu.dot_dimension_numbers<[1], [0], [0], [1], [0, 0, 1, 1], [], []>} : vector<32x32xf32>, vector<32x256xf32>, vector<32x256xf32> -> vector<32x256xf32>
    %c2560 = arith.constant 2560 : index
    %c0_134 = arith.constant 0 : index
    %171 = vector.load %arg4[%c2560, %c0_134] : memref<2888x128xf32, #tpu.memory_space<vmem>>, vector<32x32xf32>
    %cst_135 = arith.constant dense<0.000000e+00> : vector<32x256xf32>
    %172 = tpu.matmul %171, %166, %cst_135 {dimension_numbers = #tpu.dot_dimension_numbers<[1], [0], [0], [1], [0, 0, 1, 1], [], []>} : vector<32x32xf32>, vector<32x256xf32>, vector<32x256xf32> -> vector<32x256xf32>
    %c768_136 = arith.constant 768 : index
    %c0_137 = arith.constant 0 : index
    %173 = vector.load %arg5[%c768_136, %c0_137] : memref<904x256xf32, #tpu.memory_space<vmem>>, vector<1x256xf32>
    %174 = tpu.concatenate %168, %170, %172 in 1 : vector<32x256xf32>, vector<32x256xf32>, vector<32x256xf32> -> vector<32x768xf32>
    %c0_138 = arith.constant 0 : index
    %c0_139 = arith.constant 0 : index
    %175 = vector.load %arg5[%c0_138, %c0_139] : memref<904x256xf32, #tpu.memory_space<vmem>>, vector<768x256xf32>
    %cst_140 = arith.constant dense<0.000000e+00> : vector<32x256xf32>
    %176 = tpu.matmul %174, %175, %cst_140 {dimension_numbers = #tpu.dot_dimension_numbers<[1], [0], [0], [1], [0, 0, 1, 1], [], []>} : vector<32x768xf32>, vector<768x256xf32>, vector<32x256xf32> -> vector<32x256xf32>
    %177 = vector.broadcast %173 : vector<1x256xf32> to vector<32x256xf32>
    %178 = arith.addf %176, %177 : vector<32x256xf32>
    %c0_141 = arith.constant 0 : index
    %c0_142 = arith.constant 0 : index
    %c0_143 = arith.constant 0 : index
    %179 = vector.load %arg6[%c0_141, %c0_142, %c0_143] : memref<1x32x256xf32, #tpu.memory_space<vmem>>, vector<1x32x256xf32>
    %180 = vector.shape_cast %179 : vector<1x32x256xf32> to vector<32x256xf32>
    %181 = vector.shape_cast %178 : vector<32x256xf32> to vector<1x32x256xf32>
    tpu.vector_store %arg6[%c0_141, %c0_142, %c0_143], %181 {strides = array<i32>} : memref<1x32x256xf32, #tpu.memory_space<vmem>>, vector<1x32x256xf32>,
    return
  }
  func.func @transform_0(%arg0: i32) -> (i32, i32, i32) {
    %c0_i32 = arith.constant 0 : i32
    %c0_i32_0 = arith.constant 0 : i32
    %c0_i32_1 = arith.constant 0 : i32
    return %arg0, %c0_i32, %c0_i32_0 : i32, i32, i32
  }
  func.func @transform_1(%arg0: i32) -> (i32, i32, i32) {
    %c0_i32 = arith.constant 0 : i32
    %c0_i32_0 = arith.constant 0 : i32
    %c0_i32_1 = arith.constant 0 : i32
    return %arg0, %c0_i32, %c0_i32_0 : i32, i32, i32
  }
  func.func @transform_2(%arg0: i32) -> (i32, i32, i32) {
    %c0_i32 = arith.constant 0 : i32
    %c0_i32_0 = arith.constant 0 : i32
    %c0_i32_1 = arith.constant 0 : i32
    return %arg0, %c0_i32, %c0_i32_0 : i32, i32, i32
  }
  func.func @transform_3(%arg0: i32) -> (i32, i32) {
    %c0_i32 = arith.constant 0 : i32
    %c0_i32_0 = arith.constant 0 : i32
    %c0_i32_1 = arith.constant 0 : i32
    return %c0_i32, %c0_i32_0 : i32, i32
  }
  func.func @transform_4(%arg0: i32) -> (i32, i32) {
    %c0_i32 = arith.constant 0 : i32
    %c0_i32_0 = arith.constant 0 : i32
    %c0_i32_1 = arith.constant 0 : i32
    return %c0_i32, %c0_i32_0 : i32, i32
  }
  func.func @transform_5(%arg0: i32) -> (i32, i32, i32) {
    %c0_i32 = arith.constant 0 : i32
    %c0_i32_0 = arith.constant 0 : i32
    %c0_i32_1 = arith.constant 0 : i32
    return %arg0, %c0_i32, %c0_i32_0 : i32, i32, i32
  }
}

</mosaic_0001>

<llo_original>
// kernel: tpu_custom_call.1
$region0: #{tpu_custom_call.1}
  #allocation0 [shape = 'u32[]', space=smem, size = 0x4, offset = 0x4, fixed_abs, tag = 'smem constant byte address 0x4 - core index']
  #allocation1 [shape = 'u32[72,128]{1,0:T(1,128)}', space=vmem, size = 0x9000, scoped, tag = 'internal scratch']
  %s0 = inlined_call_operand.hbm [shape: f32[2,32,256], index: 0, kind: input, shape index: {}]
  %s1 = inlined_call_operand.hbm [shape: f32[2,8,64], index: 1, kind: input, shape index: {}]
  %s2 = inlined_call_operand.hbm [shape: f32[2,4,32], index: 2, kind: input, shape index: {}]
  %s3 = inlined_call_operand.hbm [shape: f32[2888,128], index: 3, kind: input, shape index: {}]
  %s4 = inlined_call_operand.hbm [shape: f32[904,256], index: 4, kind: input, shape index: {}]
  %s5 = inlined_call_operand.hbm [shape: f32[2,32,256], index: 5, kind: output, shape index: {}]
  %s6 = sld [smem:[#allocation0]]
  $region73: #{tpu_custom_call.1} parent=0
    _
  %s8 = ssub.s32 1, %s6
  %s9 = scalar_select 0, %s8, %s6
  $region1: #{tpu_custom_call.1} parent=0
    #allocation2 [shape = 'u8[65536]{0}', space=vmem, size = 0x10000, scoped, tag = 'input window, operand 0']
    #allocation3 [shape = 's32[2]{0}', space=sflag, size = 0x8, scoped, tag = 'scoped memory for tpu_custom_call.1']
    #allocation4 [shape = 's32[2]{0}', space=sflag, size = 0x8, scoped, tag = 'scoped memory for tpu_custom_call.1']
    #allocation5 [shape = 'u8[8192]{0}', space=vmem, size = 0x2000, scoped, tag = 'input window, operand 1']
    #allocation6 [shape = 's32[2]{0}', space=sflag, size = 0x8, scoped, tag = 'scoped memory for tpu_custom_call.1']
    #allocation7 [shape = 'u8[4096]{0}', space=vmem, size = 0x1000, scoped, tag = 'input window, operand 2']
    #allocation8 [shape = 'u8[1478656]{0}', space=vmem, size = 0x169000, scoped, tag = 'input window, operand 3, single buffered']
    #allocation9 [shape = 's32[1]{0}', space=sflag, size = 0x4, scoped, tag = 'scoped memory for tpu_custom_call.1']
    #allocation10 [shape = 'u8[925696]{0}', space=vmem, size = 0xe2000, scoped, tag = 'input window, operand 4, single buffered']
    #allocation11 [shape = 'u8[65536]{0}', space=vmem, size = 0x10000, scoped, tag = 'output window, operand 0']
    %10 = vsyncpa [#allocation3], 0
    %s11 = scalar_lea.sflag [#allocation3], 1
    %12 = vsyncpa %s11, 0
    %13 = vsyncpa [#allocation6], 0
    %s14 = scalar_lea.sflag [#allocation6], 1
    %15 = vsyncpa %s14, 0
    %16 = vsyncpa [#allocation9], 0
    %17 = vsyncpa [#allocation4], 0
    %s18 = scalar_lea.sflag [#allocation4], 1
    %19 = vsyncpa %s18, 0
    loop: start=0, step=1, limit=4
    $region2: #{tpu_custom_call.1} parent=1 // loop_pre_header
      _
    $region3: #{tpu_custom_call.1} parent=1 // loop_header
      %s21 = sphi 0, %s25
      %p22 = scmp.ge.s32.totalorder %s21, 4
      %s31 = sphi 0, %s33
      %s34 = sphi 0, %s31
      %s35 = sphi 0, %s34
      %s51 = sphi 0, %s35
      %s57 = sphi 0, %s59
      %s60 = sphi 0, %s57
      %s61 = sphi 0, %s60
      %s77 = sphi 0, %s61
      %s83 = sphi 0, %s85
      %s86 = sphi 0, %s83
      %s87 = sphi 0, %s86
      %s103 = sphi 0, %s87
      %s107 = sphi 0, %s107
      %s109 = sphi 0, %s107
      %s110 = sphi 0, %s109
      %s124 = sphi 0, %s110
      %s128 = sphi 0, %s128
      %s130 = sphi 0, %s128
      %s131 = sphi 0, %s130
      %s145 = sphi 0, %s131
      %s151 = sphi 0, %s153
      %s154 = sphi 0, %s151
      %s155 = sphi 0, %s154
      %s171 = sphi 0, %s155
    $region4: #{tpu_custom_call.1} parent=1 // loop_header_branch
      %24 = sbr.rel (%p22) target = $region8
    $region5: #{tpu_custom_call.1} parent=1 // loop_body
      %s26 = ssub.s32 %s21, 1
      %s27 = ssub.s32 %s21, 2
      %s28 = sadd.s32 %s21, 1
      %s29 = ssub.s32 %s21, %s28
      %p30 = scmp.eq.s32.totalorder %s29, 0
      %s32 = sadd.s32 %s31, 1
      %s33 = scalar_select %p30, %s31, %s32
      %p36 = pneg %p30
      %p37 = scmp.eq.s32.totalorder %s21, 1
      %p38 = por %p36, %p37
      %p39 = scmp.ne.s32.totalorder %s31, %s34
      %p40 = scmp.eq.s32.totalorder %s21, 0
      %p41 = por %p39, %p40
      %p42 = scmp.ne.s32.totalorder %s31, %s34
      %p43 = scmp.eq.s32.totalorder %s26, 1
      %p44 = por %p42, %p43
      %p45 = scmp.ne.s32.totalorder %s34, %s35
      %p46 = scmp.eq.s32.totalorder %s26, 0
      %p47 = por %p45, %p46
      %p48 = scmp.ne.s32.totalorder %s34, %s35
      %p49 = scmp.eq.s32.totalorder %s27, 1
      %p50 = por %p48, %p49
      %p52 = scmp.ne.s32.totalorder %s35, %s51
      %p53 = scmp.eq.s32.totalorder %s27, 0
      %p54 = por %p52, %p53
      %s55 = ssub.s32 %s21, %s28
      %p56 = scmp.eq.s32.totalorder %s55, 0
      %s58 = sadd.s32 %s57, 1
      %s59 = scalar_select %p56, %s57, %s58
      %p62 = pneg %p56
      %p63 = scmp.eq.s32.totalorder %s21, 1
      %p64 = por %p62, %p63
      %p65 = scmp.ne.s32.totalorder %s57, %s60
      %p66 = scmp.eq.s32.totalorder %s21, 0
      %p67 = por %p65, %p66
      %p68 = scmp.ne.s32.totalorder %s57, %s60
      %p69 = scmp.eq.s32.totalorder %s26, 1
      %p70 = por %p68, %p69
      %p71 = scmp.ne.s32.totalorder %s60, %s61
      %p72 = scmp.eq.s32.totalorder %s26, 0
      %p73 = por %p71, %p72
      %p74 = scmp.ne.s32.totalorder %s60, %s61
      %p75 = scmp.eq.s32.totalorder %s27, 1
      %p76 = por %p74, %p75
      %p78 = scmp.ne.s32.totalorder %s61, %s77
      %p79 = scmp.eq.s32.totalorder %s27, 0
      %p80 = por %p78, %p79
      %s81 = ssub.s32 %s21, %s28
      %p82 = scmp.eq.s32.totalorder %s81, 0
      %s84 = sadd.s32 %s83, 1
      %s85 = scalar_select %p82, %s83, %s84
      %p88 = pneg %p82
      %p89 = scmp.eq.s32.totalorder %s21, 1
      %p90 = por %p88, %p89
      %p91 = scmp.ne.s32.totalorder %s83, %s86
      %p92 = scmp.eq.s32.totalorder %s21, 0
      %p93 = por %p91, %p92
      %p94 = scmp.ne.s32.totalorder %s83, %s86
      %p95 = scmp.eq.s32.totalorder %s26, 1
      %p96 = por %p94, %p95
      %p97 = scmp.ne.s32.totalorder %s86, %s87
      %p98 = scmp.eq.s32.totalorder %s26, 0
      %p99 = por %p97, %p98
      %p100 = scmp.ne.s32.totalorder %s86, %s87
      %p101 = scmp.eq.s32.totalorder %s27, 1
      %p102 = por %p100, %p101
      %p104 = scmp.ne.s32.totalorder %s87, %s103
      %p105 = scmp.eq.s32.totalorder %s27, 0
      %p106 = por %p104, %p105
      %s108 = sadd.s32 %s107, 1
      %p111 = scmp.eq.s32.totalorder %s21, 1
      %p112 = scmp.ne.s32.totalorder %s107, %s109
      %p113 = scmp.eq.s32.totalorder %s21, 0
      %p114 = por %p112, %p113
      %p115 = scmp.ne.s32.totalorder %s107, %s109
      %p116 = scmp.eq.s32.totalorder %s26, 1
      %p117 = por %p115, %p116
      %p118 = scmp.ne.s32.totalorder %s109, %s110
      %p119 = scmp.eq.s32.totalorder %s26, 0
      %p120 = por %p118, %p119
      %p121 = scmp.ne.s32.totalorder %s109, %s110
      %p122 = scmp.eq.s32.totalorder %s27, 1
      %p123 = por %p121, %p122
      %p125 = scmp.ne.s32.totalorder %s110, %s124
      %p126 = scmp.eq.s32.totalorder %s27, 0
      %p127 = por %p125, %p126
      %s129 = sadd.s32 %s128, 1
      %p132 = scmp.eq.s32.totalorder %s21, 1
      %p133 = scmp.ne.s32.totalorder %s128, %s130
      %p134 = scmp.eq.s32.totalorder %s21, 0
      %p135 = por %p133, %p134
      %p136 = scmp.ne.s32.totalorder %s128, %s130
      %p137 = scmp.eq.s32.totalorder %s26, 1
      %p138 = por %p136, %p137
      %p139 = scmp.ne.s32.totalorder %s130, %s131
      %p140 = scmp.eq.s32.totalorder %s26, 0
      %p141 = por %p139, %p140
      %p142 = scmp.ne.s32.totalorder %s130, %s131
      %p143 = scmp.eq.s32.totalorder %s27, 1
      %p144 = por %p142, %p143
      %p146 = scmp.ne.s32.totalorder %s131, %s145
      %p147 = scmp.eq.s32.totalorder %s27, 0
      %p148 = por %p146, %p147
      %s149 = ssub.s32 %s21, %s28
      %p150 = scmp.eq.s32.totalorder %s149, 0
      %s152 = sadd.s32 %s151, 1
      %s153 = scalar_select %p150, %s151, %s152
      %p156 = pneg %p150
      %p157 = scmp.eq.s32.totalorder %s21, 1
      %p158 = por %p156, %p157
      %p159 = scmp.ne.s32.totalorder %s151, %s154
      %p160 = scmp.eq.s32.totalorder %s21, 0
      %p161 = por %p159, %p160
      %p162 = scmp.ne.s32.totalorder %s151, %s154
      %p163 = scmp.eq.s32.totalorder %s26, 1
      %p164 = por %p162, %p163
      %p165 = scmp.ne.s32.totalorder %s154, %s155
      %p166 = scmp.eq.s32.totalorder %s26, 0
      %p167 = por %p165, %p166
      %p168 = scmp.ne.s32.totalorder %s154, %s155
      %p169 = scmp.eq.s32.totalorder %s27, 1
      %p170 = por %p168, %p169
      %p172 = scmp.ne.s32.totalorder %s155, %s171
      %p173 = scmp.eq.s32.totalorder %s27, 0
      %p174 = por %p172, %p173
      %p175 = scmp.le.s32.totalorder 1, %s21
      %p176 = scmp.lt.s32.totalorder %s21, 3
      %p177 = pnand %p175, %p176
      %p178 = pneg %p177
      // Predicated region
      $region9: #{tpu_custom_call.1} parent=5 // pred_check
        _
      $region10: #{tpu_custom_call.1} parent=5 // pred_check_branch
        %180 = sbr.rel (%p177) target = $region12
      $region11: #{tpu_custom_call.1} parent=5 // pred_region
        %s181 = ssub.s32 %s21, 1
        // Predicated region
        $region13: #{tpu_custom_call.1} parent=11 // pred_check
          %p182 = pneg %p120
        $region14: #{tpu_custom_call.1} parent=11 // pred_check_branch
          %184 = sbr.rel (%p182) target = $region16
        $region15: #{tpu_custom_call.1} parent=11 // pred_region
          %186 = vsyncadd [#allocation9], 0
          %s187 = sshll.u32 %s3, 4
          %s188 = int_to_ptr.hbm [resolvable:$true] %s187
          %s189 = sshll.u32 [#allocation8], 4
          %s190 = int_to_ptr.vmem [resolvable:$true] %s189
          %195 = dma.hbm_to_vmem [thread:$0]  %s188, 46208, %s190, [#allocation9], 128, 128, 8
        $region16: #{tpu_custom_call.1} parent=11 // pred_fallthru
          _
        // Predicated region
        $region17: #{tpu_custom_call.1} parent=11 // pred_check
          %p196 = pneg %p141
        $region18: #{tpu_custom_call.1} parent=11 // pred_check_branch
          %198 = sbr.rel (%p196) target = $region20
        $region19: #{tpu_custom_call.1} parent=11 // pred_region
          %200 = vsyncadd [#allocation9], 0
          %s201 = sshll.u32 %s4, 4
          %s202 = int_to_ptr.hbm [resolvable:$true] %s201
          %s203 = sshll.u32 [#allocation10], 4
          %s204 = int_to_ptr.vmem [resolvable:$true] %s203
          %209 = dma.hbm_to_vmem [thread:$0]  %s202, 28928, %s204, [#allocation9], 256, 256, 16
        $region20: #{tpu_custom_call.1} parent=11 // pred_fallthru
          _
      $region12: #{tpu_custom_call.1} parent=5 // pred_fallthru
        _
      %p210 = scmp.lt.s32.totalorder %s21, 2
      // Predicated region
      $region21: #{tpu_custom_call.1} parent=5 // pred_check
        %p211 = pneg %p210
      $region22: #{tpu_custom_call.1} parent=5 // pred_check_branch
        %213 = sbr.rel (%p211) target = $region24
      $region23: #{tpu_custom_call.1} parent=5 // pred_region
        // Predicated region
        $region25: #{tpu_custom_call.1} parent=23 // pred_check
          %p214 = pneg %p41
        $region26: #{tpu_custom_call.1} parent=23 // pred_check_branch
          %216 = sbr.rel (%p214) target = $region28
        $region27: #{tpu_custom_call.1} parent=23 // pred_region
          %s217 = sand.u32 %s31, 1
          %s218 = scalar_lea.sflag [#allocation3], %s217
          %s219 = sand.u32 %s31, 1
          %s220 = smul.addr %s219, 64
          %s221 = scalar_lea.vmem [#allocation2], %s220
          %223 = vsyncadd %s218, 0
          %s224 = smul.addr %s21, 8
          %s225 = smul.addr %s224, 8
          %s226 = scalar_lea.hbm %s0, %s225
          %s227 = sshll.u32 %s226, 4
          %s228 = int_to_ptr.hbm [resolvable:$true] %s227
          %s229 = sshll.u32 %s221, 4
          %s230 = int_to_ptr.vmem [resolvable:$true] %s229
          %235 = dma.hbm_to_vmem [thread:$0]  %s228, 1024, %s230, %s218, 256, 256, 16
        $region28: #{tpu_custom_call.1} parent=23 // pred_fallthru
          _
        // Predicated region
        $region29: #{tpu_custom_call.1} parent=23 // pred_check
          %p236 = pneg %p67
        $region30: #{tpu_custom_call.1} parent=23 // pred_check_branch
          %238 = sbr.rel (%p236) target = $region32
        $region31: #{tpu_custom_call.1} parent=23 // pred_region
          %s239 = sand.u32 %s21, 1
          %s240 = scalar_lea.sflag [#allocation6], %s239
          %s241 = sand.u32 %s57, 1
          %s242 = smul.addr %s241, 8
          %s243 = scalar_lea.vmem [#allocation5], %s242
          %245 = vsyncadd %s240, 0
          %s246 = smul.addr %s21, 8
          %s247 = scalar_lea.hbm %s1, %s246
          %s249 = sshll.u32 %s247, 4
          %s250 = int_to_ptr.hbm [resolvable:$true] %s249
          %s251 = sshll.u32 %s243, 4
          %s252 = int_to_ptr.vmem [resolvable:$true] %s251
          %254 = dma.hbm_to_vmem [thread:$0]  %s250, 128, %s252, %s240
        $region32: #{tpu_custom_call.1} parent=23 // pred_fallthru
          _
        // Predicated region
        $region33: #{tpu_custom_call.1} parent=23 // pred_check
          %p255 = pneg %p93
        $region34: #{tpu_custom_call.1} parent=23 // pred_check_branch
          %257 = sbr.rel (%p255) target = $region36
        $region35: #{tpu_custom_call.1} parent=23 // pred_region
          %s258 = sand.u32 %s21, 1
          %s259 = scalar_lea.sflag [#allocation6], %s258
          %s260 = sand.u32 %s83, 1
          %s261 = smul.addr %s260, 4
          %s262 = scalar_lea.vmem [#allocation7], %s261
          %264 = vsyncadd %s259, 0
          %s265 = smul.addr %s21, 4
          %s266 = scalar_lea.hbm %s2, %s265
          %s268 = sshll.u32 %s266, 4
          %s269 = int_to_ptr.hbm [resolvable:$true] %s268
          %s270 = sshll.u32 %s262, 4
          %s271 = int_to_ptr.vmem [resolvable:$true] %s270
          %273 = dma.hbm_to_vmem [thread:$0]  %s269, 64, %s271, %s259
        $region36: #{tpu_custom_call.1} parent=23 // pred_fallthru
          _
      $region24: #{tpu_custom_call.1} parent=5 // pred_fallthru
        _
      %p274 = scmp.le.s32.totalorder 1, %s21
      %p275 = scmp.lt.s32.totalorder %s21, 3
      %p276 = pnand %p274, %p275
      %p277 = pneg %p276
      // Predicated region
      $region37: #{tpu_custom_call.1} parent=5 // pred_check
        _
      $region38: #{tpu_custom_call.1} parent=5 // pred_check_branch
        %279 = sbr.rel (%p276) target = $region40
      $region39: #{tpu_custom_call.1} parent=5 // pred_region
        %s280 = ssub.s32 %s21, 1
        %s281 = sand.u32 %s34, 1
        %s282 = scalar_lea.sflag [#allocation3], %s281
        %s283 = sand.u32 %s34, 1
        %s284 = smul.addr %s283, 64
        %s285 = scalar_lea.vmem [#allocation2], %s284
        // Predicated region
        $region41: #{tpu_custom_call.1} parent=39 // pred_check
          %p286 = pneg %p47
        $region42: #{tpu_custom_call.1} parent=39 // pred_check_branch
          %288 = sbr.rel (%p286) target = $region44
        $region43: #{tpu_custom_call.1} parent=39 // pred_region
          %290 = dma.done %s282, 1024
        $region44: #{tpu_custom_call.1} parent=39 // pred_fallthru
          _
        %s291 = sand.u32 %s26, 1
        %s292 = scalar_lea.sflag [#allocation6], %s291
        %s293 = sand.u32 %s60, 1
        %s294 = smul.addr %s293, 8
        %s295 = scalar_lea.vmem [#allocation5], %s294
        // Predicated region
        $region45: #{tpu_custom_call.1} parent=39 // pred_check
          %p296 = pneg %p73
        $region46: #{tpu_custom_call.1} parent=39 // pred_check_branch
          %298 = sbr.rel (%p296) target = $region48
        $region47: #{tpu_custom_call.1} parent=39 // pred_region
          %300 = dma.done %s292, 128
        $region48: #{tpu_custom_call.1} parent=39 // pred_fallthru
          _
        %s301 = sand.u32 %s26, 1
        %s302 = scalar_lea.sflag [#allocation6], %s301
        %s303 = sand.u32 %s86, 1
        %s304 = smul.addr %s303, 4
        %s305 = scalar_lea.vmem [#allocation7], %s304
        // Predicated region
        $region49: #{tpu_custom_call.1} parent=39 // pred_check
          %p306 = pneg %p99
        $region50: #{tpu_custom_call.1} parent=39 // pred_check_branch
          %308 = sbr.rel (%p306) target = $region52
        $region51: #{tpu_custom_call.1} parent=39 // pred_region
          %310 = dma.done %s302, 64
        $region52: #{tpu_custom_call.1} parent=39 // pred_fallthru
          _
        // Predicated region
        $region53: #{tpu_custom_call.1} parent=39 // pred_check
          %p311 = pneg %p120
        $region54: #{tpu_custom_call.1} parent=39 // pred_check_branch
          %313 = sbr.rel (%p311) target = $region56
        $region55: #{tpu_custom_call.1} parent=39 // pred_region
          %315 = dma.done [#allocation9], 46208
        $region56: #{tpu_custom_call.1} parent=39 // pred_fallthru
          _
        // Predicated region
        $region57: #{tpu_custom_call.1} parent=39 // pred_check
          %p316 = pneg %p141
        $region58: #{tpu_custom_call.1} parent=39 // pred_check_branch
          %318 = sbr.rel (%p316) target = $region60
        $region59: #{tpu_custom_call.1} parent=39 // pred_region
          %320 = dma.done [#allocation9], 28928
        $region60: #{tpu_custom_call.1} parent=39 // pred_fallthru
          _
        %s321 = sand.u32 %s34, 1
        %s322 = scalar_lea.sflag [#allocation3], %s321
        %s323 = sand.u32 %s34, 1
        %s324 = smul.addr %s323, 64
        %s325 = scalar_lea.vmem [#allocation2], %s324
        %p326 = pneg %p47
        %p327 = pneg %p44
        %s328 = sand.u32 %s26, 1
        %s329 = scalar_lea.sflag [#allocation6], %s328
        %s330 = sand.u32 %s60, 1
        %s331 = smul.addr %s330, 8
        %s332 = scalar_lea.vmem [#allocation5], %s331
        %p333 = pneg %p73
        %p334 = pneg %p70
        %s335 = sand.u32 %s26, 1
        %s336 = scalar_lea.sflag [#allocation6], %s335
        %s337 = sand.u32 %s86, 1
        %s338 = smul.addr %s337, 4
        %s339 = scalar_lea.vmem [#allocation7], %s338
        %p340 = pneg %p99
        %p341 = pneg %p96
        %p342 = pneg %p120
        %p343 = pneg %p117
        %p344 = pneg %p141
        %p345 = pneg %p138
        %p346 = pneg %p167
        %p347 = pneg %p164
        %s348 = sand.u32 %s154, 1
        %s349 = scalar_lea.sflag [#allocation4], %s348
        %s350 = sand.u32 %s154, 1
        %s351 = smul.addr %s350, 64
        %s352 = scalar_lea.vmem [#allocation11], %s351
        %v353 = vld [vmem:[%s285] sm:$0xff]
        %v354 = vld [vmem:[%s285 + $0x8] sm:$0xff]
        %v355 = vld [vmem:[%s285 + $0x10] sm:$0xff]
        %v356 = vld [vmem:[%s285 + $0x18] sm:$0xff]
        %v357 = vld [vmem:[%s285 + $0x20] sm:$0xff]
        %v358 = vld [vmem:[%s285 + $0x28] sm:$0xff]
        %v359 = vld [vmem:[%s285 + $0x30] sm:$0xff]
        %v360 = vld [vmem:[%s285 + $0x38] sm:$0xff]
        %v361 = vld [vmem:[#allocation8 + $0x300] sm:$0xff]
        %v362 = vld [vmem:[#allocation8 + $0x308] sm:$0xff]
        %vm363 = vcmask 261120
        %v365 = vsel %vm363, %v361, 0
        %v368 = vsel %vm363, %v362, 0
        %370 = vmatpush.msra.mxu0 0.0
        %371 = vmatpush.msra.mxu0 0.0
        %372 = vmatpush.msra.mxu0 0.0
        %373 = vmatpush.msra.mxu0 0.0
        %374 = vmatpush.msra.mxu0 0.0
        %375 = vmatpush.msra.mxu0 0.0
        %376 = vmatpush.msra.mxu0 0.0
        %377 = vmatpush.msra.mxu0 0.0
        %378 = vmatpush.msra.mxu0 0.0
        %379 = vmatpush.msra.mxu0 0.0
        %380 = vmatpush.msra.mxu0 0.0
        %381 = vmatpush.msra.mxu0 0.0
        %382 = vmatpush.msra.mxu0 %v359
        %383 = vmatpush.msra.mxu0 %v357
        %384 = vmatpush.msra.mxu0 %v355
        %385 = vmatpush.msra.mxu0 %v353
        %386 = vmatmul.f32.gmra.mxu0 %v365
        %v387 = vpop.f32.mrf.mxu0
        %v388 = vadd.f32 0.0, %v387
        %389 = vmatmul.f32.gmra.mxu0 %v368
        %v390 = vpop.f32.mrf.mxu0
        %v391 = vadd.f32 0.0, %v390
        %392 = vdwg.mxu0
        %393 = vmatpush.msra.mxu0 0.0
        %394 = vmatpush.msra.mxu0 0.0
        %395 = vmatpush.msra.mxu0 0.0
        %396 = vmatpush.msra.mxu0 0.0
        %397 = vmatpush.msra.mxu0 0.0
        %398 = vmatpush.msra.mxu0 0.0
        %399 = vmatpush.msra.mxu0 0.0
        %400 = vmatpush.msra.mxu0 0.0
        %401 = vmatpush.msra.mxu0 0.0
        %402 = vmatpush.msra.mxu0 0.0
        %403 = vmatpush.msra.mxu0 0.0
        %404 = vmatpush.msra.mxu0 0.0
        %405 = vmatpush.msra.mxu0 %v360
        %406 = vmatpush.msra.mxu0 %v358
        %407 = vmatpush.msra.mxu0 %v356
        %408 = vmatpush.msra.mxu0 %v354
        %409 = vmatmul.f32.gmra.mxu0 %v365
        %v410 = vpop.f32.mrf.mxu0
        %v411 = vadd.f32 0.0, %v410
        %412 = vmatmul.f32.gmra.mxu0 %v368
        %v413 = vpop.f32.mrf.mxu0
        %v414 = vadd.f32 0.0, %v413
        %415 = vdwg.mxu0
        %v416 = vld [vmem:[#allocation8 + $0x310] sm:$0xff]
        %v417 = vld [vmem:[#allocation8 + $0x318] sm:$0xff]
        %v419 = vsel %vm363, %v416, 0
        %v422 = vsel %vm363, %v417, 0
        %424 = vmatpush.msra.mxu0 0.0
        %425 = vmatpush.msra.mxu0 0.0
        %426 = vmatpush.msra.mxu0 0.0
        %427 = vmatpush.msra.mxu0 0.0
        %428 = vmatpush.msra.mxu0 0.0
        %429 = vmatpush.msra.mxu0 0.0
        %430 = vmatpush.msra.mxu0 0.0
        %431 = vmatpush.msra.mxu0 0.0
        %432 = vmatpush.msra.mxu0 0.0
        %433 = vmatpush.msra.mxu0 0.0
        %434 = vmatpush.msra.mxu0 0.0
        %435 = vmatpush.msra.mxu0 0.0
        %436 = vmatpush.msra.mxu0 %v359
        %437 = vmatpush.msra.mxu0 %v357
        %438 = vmatpush.msra.mxu0 %v355
        %439 = vmatpush.msra.mxu0 %v353
        %440 = vmatmul.f32.gmra.mxu0 %v419
        %v441 = vpop.f32.mrf.mxu0
        %v442 = vadd.f32 0.0, %v441
        %443 = vmatmul.f32.gmra.mxu0 %v422
        %v444 = vpop.f32.mrf.mxu0
        %v445 = vadd.f32 0.0, %v444
        %446 = vdwg.mxu0
        %447 = vmatpush.msra.mxu0 0.0
        %448 = vmatpush.msra.mxu0 0.0
        %449 = vmatpush.msra.mxu0 0.0
        %450 = vmatpush.msra.mxu0 0.0
        %451 = vmatpush.msra.mxu0 0.0
        %452 = vmatpush.msra.mxu0 0.0
        %453 = vmatpush.msra.mxu0 0.0
        %454 = vmatpush.msra.mxu0 0.0
        %455 = vmatpush.msra.mxu0 0.0
        %456 = vmatpush.msra.mxu0 0.0
        %457 = vmatpush.msra.mxu0 0.0
        %458 = vmatpush.msra.mxu0 0.0
        %459 = vmatpush.msra.mxu0 %v360
        %460 = vmatpush.msra.mxu0 %v358
        %461 = vmatpush.msra.mxu0 %v356
        %462 = vmatpush.msra.mxu0 %v354
        %463 = vmatmul.f32.gmra.mxu0 %v419
        %v464 = vpop.f32.mrf.mxu0
        %v465 = vadd.f32 0.0, %v464
        %466 = vmatmul.f32.gmra.mxu0 %v422
        %v467 = vpop.f32.mrf.mxu0
        %v468 = vadd.f32 0.0, %v467
        %469 = vdwg.mxu0
        %v470 = vld [vmem:[#allocation8 + $0x320] sm:$0xff]
        %v471 = vld [vmem:[#allocation8 + $0x328] sm:$0xff]
        %v473 = vsel %vm363, %v470, 0
        %v476 = vsel %vm363, %v471, 0
        %478 = vmatpush.msra.mxu0 0.0
        %479 = vmatpush.msra.mxu0 0.0
        %480 = vmatpush.msra.mxu0 0.0
        %481 = vmatpush.msra.mxu0 0.0
        %482 = vmatpush.msra.mxu0 0.0
        %483 = vmatpush.msra.mxu0 0.0
        %484 = vmatpush.msra.mxu0 0.0
        %485 = vmatpush.msra.mxu0 0.0
        %486 = vmatpush.msra.mxu0 0.0
        %487 = vmatpush.msra.mxu0 0.0
        %488 = vmatpush.msra.mxu0 0.0
        %489 = vmatpush.msra.mxu0 0.0
        %490 = vmatpush.msra.mxu0 %v359
        %491 = vmatpush.msra.mxu0 %v357
        %492 = vmatpush.msra.mxu0 %v355
        %493 = vmatpush.msra.mxu0 %v353
        %494 = vmatmul.f32.gmra.mxu0 %v473
        %v495 = vpop.f32.mrf.mxu0
        %v496 = vadd.f32 0.0, %v495
        %497 = vmatmul.f32.gmra.mxu0 %v476
        %v498 = vpop.f32.mrf.mxu0
        %v499 = vadd.f32 0.0, %v498
        %500 = vdwg.mxu0
        %501 = vmatpush.msra.mxu0 0.0
        %502 = vmatpush.msra.mxu0 0.0
        %503 = vmatpush.msra.mxu0 0.0
        %504 = vmatpush.msra.mxu0 0.0
        %505 = vmatpush.msra.mxu0 0.0
        %506 = vmatpush.msra.mxu0 0.0
        %507 = vmatpush.msra.mxu0 0.0
        %508 = vmatpush.msra.mxu0 0.0
        %509 = vmatpush.msra.mxu0 0.0
        %510 = vmatpush.msra.mxu0 0.0
        %511 = vmatpush.msra.mxu0 0.0
        %512 = vmatpush.msra.mxu0 0.0
        %513 = vmatpush.msra.mxu0 %v360
        %514 = vmatpush.msra.mxu0 %v358
        %515 = vmatpush.msra.mxu0 %v356
        %516 = vmatpush.msra.mxu0 %v354
        %517 = vmatmul.f32.gmra.mxu0 %v473
        %v518 = vpop.f32.mrf.mxu0
        %v519 = vadd.f32 0.0, %v518
        %520 = vmatmul.f32.gmra.mxu0 %v476
        %v521 = vpop.f32.mrf.mxu0
        %v522 = vadd.f32 0.0, %v521
        %523 = vdwg.mxu0
        %v524 = vld [vmem:[#allocation8 + $0x330] sm:$0x1]
        %v525 = vld [vmem:[#allocation8] sm:$0xff]
        %v526 = vld [vmem:[#allocation8 + $0x8] sm:$0xff]
        %v527 = vld [vmem:[#allocation8 + $0x10] sm:$0xff]
        %v528 = vld [vmem:[#allocation8 + $0x18] sm:$0xff]
        %v529 = vld [vmem:[#allocation8 + $0x20] sm:$0xff]
        %v530 = vld [vmem:[#allocation8 + $0x28] sm:$0xff]
        %v531 = vld [vmem:[#allocation8 + $0x30] sm:$0xff]
        %v532 = vld [vmem:[#allocation8 + $0x38] sm:$0xff]
        %v533 = vld [vmem:[#allocation8 + $0x40] sm:$0xff]
        %v534 = vld [vmem:[#allocation8 + $0x48] sm:$0xff]
        %v535 = vld [vmem:[#allocation8 + $0x50] sm:$0xff]
        %v536 = vld [vmem:[#allocation8 + $0x58] sm:$0xff]
        %v537 = vld [vmem:[#allocation8 + $0x60] sm:$0xff]
        %v538 = vld [vmem:[#allocation8 + $0x68] sm:$0xff]
        %v539 = vld [vmem:[#allocation8 + $0x70] sm:$0xff]
        %v540 = vld [vmem:[#allocation8 + $0x78] sm:$0xff]
        %v541 = vld [vmem:[#allocation8 + $0x80] sm:$0xff]
        %v542 = vld [vmem:[#allocation8 + $0x88] sm:$0xff]
        %v543 = vld [vmem:[#allocation8 + $0x90] sm:$0xff]
        %v544 = vld [vmem:[#allocation8 + $0x98] sm:$0xff]
        %v545 = vld [vmem:[#allocation8 + $0xa0] sm:$0xff]
        %v546 = vld [vmem:[#allocation8 + $0xa8] sm:$0xff]
        %v547 = vld [vmem:[#allocation8 + $0xb0] sm:$0xff]
        %v548 = vld [vmem:[#allocation8 + $0xb8] sm:$0xff]
        %v549 = vld [vmem:[#allocation8 + $0xc0] sm:$0xff]
        %v550 = vld [vmem:[#allocation8 + $0xc8] sm:$0xff]
        %v551 = vld [vmem:[#allocation8 + $0xd0] sm:$0xff]
        %v552 = vld [vmem:[#allocation8 + $0xd8] sm:$0xff]
        %v553 = vld [vmem:[#allocation8 + $0xe0] sm:$0xff]
        %v554 = vld [vmem:[#allocation8 + $0xe8] sm:$0xff]
        %v555 = vld [vmem:[#allocation8 + $0xf0] sm:$0xff]
        %v556 = vld [vmem:[#allocation8 + $0xf8] sm:$0xff]
        %v557 = vld [vmem:[#allocation8 + $0x100] sm:$0xff]
        %v558 = vld [vmem:[#allocation8 + $0x108] sm:$0xff]
        %v559 = vld [vmem:[#allocation8 + $0x110] sm:$0xff]
        %v560 = vld [vmem:[#allocation8 + $0x118] sm:$0xff]
        %v561 = vld [vmem:[#allocation8 + $0x120] sm:$0xff]
        %v562 = vld [vmem:[#allocation8 + $0x128] sm:$0xff]
        %v563 = vld [vmem:[#allocation8 + $0x130] sm:$0xff]
        %v564 = vld [vmem:[#allocation8 + $0x138] sm:$0xff]
        %v565 = vld [vmem:[#allocation8 + $0x140] sm:$0xff]
        %v566 = vld [vmem:[#allocation8 + $0x148] sm:$0xff]
        %v567 = vld [vmem:[#allocation8 + $0x150] sm:$0xff]
        %v568 = vld [vmem:[#allocation8 + $0x158] sm:$0xff]
        %v569 = vld [vmem:[#allocation8 + $0x160] sm:$0xff]
        %v570 = vld [vmem:[#allocation8 + $0x168] sm:$0xff]
        %v571 = vld [vmem:[#allocation8 + $0x170] sm:$0xff]
        %v572 = vld [vmem:[#allocation8 + $0x178] sm:$0xff]
        %v573 = vld [vmem:[#allocation8 + $0x180] sm:$0xff]
        %v574 = vld [vmem:[#allocation8 + $0x188] sm:$0xff]
        %v575 = vld [vmem:[#allocation8 + $0x190] sm:$0xff]
        %v576 = vld [vmem:[#allocation8 + $0x198] sm:$0xff]
        %v577 = vld [vmem:[#allocation8 + $0x1a0] sm:$0xff]
        %v578 = vld [vmem:[#allocation8 + $0x1a8] sm:$0xff]
        %v579 = vld [vmem:[#allocation8 + $0x1b0] sm:$0xff]
        %v580 = vld [vmem:[#allocation8 + $0x1b8] sm:$0xff]
        %v581 = vld [vmem:[#allocation8 + $0x1c0] sm:$0xff]
        %v582 = vld [vmem:[#allocation8 + $0x1c8] sm:$0xff]
        %v583 = vld [vmem:[#allocation8 + $0x1d0] sm:$0xff]
        %v584 = vld [vmem:[#allocation8 + $0x1d8] sm:$0xff]
        %v585 = vld [vmem:[#allocation8 + $0x1e0] sm:$0xff]
        %v586 = vld [vmem:[#allocation8 + $0x1e8] sm:$0xff]
        %v587 = vld [vmem:[#allocation8 + $0x1f0] sm:$0xff]
        %v588 = vld [vmem:[#allocation8 + $0x1f8] sm:$0xff]
        %v589 = vld [vmem:[#allocation8 + $0x200] sm:$0xff]
        %v590 = vld [vmem:[#allocation8 + $0x208] sm:$0xff]
        %v591 = vld [vmem:[#allocation8 + $0x210] sm:$0xff]
        %v592 = vld [vmem:[#allocation8 + $0x218] sm:$0xff]
        %v593 = vld [vmem:[#allocation8 + $0x220] sm:$0xff]
        %v594 = vld [vmem:[#allocation8 + $0x228] sm:$0xff]
        %v595 = vld [vmem:[#allocation8 + $0x230] sm:$0xff]
        %v596 = vld [vmem:[#allocation8 + $0x238] sm:$0xff]
        %v597 = vld [vmem:[#allocation8 + $0x240] sm:$0xff]
        %v598 = vld [vmem:[#allocation8 + $0x248] sm:$0xff]
        %v599 = vld [vmem:[#allocation8 + $0x250] sm:$0xff]
        %v600 = vld [vmem:[#allocation8 + $0x258] sm:$0xff]
        %v601 = vld [vmem:[#allocation8 + $0x260] sm:$0xff]
        %v602 = vld [vmem:[#allocation8 + $0x268] sm:$0xff]
        %v603 = vld [vmem:[#allocation8 + $0x270] sm:$0xff]
        %v604 = vld [vmem:[#allocation8 + $0x278] sm:$0xff]
        %v605 = vld [vmem:[#allocation8 + $0x280] sm:$0xff]
        %v606 = vld [vmem:[#allocation8 + $0x288] sm:$0xff]
        %v607 = vld [vmem:[#allocation8 + $0x290] sm:$0xff]
        %v608 = vld [vmem:[#allocation8 + $0x298] sm:$0xff]
        %v609 = vld [vmem:[#allocation8 + $0x2a0] sm:$0xff]
        %v610 = vld [vmem:[#allocation8 + $0x2a8] sm:$0xff]
        %v611 = vld [vmem:[#allocation8 + $0x2b0] sm:$0xff]
        %v612 = vld [vmem:[#allocation8 + $0x2b8] sm:$0xff]
        %v613 = vld [vmem:[#allocation8 + $0x2c0] sm:$0xff]
        %v614 = vld [vmem:[#allocation8 + $0x2c8] sm:$0xff]
        %v615 = vld [vmem:[#allocation8 + $0x2d0] sm:$0xff]
        %v616 = vld [vmem:[#allocation8 + $0x2d8] sm:$0xff]
        %v617 = vld [vmem:[#allocation8 + $0x2e0] sm:$0xff]
        %v618 = vld [vmem:[#allocation8 + $0x2e8] sm:$0xff]
        %v619 = vld [vmem:[#allocation8 + $0x2f0] sm:$0xff]
        %v620 = vld [vmem:[#allocation8 + $0x2f8] sm:$0xff]
        %v621 = vperm.slane %v524, 0
        %622 = vmatpush.msra.mxu0 %v540
        %623 = vmatpush.msra.mxu0 %v539
        %624 = vmatpush.msra.mxu0 %v538
        %625 = vmatpush.msra.mxu0 %v537
        %626 = vmatpush.msra.mxu0 %v536
        %627 = vmatpush.msra.mxu0 %v535
        %628 = vmatpush.msra.mxu0 %v534
        %629 = vmatpush.msra.mxu0 %v533
        %630 = vmatpush.msra.mxu0 %v532
        %631 = vmatpush.msra.mxu0 %v531
        %632 = vmatpush.msra.mxu0 %v530
        %633 = vmatpush.msra.mxu0 %v529
        %634 = vmatpush.msra.mxu0 %v528
        %635 = vmatpush.msra.mxu0 %v527
        %636 = vmatpush.msra.mxu0 %v526
        %637 = vmatpush.msra.mxu0 %v525
        %638 = vmatmul.f32.gmra.mxu0 %v388
        %v639 = vpop.f32.mrf.mxu0
        %v640 = vadd.f32 %v621, %v639
        %641 = vmatmul.f32.gmra.mxu0 %v391
        %v642 = vpop.f32.mrf.mxu0
        %v643 = vadd.f32 %v621, %v642
        %644 = vdwg.mxu0
        %645 = vmatpush.msra.mxu0 %v556
        %646 = vmatpush.msra.mxu0 %v555
        %647 = vmatpush.msra.mxu0 %v554
        %648 = vmatpush.msra.mxu0 %v553
        %649 = vmatpush.msra.mxu0 %v552
        %650 = vmatpush.msra.mxu0 %v551
        %651 = vmatpush.msra.mxu0 %v550
        %652 = vmatpush.msra.mxu0 %v549
        %653 = vmatpush.msra.mxu0 %v548
        %654 = vmatpush.msra.mxu0 %v547
        %655 = vmatpush.msra.mxu0 %v546
        %656 = vmatpush.msra.mxu0 %v545
        %657 = vmatpush.msra.mxu0 %v544
        %658 = vmatpush.msra.mxu0 %v543
        %659 = vmatpush.msra.mxu0 %v542
        %660 = vmatpush.msra.mxu0 %v541
        %661 = vmatmul.f32.gmra.mxu0 %v411
        %v662 = vpop.f32.mrf.mxu0
        %v663 = vadd.f32 %v640, %v662
        %664 = vmatmul.f32.gmra.mxu0 %v414
        %v665 = vpop.f32.mrf.mxu0
        %v666 = vadd.f32 %v643, %v665
        %667 = vdwg.mxu0
        %668 = vmatpush.msra.mxu0 %v572
        %669 = vmatpush.msra.mxu0 %v571
        %670 = vmatpush.msra.mxu0 %v570
        %671 = vmatpush.msra.mxu0 %v569
        %672 = vmatpush.msra.mxu0 %v568
        %673 = vmatpush.msra.mxu0 %v567
        %674 = vmatpush.msra.mxu0 %v566
        %675 = vmatpush.msra.mxu0 %v565
        %676 = vmatpush.msra.mxu0 %v564
        %677 = vmatpush.msra.mxu0 %v563
        %678 = vmatpush.msra.mxu0 %v562
        %679 = vmatpush.msra.mxu0 %v561
        %680 = vmatpush.msra.mxu0 %v560
        %681 = vmatpush.msra.mxu0 %v559
        %682 = vmatpush.msra.mxu0 %v558
        %683 = vmatpush.msra.mxu0 %v557
        %684 = vmatmul.f32.gmra.mxu0 %v442
        %v685 = vpop.f32.mrf.mxu0
        %v686 = vadd.f32 %v663, %v685
        %687 = vmatmul.f32.gmra.mxu0 %v445
        %v688 = vpop.f32.mrf.mxu0
        %v689 = vadd.f32 %v666, %v688
        %690 = vdwg.mxu0
        %691 = vmatpush.msra.mxu0 %v588
        %692 = vmatpush.msra.mxu0 %v587
        %693 = vmatpush.msra.mxu0 %v586
        %694 = vmatpush.msra.mxu0 %v585
        %695 = vmatpush.msra.mxu0 %v584
        %696 = vmatpush.msra.mxu0 %v583
        %697 = vmatpush.msra.mxu0 %v582
        %698 = vmatpush.msra.mxu0 %v581
        %699 = vmatpush.msra.mxu0 %v580
        %700 = vmatpush.msra.mxu0 %v579
        %701 = vmatpush.msra.mxu0 %v578
        %702 = vmatpush.msra.mxu0 %v577
        %703 = vmatpush.msra.mxu0 %v576
        %704 = vmatpush.msra.mxu0 %v575
        %705 = vmatpush.msra.mxu0 %v574
        %706 = vmatpush.msra.mxu0 %v573
        %707 = vmatmul.f32.gmra.mxu0 %v465
        %v708 = vpop.f32.mrf.mxu0
        %v709 = vadd.f32 %v686, %v708
        %710 = vmatmul.f32.gmra.mxu0 %v468
        %v711 = vpop.f32.mrf.mxu0
        %v712 = vadd.f32 %v689, %v711
        %713 = vdwg.mxu0
        %714 = vmatpush.msra.mxu0 %v604
        %715 = vmatpush.msra.mxu0 %v603
        %716 = vmatpush.msra.mxu0 %v602
        %717 = vmatpush.msra.mxu0 %v601
        %718 = vmatpush.msra.mxu0 %v600
        %719 = vmatpush.msra.mxu0 %v599
        %720 = vmatpush.msra.mxu0 %v598
        %721 = vmatpush.msra.mxu0 %v597
        %722 = vmatpush.msra.mxu0 %v596
        %723 = vmatpush.msra.mxu0 %v595
        %724 = vmatpush.msra.mxu0 %v594
        %725 = vmatpush.msra.mxu0 %v593
        %726 = vmatpush.msra.mxu0 %v592
        %727 = vmatpush.msra.mxu0 %v591
        %728 = vmatpush.msra.mxu0 %v590
        %729 = vmatpush.msra.mxu0 %v589
        %730 = vmatmul.f32.gmra.mxu0 %v496
        %v731 = vpop.f32.mrf.mxu0
        %v732 = vadd.f32 %v709, %v731
        %733 = vmatmul.f32.gmra.mxu0 %v499
        %v734 = vpop.f32.mrf.mxu0
        %v735 = vadd.f32 %v712, %v734
        %736 = vdwg.mxu0
        %737 = vmatpush.msra.mxu0 %v620
        %738 = vmatpush.msra.mxu0 %v619
        %739 = vmatpush.msra.mxu0 %v618
        %740 = vmatpush.msra.mxu0 %v617
        %741 = vmatpush.msra.mxu0 %v616
        %742 = vmatpush.msra.mxu0 %v615
        %743 = vmatpush.msra.mxu0 %v614
        %744 = vmatpush.msra.mxu0 %v613
        %745 = vmatpush.msra.mxu0 %v612
        %746 = vmatpush.msra.mxu0 %v611
        %747 = vmatpush.msra.mxu0 %v610
        %748 = vmatpush.msra.mxu0 %v609
        %749 = vmatpush.msra.mxu0 %v608
        %750 = vmatpush.msra.mxu0 %v607
        %751 = vmatpush.msra.mxu0 %v606
        %752 = vmatpush.msra.mxu0 %v605
        %753 = vmatmul.f32.gmra.mxu0 %v519
        %v754 = vpop.f32.mrf.mxu0
        %v755 = vadd.f32 %v732, %v754
        %756 = vmatmul.f32.gmra.mxu0 %v522
        %v757 = vpop.f32.mrf.mxu0
        %v758 = vadd.f32 %v735, %v757
        %759 = vdwg.mxu0
        %v760 = vld [vmem:[%s295] sm:$0xff]
        %v761 = vld [vmem:[#allocation8 + $0xa60] sm:$0xff]
        %v762 = vld [vmem:[#allocation8 + $0xa68] sm:$0xff]
        %vm763 = vcmask 64512
        %v765 = vsel %vm763, %v761, 0
        %v768 = vsel %vm763, %v762, 0
        %770 = vmatpush.msra.mxu0 0.0
        %771 = vmatpush.msra.mxu0 0.0
        %772 = vmatpush.msra.mxu0 0.0
        %773 = vmatpush.msra.mxu0 0.0
        %774 = vmatpush.msra.mxu0 0.0
        %775 = vmatpush.msra.mxu0 0.0
        %776 = vmatpush.msra.mxu0 0.0
        %777 = vmatpush.msra.mxu0 0.0
        %778 = vmatpush.msra.mxu0 0.0
        %779 = vmatpush.msra.mxu0 0.0
        %780 = vmatpush.msra.mxu0 0.0
        %781 = vmatpush.msra.mxu0 0.0
        %782 = vmatpush.msra.mxu0 0.0
        %783 = vmatpush.msra.mxu0 0.0
        %784 = vmatpush.msra.mxu0 0.0
        %785 = vmatpush.msra.mxu0 %v760
        %786 = vmatmul.f32.gmra.mxu0 %v765
        %v787 = vpop.f32.mrf.mxu0
        %v788 = vadd.f32 0.0, %v787
        %789 = vmatmul.f32.gmra.mxu0 %v768
        %v790 = vpop.f32.mrf.mxu0
        %v791 = vadd.f32 0.0, %v790
        %792 = vdwg.mxu0
        %v793 = vld [vmem:[#allocation8 + $0xa20] sm:$0xff]
        %v794 = vld [vmem:[#allocation8 + $0xa28] sm:$0xff]
        %v795 = vld [vmem:[#allocation8 + $0xa30] sm:$0xff]
        %v796 = vld [vmem:[#allocation8 + $0xa38] sm:$0xff]
        %v797 = vld [vmem:[#allocation8 + $0xa40] sm:$0xff]
        %v798 = vld [vmem:[#allocation8 + $0xa48] sm:$0xff]
        %v799 = vld [vmem:[#allocation8 + $0xa50] sm:$0xff]
        %v800 = vld [vmem:[#allocation8 + $0xa58] sm:$0xff]
        %vm801 = vcmask 523264
        %v803 = vsel %vm801, %v788, 0
        %v806 = vsel %vm801, %v791, 0
        %808 = vmatpush.msra.mxu0 0.0
        %809 = vmatpush.msra.mxu0 0.0
        %810 = vmatpush.msra.mxu0 0.0
        %811 = vmatpush.msra.mxu0 0.0
        %812 = vmatpush.msra.mxu0 0.0
        %813 = vmatpush.msra.mxu0 0.0
        %814 = vmatpush.msra.mxu0 0.0
        %815 = vmatpush.msra.mxu0 0.0
        %816 = vmatpush.msra.mxu0 %v800
        %817 = vmatpush.msra.mxu0 %v799
        %818 = vmatpush.msra.mxu0 %v798
        %819 = vmatpush.msra.mxu0 %v797
        %820 = vmatpush.msra.mxu0 %v796
        %821 = vmatpush.msra.mxu0 %v795
        %822 = vmatpush.msra.mxu0 %v794
        %823 = vmatpush.msra.mxu0 %v793
        %824 = vmatmul.f32.gmra.mxu0 %v803
        %v825 = vpop.f32.mrf.mxu0
        %v826 = vadd.f32 0.0, %v825
        %827 = vmatmul.f32.gmra.mxu0 %v806
        %v828 = vpop.f32.mrf.mxu0
        %v829 = vadd.f32 0.0, %v828
        %830 = vdwg.mxu0
        %v831 = vadd.f32 %v755, %v826
        %v832 = vadd.f32 %v758, %v829
        %v833 = vld [vmem:[#allocation8 + $0x4b8] sm:$0xff]
        %vm834 = vcmask 130048
        %v836 = vsel %vm834, %v833, 0
        %838 = vmatpush.msra.mxu0 0.0
        %839 = vmatpush.msra.mxu0 0.0
        %840 = vmatpush.msra.mxu0 0.0
        %841 = vmatpush.msra.mxu0 0.0
        %842 = vmatpush.msra.mxu0 0.0
        %843 = vmatpush.msra.mxu0 0.0
        %844 = vmatpush.msra.mxu0 0.0
        %845 = vmatpush.msra.mxu0 0.0
        %846 = vmatpush.msra.mxu0 0.0
        %847 = vmatpush.msra.mxu0 0.0
        %848 = vmatpush.msra.mxu0 0.0
        %849 = vmatpush.msra.mxu0 0.0
        %850 = vmatpush.msra.mxu0 0.0
        %851 = vmatpush.msra.mxu0 0.0
        %852 = vmatpush.msra.mxu0 %v832
        %853 = vmatpush.msra.mxu0 %v831
        %854 = vmatmul.f32.gmra.mxu0 %v836
        %v855 = vpop.f32.mrf.mxu0
        %v856 = vadd.f32 0.0, %v855
        %857 = vdwg.mxu0
        %v858 = vld [vmem:[#allocation8 + $0x4c0] sm:$0xff]
        %v860 = vsel %vm834, %v858, 0
        %862 = vmatpush.msra.mxu0 0.0
        %863 = vmatpush.msra.mxu0 0.0
        %864 = vmatpush.msra.mxu0 0.0
        %865 = vmatpush.msra.mxu0 0.0
        %866 = vmatpush.msra.mxu0 0.0
        %867 = vmatpush.msra.mxu0 0.0
        %868 = vmatpush.msra.mxu0 0.0
        %869 = vmatpush.msra.mxu0 0.0
        %870 = vmatpush.msra.mxu0 0.0
        %871 = vmatpush.msra.mxu0 0.0
        %872 = vmatpush.msra.mxu0 0.0
        %873 = vmatpush.msra.mxu0 0.0
        %874 = vmatpush.msra.mxu0 0.0
        %875 = vmatpush.msra.mxu0 0.0
        %876 = vmatpush.msra.mxu0 %v832
        %877 = vmatpush.msra.mxu0 %v831
        %878 = vmatmul.f32.gmra.mxu0 %v860
        %v879 = vpop.f32.mrf.mxu0
        %v880 = vadd.f32 0.0, %v879
        %881 = vdwg.mxu0
        %v882 = vld [vmem:[#allocation8 + $0x4c8] sm:$0xff]
        %v884 = vsel %vm834, %v882, 0
        %886 = vmatpush.msra.mxu0 0.0
        %887 = vmatpush.msra.mxu0 0.0
        %888 = vmatpush.msra.mxu0 0.0
        %889 = vmatpush.msra.mxu0 0.0
        %890 = vmatpush.msra.mxu0 0.0
        %891 = vmatpush.msra.mxu0 0.0
        %892 = vmatpush.msra.mxu0 0.0
        %893 = vmatpush.msra.mxu0 0.0
        %894 = vmatpush.msra.mxu0 0.0
        %895 = vmatpush.msra.mxu0 0.0
        %896 = vmatpush.msra.mxu0 0.0
        %897 = vmatpush.msra.mxu0 0.0
        %898 = vmatpush.msra.mxu0 0.0
        %899 = vmatpush.msra.mxu0 0.0
        %900 = vmatpush.msra.mxu0 %v832
        %901 = vmatpush.msra.mxu0 %v831
        %902 = vmatmul.f32.gmra.mxu0 %v884
        %v903 = vpop.f32.mrf.mxu0
        %v904 = vadd.f32 0.0, %v903
        %905 = vdwg.mxu0
        %v906 = vld [vmem:[#allocation8 + $0x4d0] sm:$0x1]
        %v907 = vld [vmem:[#allocation8 + $0x338] sm:$0xff]
        %v908 = vld [vmem:[#allocation8 + $0x340] sm:$0xff]
        %v909 = vld [vmem:[#allocation8 + $0x348] sm:$0xff]
        %v910 = vld [vmem:[#allocation8 + $0x350] sm:$0xff]
        %v911 = vld [vmem:[#allocation8 + $0x358] sm:$0xff]
        %v912 = vld [vmem:[#allocation8 + $0x360] sm:$0xff]
        %v913 = vld [vmem:[#allocation8 + $0x368] sm:$0xff]
        %v914 = vld [vmem:[#allocation8 + $0x370] sm:$0xff]
        %v915 = vld [vmem:[#allocation8 + $0x378] sm:$0xff]
        %v916 = vld [vmem:[#allocation8 + $0x380] sm:$0xff]
        %v917 = vld [vmem:[#allocation8 + $0x388] sm:$0xff]
        %v918 = vld [vmem:[#allocation8 + $0x390] sm:$0xff]
        %v919 = vld [vmem:[#allocation8 + $0x398] sm:$0xff]
        %v920 = vld [vmem:[#allocation8 + $0x3a0] sm:$0xff]
        %v921 = vld [vmem:[#allocation8 + $0x3a8] sm:$0xff]
        %v922 = vld [vmem:[#allocation8 + $0x3b0] sm:$0xff]
        %v923 = vld [vmem:[#allocation8 + $0x3b8] sm:$0xff]
        %v924 = vld [vmem:[#allocation8 + $0x3c0] sm:$0xff]
        %v925 = vld [vmem:[#allocation8 + $0x3c8] sm:$0xff]
        %v926 = vld [vmem:[#allocation8 + $0x3d0] sm:$0xff]
        %v927 = vld [vmem:[#allocation8 + $0x3d8] sm:$0xff]
        %v928 = vld [vmem:[#allocation8 + $0x3e0] sm:$0xff]
        %v929 = vld [vmem:[#allocation8 + $0x3e8] sm:$0xff]
        %v930 = vld [vmem:[#allocation8 + $0x3f0] sm:$0xff]
        %v931 = vld [vmem:[#allocation8 + $0x3f8] sm:$0xff]
        %v932 = vld [vmem:[#allocation8 + $0x400] sm:$0xff]
        %v933 = vld [vmem:[#allocation8 + $0x408] sm:$0xff]
        %v934 = vld [vmem:[#allocation8 + $0x410] sm:$0xff]
        %v935 = vld [vmem:[#allocation8 + $0x418] sm:$0xff]
        %v936 = vld [vmem:[#allocation8 + $0x420] sm:$0xff]
        %v937 = vld [vmem:[#allocation8 + $0x428] sm:$0xff]
        %v938 = vld [vmem:[#allocation8 + $0x430] sm:$0xff]
        %v939 = vld [vmem:[#allocation8 + $0x438] sm:$0xff]
        %v940 = vld [vmem:[#allocation8 + $0x440] sm:$0xff]
        %v941 = vld [vmem:[#allocation8 + $0x448] sm:$0xff]
        %v942 = vld [vmem:[#allocation8 + $0x450] sm:$0xff]
        %v943 = vld [vmem:[#allocation8 + $0x458] sm:$0xff]
        %v944 = vld [vmem:[#allocation8 + $0x460] sm:$0xff]
        %v945 = vld [vmem:[#allocation8 + $0x468] sm:$0xff]
        %v946 = vld [vmem:[#allocation8 + $0x470] sm:$0xff]
        %v947 = vld [vmem:[#allocation8 + $0x478] sm:$0xff]
        %v948 = vld [vmem:[#allocation8 + $0x480] sm:$0xff]
        %v949 = vld [vmem:[#allocation8 + $0x488] sm:$0xff]
        %v950 = vld [vmem:[#allocation8 + $0x490] sm:$0xff]
        %v951 = vld [vmem:[#allocation8 + $0x498] sm:$0xff]
        %v952 = vld [vmem:[#allocation8 + $0x4a0] sm:$0xff]
        %v953 = vld [vmem:[#allocation8 + $0x4a8] sm:$0xff]
        %v954 = vld [vmem:[#allocation8 + $0x4b0] sm:$0xff]
        %v955 = vperm.slane %v906, 0
        %956 = vmatpush.msra.mxu0 %v922
        %957 = vmatpush.msra.mxu0 %v921
        %958 = vmatpush.msra.mxu0 %v920
        %959 = vmatpush.msra.mxu0 %v919
        %960 = vmatpush.msra.mxu0 %v918
        %961 = vmatpush.msra.mxu0 %v917
        %962 = vmatpush.msra.mxu0 %v916
        %963 = vmatpush.msra.mxu0 %v915
        %964 = vmatpush.msra.mxu0 %v914
        %965 = vmatpush.msra.mxu0 %v913
        %966 = vmatpush.msra.mxu0 %v912
        %967 = vmatpush.msra.mxu0 %v911
        %968 = vmatpush.msra.mxu0 %v910
        %969 = vmatpush.msra.mxu0 %v909
        %970 = vmatpush.msra.mxu0 %v908
        %971 = vmatpush.msra.mxu0 %v907
        %972 = vmatmul.f32.gmra.mxu0 %v856
        %v973 = vpop.f32.mrf.mxu0
        %v974 = vadd.f32 %v955, %v973
        %975 = vdwg.mxu0
        %976 = vmatpush.msra.mxu0 %v938
        %977 = vmatpush.msra.mxu0 %v937
        %978 = vmatpush.msra.mxu0 %v936
        %979 = vmatpush.msra.mxu0 %v935
        %980 = vmatpush.msra.mxu0 %v934
        %981 = vmatpush.msra.mxu0 %v933
        %982 = vmatpush.msra.mxu0 %v932
        %983 = vmatpush.msra.mxu0 %v931
        %984 = vmatpush.msra.mxu0 %v930
        %985 = vmatpush.msra.mxu0 %v929
        %986 = vmatpush.msra.mxu0 %v928
        %987 = vmatpush.msra.mxu0 %v927
        %988 = vmatpush.msra.mxu0 %v926
        %989 = vmatpush.msra.mxu0 %v925
        %990 = vmatpush.msra.mxu0 %v924
        %991 = vmatpush.msra.mxu0 %v923
        %992 = vmatmul.f32.gmra.mxu0 %v880
        %v993 = vpop.f32.mrf.mxu0
        %v994 = vadd.f32 %v974, %v993
        %995 = vdwg.mxu0
        %996 = vmatpush.msra.mxu0 %v954
        %997 = vmatpush.msra.mxu0 %v953
        %998 = vmatpush.msra.mxu0 %v952
        %999 = vmatpush.msra.mxu0 %v951
        %1000 = vmatpush.msra.mxu0 %v950
        %1001 = vmatpush.msra.mxu0 %v949
        %1002 = vmatpush.msra.mxu0 %v948
        %1003 = vmatpush.msra.mxu0 %v947
        %1004 = vmatpush.msra.mxu0 %v946
        %1005 = vmatpush.msra.mxu0 %v945
        %1006 = vmatpush.msra.mxu0 %v944
        %1007 = vmatpush.msra.mxu0 %v943
        %1008 = vmatpush.msra.mxu0 %v942
        %1009 = vmatpush.msra.mxu0 %v941
        %1010 = vmatpush.msra.mxu0 %v940
        %1011 = vmatpush.msra.mxu0 %v939
        %1012 = vmatmul.f32.gmra.mxu0 %v904
        %v1013 = vpop.f32.mrf.mxu0
        %v1014 = vadd.f32 %v994, %v1013
        %1015 = vdwg.mxu0
        %v1016 = vld [vmem:[%s305] sm:$0xf]
        %v1017 = vld [vmem:[#allocation8 + $0xa90] sm:$0xff]
        %vm1018 = vcmask 31744
        %v1020 = vsel %vm1018, %v1017, 0
        %vm1022 = vcmask 1043456
        %v1024 = vsel %vm1022, %v1016, 0
        %1026 = vmatpush.msra.mxu0 0.0
        %1027 = vmatpush.msra.mxu0 0.0
        %1028 = vmatpush.msra.mxu0 0.0
        %1029 = vmatpush.msra.mxu0 0.0
        %1030 = vmatpush.msra.mxu0 0.0
        %1031 = vmatpush.msra.mxu0 0.0
        %1032 = vmatpush.msra.mxu0 0.0
        %1033 = vmatpush.msra.mxu0 0.0
        %1034 = vmatpush.msra.mxu0 0.0
        %1035 = vmatpush.msra.mxu0 0.0
        %1036 = vmatpush.msra.mxu0 0.0
        %1037 = vmatpush.msra.mxu0 0.0
        %1038 = vmatpush.msra.mxu0 0.0
        %1039 = vmatpush.msra.mxu0 0.0
        %1040 = vmatpush.msra.mxu0 0.0
        %1041 = vmatpush.msra.mxu0 %v1024
        %1042 = vmatmul.f32.gmra.mxu0 %v1020
        %v1043 = vpop.f32.mrf.mxu0
        %v1044 = vadd.f32 0.0, %v1043
        %1045 = vdwg.mxu0
        %v1046 = vld [vmem:[#allocation8 + $0xa70] sm:$0xff]
        %v1047 = vld [vmem:[#allocation8 + $0xa78] sm:$0xff]
        %v1048 = vld [vmem:[#allocation8 + $0xa80] sm:$0xff]
        %v1049 = vld [vmem:[#allocation8 + $0xa88] sm:$0xff]
        %v1051 = vsel %vm363, %v1044, 0
        %1053 = vmatpush.msra.mxu0 0.0
        %1054 = vmatpush.msra.mxu0 0.0
        %1055 = vmatpush.msra.mxu0 0.0
        %1056 = vmatpush.msra.mxu0 0.0
        %1057 = vmatpush.msra.mxu0 0.0
        %1058 = vmatpush.msra.mxu0 0.0
        %1059 = vmatpush.msra.mxu0 0.0
        %1060 = vmatpush.msra.mxu0 0.0
        %1061 = vmatpush.msra.mxu0 0.0
        %1062 = vmatpush.msra.mxu0 0.0
        %1063 = vmatpush.msra.mxu0 0.0
        %1064 = vmatpush.msra.mxu0 0.0
        %1065 = vmatpush.msra.mxu0 %v1049
        %1066 = vmatpush.msra.mxu0 %v1048
        %1067 = vmatpush.msra.mxu0 %v1047
        %1068 = vmatpush.msra.mxu0 %v1046
        %1069 = vmatmul.f32.gmra.mxu0 %v1051
        %v1070 = vpop.f32.mrf.mxu0
        %v1071 = vadd.f32 0.0, %v1070
        %1072 = vdwg.mxu0
        %v1073 = vadd.f32 %v1014, %v1071
        %v1074 = vld [vmem:[#allocation8 + $0x598] sm:$0xf]
        %v1076 = vsel %vm763, %v1074, 0
        %1078 = vmatpush.msra.mxu0 0.0
        %1079 = vmatpush.msra.mxu0 0.0
        %1080 = vmatpush.msra.mxu0 0.0
        %1081 = vmatpush.msra.mxu0 0.0
        %1082 = vmatpush.msra.mxu0 0.0
        %1083 = vmatpush.msra.mxu0 0.0
        %1084 = vmatpush.msra.mxu0 0.0
        %1085 = vmatpush.msra.mxu0 0.0
        %1086 = vmatpush.msra.mxu0 0.0
        %1087 = vmatpush.msra.mxu0 0.0
        %1088 = vmatpush.msra.mxu0 0.0
        %1089 = vmatpush.msra.mxu0 0.0
        %1090 = vmatpush.msra.mxu0 0.0
        %1091 = vmatpush.msra.mxu0 0.0
        %1092 = vmatpush.msra.mxu0 0.0
        %1093 = vmatpush.msra.mxu0 %v1073
        %1094 = vmatmul.f32.gmra.mxu0 %v1076
        %v1095 = vpop.f32.mrf.mxu0
        %v1096 = vadd.f32 0.0, %v1095
        %1097 = vdwg.mxu0
        %v1098 = vld [vmem:[#allocation8 + $0x5a0] sm:$0xf]
        %v1100 = vsel %vm763, %v1098, 0
        %1102 = vmatpush.msra.mxu0 0.0
        %1103 = vmatpush.msra.mxu0 0.0
        %1104 = vmatpush.msra.mxu0 0.0
        %1105 = vmatpush.msra.mxu0 0.0
        %1106 = vmatpush.msra.mxu0 0.0
        %1107 = vmatpush.msra.mxu0 0.0
        %1108 = vmatpush.msra.mxu0 0.0
        %1109 = vmatpush.msra.mxu0 0.0
        %1110 = vmatpush.msra.mxu0 0.0
        %1111 = vmatpush.msra.mxu0 0.0
        %1112 = vmatpush.msra.mxu0 0.0
        %1113 = vmatpush.msra.mxu0 0.0
        %1114 = vmatpush.msra.mxu0 0.0
        %1115 = vmatpush.msra.mxu0 0.0
        %1116 = vmatpush.msra.mxu0 0.0
        %1117 = vmatpush.msra.mxu0 %v1073
        %1118 = vmatmul.f32.gmra.mxu0 %v1100
        %v1119 = vpop.f32.mrf.mxu0
        %v1120 = vadd.f32 0.0, %v1119
        %1121 = vdwg.mxu0
        %v1122 = vld [vmem:[#allocation8 + $0x5a8] sm:$0xf]
        %v1124 = vsel %vm763, %v1122, 0
        %1126 = vmatpush.msra.mxu0 0.0
        %1127 = vmatpush.msra.mxu0 0.0
        %1128 = vmatpush.msra.mxu0 0.0
        %1129 = vmatpush.msra.mxu0 0.0
        %1130 = vmatpush.msra.mxu0 0.0
        %1131 = vmatpush.msra.mxu0 0.0
        %1132 = vmatpush.msra.mxu0 0.0
        %1133 = vmatpush.msra.mxu0 0.0
        %1134 = vmatpush.msra.mxu0 0.0
        %1135 = vmatpush.msra.mxu0 0.0
        %1136 = vmatpush.msra.mxu0 0.0
        %1137 = vmatpush.msra.mxu0 0.0
        %1138 = vmatpush.msra.mxu0 0.0
        %1139 = vmatpush.msra.mxu0 0.0
        %1140 = vmatpush.msra.mxu0 0.0
        %1141 = vmatpush.msra.mxu0 %v1073
        %1142 = vmatmul.f32.gmra.mxu0 %v1124
        %v1143 = vpop.f32.mrf.mxu0
        %v1144 = vadd.f32 0.0, %v1143
        %1145 = vdwg.mxu0
        %v1146 = vld [vmem:[#allocation8 + $0x5b0] sm:$0x1]
        %v1147 = vld [vmem:[#allocation8 + $0x4d8] sm:$0xff]
        %v1148 = vld [vmem:[#allocation8 + $0x4e0] sm:$0xff]
        %v1149 = vld [vmem:[#allocation8 + $0x4e8] sm:$0xff]
        %v1150 = vld [vmem:[#allocation8 + $0x4f0] sm:$0xff]
        %v1151 = vld [vmem:[#allocation8 + $0x4f8] sm:$0xff]
        %v1152 = vld [vmem:[#allocation8 + $0x500] sm:$0xff]
        %v1153 = vld [vmem:[#allocation8 + $0x508] sm:$0xff]
        %v1154 = vld [vmem:[#allocation8 + $0x510] sm:$0xff]
        %v1156 = vsel %vm801, %v1096, 0
        %1158 = vmatpush.msra.mxu0 0.0
        %1159 = vmatpush.msra.mxu0 0.0
        %1160 = vmatpush.msra.mxu0 0.0
        %1161 = vmatpush.msra.mxu0 0.0
        %1162 = vmatpush.msra.mxu0 0.0
        %1163 = vmatpush.msra.mxu0 0.0
        %1164 = vmatpush.msra.mxu0 0.0
        %1165 = vmatpush.msra.mxu0 0.0
        %1166 = vmatpush.msra.mxu0 %v1154
        %1167 = vmatpush.msra.mxu0 %v1153
        %1168 = vmatpush.msra.mxu0 %v1152
        %1169 = vmatpush.msra.mxu0 %v1151
        %1170 = vmatpush.msra.mxu0 %v1150
        %1171 = vmatpush.msra.mxu0 %v1149
        %1172 = vmatpush.msra.mxu0 %v1148
        %1173 = vmatpush.msra.mxu0 %v1147
        %1174 = vmatmul.f32.gmra.mxu0 %v1156
        %v1175 = vpop.f32.mrf.mxu0
        %v1176 = vadd.f32 0.0, %v1175
        %1177 = vdwg.mxu0
        %v1178 = vperm.slane %v1146, 0
        %v1179 = vadd.f32 %v1178, %v1176
        %v1180 = vld [vmem:[#allocation8 + $0x518] sm:$0xff]
        %v1181 = vld [vmem:[#allocation8 + $0x520] sm:$0xff]
        %v1182 = vld [vmem:[#allocation8 + $0x528] sm:$0xff]
        %v1183 = vld [vmem:[#allocation8 + $0x530] sm:$0xff]
        %v1184 = vld [vmem:[#allocation8 + $0x538] sm:$0xff]
        %v1185 = vld [vmem:[#allocation8 + $0x540] sm:$0xff]
        %v1186 = vld [vmem:[#allocation8 + $0x548] sm:$0xff]
        %v1187 = vld [vmem:[#allocation8 + $0x550] sm:$0xff]
        %v1189 = vsel %vm801, %v1120, 0
        %1191 = vmatpush.msra.mxu0 0.0
        %1192 = vmatpush.msra.mxu0 0.0
        %1193 = vmatpush.msra.mxu0 0.0
        %1194 = vmatpush.msra.mxu0 0.0
        %1195 = vmatpush.msra.mxu0 0.0
        %1196 = vmatpush.msra.mxu0 0.0
        %1197 = vmatpush.msra.mxu0 0.0
        %1198 = vmatpush.msra.mxu0 0.0
        %1199 = vmatpush.msra.mxu0 %v1187
        %1200 = vmatpush.msra.mxu0 %v1186
        %1201 = vmatpush.msra.mxu0 %v1185
        %1202 = vmatpush.msra.mxu0 %v1184
        %1203 = vmatpush.msra.mxu0 %v1183
        %1204 = vmatpush.msra.mxu0 %v1182
        %1205 = vmatpush.msra.mxu0 %v1181
        %1206 = vmatpush.msra.mxu0 %v1180
        %1207 = vmatmul.f32.gmra.mxu0 %v1189
        %v1208 = vpop.f32.mrf.mxu0
        %v1209 = vadd.f32 0.0, %v1208
        %1210 = vdwg.mxu0
        %v1211 = vadd.f32 %v1179, %v1209
        %v1212 = vld [vmem:[#allocation8 + $0x558] sm:$0xff]
        %v1213 = vld [vmem:[#allocation8 + $0x560] sm:$0xff]
        %v1214 = vld [vmem:[#allocation8 + $0x568] sm:$0xff]
        %v1215 = vld [vmem:[#allocation8 + $0x570] sm:$0xff]
        %v1216 = vld [vmem:[#allocation8 + $0x578] sm:$0xff]
        %v1217 = vld [vmem:[#allocation8 + $0x580] sm:$0xff]
        %v1218 = vld [vmem:[#allocation8 + $0x588] sm:$0xff]
        %v1219 = vld [vmem:[#allocation8 + $0x590] sm:$0xff]
        %v1221 = vsel %vm801, %v1144, 0
        %1223 = vmatpush.msra.mxu0 0.0
        %1224 = vmatpush.msra.mxu0 0.0
        %1225 = vmatpush.msra.mxu0 0.0
        %1226 = vmatpush.msra.mxu0 0.0
        %1227 = vmatpush.msra.mxu0 0.0
        %1228 = vmatpush.msra.mxu0 0.0
        %1229 = vmatpush.msra.mxu0 0.0
        %1230 = vmatpush.msra.mxu0 0.0
        %1231 = vmatpush.msra.mxu0 %v1219
        %1232 = vmatpush.msra.mxu0 %v1218
        %1233 = vmatpush.msra.mxu0 %v1217
        %1234 = vmatpush.msra.mxu0 %v1216
        %1235 = vmatpush.msra.mxu0 %v1215
        %1236 = vmatpush.msra.mxu0 %v1214
        %1237 = vmatpush.msra.mxu0 %v1213
        %1238 = vmatpush.msra.mxu0 %v1212
        %1239 = vmatmul.f32.gmra.mxu0 %v1221
        %v1240 = vpop.f32.mrf.mxu0
        %v1241 = vadd.f32 0.0, %v1240
        %1242 = vdwg.mxu0
        %v1243 = vadd.f32 %v1211, %v1241
        %v1244 = vld [vmem:[#allocation8 + $0x618] sm:$0x3]
        %v1246 = vsel %vm1018, %v1244, 0
        %v1249 = vsel %vm1022, %v1243, 0
        %1251 = vmatpush.msra.mxu0 0.0
        %1252 = vmatpush.msra.mxu0 0.0
        %1253 = vmatpush.msra.mxu0 0.0
        %1254 = vmatpush.msra.mxu0 0.0
        %1255 = vmatpush.msra.mxu0 0.0
        %1256 = vmatpush.msra.mxu0 0.0
        %1257 = vmatpush.msra.mxu0 0.0
        %1258 = vmatpush.msra.mxu0 0.0
        %1259 = vmatpush.msra.mxu0 0.0
        %1260 = vmatpush.msra.mxu0 0.0
        %1261 = vmatpush.msra.mxu0 0.0
        %1262 = vmatpush.msra.mxu0 0.0
        %1263 = vmatpush.msra.mxu0 0.0
        %1264 = vmatpush.msra.mxu0 0.0
        %1265 = vmatpush.msra.mxu0 0.0
        %1266 = vmatpush.msra.mxu0 %v1249
        %1267 = vmatmul.f32.gmra.mxu0 %v1246
        %v1268 = vpop.f32.mrf.mxu0
        %v1269 = vadd.f32 0.0, %v1268
        %1270 = vdwg.mxu0
        %v1271 = vld [vmem:[#allocation8 + $0x620] sm:$0x3]
        %v1273 = vsel %vm1018, %v1271, 0
        %1275 = vmatpush.msra.mxu0 0.0
        %1276 = vmatpush.msra.mxu0 0.0
        %1277 = vmatpush.msra.mxu0 0.0
        %1278 = vmatpush.msra.mxu0 0.0
        %1279 = vmatpush.msra.mxu0 0.0
        %1280 = vmatpush.msra.mxu0 0.0
        %1281 = vmatpush.msra.mxu0 0.0
        %1282 = vmatpush.msra.mxu0 0.0
        %1283 = vmatpush.msra.mxu0 0.0
        %1284 = vmatpush.msra.mxu0 0.0
        %1285 = vmatpush.msra.mxu0 0.0
        %1286 = vmatpush.msra.mxu0 0.0
        %1287 = vmatpush.msra.mxu0 0.0
        %1288 = vmatpush.msra.mxu0 0.0
        %1289 = vmatpush.msra.mxu0 0.0
        %1290 = vmatpush.msra.mxu0 %v1249
        %1291 = vmatmul.f32.gmra.mxu0 %v1273
        %v1292 = vpop.f32.mrf.mxu0
        %v1293 = vadd.f32 0.0, %v1292
        %1294 = vdwg.mxu0
        %v1295 = vld [vmem:[#allocation8 + $0x628] sm:$0x3]
        %v1297 = vsel %vm1018, %v1295, 0
        %1299 = vmatpush.msra.mxu0 0.0
        %1300 = vmatpush.msra.mxu0 0.0
        %1301 = vmatpush.msra.mxu0 0.0
        %1302 = vmatpush.msra.mxu0 0.0
        %1303 = vmatpush.msra.mxu0 0.0
        %1304 = vmatpush.msra.mxu0 0.0
        %1305 = vmatpush.msra.mxu0 0.0
        %1306 = vmatpush.msra.mxu0 0.0
        %1307 = vmatpush.msra.mxu0 0.0
        %1308 = vmatpush.msra.mxu0 0.0
        %1309 = vmatpush.msra.mxu0 0.0
        %1310 = vmatpush.msra.mxu0 0.0
        %1311 = vmatpush.msra.mxu0 0.0
        %1312 = vmatpush.msra.mxu0 0.0
        %1313 = vmatpush.msra.mxu0 0.0
        %1314 = vmatpush.msra.mxu0 %v1249
        %1315 = vmatmul.f32.gmra.mxu0 %v1297
        %v1316 = vpop.f32.mrf.mxu0
        %v1317 = vadd.f32 0.0, %v1316
        %1318 = vdwg.mxu0
        %v1319 = vld [vmem:[#allocation8 + $0x630] sm:$0x1]
        %v1320 = vld [vmem:[#allocation8 + $0x5b8] sm:$0xff]
        %v1321 = vld [vmem:[#allocation8 + $0x5c0] sm:$0xff]
        %v1322 = vld [vmem:[#allocation8 + $0x5c8] sm:$0xff]
        %v1323 = vld [vmem:[#allocation8 + $0x5d0] sm:$0xff]
        %v1325 = vsel %vm363, %v1269, 0
        %1327 = vmatpush.msra.mxu0 0.0
        %1328 = vmatpush.msra.mxu0 0.0
        %1329 = vmatpush.msra.mxu0 0.0
        %1330 = vmatpush.msra.mxu0 0.0
        %1331 = vmatpush.msra.mxu0 0.0
        %1332 = vmatpush.msra.mxu0 0.0
        %1333 = vmatpush.msra.mxu0 0.0
        %1334 = vmatpush.msra.mxu0 0.0
        %1335 = vmatpush.msra.mxu0 0.0
        %1336 = vmatpush.msra.mxu0 0.0
        %1337 = vmatpush.msra.mxu0 0.0
        %1338 = vmatpush.msra.mxu0 0.0
        %1339 = vmatpush.msra.mxu0 %v1323
        %1340 = vmatpush.msra.mxu0 %v1322
        %1341 = vmatpush.msra.mxu0 %v1321
        %1342 = vmatpush.msra.mxu0 %v1320
        %1343 = vmatmul.f32.gmra.mxu0 %v1325
        %v1344 = vpop.f32.mrf.mxu0
        %v1345 = vadd.f32 0.0, %v1344
        %1346 = vdwg.mxu0
        %v1347 = vperm.slane %v1319, 0
        %v1348 = vadd.f32 %v1347, %v1345
        %v1349 = vld [vmem:[#allocation8 + $0x5d8] sm:$0xff]
        %v1350 = vld [vmem:[#allocation8 + $0x5e0] sm:$0xff]
        %v1351 = vld [vmem:[#allocation8 + $0x5e8] sm:$0xff]
        %v1352 = vld [vmem:[#allocation8 + $0x5f0] sm:$0xff]
        %v1354 = vsel %vm363, %v1293, 0
        %1356 = vmatpush.msra.mxu0 0.0
        %1357 = vmatpush.msra.mxu0 0.0
        %1358 = vmatpush.msra.mxu0 0.0
        %1359 = vmatpush.msra.mxu0 0.0
        %1360 = vmatpush.msra.mxu0 0.0
        %1361 = vmatpush.msra.mxu0 0.0
        %1362 = vmatpush.msra.mxu0 0.0
        %1363 = vmatpush.msra.mxu0 0.0
        %1364 = vmatpush.msra.mxu0 0.0
        %1365 = vmatpush.msra.mxu0 0.0
        %1366 = vmatpush.msra.mxu0 0.0
        %1367 = vmatpush.msra.mxu0 0.0
        %1368 = vmatpush.msra.mxu0 %v1352
        %1369 = vmatpush.msra.mxu0 %v1351
        %1370 = vmatpush.msra.mxu0 %v1350
        %1371 = vmatpush.msra.mxu0 %v1349
        %1372 = vmatmul.f32.gmra.mxu0 %v1354
        %v1373 = vpop.f32.mrf.mxu0
        %v1374 = vadd.f32 0.0, %v1373
        %1375 = vdwg.mxu0
        %v1376 = vadd.f32 %v1348, %v1374
        %v1377 = vld [vmem:[#allocation8 + $0x5f8] sm:$0xff]
        %v1378 = vld [vmem:[#allocation8 + $0x600] sm:$0xff]
        %v1379 = vld [vmem:[#allocation8 + $0x608] sm:$0xff]
        %v1380 = vld [vmem:[#allocation8 + $0x610] sm:$0xff]
        %v1382 = vsel %vm363, %v1317, 0
        %1384 = vmatpush.msra.mxu0 0.0
        %1385 = vmatpush.msra.mxu0 0.0
        %1386 = vmatpush.msra.mxu0 0.0
        %1387 = vmatpush.msra.mxu0 0.0
        %1388 = vmatpush.msra.mxu0 0.0
        %1389 = vmatpush.msra.mxu0 0.0
        %1390 = vmatpush.msra.mxu0 0.0
        %1391 = vmatpush.msra.mxu0 0.0
        %1392 = vmatpush.msra.mxu0 0.0
        %1393 = vmatpush.msra.mxu0 0.0
        %1394 = vmatpush.msra.mxu0 0.0
        %1395 = vmatpush.msra.mxu0 0.0
        %1396 = vmatpush.msra.mxu0 %v1380
        %1397 = vmatpush.msra.mxu0 %v1379
        %1398 = vmatpush.msra.mxu0 %v1378
        %1399 = vmatpush.msra.mxu0 %v1377
        %1400 = vmatmul.f32.gmra.mxu0 %v1382
        %v1401 = vpop.f32.mrf.mxu0
        %v1402 = vadd.f32 0.0, %v1401
        %1403 = vdwg.mxu0
        %v1404 = vadd.f32 %v1376, %v1402
        %v1405 = vld [vmem:[#allocation8 + $0x648] sm:$0x3]
        %vm1406 = vcmask 15360
        %v1408 = vsel %vm1406, %v1405, 0
        %vm1410 = vcmask 1041408
        %v1412 = vsel %vm1410, %v1404, 0
        %1414 = vmatpush.msra.mxu0 0.0
        %1415 = vmatpush.msra.mxu0 0.0
        %1416 = vmatpush.msra.mxu0 0.0
        %1417 = vmatpush.msra.mxu0 0.0
        %1418 = vmatpush.msra.mxu0 0.0
        %1419 = vmatpush.msra.mxu0 0.0
        %1420 = vmatpush.msra.mxu0 0.0
        %1421 = vmatpush.msra.mxu0 0.0
        %1422 = vmatpush.msra.mxu0 0.0
        %1423 = vmatpush.msra.mxu0 0.0
        %1424 = vmatpush.msra.mxu0 0.0
        %1425 = vmatpush.msra.mxu0 0.0
        %1426 = vmatpush.msra.mxu0 0.0
        %1427 = vmatpush.msra.mxu0 0.0
        %1428 = vmatpush.msra.mxu0 0.0
        %1429 = vmatpush.msra.mxu0 %v1412
        %1430 = vmatmul.f32.gmra.mxu0 %v1408
        %v1431 = vpop.f32.mrf.mxu0
        %v1432 = vadd.f32 0.0, %v1431
        %1433 = vdwg.mxu0
        %v1434 = vld [vmem:[#allocation8 + $0x650] sm:$0x1]
        %v1435 = vld [vmem:[#allocation8 + $0x638] sm:$0xff]
        %v1436 = vld [vmem:[#allocation8 + $0x640] sm:$0xff]
        %v1438 = vsel %vm834, %v1432, 0
        %1440 = vmatpush.msra.mxu0 0.0
        %1441 = vmatpush.msra.mxu0 0.0
        %1442 = vmatpush.msra.mxu0 0.0
        %1443 = vmatpush.msra.mxu0 0.0
        %1444 = vmatpush.msra.mxu0 0.0
        %1445 = vmatpush.msra.mxu0 0.0
        %1446 = vmatpush.msra.mxu0 0.0
        %1447 = vmatpush.msra.mxu0 0.0
        %1448 = vmatpush.msra.mxu0 0.0
        %1449 = vmatpush.msra.mxu0 0.0
        %1450 = vmatpush.msra.mxu0 0.0
        %1451 = vmatpush.msra.mxu0 0.0
        %1452 = vmatpush.msra.mxu0 0.0
        %1453 = vmatpush.msra.mxu0 0.0
        %1454 = vmatpush.msra.mxu0 %v1436
        %1455 = vmatpush.msra.mxu0 %v1435
        %1456 = vmatmul.f32.gmra.mxu0 %v1438
        %v1457 = vpop.f32.mrf.mxu0
        %v1458 = vadd.f32 0.0, %v1457
        %1459 = vdwg.mxu0
        %v1460 = vperm.slane %v1434, 0
        %v1461 = vadd.f32 %v1460, %v1458
        %v1462 = vadd.f32 %v1404, %v1461
        %v1463 = vld [vmem:[#allocation8 + $0x688] sm:$0x3]
        %v1465 = vsel %vm1406, %v1463, 0
        %v1468 = vsel %vm1410, %v1462, 0
        %1470 = vmatpush.msra.mxu0 0.0
        %1471 = vmatpush.msra.mxu0 0.0
        %1472 = vmatpush.msra.mxu0 0.0
        %1473 = vmatpush.msra.mxu0 0.0
        %1474 = vmatpush.msra.mxu0 0.0
        %1475 = vmatpush.msra.mxu0 0.0
        %1476 = vmatpush.msra.mxu0 0.0
        %1477 = vmatpush.msra.mxu0 0.0
        %1478 = vmatpush.msra.mxu0 0.0
        %1479 = vmatpush.msra.mxu0 0.0
        %1480 = vmatpush.msra.mxu0 0.0
        %1481 = vmatpush.msra.mxu0 0.0
        %1482 = vmatpush.msra.mxu0 0.0
        %1483 = vmatpush.msra.mxu0 0.0
        %1484 = vmatpush.msra.mxu0 0.0
        %1485 = vmatpush.msra.mxu0 %v1468
        %1486 = vmatmul.f32.gmra.mxu0 %v1465
        %v1487 = vpop.f32.mrf.mxu0
        %v1488 = vadd.f32 0.0, %v1487
        %1489 = vdwg.mxu0
        %v1490 = vld [vmem:[#allocation8 + $0x690] sm:$0x3]
        %v1492 = vsel %vm1406, %v1490, 0
        %1494 = vmatpush.msra.mxu0 0.0
        %1495 = vmatpush.msra.mxu0 0.0
        %1496 = vmatpush.msra.mxu0 0.0
        %1497 = vmatpush.msra.mxu0 0.0
        %1498 = vmatpush.msra.mxu0 0.0
        %1499 = vmatpush.msra.mxu0 0.0
        %1500 = vmatpush.msra.mxu0 0.0
        %1501 = vmatpush.msra.mxu0 0.0
        %1502 = vmatpush.msra.mxu0 0.0
        %1503 = vmatpush.msra.mxu0 0.0
        %1504 = vmatpush.msra.mxu0 0.0
        %1505 = vmatpush.msra.mxu0 0.0
        %1506 = vmatpush.msra.mxu0 0.0
        %1507 = vmatpush.msra.mxu0 0.0
        %1508 = vmatpush.msra.mxu0 0.0
        %1509 = vmatpush.msra.mxu0 %v1468
        %1510 = vmatmul.f32.gmra.mxu0 %v1492
        %v1511 = vpop.f32.mrf.mxu0
        %v1512 = vadd.f32 0.0, %v1511
        %1513 = vdwg.mxu0
        %v1514 = vld [vmem:[#allocation8 + $0x698] sm:$0x3]
        %v1516 = vsel %vm1406, %v1514, 0
        %1518 = vmatpush.msra.mxu0 0.0
        %1519 = vmatpush.msra.mxu0 0.0
        %1520 = vmatpush.msra.mxu0 0.0
        %1521 = vmatpush.msra.mxu0 0.0
        %1522 = vmatpush.msra.mxu0 0.0
        %1523 = vmatpush.msra.mxu0 0.0
        %1524 = vmatpush.msra.mxu0 0.0
        %1525 = vmatpush.msra.mxu0 0.0
        %1526 = vmatpush.msra.mxu0 0.0
        %1527 = vmatpush.msra.mxu0 0.0
        %1528 = vmatpush.msra.mxu0 0.0
        %1529 = vmatpush.msra.mxu0 0.0
        %1530 = vmatpush.msra.mxu0 0.0
        %1531 = vmatpush.msra.mxu0 0.0
        %1532 = vmatpush.msra.mxu0 0.0
        %1533 = vmatpush.msra.mxu0 %v1468
        %1534 = vmatmul.f32.gmra.mxu0 %v1516
        %v1535 = vpop.f32.mrf.mxu0
        %v1536 = vadd.f32 0.0, %v1535
        %1537 = vdwg.mxu0
        %v1538 = vld [vmem:[#allocation8 + $0x6a0] sm:$0x1]
        %v1539 = vld [vmem:[#allocation8 + $0x658] sm:$0xff]
        %v1540 = vld [vmem:[#allocation8 + $0x660] sm:$0xff]
        %v1542 = vsel %vm834, %v1488, 0
        %1544 = vmatpush.msra.mxu0 0.0
        %1545 = vmatpush.msra.mxu0 0.0
        %1546 = vmatpush.msra.mxu0 0.0
        %1547 = vmatpush.msra.mxu0 0.0
        %1548 = vmatpush.msra.mxu0 0.0
        %1549 = vmatpush.msra.mxu0 0.0
        %1550 = vmatpush.msra.mxu0 0.0
        %1551 = vmatpush.msra.mxu0 0.0
        %1552 = vmatpush.msra.mxu0 0.0
        %1553 = vmatpush.msra.mxu0 0.0
        %1554 = vmatpush.msra.mxu0 0.0
        %1555 = vmatpush.msra.mxu0 0.0
        %1556 = vmatpush.msra.mxu0 0.0
        %1557 = vmatpush.msra.mxu0 0.0
        %1558 = vmatpush.msra.mxu0 %v1540
        %1559 = vmatpush.msra.mxu0 %v1539
        %1560 = vmatmul.f32.gmra.mxu0 %v1542
        %v1561 = vpop.f32.mrf.mxu0
        %v1562 = vadd.f32 0.0, %v1561
        %1563 = vdwg.mxu0
        %v1564 = vperm.slane %v1538, 0
        %v1565 = vadd.f32 %v1564, %v1562
        %v1566 = vld [vmem:[#allocation8 + $0x668] sm:$0xff]
        %v1567 = vld [vmem:[#allocation8 + $0x670] sm:$0xff]
        %v1569 = vsel %vm834, %v1512, 0
        %1571 = vmatpush.msra.mxu0 0.0
        %1572 = vmatpush.msra.mxu0 0.0
        %1573 = vmatpush.msra.mxu0 0.0
        %1574 = vmatpush.msra.mxu0 0.0
        %1575 = vmatpush.msra.mxu0 0.0
        %1576 = vmatpush.msra.mxu0 0.0
        %1577 = vmatpush.msra.mxu0 0.0
        %1578 = vmatpush.msra.mxu0 0.0
        %1579 = vmatpush.msra.mxu0 0.0
        %1580 = vmatpush.msra.mxu0 0.0
        %1581 = vmatpush.msra.mxu0 0.0
        %1582 = vmatpush.msra.mxu0 0.0
        %1583 = vmatpush.msra.mxu0 0.0
        %1584 = vmatpush.msra.mxu0 0.0
        %1585 = vmatpush.msra.mxu0 %v1567
        %1586 = vmatpush.msra.mxu0 %v1566
        %1587 = vmatmul.f32.gmra.mxu0 %v1569
        %v1588 = vpop.f32.mrf.mxu0
        %v1589 = vadd.f32 0.0, %v1588
        %1590 = vdwg.mxu0
        %v1591 = vadd.f32 %v1565, %v1589
        %v1592 = vld [vmem:[#allocation8 + $0x678] sm:$0xff]
        %v1593 = vld [vmem:[#allocation8 + $0x680] sm:$0xff]
        %v1595 = vsel %vm834, %v1536, 0
        %1597 = vmatpush.msra.mxu0 0.0
        %1598 = vmatpush.msra.mxu0 0.0
        %1599 = vmatpush.msra.mxu0 0.0
        %1600 = vmatpush.msra.mxu0 0.0
        %1601 = vmatpush.msra.mxu0 0.0
        %1602 = vmatpush.msra.mxu0 0.0
        %1603 = vmatpush.msra.mxu0 0.0
        %1604 = vmatpush.msra.mxu0 0.0
        %1605 = vmatpush.msra.mxu0 0.0
        %1606 = vmatpush.msra.mxu0 0.0
        %1607 = vmatpush.msra.mxu0 0.0
        %1608 = vmatpush.msra.mxu0 0.0
        %1609 = vmatpush.msra.mxu0 0.0
        %1610 = vmatpush.msra.mxu0 0.0
        %1611 = vmatpush.msra.mxu0 %v1593
        %1612 = vmatpush.msra.mxu0 %v1592
        %1613 = vmatmul.f32.gmra.mxu0 %v1595
        %v1614 = vpop.f32.mrf.mxu0
        %v1615 = vadd.f32 0.0, %v1614
        %1616 = vdwg.mxu0
        %v1617 = vadd.f32 %v1591, %v1615
        %v1618 = vld [vmem:[#allocation8 + $0xaa8] sm:$0xf]
        %v1620 = vsel %vm1406, %v1618, 0
        %v1623 = vsel %vm1410, %v1617, 0
        %1625 = vmatpush.msra.mxu0 0.0
        %1626 = vmatpush.msra.mxu0 0.0
        %1627 = vmatpush.msra.mxu0 0.0
        %1628 = vmatpush.msra.mxu0 0.0
        %1629 = vmatpush.msra.mxu0 0.0
        %1630 = vmatpush.msra.mxu0 0.0
        %1631 = vmatpush.msra.mxu0 0.0
        %1632 = vmatpush.msra.mxu0 0.0
        %1633 = vmatpush.msra.mxu0 0.0
        %1634 = vmatpush.msra.mxu0 0.0
        %1635 = vmatpush.msra.mxu0 0.0
        %1636 = vmatpush.msra.mxu0 0.0
        %1637 = vmatpush.msra.mxu0 0.0
        %1638 = vmatpush.msra.mxu0 0.0
        %1639 = vmatpush.msra.mxu0 0.0
        %1640 = vmatpush.msra.mxu0 %v1623
        %1641 = vmatmul.f32.gmra.mxu0 %v1620
        %v1642 = vpop.f32.mrf.mxu0
        %v1643 = vadd.f32 0.0, %v1642
        %1644 = vdwg.mxu0
        %v1645 = vld [vmem:[#allocation8 + $0xa98] sm:$0xff]
        %v1646 = vld [vmem:[#allocation8 + $0xaa0] sm:$0xff]
        %v1648 = vsel %vm834, %v1643, 0
        %1650 = vmatpush.msra.mxu0 0.0
        %1651 = vmatpush.msra.mxu0 0.0
        %1652 = vmatpush.msra.mxu0 0.0
        %1653 = vmatpush.msra.mxu0 0.0
        %1654 = vmatpush.msra.mxu0 0.0
        %1655 = vmatpush.msra.mxu0 0.0
        %1656 = vmatpush.msra.mxu0 0.0
        %1657 = vmatpush.msra.mxu0 0.0
        %1658 = vmatpush.msra.mxu0 0.0
        %1659 = vmatpush.msra.mxu0 0.0
        %1660 = vmatpush.msra.mxu0 0.0
        %1661 = vmatpush.msra.mxu0 0.0
        %1662 = vmatpush.msra.mxu0 0.0
        %1663 = vmatpush.msra.mxu0 0.0
        %1664 = vmatpush.msra.mxu0 %v1646
        %1665 = vmatpush.msra.mxu0 %v1645
        %1666 = vmatmul.f32.gmra.mxu0 %v1648
        %v1667 = vpop.f32.mrf.mxu0
        %v1668 = vadd.f32 0.0, %v1667
        %1669 = vdwg.mxu0
        %v1670 = vadd.f32 %v1243, %v1668
        %v1671 = vld [vmem:[#allocation8 + $0x708] sm:$0xf]
        %v1673 = vsel %vm1018, %v1671, 0
        %v1676 = vsel %vm1022, %v1670, 0
        %1678 = vmatpush.msra.mxu0 0.0
        %1679 = vmatpush.msra.mxu0 0.0
        %1680 = vmatpush.msra.mxu0 0.0
        %1681 = vmatpush.msra.mxu0 0.0
        %1682 = vmatpush.msra.mxu0 0.0
        %1683 = vmatpush.msra.mxu0 0.0
        %1684 = vmatpush.msra.mxu0 0.0
        %1685 = vmatpush.msra.mxu0 0.0
        %1686 = vmatpush.msra.mxu0 0.0
        %1687 = vmatpush.msra.mxu0 0.0
        %1688 = vmatpush.msra.mxu0 0.0
        %1689 = vmatpush.msra.mxu0 0.0
        %1690 = vmatpush.msra.mxu0 0.0
        %1691 = vmatpush.msra.mxu0 0.0
        %1692 = vmatpush.msra.mxu0 0.0
        %1693 = vmatpush.msra.mxu0 %v1676
        %1694 = vmatmul.f32.gmra.mxu0 %v1673
        %v1695 = vpop.f32.mrf.mxu0
        %v1696 = vadd.f32 0.0, %v1695
        %1697 = vdwg.mxu0
        %v1698 = vld [vmem:[#allocation8 + $0x710] sm:$0xf]
        %v1700 = vsel %vm1018, %v1698, 0
        %1702 = vmatpush.msra.mxu0 0.0
        %1703 = vmatpush.msra.mxu0 0.0
        %1704 = vmatpush.msra.mxu0 0.0
        %1705 = vmatpush.msra.mxu0 0.0
        %1706 = vmatpush.msra.mxu0 0.0
        %1707 = vmatpush.msra.mxu0 0.0
        %1708 = vmatpush.msra.mxu0 0.0
        %1709 = vmatpush.msra.mxu0 0.0
        %1710 = vmatpush.msra.mxu0 0.0
        %1711 = vmatpush.msra.mxu0 0.0
        %1712 = vmatpush.msra.mxu0 0.0
        %1713 = vmatpush.msra.mxu0 0.0
        %1714 = vmatpush.msra.mxu0 0.0
        %1715 = vmatpush.msra.mxu0 0.0
        %1716 = vmatpush.msra.mxu0 0.0
        %1717 = vmatpush.msra.mxu0 %v1676
        %1718 = vmatmul.f32.gmra.mxu0 %v1700
        %v1719 = vpop.f32.mrf.mxu0
        %v1720 = vadd.f32 0.0, %v1719
        %1721 = vdwg.mxu0
        %v1722 = vld [vmem:[#allocation8 + $0x718] sm:$0xf]
        %v1724 = vsel %vm1018, %v1722, 0
        %1726 = vmatpush.msra.mxu0 0.0
        %1727 = vmatpush.msra.mxu0 0.0
        %1728 = vmatpush.msra.mxu0 0.0
        %1729 = vmatpush.msra.mxu0 0.0
        %1730 = vmatpush.msra.mxu0 0.0
        %1731 = vmatpush.msra.mxu0 0.0
        %1732 = vmatpush.msra.mxu0 0.0
        %1733 = vmatpush.msra.mxu0 0.0
        %1734 = vmatpush.msra.mxu0 0.0
        %1735 = vmatpush.msra.mxu0 0.0
        %1736 = vmatpush.msra.mxu0 0.0
        %1737 = vmatpush.msra.mxu0 0.0
        %1738 = vmatpush.msra.mxu0 0.0
        %1739 = vmatpush.msra.mxu0 0.0
        %1740 = vmatpush.msra.mxu0 0.0
        %1741 = vmatpush.msra.mxu0 %v1676
        %1742 = vmatmul.f32.gmra.mxu0 %v1724
        %v1743 = vpop.f32.mrf.mxu0
        %v1744 = vadd.f32 0.0, %v1743
        %1745 = vdwg.mxu0
        %v1746 = vld [vmem:[#allocation8 + $0x720] sm:$0x1]
        %v1747 = vld [vmem:[#allocation8 + $0x6a8] sm:$0xff]
        %v1748 = vld [vmem:[#allocation8 + $0x6b0] sm:$0xff]
        %v1749 = vld [vmem:[#allocation8 + $0x6b8] sm:$0xff]
        %v1750 = vld [vmem:[#allocation8 + $0x6c0] sm:$0xff]
        %v1752 = vsel %vm363, %v1696, 0
        %1754 = vmatpush.msra.mxu0 0.0
        %1755 = vmatpush.msra.mxu0 0.0
        %1756 = vmatpush.msra.mxu0 0.0
        %1757 = vmatpush.msra.mxu0 0.0
        %1758 = vmatpush.msra.mxu0 0.0
        %1759 = vmatpush.msra.mxu0 0.0
        %1760 = vmatpush.msra.mxu0 0.0
        %1761 = vmatpush.msra.mxu0 0.0
        %1762 = vmatpush.msra.mxu0 0.0
        %1763 = vmatpush.msra.mxu0 0.0
        %1764 = vmatpush.msra.mxu0 0.0
        %1765 = vmatpush.msra.mxu0 0.0
        %1766 = vmatpush.msra.mxu0 %v1750
        %1767 = vmatpush.msra.mxu0 %v1749
        %1768 = vmatpush.msra.mxu0 %v1748
        %1769 = vmatpush.msra.mxu0 %v1747
        %1770 = vmatmul.f32.gmra.mxu0 %v1752
        %v1771 = vpop.f32.mrf.mxu0
        %v1772 = vadd.f32 0.0, %v1771
        %1773 = vdwg.mxu0
        %v1774 = vperm.slane %v1746, 0
        %v1775 = vadd.f32 %v1774, %v1772
        %v1776 = vld [vmem:[#allocation8 + $0x6c8] sm:$0xff]
        %v1777 = vld [vmem:[#allocation8 + $0x6d0] sm:$0xff]
        %v1778 = vld [vmem:[#allocation8 + $0x6d8] sm:$0xff]
        %v1779 = vld [vmem:[#allocation8 + $0x6e0] sm:$0xff]
        %v1781 = vsel %vm363, %v1720, 0
        %1783 = vmatpush.msra.mxu0 0.0
        %1784 = vmatpush.msra.mxu0 0.0
        %1785 = vmatpush.msra.mxu0 0.0
        %1786 = vmatpush.msra.mxu0 0.0
        %1787 = vmatpush.msra.mxu0 0.0
        %1788 = vmatpush.msra.mxu0 0.0
        %1789 = vmatpush.msra.mxu0 0.0
        %1790 = vmatpush.msra.mxu0 0.0
        %1791 = vmatpush.msra.mxu0 0.0
        %1792 = vmatpush.msra.mxu0 0.0
        %1793 = vmatpush.msra.mxu0 0.0
        %1794 = vmatpush.msra.mxu0 0.0
        %1795 = vmatpush.msra.mxu0 %v1779
        %1796 = vmatpush.msra.mxu0 %v1778
        %1797 = vmatpush.msra.mxu0 %v1777
        %1798 = vmatpush.msra.mxu0 %v1776
        %1799 = vmatmul.f32.gmra.mxu0 %v1781
        %v1800 = vpop.f32.mrf.mxu0
        %v1801 = vadd.f32 0.0, %v1800
        %1802 = vdwg.mxu0
        %v1803 = vadd.f32 %v1775, %v1801
        %v1804 = vld [vmem:[#allocation8 + $0x6e8] sm:$0xff]
        %v1805 = vld [vmem:[#allocation8 + $0x6f0] sm:$0xff]
        %v1806 = vld [vmem:[#allocation8 + $0x6f8] sm:$0xff]
        %v1807 = vld [vmem:[#allocation8 + $0x700] sm:$0xff]
        %v1809 = vsel %vm363, %v1744, 0
        %1811 = vmatpush.msra.mxu0 0.0
        %1812 = vmatpush.msra.mxu0 0.0
        %1813 = vmatpush.msra.mxu0 0.0
        %1814 = vmatpush.msra.mxu0 0.0
        %1815 = vmatpush.msra.mxu0 0.0
        %1816 = vmatpush.msra.mxu0 0.0
        %1817 = vmatpush.msra.mxu0 0.0
        %1818 = vmatpush.msra.mxu0 0.0
        %1819 = vmatpush.msra.mxu0 0.0
        %1820 = vmatpush.msra.mxu0 0.0
        %1821 = vmatpush.msra.mxu0 0.0
        %1822 = vmatpush.msra.mxu0 0.0
        %1823 = vmatpush.msra.mxu0 %v1807
        %1824 = vmatpush.msra.mxu0 %v1806
        %1825 = vmatpush.msra.mxu0 %v1805
        %1826 = vmatpush.msra.mxu0 %v1804
        %1827 = vmatmul.f32.gmra.mxu0 %v1809
        %v1828 = vpop.f32.mrf.mxu0
        %v1829 = vadd.f32 0.0, %v1828
        %1830 = vdwg.mxu0
        %v1831 = vadd.f32 %v1803, %v1829
        %v1832 = vld [vmem:[#allocation8 + $0xad0] sm:$0xff]
        %v1834 = vsel %vm1018, %v1832, 0
        %v1837 = vsel %vm1022, %v1831, 0
        %1839 = vmatpush.msra.mxu0 0.0
        %1840 = vmatpush.msra.mxu0 0.0
        %1841 = vmatpush.msra.mxu0 0.0
        %1842 = vmatpush.msra.mxu0 0.0
        %1843 = vmatpush.msra.mxu0 0.0
        %1844 = vmatpush.msra.mxu0 0.0
        %1845 = vmatpush.msra.mxu0 0.0
        %1846 = vmatpush.msra.mxu0 0.0
        %1847 = vmatpush.msra.mxu0 0.0
        %1848 = vmatpush.msra.mxu0 0.0
        %1849 = vmatpush.msra.mxu0 0.0
        %1850 = vmatpush.msra.mxu0 0.0
        %1851 = vmatpush.msra.mxu0 0.0
        %1852 = vmatpush.msra.mxu0 0.0
        %1853 = vmatpush.msra.mxu0 0.0
        %1854 = vmatpush.msra.mxu0 %v1837
        %1855 = vmatmul.f32.gmra.mxu0 %v1834
        %v1856 = vpop.f32.mrf.mxu0
        %v1857 = vadd.f32 0.0, %v1856
        %1858 = vdwg.mxu0
        %v1859 = vld [vmem:[#allocation8 + $0xab0] sm:$0xff]
        %v1860 = vld [vmem:[#allocation8 + $0xab8] sm:$0xff]
        %v1861 = vld [vmem:[#allocation8 + $0xac0] sm:$0xff]
        %v1862 = vld [vmem:[#allocation8 + $0xac8] sm:$0xff]
        %v1864 = vsel %vm363, %v1857, 0
        %1866 = vmatpush.msra.mxu0 0.0
        %1867 = vmatpush.msra.mxu0 0.0
        %1868 = vmatpush.msra.mxu0 0.0
        %1869 = vmatpush.msra.mxu0 0.0
        %1870 = vmatpush.msra.mxu0 0.0
        %1871 = vmatpush.msra.mxu0 0.0
        %1872 = vmatpush.msra.mxu0 0.0
        %1873 = vmatpush.msra.mxu0 0.0
        %1874 = vmatpush.msra.mxu0 0.0
        %1875 = vmatpush.msra.mxu0 0.0
        %1876 = vmatpush.msra.mxu0 0.0
        %1877 = vmatpush.msra.mxu0 0.0
        %1878 = vmatpush.msra.mxu0 %v1862
        %1879 = vmatpush.msra.mxu0 %v1861
        %1880 = vmatpush.msra.mxu0 %v1860
        %1881 = vmatpush.msra.mxu0 %v1859
        %1882 = vmatmul.f32.gmra.mxu0 %v1864
        %v1883 = vpop.f32.mrf.mxu0
        %v1884 = vadd.f32 0.0, %v1883
        %1885 = vdwg.mxu0
        %v1886 = vadd.f32 %v1073, %v1884
        %v1887 = vld [vmem:[#allocation8 + $0x7e8] sm:$0xff]
        %v1889 = vsel %vm763, %v1887, 0
        %1891 = vmatpush.msra.mxu0 0.0
        %1892 = vmatpush.msra.mxu0 0.0
        %1893 = vmatpush.msra.mxu0 0.0
        %1894 = vmatpush.msra.mxu0 0.0
        %1895 = vmatpush.msra.mxu0 0.0
        %1896 = vmatpush.msra.mxu0 0.0
        %1897 = vmatpush.msra.mxu0 0.0
        %1898 = vmatpush.msra.mxu0 0.0
        %1899 = vmatpush.msra.mxu0 0.0
        %1900 = vmatpush.msra.mxu0 0.0
        %1901 = vmatpush.msra.mxu0 0.0
        %1902 = vmatpush.msra.mxu0 0.0
        %1903 = vmatpush.msra.mxu0 0.0
        %1904 = vmatpush.msra.mxu0 0.0
        %1905 = vmatpush.msra.mxu0 0.0
        %1906 = vmatpush.msra.mxu0 %v1886
        %1907 = vmatmul.f32.gmra.mxu0 %v1889
        %v1908 = vpop.f32.mrf.mxu0
        %v1909 = vadd.f32 0.0, %v1908
        %1910 = vdwg.mxu0
        %v1911 = vld [vmem:[#allocation8 + $0x7f0] sm:$0xff]
        %v1913 = vsel %vm763, %v1911, 0
        %1915 = vmatpush.msra.mxu0 0.0
        %1916 = vmatpush.msra.mxu0 0.0
        %1917 = vmatpush.msra.mxu0 0.0
        %1918 = vmatpush.msra.mxu0 0.0
        %1919 = vmatpush.msra.mxu0 0.0
        %1920 = vmatpush.msra.mxu0 0.0
        %1921 = vmatpush.msra.mxu0 0.0
        %1922 = vmatpush.msra.mxu0 0.0
        %1923 = vmatpush.msra.mxu0 0.0
        %1924 = vmatpush.msra.mxu0 0.0
        %1925 = vmatpush.msra.mxu0 0.0
        %1926 = vmatpush.msra.mxu0 0.0
        %1927 = vmatpush.msra.mxu0 0.0
        %1928 = vmatpush.msra.mxu0 0.0
        %1929 = vmatpush.msra.mxu0 0.0
        %1930 = vmatpush.msra.mxu0 %v1886
        %1931 = vmatmul.f32.gmra.mxu0 %v1913
        %v1932 = vpop.f32.mrf.mxu0
        %v1933 = vadd.f32 0.0, %v1932
        %1934 = vdwg.mxu0
        %v1935 = vld [vmem:[#allocation8 + $0x7f8] sm:$0xff]
        %v1937 = vsel %vm763, %v1935, 0
        %1939 = vmatpush.msra.mxu0 0.0
        %1940 = vmatpush.msra.mxu0 0.0
        %1941 = vmatpush.msra.mxu0 0.0
        %1942 = vmatpush.msra.mxu0 0.0
        %1943 = vmatpush.msra.mxu0 0.0
        %1944 = vmatpush.msra.mxu0 0.0
        %1945 = vmatpush.msra.mxu0 0.0
        %1946 = vmatpush.msra.mxu0 0.0
        %1947 = vmatpush.msra.mxu0 0.0
        %1948 = vmatpush.msra.mxu0 0.0
        %1949 = vmatpush.msra.mxu0 0.0
        %1950 = vmatpush.msra.mxu0 0.0
        %1951 = vmatpush.msra.mxu0 0.0
        %1952 = vmatpush.msra.mxu0 0.0
        %1953 = vmatpush.msra.mxu0 0.0
        %1954 = vmatpush.msra.mxu0 %v1886
        %1955 = vmatmul.f32.gmra.mxu0 %v1937
        %v1956 = vpop.f32.mrf.mxu0
        %v1957 = vadd.f32 0.0, %v1956
        %1958 = vdwg.mxu0
        %v1959 = vld [vmem:[#allocation8 + $0x800] sm:$0x1]
        %v1960 = vld [vmem:[#allocation8 + $0x728] sm:$0xff]
        %v1961 = vld [vmem:[#allocation8 + $0x730] sm:$0xff]
        %v1962 = vld [vmem:[#allocation8 + $0x738] sm:$0xff]
        %v1963 = vld [vmem:[#allocation8 + $0x740] sm:$0xff]
        %v1964 = vld [vmem:[#allocation8 + $0x748] sm:$0xff]
        %v1965 = vld [vmem:[#allocation8 + $0x750] sm:$0xff]
        %v1966 = vld [vmem:[#allocation8 + $0x758] sm:$0xff]
        %v1967 = vld [vmem:[#allocation8 + $0x760] sm:$0xff]
        %v1969 = vsel %vm801, %v1909, 0
        %1971 = vmatpush.msra.mxu0 0.0
        %1972 = vmatpush.msra.mxu0 0.0
        %1973 = vmatpush.msra.mxu0 0.0
        %1974 = vmatpush.msra.mxu0 0.0
        %1975 = vmatpush.msra.mxu0 0.0
        %1976 = vmatpush.msra.mxu0 0.0
        %1977 = vmatpush.msra.mxu0 0.0
        %1978 = vmatpush.msra.mxu0 0.0
        %1979 = vmatpush.msra.mxu0 %v1967
        %1980 = vmatpush.msra.mxu0 %v1966
        %1981 = vmatpush.msra.mxu0 %v1965
        %1982 = vmatpush.msra.mxu0 %v1964
        %1983 = vmatpush.msra.mxu0 %v1963
        %1984 = vmatpush.msra.mxu0 %v1962
        %1985 = vmatpush.msra.mxu0 %v1961
        %1986 = vmatpush.msra.mxu0 %v1960
        %1987 = vmatmul.f32.gmra.mxu0 %v1969
        %v1988 = vpop.f32.mrf.mxu0
        %v1989 = vadd.f32 0.0, %v1988
        %1990 = vdwg.mxu0
        %v1991 = vperm.slane %v1959, 0
        %v1992 = vadd.f32 %v1991, %v1989
        %v1993 = vld [vmem:[#allocation8 + $0x768] sm:$0xff]
        %v1994 = vld [vmem:[#allocation8 + $0x770] sm:$0xff]
        %v1995 = vld [vmem:[#allocation8 + $0x778] sm:$0xff]
        %v1996 = vld [vmem:[#allocation8 + $0x780] sm:$0xff]
        %v1997 = vld [vmem:[#allocation8 + $0x788] sm:$0xff]
        %v1998 = vld [vmem:[#allocation8 + $0x790] sm:$0xff]
        %v1999 = vld [vmem:[#allocation8 + $0x798] sm:$0xff]
        %v2000 = vld [vmem:[#allocation8 + $0x7a0] sm:$0xff]
        %v2002 = vsel %vm801, %v1933, 0
        %2004 = vmatpush.msra.mxu0 0.0
        %2005 = vmatpush.msra.mxu0 0.0
        %2006 = vmatpush.msra.mxu0 0.0
        %2007 = vmatpush.msra.mxu0 0.0
        %2008 = vmatpush.msra.mxu0 0.0
        %2009 = vmatpush.msra.mxu0 0.0
        %2010 = vmatpush.msra.mxu0 0.0
        %2011 = vmatpush.msra.mxu0 0.0
        %2012 = vmatpush.msra.mxu0 %v2000
        %2013 = vmatpush.msra.mxu0 %v1999
        %2014 = vmatpush.msra.mxu0 %v1998
        %2015 = vmatpush.msra.mxu0 %v1997
        %2016 = vmatpush.msra.mxu0 %v1996
        %2017 = vmatpush.msra.mxu0 %v1995
        %2018 = vmatpush.msra.mxu0 %v1994
        %2019 = vmatpush.msra.mxu0 %v1993
        %2020 = vmatmul.f32.gmra.mxu0 %v2002
        %v2021 = vpop.f32.mrf.mxu0
        %v2022 = vadd.f32 0.0, %v2021
        %2023 = vdwg.mxu0
        %v2024 = vadd.f32 %v1992, %v2022
        %v2025 = vld [vmem:[#allocation8 + $0x7a8] sm:$0xff]
        %v2026 = vld [vmem:[#allocation8 + $0x7b0] sm:$0xff]
        %v2027 = vld [vmem:[#allocation8 + $0x7b8] sm:$0xff]
        %v2028 = vld [vmem:[#allocation8 + $0x7c0] sm:$0xff]
        %v2029 = vld [vmem:[#allocation8 + $0x7c8] sm:$0xff]
        %v2030 = vld [vmem:[#allocation8 + $0x7d0] sm:$0xff]
        %v2031 = vld [vmem:[#allocation8 + $0x7d8] sm:$0xff]
        %v2032 = vld [vmem:[#allocation8 + $0x7e0] sm:$0xff]
        %v2034 = vsel %vm801, %v1957, 0
        %2036 = vmatpush.msra.mxu0 0.0
        %2037 = vmatpush.msra.mxu0 0.0
        %2038 = vmatpush.msra.mxu0 0.0
        %2039 = vmatpush.msra.mxu0 0.0
        %2040 = vmatpush.msra.mxu0 0.0
        %2041 = vmatpush.msra.mxu0 0.0
        %2042 = vmatpush.msra.mxu0 0.0
        %2043 = vmatpush.msra.mxu0 0.0
        %2044 = vmatpush.msra.mxu0 %v2032
        %2045 = vmatpush.msra.mxu0 %v2031
        %2046 = vmatpush.msra.mxu0 %v2030
        %2047 = vmatpush.msra.mxu0 %v2029
        %2048 = vmatpush.msra.mxu0 %v2028
        %2049 = vmatpush.msra.mxu0 %v2027
        %2050 = vmatpush.msra.mxu0 %v2026
        %2051 = vmatpush.msra.mxu0 %v2025
        %2052 = vmatmul.f32.gmra.mxu0 %v2034
        %v2053 = vpop.f32.mrf.mxu0
        %v2054 = vadd.f32 0.0, %v2053
        %2055 = vdwg.mxu0
        %v2056 = vadd.f32 %v2024, %v2054
        %v2057 = vld [vmem:[#allocation8 + $0xb18] sm:$0xff]
        %v2058 = vld [vmem:[#allocation8 + $0xb20] sm:$0xff]
        %v2060 = vsel %vm763, %v2057, 0
        %v2063 = vsel %vm763, %v2058, 0
        %2065 = vmatpush.msra.mxu0 0.0
        %2066 = vmatpush.msra.mxu0 0.0
        %2067 = vmatpush.msra.mxu0 0.0
        %2068 = vmatpush.msra.mxu0 0.0
        %2069 = vmatpush.msra.mxu0 0.0
        %2070 = vmatpush.msra.mxu0 0.0
        %2071 = vmatpush.msra.mxu0 0.0
        %2072 = vmatpush.msra.mxu0 0.0
        %2073 = vmatpush.msra.mxu0 0.0
        %2074 = vmatpush.msra.mxu0 0.0
        %2075 = vmatpush.msra.mxu0 0.0
        %2076 = vmatpush.msra.mxu0 0.0
        %2077 = vmatpush.msra.mxu0 0.0
        %2078 = vmatpush.msra.mxu0 0.0
        %2079 = vmatpush.msra.mxu0 0.0
        %2080 = vmatpush.msra.mxu0 %v2056
        %2081 = vmatmul.f32.gmra.mxu0 %v2060
        %v2082 = vpop.f32.mrf.mxu0
        %v2083 = vadd.f32 0.0, %v2082
        %2084 = vmatmul.f32.gmra.mxu0 %v2063
        %v2085 = vpop.f32.mrf.mxu0
        %v2086 = vadd.f32 0.0, %v2085
        %2087 = vdwg.mxu0
        %v2088 = vld [vmem:[#allocation8 + $0xad8] sm:$0xff]
        %v2089 = vld [vmem:[#allocation8 + $0xae0] sm:$0xff]
        %v2090 = vld [vmem:[#allocation8 + $0xae8] sm:$0xff]
        %v2091 = vld [vmem:[#allocation8 + $0xaf0] sm:$0xff]
        %v2092 = vld [vmem:[#allocation8 + $0xaf8] sm:$0xff]
        %v2093 = vld [vmem:[#allocation8 + $0xb00] sm:$0xff]
        %v2094 = vld [vmem:[#allocation8 + $0xb08] sm:$0xff]
        %v2095 = vld [vmem:[#allocation8 + $0xb10] sm:$0xff]
        %v2097 = vsel %vm801, %v2083, 0
        %v2100 = vsel %vm801, %v2086, 0
        %2102 = vmatpush.msra.mxu0 0.0
        %2103 = vmatpush.msra.mxu0 0.0
        %2104 = vmatpush.msra.mxu0 0.0
        %2105 = vmatpush.msra.mxu0 0.0
        %2106 = vmatpush.msra.mxu0 0.0
        %2107 = vmatpush.msra.mxu0 0.0
        %2108 = vmatpush.msra.mxu0 0.0
        %2109 = vmatpush.msra.mxu0 0.0
        %2110 = vmatpush.msra.mxu0 %v2095
        %2111 = vmatpush.msra.mxu0 %v2094
        %2112 = vmatpush.msra.mxu0 %v2093
        %2113 = vmatpush.msra.mxu0 %v2092
        %2114 = vmatpush.msra.mxu0 %v2091
        %2115 = vmatpush.msra.mxu0 %v2090
        %2116 = vmatpush.msra.mxu0 %v2089
        %2117 = vmatpush.msra.mxu0 %v2088
        %2118 = vmatmul.f32.gmra.mxu0 %v2097
        %v2119 = vpop.f32.mrf.mxu0
        %v2120 = vadd.f32 0.0, %v2119
        %2121 = vmatmul.f32.gmra.mxu0 %v2100
        %v2122 = vpop.f32.mrf.mxu0
        %v2123 = vadd.f32 0.0, %v2122
        %2124 = vdwg.mxu0
        %v2125 = vadd.f32 %v831, %v2120
        %v2126 = vadd.f32 %v832, %v2123
        %v2127 = vld [vmem:[#allocation8 + $0x988] sm:$0xff]
        %v2128 = vld [vmem:[#allocation8 + $0x990] sm:$0xff]
        %v2130 = vsel %vm834, %v2127, 0
        %v2133 = vsel %vm834, %v2128, 0
        %2135 = vmatpush.msra.mxu0 0.0
        %2136 = vmatpush.msra.mxu0 0.0
        %2137 = vmatpush.msra.mxu0 0.0
        %2138 = vmatpush.msra.mxu0 0.0
        %2139 = vmatpush.msra.mxu0 0.0
        %2140 = vmatpush.msra.mxu0 0.0
        %2141 = vmatpush.msra.mxu0 0.0
        %2142 = vmatpush.msra.mxu0 0.0
        %2143 = vmatpush.msra.mxu0 0.0
        %2144 = vmatpush.msra.mxu0 0.0
        %2145 = vmatpush.msra.mxu0 0.0
        %2146 = vmatpush.msra.mxu0 0.0
        %2147 = vmatpush.msra.mxu0 0.0
        %2148 = vmatpush.msra.mxu0 0.0
        %2149 = vmatpush.msra.mxu0 %v2126
        %2150 = vmatpush.msra.mxu0 %v2125
        %2151 = vmatmul.f32.gmra.mxu0 %v2130
        %v2152 = vpop.f32.mrf.mxu0
        %v2153 = vadd.f32 0.0, %v2152
        %2154 = vmatmul.f32.gmra.mxu0 %v2133
        %v2155 = vpop.f32.mrf.mxu0
        %v2156 = vadd.f32 0.0, %v2155
        %2157 = vdwg.mxu0
        %v2158 = vld [vmem:[#allocation8 + $0x998] sm:$0xff]
        %v2159 = vld [vmem:[#allocation8 + $0x9a0] sm:$0xff]
        %v2161 = vsel %vm834, %v2158, 0
        %v2164 = vsel %vm834, %v2159, 0
        %2166 = vmatpush.msra.mxu0 0.0
        %2167 = vmatpush.msra.mxu0 0.0
        %2168 = vmatpush.msra.mxu0 0.0
        %2169 = vmatpush.msra.mxu0 0.0
        %2170 = vmatpush.msra.mxu0 0.0
        %2171 = vmatpush.msra.mxu0 0.0
        %2172 = vmatpush.msra.mxu0 0.0
        %2173 = vmatpush.msra.mxu0 0.0
        %2174 = vmatpush.msra.mxu0 0.0
        %2175 = vmatpush.msra.mxu0 0.0
        %2176 = vmatpush.msra.mxu0 0.0
        %2177 = vmatpush.msra.mxu0 0.0
        %2178 = vmatpush.msra.mxu0 0.0
        %2179 = vmatpush.msra.mxu0 0.0
        %2180 = vmatpush.msra.mxu0 %v2126
        %2181 = vmatpush.msra.mxu0 %v2125
        %2182 = vmatmul.f32.gmra.mxu0 %v2161
        %v2183 = vpop.f32.mrf.mxu0
        %v2184 = vadd.f32 0.0, %v2183
        %2185 = vmatmul.f32.gmra.mxu0 %v2164
        %v2186 = vpop.f32.mrf.mxu0
        %v2187 = vadd.f32 0.0, %v2186
        %2188 = vdwg.mxu0
        %v2189 = vld [vmem:[#allocation8 + $0x9a8] sm:$0xff]
        %v2190 = vld [vmem:[#allocation8 + $0x9b0] sm:$0xff]
        %v2192 = vsel %vm834, %v2189, 0
        %v2195 = vsel %vm834, %v2190, 0
        %2197 = vmatpush.msra.mxu0 0.0
        %2198 = vmatpush.msra.mxu0 0.0
        %2199 = vmatpush.msra.mxu0 0.0
        %2200 = vmatpush.msra.mxu0 0.0
        %2201 = vmatpush.msra.mxu0 0.0
        %2202 = vmatpush.msra.mxu0 0.0
        %2203 = vmatpush.msra.mxu0 0.0
        %2204 = vmatpush.msra.mxu0 0.0
        %2205 = vmatpush.msra.mxu0 0.0
        %2206 = vmatpush.msra.mxu0 0.0
        %2207 = vmatpush.msra.mxu0 0.0
        %2208 = vmatpush.msra.mxu0 0.0
        %2209 = vmatpush.msra.mxu0 0.0
        %2210 = vmatpush.msra.mxu0 0.0
        %2211 = vmatpush.msra.mxu0 %v2126
        %2212 = vmatpush.msra.mxu0 %v2125
        %2213 = vmatmul.f32.gmra.mxu0 %v2192
        %v2214 = vpop.f32.mrf.mxu0
        %v2215 = vadd.f32 0.0, %v2214
        %2216 = vmatmul.f32.gmra.mxu0 %v2195
        %v2217 = vpop.f32.mrf.mxu0
        %v2218 = vadd.f32 0.0, %v2217
        %2219 = vdwg.mxu0
        %v2220 = vld [vmem:[#allocation8 + $0x9b8] sm:$0x1]
        %v2221 = vld [vmem:[#allocation8 + $0x808] sm:$0xff]
        %v2222 = vld [vmem:[#allocation8 + $0x810] sm:$0xff]
        %v2223 = vld [vmem:[#allocation8 + $0x818] sm:$0xff]
        %v2224 = vld [vmem:[#allocation8 + $0x820] sm:$0xff]
        %v2225 = vld [vmem:[#allocation8 + $0x828] sm:$0xff]
        %v2226 = vld [vmem:[#allocation8 + $0x830] sm:$0xff]
        %v2227 = vld [vmem:[#allocation8 + $0x838] sm:$0xff]
        %v2228 = vld [vmem:[#allocation8 + $0x840] sm:$0xff]
        %v2229 = vld [vmem:[#allocation8 + $0x848] sm:$0xff]
        %v2230 = vld [vmem:[#allocation8 + $0x850] sm:$0xff]
        %v2231 = vld [vmem:[#allocation8 + $0x858] sm:$0xff]
        %v2232 = vld [vmem:[#allocation8 + $0x860] sm:$0xff]
        %v2233 = vld [vmem:[#allocation8 + $0x868] sm:$0xff]
        %v2234 = vld [vmem:[#allocation8 + $0x870] sm:$0xff]
        %v2235 = vld [vmem:[#allocation8 + $0x878] sm:$0xff]
        %v2236 = vld [vmem:[#allocation8 + $0x880] sm:$0xff]
        %v2237 = vld [vmem:[#allocation8 + $0x888] sm:$0xff]
        %v2238 = vld [vmem:[#allocation8 + $0x890] sm:$0xff]
        %v2239 = vld [vmem:[#allocation8 + $0x898] sm:$0xff]
        %v2240 = vld [vmem:[#allocation8 + $0x8a0] sm:$0xff]
        %v2241 = vld [vmem:[#allocation8 + $0x8a8] sm:$0xff]
        %v2242 = vld [vmem:[#allocation8 + $0x8b0] sm:$0xff]
        %v2243 = vld [vmem:[#allocation8 + $0x8b8] sm:$0xff]
        %v2244 = vld [vmem:[#allocation8 + $0x8c0] sm:$0xff]
        %v2245 = vld [vmem:[#allocation8 + $0x8c8] sm:$0xff]
        %v2246 = vld [vmem:[#allocation8 + $0x8d0] sm:$0xff]
        %v2247 = vld [vmem:[#allocation8 + $0x8d8] sm:$0xff]
        %v2248 = vld [vmem:[#allocation8 + $0x8e0] sm:$0xff]
        %v2249 = vld [vmem:[#allocation8 + $0x8e8] sm:$0xff]
        %v2250 = vld [vmem:[#allocation8 + $0x8f0] sm:$0xff]
        %v2251 = vld [vmem:[#allocation8 + $0x8f8] sm:$0xff]
        %v2252 = vld [vmem:[#allocation8 + $0x900] sm:$0xff]
        %v2253 = vld [vmem:[#allocation8 + $0x908] sm:$0xff]
        %v2254 = vld [vmem:[#allocation8 + $0x910] sm:$0xff]
        %v2255 = vld [vmem:[#allocation8 + $0x918] sm:$0xff]
        %v2256 = vld [vmem:[#allocation8 + $0x920] sm:$0xff]
        %v2257 = vld [vmem:[#allocation8 + $0x928] sm:$0xff]
        %v2258 = vld [vmem:[#allocation8 + $0x930] sm:$0xff]
        %v2259 = vld [vmem:[#allocation8 + $0x938] sm:$0xff]
        %v2260 = vld [vmem:[#allocation8 + $0x940] sm:$0xff]
        %v2261 = vld [vmem:[#allocation8 + $0x948] sm:$0xff]
        %v2262 = vld [vmem:[#allocation8 + $0x950] sm:$0xff]
        %v2263 = vld [vmem:[#allocation8 + $0x958] sm:$0xff]
        %v2264 = vld [vmem:[#allocation8 + $0x960] sm:$0xff]
        %v2265 = vld [vmem:[#allocation8 + $0x968] sm:$0xff]
        %v2266 = vld [vmem:[#allocation8 + $0x970] sm:$0xff]
        %v2267 = vld [vmem:[#allocation8 + $0x978] sm:$0xff]
        %v2268 = vld [vmem:[#allocation8 + $0x980] sm:$0xff]
        %v2269 = vperm.slane %v2220, 0
        %2270 = vmatpush.msra.mxu0 %v2236
        %2271 = vmatpush.msra.mxu0 %v2235
        %2272 = vmatpush.msra.mxu0 %v2234
        %2273 = vmatpush.msra.mxu0 %v2233
        %2274 = vmatpush.msra.mxu0 %v2232
        %2275 = vmatpush.msra.mxu0 %v2231
        %2276 = vmatpush.msra.mxu0 %v2230
        %2277 = vmatpush.msra.mxu0 %v2229
        %2278 = vmatpush.msra.mxu0 %v2228
        %2279 = vmatpush.msra.mxu0 %v2227
        %2280 = vmatpush.msra.mxu0 %v2226
        %2281 = vmatpush.msra.mxu0 %v2225
        %2282 = vmatpush.msra.mxu0 %v2224
        %2283 = vmatpush.msra.mxu0 %v2223
        %2284 = vmatpush.msra.mxu0 %v2222
        %2285 = vmatpush.msra.mxu0 %v2221
        %2286 = vmatmul.f32.gmra.mxu0 %v2153
        %v2287 = vpop.f32.mrf.mxu0
        %v2288 = vadd.f32 %v2269, %v2287
        %2289 = vmatmul.f32.gmra.mxu0 %v2156
        %v2290 = vpop.f32.mrf.mxu0
        %v2291 = vadd.f32 %v2269, %v2290
        %2292 = vdwg.mxu0
        %2293 = vmatpush.msra.mxu0 %v2252
        %2294 = vmatpush.msra.mxu0 %v2251
        %2295 = vmatpush.msra.mxu0 %v2250
        %2296 = vmatpush.msra.mxu0 %v2249
        %2297 = vmatpush.msra.mxu0 %v2248
        %2298 = vmatpush.msra.mxu0 %v2247
        %2299 = vmatpush.msra.mxu0 %v2246
        %2300 = vmatpush.msra.mxu0 %v2245
        %2301 = vmatpush.msra.mxu0 %v2244
        %2302 = vmatpush.msra.mxu0 %v2243
        %2303 = vmatpush.msra.mxu0 %v2242
        %2304 = vmatpush.msra.mxu0 %v2241
        %2305 = vmatpush.msra.mxu0 %v2240
        %2306 = vmatpush.msra.mxu0 %v2239
        %2307 = vmatpush.msra.mxu0 %v2238
        %2308 = vmatpush.msra.mxu0 %v2237
        %2309 = vmatmul.f32.gmra.mxu0 %v2184
        %v2310 = vpop.f32.mrf.mxu0
        %v2311 = vadd.f32 %v2288, %v2310
        %2312 = vmatmul.f32.gmra.mxu0 %v2187
        %v2313 = vpop.f32.mrf.mxu0
        %v2314 = vadd.f32 %v2291, %v2313
        %2315 = vdwg.mxu0
        %2316 = vmatpush.msra.mxu0 %v2268
        %2317 = vmatpush.msra.mxu0 %v2267
        %2318 = vmatpush.msra.mxu0 %v2266
        %2319 = vmatpush.msra.mxu0 %v2265
        %2320 = vmatpush.msra.mxu0 %v2264
        %2321 = vmatpush.msra.mxu0 %v2263
        %2322 = vmatpush.msra.mxu0 %v2262
        %2323 = vmatpush.msra.mxu0 %v2261
        %2324 = vmatpush.msra.mxu0 %v2260
        %2325 = vmatpush.msra.mxu0 %v2259
        %2326 = vmatpush.msra.mxu0 %v2258
        %2327 = vmatpush.msra.mxu0 %v2257
        %2328 = vmatpush.msra.mxu0 %v2256
        %2329 = vmatpush.msra.mxu0 %v2255
        %2330 = vmatpush.msra.mxu0 %v2254
        %2331 = vmatpush.msra.mxu0 %v2253
        %2332 = vmatmul.f32.gmra.mxu0 %v2215
        %v2333 = vpop.f32.mrf.mxu0
        %v2334 = vadd.f32 %v2311, %v2333
        %2335 = vmatmul.f32.gmra.mxu0 %v2218
        %v2336 = vpop.f32.mrf.mxu0
        %v2337 = vadd.f32 %v2314, %v2336
        %2338 = vdwg.mxu0
        %v2339 = vld [vmem:[#allocation8 + $0xb28] sm:$0xff]
        %v2340 = vld [vmem:[#allocation8 + $0xb30] sm:$0xff]
        %v2341 = vld [vmem:[#allocation8 + $0xb38] sm:$0xff]
        %v2342 = vld [vmem:[#allocation8 + $0xb40] sm:$0xff]
        %v2344 = vsel %vm834, %v2339, 0
        %v2347 = vsel %vm834, %v2340, 0
        %v2350 = vsel %vm834, %v2341, 0
        %v2353 = vsel %vm834, %v2342, 0
        %2355 = vmatpush.msra.mxu0 0.0
        %2356 = vmatpush.msra.mxu0 0.0
        %2357 = vmatpush.msra.mxu0 0.0
        %2358 = vmatpush.msra.mxu0 0.0
        %2359 = vmatpush.msra.mxu0 0.0
        %2360 = vmatpush.msra.mxu0 0.0
        %2361 = vmatpush.msra.mxu0 0.0
        %2362 = vmatpush.msra.mxu0 0.0
        %2363 = vmatpush.msra.mxu0 0.0
        %2364 = vmatpush.msra.mxu0 0.0
        %2365 = vmatpush.msra.mxu0 0.0
        %2366 = vmatpush.msra.mxu0 0.0
        %2367 = vmatpush.msra.mxu0 0.0
        %2368 = vmatpush.msra.mxu0 0.0
        %2369 = vmatpush.msra.mxu0 %v2337
        %2370 = vmatpush.msra.mxu0 %v2334
        %2371 = vmatmul.f32.gmra.mxu0 %v2344
        %v2372 = vpop.f32.mrf.mxu0
        %v2373 = vadd.f32 0.0, %v2372
        %2374 = vmatmul.f32.gmra.mxu0 %v2347
        %v2375 = vpop.f32.mrf.mxu0
        %v2376 = vadd.f32 0.0, %v2375
        %2377 = vmatmul.f32.gmra.mxu0 %v2350
        %v2378 = vpop.f32.mrf.mxu0
        %v2379 = vadd.f32 0.0, %v2378
        %2380 = vmatmul.f32.gmra.mxu0 %v2353
        %v2381 = vpop.f32.mrf.mxu0
        %v2382 = vadd.f32 0.0, %v2381
        %2383 = vdwg.mxu0
        %v2384 = vld [vmem:[#allocation10 + $0x610] sm:$0xff]
        %v2385 = vld [vmem:[#allocation10 + $0x618] sm:$0xff]
        %v2386 = vld [vmem:[#allocation10 + $0x620] sm:$0xff]
        %v2387 = vld [vmem:[#allocation10 + $0x628] sm:$0xff]
        %v2388 = vld [vmem:[#allocation10 + $0x630] sm:$0xff]
        %v2389 = vld [vmem:[#allocation10 + $0x638] sm:$0xff]
        %v2390 = vld [vmem:[#allocation10 + $0x640] sm:$0xff]
        %v2391 = vld [vmem:[#allocation10 + $0x648] sm:$0xff]
        %v2392 = vld [vmem:[#allocation10 + $0x650] sm:$0xff]
        %v2393 = vld [vmem:[#allocation10 + $0x658] sm:$0xff]
        %v2394 = vld [vmem:[#allocation10 + $0x660] sm:$0xff]
        %v2395 = vld [vmem:[#allocation10 + $0x668] sm:$0xff]
        %v2396 = vld [vmem:[#allocation10 + $0x670] sm:$0xff]
        %v2397 = vld [vmem:[#allocation10 + $0x678] sm:$0xff]
        %v2398 = vld [vmem:[#allocation10 + $0x680] sm:$0xff]
        %v2399 = vld [vmem:[#allocation10 + $0x688] sm:$0xff]
        %v2400 = vld [vmem:[#allocation10 + $0x690] sm:$0xff]
        %v2401 = vld [vmem:[#allocation10 + $0x698] sm:$0xff]
        %v2402 = vld [vmem:[#allocation10 + $0x6a0] sm:$0xff]
        %v2403 = vld [vmem:[#allocation10 + $0x6a8] sm:$0xff]
        %v2404 = vld [vmem:[#allocation10 + $0x6b0] sm:$0xff]
        %v2405 = vld [vmem:[#allocation10 + $0x6b8] sm:$0xff]
        %v2406 = vld [vmem:[#allocation10 + $0x6c0] sm:$0xff]
        %v2407 = vld [vmem:[#allocation10 + $0x6c8] sm:$0xff]
        %v2408 = vld [vmem:[#allocation10 + $0x6d0] sm:$0xff]
        %v2409 = vld [vmem:[#allocation10 + $0x6d8] sm:$0xff]
        %v2410 = vld [vmem:[#allocation10 + $0x6e0] sm:$0xff]
        %v2411 = vld [vmem:[#allocation10 + $0x6e8] sm:$0xff]
        %v2412 = vld [vmem:[#allocation10 + $0x6f0] sm:$0xff]
        %v2413 = vld [vmem:[#allocation10 + $0x6f8] sm:$0xff]
        %v2414 = vld [vmem:[#allocation10 + $0x700] sm:$0xff]
        %v2415 = vld [vmem:[#allocation10 + $0x708] sm:$0xff]
        %2416 = vmatpush.msra.mxu0 %v2414
        %2417 = vmatpush.msra.mxu0 %v2412
        %2418 = vmatpush.msra.mxu0 %v2410
        %2419 = vmatpush.msra.mxu0 %v2408
        %2420 = vmatpush.msra.mxu0 %v2406
        %2421 = vmatpush.msra.mxu0 %v2404
        %2422 = vmatpush.msra.mxu0 %v2402
        %2423 = vmatpush.msra.mxu0 %v2400
        %2424 = vmatpush.msra.mxu0 %v2398
        %2425 = vmatpush.msra.mxu0 %v2396
        %2426 = vmatpush.msra.mxu0 %v2394
        %2427 = vmatpush.msra.mxu0 %v2392
        %2428 = vmatpush.msra.mxu0 %v2390
        %2429 = vmatpush.msra.mxu0 %v2388
        %2430 = vmatpush.msra.mxu0 %v2386
        %2431 = vmatpush.msra.mxu0 %v2384
        %2432 = vmatmul.f32.gmra.mxu0 %v2373
        %v2433 = vpop.f32.mrf.mxu0
        %v2434 = vadd.f32 0.0, %v2433
        %2435 = vmatmul.f32.gmra.mxu0 %v2376
        %v2436 = vpop.f32.mrf.mxu0
        %v2437 = vadd.f32 0.0, %v2436
        %2438 = vmatmul.f32.gmra.mxu0 %v2379
        %v2439 = vpop.f32.mrf.mxu0
        %v2440 = vadd.f32 0.0, %v2439
        %2441 = vmatmul.f32.gmra.mxu0 %v2382
        %v2442 = vpop.f32.mrf.mxu0
        %v2443 = vadd.f32 0.0, %v2442
        %2444 = vdwg.mxu0
        %2445 = vmatpush.msra.mxu0 %v2415
        %2446 = vmatpush.msra.mxu0 %v2413
        %2447 = vmatpush.msra.mxu0 %v2411
        %2448 = vmatpush.msra.mxu0 %v2409
        %2449 = vmatpush.msra.mxu0 %v2407
        %2450 = vmatpush.msra.mxu0 %v2405
        %2451 = vmatpush.msra.mxu0 %v2403
        %2452 = vmatpush.msra.mxu0 %v2401
        %2453 = vmatpush.msra.mxu0 %v2399
        %2454 = vmatpush.msra.mxu0 %v2397
        %2455 = vmatpush.msra.mxu0 %v2395
        %2456 = vmatpush.msra.mxu0 %v2393
        %2457 = vmatpush.msra.mxu0 %v2391
        %2458 = vmatpush.msra.mxu0 %v2389
        %2459 = vmatpush.msra.mxu0 %v2387
        %2460 = vmatpush.msra.mxu0 %v2385
        %2461 = vmatmul.f32.gmra.mxu0 %v2373
        %v2462 = vpop.f32.mrf.mxu0
        %v2463 = vadd.f32 0.0, %v2462
        %2464 = vmatmul.f32.gmra.mxu0 %v2376
        %v2465 = vpop.f32.mrf.mxu0
        %v2466 = vadd.f32 0.0, %v2465
        %2467 = vmatmul.f32.gmra.mxu0 %v2379
        %v2468 = vpop.f32.mrf.mxu0
        %v2469 = vadd.f32 0.0, %v2468
        %2470 = vmatmul.f32.gmra.mxu0 %v2382
        %v2471 = vpop.f32.mrf.mxu0
        %v2472 = vadd.f32 0.0, %v2471
        %2473 = vdwg.mxu0
        %v2474 = vadd.f32 %v353, %v2434
        %v2475 = vadd.f32 %v354, %v2463
        %v2476 = vadd.f32 %v355, %v2437
        %v2477 = vadd.f32 %v356, %v2466
        %v2478 = vadd.f32 %v357, %v2440
        %v2479 = vadd.f32 %v358, %v2469
        %v2480 = vadd.f32 %v359, %v2443
        %v2481 = vadd.f32 %v360, %v2472
        %v2482 = vmax.f32 %v2474, 0.0
        %v2483 = vmax.f32 %v2475, 0.0
        %v2484 = vmax.f32 %v2476, 0.0
        %v2485 = vmax.f32 %v2477, 0.0
        %v2486 = vmax.f32 %v2478, 0.0
        %v2487 = vmax.f32 %v2479, 0.0
        %v2488 = vmax.f32 %v2480, 0.0
        %v2489 = vmax.f32 %v2481, 0.0
        %v2490 = vld [vmem:[#allocation8 + $0x9c0] sm:$0xff]
        %v2491 = vld [vmem:[#allocation8 + $0x9c8] sm:$0xff]
        %v2492 = vld [vmem:[#allocation8 + $0x9d0] sm:$0xff]
        %v2493 = vld [vmem:[#allocation8 + $0x9d8] sm:$0xff]
        %v2495 = vsel %vm363, %v2490, 0
        %v2498 = vsel %vm363, %v2491, 0
        %v2501 = vsel %vm363, %v2492, 0
        %v2504 = vsel %vm363, %v2493, 0
        %2506 = vmatpush.msra.mxu0 0.0
        %2507 = vmatpush.msra.mxu0 0.0
        %2508 = vmatpush.msra.mxu0 0.0
        %2509 = vmatpush.msra.mxu0 0.0
        %2510 = vmatpush.msra.mxu0 0.0
        %2511 = vmatpush.msra.mxu0 0.0
        %2512 = vmatpush.msra.mxu0 0.0
        %2513 = vmatpush.msra.mxu0 0.0
        %2514 = vmatpush.msra.mxu0 0.0
        %2515 = vmatpush.msra.mxu0 0.0
        %2516 = vmatpush.msra.mxu0 0.0
        %2517 = vmatpush.msra.mxu0 0.0
        %2518 = vmatpush.msra.mxu0 %v2488
        %2519 = vmatpush.msra.mxu0 %v2486
        %2520 = vmatpush.msra.mxu0 %v2484
        %2521 = vmatpush.msra.mxu0 %v2482
        %2522 = vmatmul.f32.gmra.mxu0 %v2495
        %v2523 = vpop.f32.mrf.mxu0
        %v2524 = vadd.f32 0.0, %v2523
        %2525 = vmatmul.f32.gmra.mxu0 %v2498
        %v2526 = vpop.f32.mrf.mxu0
        %v2527 = vadd.f32 0.0, %v2526
        %2528 = vmatmul.f32.gmra.mxu0 %v2501
        %v2529 = vpop.f32.mrf.mxu0
        %v2530 = vadd.f32 0.0, %v2529
        %2531 = vmatmul.f32.gmra.mxu0 %v2504
        %v2532 = vpop.f32.mrf.mxu0
        %v2533 = vadd.f32 0.0, %v2532
        %2534 = vdwg.mxu0
        %2535 = vmatpush.msra.mxu0 0.0
        %2536 = vmatpush.msra.mxu0 0.0
        %2537 = vmatpush.msra.mxu0 0.0
        %2538 = vmatpush.msra.mxu0 0.0
        %2539 = vmatpush.msra.mxu0 0.0
        %2540 = vmatpush.msra.mxu0 0.0
        %2541 = vmatpush.msra.mxu0 0.0
        %2542 = vmatpush.msra.mxu0 0.0
        %2543 = vmatpush.msra.mxu0 0.0
        %2544 = vmatpush.msra.mxu0 0.0
        %2545 = vmatpush.msra.mxu0 0.0
        %2546 = vmatpush.msra.mxu0 0.0
        %2547 = vmatpush.msra.mxu0 %v2489
        %2548 = vmatpush.msra.mxu0 %v2487
        %2549 = vmatpush.msra.mxu0 %v2485
        %2550 = vmatpush.msra.mxu0 %v2483
        %2551 = vmatmul.f32.gmra.mxu0 %v2495
        %v2552 = vpop.f32.mrf.mxu0
        %v2553 = vadd.f32 0.0, %v2552
        %2554 = vmatmul.f32.gmra.mxu0 %v2498
        %v2555 = vpop.f32.mrf.mxu0
        %v2556 = vadd.f32 0.0, %v2555
        %2557 = vmatmul.f32.gmra.mxu0 %v2501
        %v2558 = vpop.f32.mrf.mxu0
        %v2559 = vadd.f32 0.0, %v2558
        %2560 = vmatmul.f32.gmra.mxu0 %v2504
        %v2561 = vpop.f32.mrf.mxu0
        %v2562 = vadd.f32 0.0, %v2561
        %2563 = vdwg.mxu0
        %v2564 = vld [vmem:[#allocation8 + $0x9e0] sm:$0xff]
        %v2565 = vld [vmem:[#allocation8 + $0x9e8] sm:$0xff]
        %v2566 = vld [vmem:[#allocation8 + $0x9f0] sm:$0xff]
        %v2567 = vld [vmem:[#allocation8 + $0x9f8] sm:$0xff]
        %v2569 = vsel %vm363, %v2564, 0
        %v2572 = vsel %vm363, %v2565, 0
        %v2575 = vsel %vm363, %v2566, 0
        %v2578 = vsel %vm363, %v2567, 0
        %2580 = vmatpush.msra.mxu0 0.0
        %2581 = vmatpush.msra.mxu0 0.0
        %2582 = vmatpush.msra.mxu0 0.0
        %2583 = vmatpush.msra.mxu0 0.0
        %2584 = vmatpush.msra.mxu0 0.0
        %2585 = vmatpush.msra.mxu0 0.0
        %2586 = vmatpush.msra.mxu0 0.0
        %2587 = vmatpush.msra.mxu0 0.0
        %2588 = vmatpush.msra.mxu0 0.0
        %2589 = vmatpush.msra.mxu0 0.0
        %2590 = vmatpush.msra.mxu0 0.0
        %2591 = vmatpush.msra.mxu0 0.0
        %2592 = vmatpush.msra.mxu0 %v2488
        %2593 = vmatpush.msra.mxu0 %v2486
        %2594 = vmatpush.msra.mxu0 %v2484
        %2595 = vmatpush.msra.mxu0 %v2482
        %2596 = vmatmul.f32.gmra.mxu0 %v2569
        %v2597 = vpop.f32.mrf.mxu0
        %v2598 = vadd.f32 0.0, %v2597
        %2599 = vmatmul.f32.gmra.mxu0 %v2572
        %v2600 = vpop.f32.mrf.mxu0
        %v2601 = vadd.f32 0.0, %v2600
        %2602 = vmatmul.f32.gmra.mxu0 %v2575
        %v2603 = vpop.f32.mrf.mxu0
        %v2604 = vadd.f32 0.0, %v2603
        %2605 = vmatmul.f32.gmra.mxu0 %v2578
        %v2606 = vpop.f32.mrf.mxu0
        %v2607 = vadd.f32 0.0, %v2606
        %2608 = vdwg.mxu0
        %2609 = vmatpush.msra.mxu0 0.0
        %2610 = vmatpush.msra.mxu0 0.0
        %2611 = vmatpush.msra.mxu0 0.0
        %2612 = vmatpush.msra.mxu0 0.0
        %2613 = vmatpush.msra.mxu0 0.0
        %2614 = vmatpush.msra.mxu0 0.0
        %2615 = vmatpush.msra.mxu0 0.0
        %2616 = vmatpush.msra.mxu0 0.0
        %2617 = vmatpush.msra.mxu0 0.0
        %2618 = vmatpush.msra.mxu0 0.0
        %2619 = vmatpush.msra.mxu0 0.0
        %2620 = vmatpush.msra.mxu0 0.0
        %2621 = vmatpush.msra.mxu0 %v2489
        %2622 = vmatpush.msra.mxu0 %v2487
        %2623 = vmatpush.msra.mxu0 %v2485
        %2624 = vmatpush.msra.mxu0 %v2483
        %2625 = vmatmul.f32.gmra.mxu0 %v2569
        %v2626 = vpop.f32.mrf.mxu0
        %v2627 = vadd.f32 0.0, %v2626
        %2628 = vmatmul.f32.gmra.mxu0 %v2572
        %v2629 = vpop.f32.mrf.mxu0
        %v2630 = vadd.f32 0.0, %v2629
        %2631 = vmatmul.f32.gmra.mxu0 %v2575
        %v2632 = vpop.f32.mrf.mxu0
        %v2633 = vadd.f32 0.0, %v2632
        %2634 = vmatmul.f32.gmra.mxu0 %v2578
        %v2635 = vpop.f32.mrf.mxu0
        %v2636 = vadd.f32 0.0, %v2635
        %2637 = vdwg.mxu0
        %v2638 = vld [vmem:[#allocation8 + $0xa00] sm:$0xff]
        %v2639 = vld [vmem:[#allocation8 + $0xa08] sm:$0xff]
        %v2640 = vld [vmem:[#allocation8 + $0xa10] sm:$0xff]
        %v2641 = vld [vmem:[#allocation8 + $0xa18] sm:$0xff]
        %v2643 = vsel %vm363, %v2638, 0
        %v2646 = vsel %vm363, %v2639, 0
        %v2649 = vsel %vm363, %v2640, 0
        %v2652 = vsel %vm363, %v2641, 0
        %2654 = vmatpush.msra.mxu0 0.0
        %2655 = vmatpush.msra.mxu0 0.0
        %2656 = vmatpush.msra.mxu0 0.0
        %2657 = vmatpush.msra.mxu0 0.0
        %2658 = vmatpush.msra.mxu0 0.0
        %2659 = vmatpush.msra.mxu0 0.0
        %2660 = vmatpush.msra.mxu0 0.0
        %2661 = vmatpush.msra.mxu0 0.0
        %2662 = vmatpush.msra.mxu0 0.0
        %2663 = vmatpush.msra.mxu0 0.0
        %2664 = vmatpush.msra.mxu0 0.0
        %2665 = vmatpush.msra.mxu0 0.0
        %2666 = vmatpush.msra.mxu0 %v2488
        %2667 = vmatpush.msra.mxu0 %v2486
        %2668 = vmatpush.msra.mxu0 %v2484
        %2669 = vmatpush.msra.mxu0 %v2482
        %2670 = vmatmul.f32.gmra.mxu0 %v2643
        %v2671 = vpop.f32.mrf.mxu0
        %v2672 = vadd.f32 0.0, %v2671
        %2673 = vmatmul.f32.gmra.mxu0 %v2646
        %v2674 = vpop.f32.mrf.mxu0
        %v2675 = vadd.f32 0.0, %v2674
        %2676 = vmatmul.f32.gmra.mxu0 %v2649
        %v2677 = vpop.f32.mrf.mxu0
        %v2678 = vadd.f32 0.0, %v2677
        %2679 = vmatmul.f32.gmra.mxu0 %v2652
        %v2680 = vpop.f32.mrf.mxu0
        %v2681 = vadd.f32 0.0, %v2680
        %2682 = vdwg.mxu0
        %2683 = vmatpush.msra.mxu0 0.0
        %2684 = vmatpush.msra.mxu0 0.0
        %2685 = vmatpush.msra.mxu0 0.0
        %2686 = vmatpush.msra.mxu0 0.0
        %2687 = vmatpush.msra.mxu0 0.0
        %2688 = vmatpush.msra.mxu0 0.0
        %2689 = vmatpush.msra.mxu0 0.0
        %2690 = vmatpush.msra.mxu0 0.0
        %2691 = vmatpush.msra.mxu0 0.0
        %2692 = vmatpush.msra.mxu0 0.0
        %2693 = vmatpush.msra.mxu0 0.0
        %2694 = vmatpush.msra.mxu0 0.0
        %2695 = vmatpush.msra.mxu0 %v2489
        %2696 = vmatpush.msra.mxu0 %v2487
        %2697 = vmatpush.msra.mxu0 %v2485
        %2698 = vmatpush.msra.mxu0 %v2483
        %2699 = vmatmul.f32.gmra.mxu0 %v2643
        %v2700 = vpop.f32.mrf.mxu0
        %v2701 = vadd.f32 0.0, %v2700
        %2702 = vmatmul.f32.gmra.mxu0 %v2646
        %v2703 = vpop.f32.mrf.mxu0
        %v2704 = vadd.f32 0.0, %v2703
        %2705 = vmatmul.f32.gmra.mxu0 %v2649
        %v2706 = vpop.f32.mrf.mxu0
        %v2707 = vadd.f32 0.0, %v2706
        %2708 = vmatmul.f32.gmra.mxu0 %v2652
        %v2709 = vpop.f32.mrf.mxu0
        %v2710 = vadd.f32 0.0, %v2709
        %2711 = vdwg.mxu0
        %s2712 = scalar_lea.vmem [#allocation10], 1536
        %v2713 = vld [vmem:[%s2712] ss:$8 sm:$0x3]
        %v2714 = vld [vmem:[#allocation10] sm:$0xff]
        %v2715 = vld [vmem:[#allocation10 + $0x8] sm:$0xff]
        %v2716 = vld [vmem:[#allocation10 + $0x10] sm:$0xff]
        %v2717 = vld [vmem:[#allocation10 + $0x18] sm:$0xff]
        %v2718 = vld [vmem:[#allocation10 + $0x20] sm:$0xff]
        %v2719 = vld [vmem:[#allocation10 + $0x28] sm:$0xff]
        %v2720 = vld [vmem:[#allocation10 + $0x30] sm:$0xff]
        %v2721 = vld [vmem:[#allocation10 + $0x38] sm:$0xff]
        %v2722 = vld [vmem:[#allocation10 + $0x40] sm:$0xff]
        %v2723 = vld [vmem:[#allocation10 + $0x48] sm:$0xff]
        %v2724 = vld [vmem:[#allocation10 + $0x50] sm:$0xff]
        %v2725 = vld [vmem:[#allocation10 + $0x58] sm:$0xff]
        %v2726 = vld [vmem:[#allocation10 + $0x60] sm:$0xff]
        %v2727 = vld [vmem:[#allocation10 + $0x68] sm:$0xff]
        %v2728 = vld [vmem:[#allocation10 + $0x70] sm:$0xff]
        %v2729 = vld [vmem:[#allocation10 + $0x78] sm:$0xff]
        %v2730 = vld [vmem:[#allocation10 + $0x80] sm:$0xff]
        %v2731 = vld [vmem:[#allocation10 + $0x88] sm:$0xff]
        %v2732 = vld [vmem:[#allocation10 + $0x90] sm:$0xff]
        %v2733 = vld [vmem:[#allocation10 + $0x98] sm:$0xff]
        %v2734 = vld [vmem:[#allocation10 + $0xa0] sm:$0xff]
        %v2735 = vld [vmem:[#allocation10 + $0xa8] sm:$0xff]
        %v2736 = vld [vmem:[#allocation10 + $0xb0] sm:$0xff]
        %v2737 = vld [vmem:[#allocation10 + $0xb8] sm:$0xff]
        %v2738 = vld [vmem:[#allocation10 + $0xc0] sm:$0xff]
        %v2739 = vld [vmem:[#allocation10 + $0xc8] sm:$0xff]
        %v2740 = vld [vmem:[#allocation10 + $0xd0] sm:$0xff]
        %v2741 = vld [vmem:[#allocation10 + $0xd8] sm:$0xff]
        %v2742 = vld [vmem:[#allocation10 + $0xe0] sm:$0xff]
        %v2743 = vld [vmem:[#allocation10 + $0xe8] sm:$0xff]
        %v2744 = vld [vmem:[#allocation10 + $0xf0] sm:$0xff]
        %v2745 = vld [vmem:[#allocation10 + $0xf8] sm:$0xff]
        %v2746 = vld [vmem:[#allocation10 + $0x100] sm:$0xff]
        %v2747 = vld [vmem:[#allocation10 + $0x108] sm:$0xff]
        %v2748 = vld [vmem:[#allocation10 + $0x110] sm:$0xff]
        %v2749 = vld [vmem:[#allocation10 + $0x118] sm:$0xff]
        %v2750 = vld [vmem:[#allocation10 + $0x120] sm:$0xff]
        %v2751 = vld [vmem:[#allocation10 + $0x128] sm:$0xff]
        %v2752 = vld [vmem:[#allocation10 + $0x130] sm:$0xff]
        %v2753 = vld [vmem:[#allocation10 + $0x138] sm:$0xff]
        %v2754 = vld [vmem:[#allocation10 + $0x140] sm:$0xff]
        %v2755 = vld [vmem:[#allocation10 + $0x148] sm:$0xff]
        %v2756 = vld [vmem:[#allocation10 + $0x150] sm:$0xff]
        %v2757 = vld [vmem:[#allocation10 + $0x158] sm:$0xff]
        %v2758 = vld [vmem:[#allocation10 + $0x160] sm:$0xff]
        %v2759 = vld [vmem:[#allocation10 + $0x168] sm:$0xff]
        %v2760 = vld [vmem:[#allocation10 + $0x170] sm:$0xff]
        %v2761 = vld [vmem:[#allocation10 + $0x178] sm:$0xff]
        %v2762 = vld [vmem:[#allocation10 + $0x180] sm:$0xff]
        %v2763 = vld [vmem:[#allocation10 + $0x188] sm:$0xff]
        %v2764 = vld [vmem:[#allocation10 + $0x190] sm:$0xff]
        %v2765 = vld [vmem:[#allocation10 + $0x198] sm:$0xff]
        %v2766 = vld [vmem:[#allocation10 + $0x1a0] sm:$0xff]
        %v2767 = vld [vmem:[#allocation10 + $0x1a8] sm:$0xff]
        %v2768 = vld [vmem:[#allocation10 + $0x1b0] sm:$0xff]
        %v2769 = vld [vmem:[#allocation10 + $0x1b8] sm:$0xff]
        %v2770 = vld [vmem:[#allocation10 + $0x1c0] sm:$0xff]
        %v2771 = vld [vmem:[#allocation10 + $0x1c8] sm:$0xff]
        %v2772 = vld [vmem:[#allocation10 + $0x1d0] sm:$0xff]
        %v2773 = vld [vmem:[#allocation10 + $0x1d8] sm:$0xff]
        %v2774 = vld [vmem:[#allocation10 + $0x1e0] sm:$0xff]
        %v2775 = vld [vmem:[#allocation10 + $0x1e8] sm:$0xff]
        %v2776 = vld [vmem:[#allocation10 + $0x1f0] sm:$0xff]
        %v2777 = vld [vmem:[#allocation10 + $0x1f8] sm:$0xff]
        %v2778 = vld [vmem:[#allocation10 + $0x200] sm:$0xff]
        %v2779 = vld [vmem:[#allocation10 + $0x208] sm:$0xff]
        %v2780 = vld [vmem:[#allocation10 + $0x210] sm:$0xff]
        %v2781 = vld [vmem:[#allocation10 + $0x218] sm:$0xff]
        %v2782 = vld [vmem:[#allocation10 + $0x220] sm:$0xff]
        %v2783 = vld [vmem:[#allocation10 + $0x228] sm:$0xff]
        %v2784 = vld [vmem:[#allocation10 + $0x230] sm:$0xff]
        %v2785 = vld [vmem:[#allocation10 + $0x238] sm:$0xff]
        %v2786 = vld [vmem:[#allocation10 + $0x240] sm:$0xff]
        %v2787 = vld [vmem:[#allocation10 + $0x248] sm:$0xff]
        %v2788 = vld [vmem:[#allocation10 + $0x250] sm:$0xff]
        %v2789 = vld [vmem:[#allocation10 + $0x258] sm:$0xff]
        %v2790 = vld [vmem:[#allocation10 + $0x260] sm:$0xff]
        %v2791 = vld [vmem:[#allocation10 + $0x268] sm:$0xff]
        %v2792 = vld [vmem:[#allocation10 + $0x270] sm:$0xff]
        %v2793 = vld [vmem:[#allocation10 + $0x278] sm:$0xff]
        %v2794 = vld [vmem:[#allocation10 + $0x280] sm:$0xff]
        %v2795 = vld [vmem:[#allocation10 + $0x288] sm:$0xff]
        %v2796 = vld [vmem:[#allocation10 + $0x290] sm:$0xff]
        %v2797 = vld [vmem:[#allocation10 + $0x298] sm:$0xff]
        %v2798 = vld [vmem:[#allocation10 + $0x2a0] sm:$0xff]
        %v2799 = vld [vmem:[#allocation10 + $0x2a8] sm:$0xff]
        %v2800 = vld [vmem:[#allocation10 + $0x2b0] sm:$0xff]
        %v2801 = vld [vmem:[#allocation10 + $0x2b8] sm:$0xff]
        %v2802 = vld [vmem:[#allocation10 + $0x2c0] sm:$0xff]
        %v2803 = vld [vmem:[#allocation10 + $0x2c8] sm:$0xff]
        %v2804 = vld [vmem:[#allocation10 + $0x2d0] sm:$0xff]
        %v2805 = vld [vmem:[#allocation10 + $0x2d8] sm:$0xff]
        %v2806 = vld [vmem:[#allocation10 + $0x2e0] sm:$0xff]
        %v2807 = vld [vmem:[#allocation10 + $0x2e8] sm:$0xff]
        %v2808 = vld [vmem:[#allocation10 + $0x2f0] sm:$0xff]
        %v2809 = vld [vmem:[#allocation10 + $0x2f8] sm:$0xff]
        %v2810 = vld [vmem:[#allocation10 + $0x300] sm:$0xff]
        %v2811 = vld [vmem:[#allocation10 + $0x308] sm:$0xff]
        %v2812 = vld [vmem:[#allocation10 + $0x310] sm:$0xff]
        %v2813 = vld [vmem:[#allocation10 + $0x318] sm:$0xff]
        %v2814 = vld [vmem:[#allocation10 + $0x320] sm:$0xff]
        %v2815 = vld [vmem:[#allocation10 + $0x328] sm:$0xff]
        %v2816 = vld [vmem:[#allocation10 + $0x330] sm:$0xff]
        %v2817 = vld [vmem:[#allocation10 + $0x338] sm:$0xff]
        %v2818 = vld [vmem:[#allocation10 + $0x340] sm:$0xff]
        %v2819 = vld [vmem:[#allocation10 + $0x348] sm:$0xff]
        %v2820 = vld [vmem:[#allocation10 + $0x350] sm:$0xff]
        %v2821 = vld [vmem:[#allocation10 + $0x358] sm:$0xff]
        %v2822 = vld [vmem:[#allocation10 + $0x360] sm:$0xff]
        %v2823 = vld [vmem:[#allocation10 + $0x368] sm:$0xff]
        %v2824 = vld [vmem:[#allocation10 + $0x370] sm:$0xff]
        %v2825 = vld [vmem:[#allocation10 + $0x378] sm:$0xff]
        %v2826 = vld [vmem:[#allocation10 + $0x380] sm:$0xff]
        %v2827 = vld [vmem:[#allocation10 + $0x388] sm:$0xff]
        %v2828 = vld [vmem:[#allocation10 + $0x390] sm:$0xff]
        %v2829 = vld [vmem:[#allocation10 + $0x398] sm:$0xff]
        %v2830 = vld [vmem:[#allocation10 + $0x3a0] sm:$0xff]
        %v2831 = vld [vmem:[#allocation10 + $0x3a8] sm:$0xff]
        %v2832 = vld [vmem:[#allocation10 + $0x3b0] sm:$0xff]
        %v2833 = vld [vmem:[#allocation10 + $0x3b8] sm:$0xff]
        %v2834 = vld [vmem:[#allocation10 + $0x3c0] sm:$0xff]
        %v2835 = vld [vmem:[#allocation10 + $0x3c8] sm:$0xff]
        %v2836 = vld [vmem:[#allocation10 + $0x3d0] sm:$0xff]
        %v2837 = vld [vmem:[#allocation10 + $0x3d8] sm:$0xff]
        %v2838 = vld [vmem:[#allocation10 + $0x3e0] sm:$0xff]
        %v2839 = vld [vmem:[#allocation10 + $0x3e8] sm:$0xff]
        %v2840 = vld [vmem:[#allocation10 + $0x3f0] sm:$0xff]
        %v2841 = vld [vmem:[#allocation10 + $0x3f8] sm:$0xff]
        %v2842 = vld [vmem:[#allocation10 + $0x400] sm:$0xff]
        %v2843 = vld [vmem:[#allocation10 + $0x408] sm:$0xff]
        %v2844 = vld [vmem:[#allocation10 + $0x410] sm:$0xff]
        %v2845 = vld [vmem:[#allocation10 + $0x418] sm:$0xff]
        %v2846 = vld [vmem:[#allocation10 + $0x420] sm:$0xff]
        %v2847 = vld [vmem:[#allocation10 + $0x428] sm:$0xff]
        %v2848 = vld [vmem:[#allocation10 + $0x430] sm:$0xff]
        %v2849 = vld [vmem:[#allocation10 + $0x438] sm:$0xff]
        %v2850 = vld [vmem:[#allocation10 + $0x440] sm:$0xff]
        %v2851 = vld [vmem:[#allocation10 + $0x448] sm:$0xff]
        %v2852 = vld [vmem:[#allocation10 + $0x450] sm:$0xff]
        %v2853 = vld [vmem:[#allocation10 + $0x458] sm:$0xff]
        %v2854 = vld [vmem:[#allocation10 + $0x460] sm:$0xff]
        %v2855 = vld [vmem:[#allocation10 + $0x468] sm:$0xff]
        %v2856 = vld [vmem:[#allocation10 + $0x470] sm:$0xff]
        %v2857 = vld [vmem:[#allocation10 + $0x478] sm:$0xff]
        %v2858 = vld [vmem:[#allocation10 + $0x480] sm:$0xff]
        %v2859 = vld [vmem:[#allocation10 + $0x488] sm:$0xff]
        %v2860 = vld [vmem:[#allocation10 + $0x490] sm:$0xff]
        %v2861 = vld [vmem:[#allocation10 + $0x498] sm:$0xff]
        %v2862 = vld [vmem:[#allocation10 + $0x4a0] sm:$0xff]
        %v2863 = vld [vmem:[#allocation10 + $0x4a8] sm:$0xff]
        %v2864 = vld [vmem:[#allocation10 + $0x4b0] sm:$0xff]
        %v2865 = vld [vmem:[#allocation10 + $0x4b8] sm:$0xff]
        %v2866 = vld [vmem:[#allocation10 + $0x4c0] sm:$0xff]
        %v2867 = vld [vmem:[#allocation10 + $0x4c8] sm:$0xff]
        %v2868 = vld [vmem:[#allocation10 + $0x4d0] sm:$0xff]
        %v2869 = vld [vmem:[#allocation10 + $0x4d8] sm:$0xff]
        %v2870 = vld [vmem:[#allocation10 + $0x4e0] sm:$0xff]
        %v2871 = vld [vmem:[#allocation10 + $0x4e8] sm:$0xff]
        %v2872 = vld [vmem:[#allocation10 + $0x4f0] sm:$0xff]
        %v2873 = vld [vmem:[#allocation10 + $0x4f8] sm:$0xff]
        %v2874 = vld [vmem:[#allocation10 + $0x500] sm:$0xff]
        %v2875 = vld [vmem:[#allocation10 + $0x508] sm:$0xff]
        %v2876 = vld [vmem:[#allocation10 + $0x510] sm:$0xff]
        %v2877 = vld [vmem:[#allocation10 + $0x518] sm:$0xff]
        %v2878 = vld [vmem:[#allocation10 + $0x520] sm:$0xff]
        %v2879 = vld [vmem:[#allocation10 + $0x528] sm:$0xff]
        %v2880 = vld [vmem:[#allocation10 + $0x530] sm:$0xff]
        %v2881 = vld [vmem:[#allocation10 + $0x538] sm:$0xff]
        %v2882 = vld [vmem:[#allocation10 + $0x540] sm:$0xff]
        %v2883 = vld [vmem:[#allocation10 + $0x548] sm:$0xff]
        %v2884 = vld [vmem:[#allocation10 + $0x550] sm:$0xff]
        %v2885 = vld [vmem:[#allocation10 + $0x558] sm:$0xff]
        %v2886 = vld [vmem:[#allocation10 + $0x560] sm:$0xff]
        %v2887 = vld [vmem:[#allocation10 + $0x568] sm:$0xff]
        %v2888 = vld [vmem:[#allocation10 + $0x570] sm:$0xff]
        %v2889 = vld [vmem:[#allocation10 + $0x578] sm:$0xff]
        %v2890 = vld [vmem:[#allocation10 + $0x580] sm:$0xff]
        %v2891 = vld [vmem:[#allocation10 + $0x588] sm:$0xff]
        %v2892 = vld [vmem:[#allocation10 + $0x590] sm:$0xff]
        %v2893 = vld [vmem:[#allocation10 + $0x598] sm:$0xff]
        %v2894 = vld [vmem:[#allocation10 + $0x5a0] sm:$0xff]
        %v2895 = vld [vmem:[#allocation10 + $0x5a8] sm:$0xff]
        %v2896 = vld [vmem:[#allocation10 + $0x5b0] sm:$0xff]
        %v2897 = vld [vmem:[#allocation10 + $0x5b8] sm:$0xff]
        %v2898 = vld [vmem:[#allocation10 + $0x5c0] sm:$0xff]
        %v2899 = vld [vmem:[#allocation10 + $0x5c8] sm:$0xff]
        %v2900 = vld [vmem:[#allocation10 + $0x5d0] sm:$0xff]
        %v2901 = vld [vmem:[#allocation10 + $0x5d8] sm:$0xff]
        %v2902 = vld [vmem:[#allocation10 + $0x5e0] sm:$0xff]
        %v2903 = vld [vmem:[#allocation10 + $0x5e8] sm:$0xff]
        %v2904 = vld [vmem:[#allocation10 + $0x5f0] sm:$0xff]
        %v2905 = vld [vmem:[#allocation10 + $0x5f8] sm:$0xff]
        %v2907 = vperm.slane %v2713, 0
        %v2908 = vperm.slane %v2713, 1
        %2911 = vmatpush.msra.mxu0 %v2744
        %2912 = vmatpush.msra.mxu0 %v2742
        %2913 = vmatpush.msra.mxu0 %v2740
        %2914 = vmatpush.msra.mxu0 %v2738
        %2915 = vmatpush.msra.mxu0 %v2736
        %2916 = vmatpush.msra.mxu0 %v2734
        %2917 = vmatpush.msra.mxu0 %v2732
        %2918 = vmatpush.msra.mxu0 %v2730
        %2919 = vmatpush.msra.mxu0 %v2728
        %2920 = vmatpush.msra.mxu0 %v2726
        %2921 = vmatpush.msra.mxu0 %v2724
        %2922 = vmatpush.msra.mxu0 %v2722
        %2923 = vmatpush.msra.mxu0 %v2720
        %2924 = vmatpush.msra.mxu0 %v2718
        %2925 = vmatpush.msra.mxu0 %v2716
        %2926 = vmatpush.msra.mxu0 %v2714
        %2927 = vmatmul.f32.gmra.mxu0 %v2524
        %v2928 = vpop.f32.mrf.mxu0
        %v2929 = vadd.f32 %v2907, %v2928
        %2930 = vmatmul.f32.gmra.mxu0 %v2527
        %v2931 = vpop.f32.mrf.mxu0
        %v2932 = vadd.f32 %v2907, %v2931
        %2933 = vmatmul.f32.gmra.mxu0 %v2530
        %v2934 = vpop.f32.mrf.mxu0
        %v2935 = vadd.f32 %v2907, %v2934
        %2936 = vmatmul.f32.gmra.mxu0 %v2533
        %v2937 = vpop.f32.mrf.mxu0
        %v2938 = vadd.f32 %v2907, %v2937
        %2939 = vdwg.mxu0
        %2940 = vmatpush.msra.mxu0 %v2776
        %2941 = vmatpush.msra.mxu0 %v2774
        %2942 = vmatpush.msra.mxu0 %v2772
        %2943 = vmatpush.msra.mxu0 %v2770
        %2944 = vmatpush.msra.mxu0 %v2768
        %2945 = vmatpush.msra.mxu0 %v2766
        %2946 = vmatpush.msra.mxu0 %v2764
        %2947 = vmatpush.msra.mxu0 %v2762
        %2948 = vmatpush.msra.mxu0 %v2760
        %2949 = vmatpush.msra.mxu0 %v2758
        %2950 = vmatpush.msra.mxu0 %v2756
        %2951 = vmatpush.msra.mxu0 %v2754
        %2952 = vmatpush.msra.mxu0 %v2752
        %2953 = vmatpush.msra.mxu0 %v2750
        %2954 = vmatpush.msra.mxu0 %v2748
        %2955 = vmatpush.msra.mxu0 %v2746
        %2956 = vmatmul.f32.gmra.mxu0 %v2553
        %v2957 = vpop.f32.mrf.mxu0
        %v2958 = vadd.f32 %v2929, %v2957
        %2959 = vmatmul.f32.gmra.mxu0 %v2556
        %v2960 = vpop.f32.mrf.mxu0
        %v2961 = vadd.f32 %v2932, %v2960
        %2962 = vmatmul.f32.gmra.mxu0 %v2559
        %v2963 = vpop.f32.mrf.mxu0
        %v2964 = vadd.f32 %v2935, %v2963
        %2965 = vmatmul.f32.gmra.mxu0 %v2562
        %v2966 = vpop.f32.mrf.mxu0
        %v2967 = vadd.f32 %v2938, %v2966
        %2968 = vdwg.mxu0
        %2969 = vmatpush.msra.mxu0 %v2808
        %2970 = vmatpush.msra.mxu0 %v2806
        %2971 = vmatpush.msra.mxu0 %v2804
        %2972 = vmatpush.msra.mxu0 %v2802
        %2973 = vmatpush.msra.mxu0 %v2800
        %2974 = vmatpush.msra.mxu0 %v2798
        %2975 = vmatpush.msra.mxu0 %v2796
        %2976 = vmatpush.msra.mxu0 %v2794
        %2977 = vmatpush.msra.mxu0 %v2792
        %2978 = vmatpush.msra.mxu0 %v2790
        %2979 = vmatpush.msra.mxu0 %v2788
        %2980 = vmatpush.msra.mxu0 %v2786
        %2981 = vmatpush.msra.mxu0 %v2784
        %2982 = vmatpush.msra.mxu0 %v2782
        %2983 = vmatpush.msra.mxu0 %v2780
        %2984 = vmatpush.msra.mxu0 %v2778
        %2985 = vmatmul.f32.gmra.mxu0 %v2598
        %v2986 = vpop.f32.mrf.mxu0
        %v2987 = vadd.f32 %v2958, %v2986
        %2988 = vmatmul.f32.gmra.mxu0 %v2601
        %v2989 = vpop.f32.mrf.mxu0
        %v2990 = vadd.f32 %v2961, %v2989
        %2991 = vmatmul.f32.gmra.mxu0 %v2604
        %v2992 = vpop.f32.mrf.mxu0
        %v2993 = vadd.f32 %v2964, %v2992
        %2994 = vmatmul.f32.gmra.mxu0 %v2607
        %v2995 = vpop.f32.mrf.mxu0
        %v2996 = vadd.f32 %v2967, %v2995
        %2997 = vdwg.mxu0
        %2998 = vmatpush.msra.mxu0 %v2840
        %2999 = vmatpush.msra.mxu0 %v2838
        %3000 = vmatpush.msra.mxu0 %v2836
        %3001 = vmatpush.msra.mxu0 %v2834
        %3002 = vmatpush.msra.mxu0 %v2832
        %3003 = vmatpush.msra.mxu0 %v2830
        %3004 = vmatpush.msra.mxu0 %v2828
        %3005 = vmatpush.msra.mxu0 %v2826
        %3006 = vmatpush.msra.mxu0 %v2824
        %3007 = vmatpush.msra.mxu0 %v2822
        %3008 = vmatpush.msra.mxu0 %v2820
        %3009 = vmatpush.msra.mxu0 %v2818
        %3010 = vmatpush.msra.mxu0 %v2816
        %3011 = vmatpush.msra.mxu0 %v2814
        %3012 = vmatpush.msra.mxu0 %v2812
        %3013 = vmatpush.msra.mxu0 %v2810
        %3014 = vmatmul.f32.gmra.mxu0 %v2627
        %v3015 = vpop.f32.mrf.mxu0
        %v3016 = vadd.f32 %v2987, %v3015
        %3017 = vmatmul.f32.gmra.mxu0 %v2630
        %v3018 = vpop.f32.mrf.mxu0
        %v3019 = vadd.f32 %v2990, %v3018
        %3020 = vmatmul.f32.gmra.mxu0 %v2633
        %v3021 = vpop.f32.mrf.mxu0
        %v3022 = vadd.f32 %v2993, %v3021
        %3023 = vmatmul.f32.gmra.mxu0 %v2636
        %v3024 = vpop.f32.mrf.mxu0
        %v3025 = vadd.f32 %v2996, %v3024
        %3026 = vdwg.mxu0
        %3027 = vmatpush.msra.mxu0 %v2872
        %3028 = vmatpush.msra.mxu0 %v2870
        %3029 = vmatpush.msra.mxu0 %v2868
        %3030 = vmatpush.msra.mxu0 %v2866
        %3031 = vmatpush.msra.mxu0 %v2864
        %3032 = vmatpush.msra.mxu0 %v2862
        %3033 = vmatpush.msra.mxu0 %v2860
        %3034 = vmatpush.msra.mxu0 %v2858
        %3035 = vmatpush.msra.mxu0 %v2856
        %3036 = vmatpush.msra.mxu0 %v2854
        %3037 = vmatpush.msra.mxu0 %v2852
        %3038 = vmatpush.msra.mxu0 %v2850
        %3039 = vmatpush.msra.mxu0 %v2848
        %3040 = vmatpush.msra.mxu0 %v2846
        %3041 = vmatpush.msra.mxu0 %v2844
        %3042 = vmatpush.msra.mxu0 %v2842
        %3043 = vmatmul.f32.gmra.mxu0 %v2672
        %v3044 = vpop.f32.mrf.mxu0
        %v3045 = vadd.f32 %v3016, %v3044
        %3046 = vmatmul.f32.gmra.mxu0 %v2675
        %v3047 = vpop.f32.mrf.mxu0
        %v3048 = vadd.f32 %v3019, %v3047
        %3049 = vmatmul.f32.gmra.mxu0 %v2678
        %v3050 = vpop.f32.mrf.mxu0
        %v3051 = vadd.f32 %v3022, %v3050
        %3052 = vmatmul.f32.gmra.mxu0 %v2681
        %v3053 = vpop.f32.mrf.mxu0
        %v3054 = vadd.f32 %v3025, %v3053
        %3055 = vdwg.mxu0
        %3056 = vmatpush.msra.mxu0 %v2904
        %3057 = vmatpush.msra.mxu0 %v2902
        %3058 = vmatpush.msra.mxu0 %v2900
        %3059 = vmatpush.msra.mxu0 %v2898
        %3060 = vmatpush.msra.mxu0 %v2896
        %3061 = vmatpush.msra.mxu0 %v2894
        %3062 = vmatpush.msra.mxu0 %v2892
        %3063 = vmatpush.msra.mxu0 %v2890
        %3064 = vmatpush.msra.mxu0 %v2888
        %3065 = vmatpush.msra.mxu0 %v2886
        %3066 = vmatpush.msra.mxu0 %v2884
        %3067 = vmatpush.msra.mxu0 %v2882
        %3068 = vmatpush.msra.mxu0 %v2880
        %3069 = vmatpush.msra.mxu0 %v2878
        %3070 = vmatpush.msra.mxu0 %v2876
        %3071 = vmatpush.msra.mxu0 %v2874
        %3072 = vmatmul.f32.gmra.mxu0 %v2701
        %v3073 = vpop.f32.mrf.mxu0
        %v3074 = vadd.f32 %v3045, %v3073
        %3075 = vmatmul.f32.gmra.mxu0 %v2704
        %v3076 = vpop.f32.mrf.mxu0
        %v3077 = vadd.f32 %v3048, %v3076
        %3078 = vmatmul.f32.gmra.mxu0 %v2707
        %v3079 = vpop.f32.mrf.mxu0
        %v3080 = vadd.f32 %v3051, %v3079
        %3081 = vmatmul.f32.gmra.mxu0 %v2710
        %v3082 = vpop.f32.mrf.mxu0
        %v3083 = vadd.f32 %v3054, %v3082
        %3084 = vdwg.mxu0
        %3085 = vmatpush.msra.mxu0 %v2745
        %3086 = vmatpush.msra.mxu0 %v2743
        %3087 = vmatpush.msra.mxu0 %v2741
        %3088 = vmatpush.msra.mxu0 %v2739
        %3089 = vmatpush.msra.mxu0 %v2737
        %3090 = vmatpush.msra.mxu0 %v2735
        %3091 = vmatpush.msra.mxu0 %v2733
        %3092 = vmatpush.msra.mxu0 %v2731
        %3093 = vmatpush.msra.mxu0 %v2729
        %3094 = vmatpush.msra.mxu0 %v2727
        %3095 = vmatpush.msra.mxu0 %v2725
        %3096 = vmatpush.msra.mxu0 %v2723
        %3097 = vmatpush.msra.mxu0 %v2721
        %3098 = vmatpush.msra.mxu0 %v2719
        %3099 = vmatpush.msra.mxu0 %v2717
        %3100 = vmatpush.msra.mxu0 %v2715
        %3101 = vmatmul.f32.gmra.mxu0 %v2524
        %v3102 = vpop.f32.mrf.mxu0
        %v3103 = vadd.f32 %v2908, %v3102
        %3104 = vmatmul.f32.gmra.mxu0 %v2527
        %v3105 = vpop.f32.mrf.mxu0
        %v3106 = vadd.f32 %v2908, %v3105
        %3107 = vmatmul.f32.gmra.mxu0 %v2530
        %v3108 = vpop.f32.mrf.mxu0
        %v3109 = vadd.f32 %v2908, %v3108
        %3110 = vmatmul.f32.gmra.mxu0 %v2533
        %v3111 = vpop.f32.mrf.mxu0
        %v3112 = vadd.f32 %v2908, %v3111
        %3113 = vdwg.mxu0
        %3114 = vmatpush.msra.mxu0 %v2777
        %3115 = vmatpush.msra.mxu0 %v2775
        %3116 = vmatpush.msra.mxu0 %v2773
        %3117 = vmatpush.msra.mxu0 %v2771
        %3118 = vmatpush.msra.mxu0 %v2769
        %3119 = vmatpush.msra.mxu0 %v2767
        %3120 = vmatpush.msra.mxu0 %v2765
        %3121 = vmatpush.msra.mxu0 %v2763
        %3122 = vmatpush.msra.mxu0 %v2761
        %3123 = vmatpush.msra.mxu0 %v2759
        %3124 = vmatpush.msra.mxu0 %v2757
        %3125 = vmatpush.msra.mxu0 %v2755
        %3126 = vmatpush.msra.mxu0 %v2753
        %3127 = vmatpush.msra.mxu0 %v2751
        %3128 = vmatpush.msra.mxu0 %v2749
        %3129 = vmatpush.msra.mxu0 %v2747
        %3130 = vmatmul.f32.gmra.mxu0 %v2553
        %v3131 = vpop.f32.mrf.mxu0
        %v3132 = vadd.f32 %v3103, %v3131
        %3133 = vmatmul.f32.gmra.mxu0 %v2556
        %v3134 = vpop.f32.mrf.mxu0
        %v3135 = vadd.f32 %v3106, %v3134
        %3136 = vmatmul.f32.gmra.mxu0 %v2559
        %v3137 = vpop.f32.mrf.mxu0
        %v3138 = vadd.f32 %v3109, %v3137
        %3139 = vmatmul.f32.gmra.mxu0 %v2562
        %v3140 = vpop.f32.mrf.mxu0
        %v3141 = vadd.f32 %v3112, %v3140
        %3142 = vdwg.mxu0
        %3143 = vmatpush.msra.mxu0 %v2809
        %3144 = vmatpush.msra.mxu0 %v2807
        %3145 = vmatpush.msra.mxu0 %v2805
        %3146 = vmatpush.msra.mxu0 %v2803
        %3147 = vmatpush.msra.mxu0 %v2801
        %3148 = vmatpush.msra.mxu0 %v2799
        %3149 = vmatpush.msra.mxu0 %v2797
        %3150 = vmatpush.msra.mxu0 %v2795
        %3151 = vmatpush.msra.mxu0 %v2793
        %3152 = vmatpush.msra.mxu0 %v2791
        %3153 = vmatpush.msra.mxu0 %v2789
        %3154 = vmatpush.msra.mxu0 %v2787
        %3155 = vmatpush.msra.mxu0 %v2785
        %3156 = vmatpush.msra.mxu0 %v2783
        %3157 = vmatpush.msra.mxu0 %v2781
        %3158 = vmatpush.msra.mxu0 %v2779
        %3159 = vmatmul.f32.gmra.mxu0 %v2598
        %v3160 = vpop.f32.mrf.mxu0
        %v3161 = vadd.f32 %v3132, %v3160
        %3162 = vmatmul.f32.gmra.mxu0 %v2601
        %v3163 = vpop.f32.mrf.mxu0
        %v3164 = vadd.f32 %v3135, %v3163
        %3165 = vmatmul.f32.gmra.mxu0 %v2604
        %v3166 = vpop.f32.mrf.mxu0
        %v3167 = vadd.f32 %v3138, %v3166
        %3168 = vmatmul.f32.gmra.mxu0 %v2607
        %v3169 = vpop.f32.mrf.mxu0
        %v3170 = vadd.f32 %v3141, %v3169
        %3171 = vdwg.mxu0
        %3172 = vmatpush.msra.mxu0 %v2841
        %3173 = vmatpush.msra.mxu0 %v2839
        %3174 = vmatpush.msra.mxu0 %v2837
        %3175 = vmatpush.msra.mxu0 %v2835
        %3176 = vmatpush.msra.mxu0 %v2833
        %3177 = vmatpush.msra.mxu0 %v2831
        %3178 = vmatpush.msra.mxu0 %v2829
        %3179 = vmatpush.msra.mxu0 %v2827
        %3180 = vmatpush.msra.mxu0 %v2825
        %3181 = vmatpush.msra.mxu0 %v2823
        %3182 = vmatpush.msra.mxu0 %v2821
        %3183 = vmatpush.msra.mxu0 %v2819
        %3184 = vmatpush.msra.mxu0 %v2817
        %3185 = vmatpush.msra.mxu0 %v2815
        %3186 = vmatpush.msra.mxu0 %v2813
        %3187 = vmatpush.msra.mxu0 %v2811
        %3188 = vmatmul.f32.gmra.mxu0 %v2627
        %v3189 = vpop.f32.mrf.mxu0
        %v3190 = vadd.f32 %v3161, %v3189
        %3191 = vmatmul.f32.gmra.mxu0 %v2630
        %v3192 = vpop.f32.mrf.mxu0
        %v3193 = vadd.f32 %v3164, %v3192
        %3194 = vmatmul.f32.gmra.mxu0 %v2633
        %v3195 = vpop.f32.mrf.mxu0
        %v3196 = vadd.f32 %v3167, %v3195
        %3197 = vmatmul.f32.gmra.mxu0 %v2636
        %v3198 = vpop.f32.mrf.mxu0
        %v3199 = vadd.f32 %v3170, %v3198
        %3200 = vdwg.mxu0
        %3201 = vmatpush.msra.mxu0 %v2873
        %3202 = vmatpush.msra.mxu0 %v2871
        %3203 = vmatpush.msra.mxu0 %v2869
        %3204 = vmatpush.msra.mxu0 %v2867
        %3205 = vmatpush.msra.mxu0 %v2865
        %3206 = vmatpush.msra.mxu0 %v2863
        %3207 = vmatpush.msra.mxu0 %v2861
        %3208 = vmatpush.msra.mxu0 %v2859
        %3209 = vmatpush.msra.mxu0 %v2857
        %3210 = vmatpush.msra.mxu0 %v2855
        %3211 = vmatpush.msra.mxu0 %v2853
        %3212 = vmatpush.msra.mxu0 %v2851
        %3213 = vmatpush.msra.mxu0 %v2849
        %3214 = vmatpush.msra.mxu0 %v2847
        %3215 = vmatpush.msra.mxu0 %v2845
        %3216 = vmatpush.msra.mxu0 %v2843
        %3217 = vmatmul.f32.gmra.mxu0 %v2672
        %v3218 = vpop.f32.mrf.mxu0
        %v3219 = vadd.f32 %v3190, %v3218
        %3220 = vmatmul.f32.gmra.mxu0 %v2675
        %v3221 = vpop.f32.mrf.mxu0
        %v3222 = vadd.f32 %v3193, %v3221
        %3223 = vmatmul.f32.gmra.mxu0 %v2678
        %v3224 = vpop.f32.mrf.mxu0
        %v3225 = vadd.f32 %v3196, %v3224
        %3226 = vmatmul.f32.gmra.mxu0 %v2681
        %v3227 = vpop.f32.mrf.mxu0
        %v3228 = vadd.f32 %v3199, %v3227
        %3229 = vdwg.mxu0
        %3230 = vmatpush.msra.mxu0 %v2905
        %3231 = vmatpush.msra.mxu0 %v2903
        %3232 = vmatpush.msra.mxu0 %v2901
        %3233 = vmatpush.msra.mxu0 %v2899
        %3234 = vmatpush.msra.mxu0 %v2897
        %3235 = vmatpush.msra.mxu0 %v2895
        %3236 = vmatpush.msra.mxu0 %v2893
        %3237 = vmatpush.msra.mxu0 %v2891
        %3238 = vmatpush.msra.mxu0 %v2889
        %3239 = vmatpush.msra.mxu0 %v2887
        %3240 = vmatpush.msra.mxu0 %v2885
        %3241 = vmatpush.msra.mxu0 %v2883
        %3242 = vmatpush.msra.mxu0 %v2881
        %3243 = vmatpush.msra.mxu0 %v2879
        %3244 = vmatpush.msra.mxu0 %v2877
        %3245 = vmatpush.msra.mxu0 %v2875
        %3246 = vmatmul.f32.gmra.mxu0 %v2701
        %v3247 = vpop.f32.mrf.mxu0
        %v3248 = vadd.f32 %v3219, %v3247
        %3249 = vmatmul.f32.gmra.mxu0 %v2704
        %v3250 = vpop.f32.mrf.mxu0
        %v3251 = vadd.f32 %v3222, %v3250
        %3252 = vmatmul.f32.gmra.mxu0 %v2707
        %v3253 = vpop.f32.mrf.mxu0
        %v3254 = vadd.f32 %v3225, %v3253
        %3255 = vmatmul.f32.gmra.mxu0 %v2710
        %v3256 = vpop.f32.mrf.mxu0
        %v3257 = vadd.f32 %v3228, %v3256
        %3258 = vdwg.mxu0
        %3259 = vst [vmem:[%s352] sm:$0xff] %v3074
        %3260 = vst [vmem:[%s352 + $0x8] sm:$0xff] %v3248
        %3261 = vst [vmem:[%s352 + $0x10] sm:$0xff] %v3077
        %3262 = vst [vmem:[%s352 + $0x18] sm:$0xff] %v3251
        %3263 = vst [vmem:[%s352 + $0x20] sm:$0xff] %v3080
        %3264 = vst [vmem:[%s352 + $0x28] sm:$0xff] %v3254
        %3265 = vst [vmem:[%s352 + $0x30] sm:$0xff] %v3083
        %3266 = vst [vmem:[%s352 + $0x38] sm:$0xff] %v3257
        %s3267 = sand.u32 %s154, 1
        %s3268 = scalar_lea.sflag [#allocation4], %s3267
        %s3269 = sand.u32 %s154, 1
        %s3270 = smul.addr %s3269, 64
        %s3271 = scalar_lea.vmem [#allocation11], %s3270
        // Predicated region
        $region61: #{tpu_custom_call.1} parent=39 // pred_check
          %p3272 = pneg %p164
        $region62: #{tpu_custom_call.1} parent=39 // pred_check_branch
          %3274 = sbr.rel (%p3272) target = $region64
        $region63: #{tpu_custom_call.1} parent=39 // pred_region
          %3276 = vsyncadd %s3268, 0
          %s3277 = smul.addr %s26, 8
          %s3278 = smul.addr %s3277, 8
          %s3279 = scalar_lea.hbm %s5, %s3278
          %s3280 = sshll.u32 %s3271, 4
          %s3281 = int_to_ptr.vmem [resolvable:$true] %s3280
          %s3282 = sshll.u32 %s3279, 4
          %s3283 = int_to_ptr.hbm [resolvable:$true] %s3282
          %3288 = dma.vmem_to_hbm [thread:$0]  %s3281, 1024, %s3283, %s3268, 256, 256, 16
        $region64: #{tpu_custom_call.1} parent=39 // pred_fallthru
          _
      $region40: #{tpu_custom_call.1} parent=5 // pred_fallthru
        _
      %p3289 = scmp.le.s32.totalorder 2, %s21
      // Predicated region
      $region65: #{tpu_custom_call.1} parent=5 // pred_check
        %p3290 = pneg %p3289
      $region66: #{tpu_custom_call.1} parent=5 // pred_check_branch
        %3292 = sbr.rel (%p3290) target = $region68
      $region67: #{tpu_custom_call.1} parent=5 // pred_region
        %s3293 = ssub.s32 %s21, 2
        // Predicated region
        $region69: #{tpu_custom_call.1} parent=67 // pred_check
          %p3294 = pneg %p170
        $region70: #{tpu_custom_call.1} parent=67 // pred_check_branch
          %3296 = sbr.rel (%p3294) target = $region72
        $region71: #{tpu_custom_call.1} parent=67 // pred_region
          %s3297 = sand.u32 %s155, 1
          %s3298 = scalar_lea.sflag [#allocation4], %s3297
          %s3299 = sand.u32 %s155, 1
          %s3300 = smul.addr %s3299, 64
          %s3301 = scalar_lea.vmem [#allocation11], %s3300
          %3303 = dma.done %s3298, 1024
        $region72: #{tpu_custom_call.1} parent=67 // pred_fallthru
          _
      $region68: #{tpu_custom_call.1} parent=5 // pred_fallthru
        _
    $region6: #{tpu_custom_call.1} parent=1 // loop_footer
      %s25 = sadd.s32 1, %s21
    $region7: #{tpu_custom_call.1} parent=1 // loop_footer_branch
      %20 = sbr.rel target = $region3
    $region8: #{tpu_custom_call.1} parent=1 // loop_exit
      _
    %3304 = vsyncpa [#allocation3], 1
    %s3305 = scalar_lea.sflag [#allocation3], 1
    %3306 = vsyncpa %s3305, 1
    %3307 = vsyncpa [#allocation6], 1
    %s3308 = scalar_lea.sflag [#allocation6], 1
    %3309 = vsyncpa %s3308, 1
    %3310 = vsyncpa [#allocation9], 1
    %3311 = vsyncpa [#allocation4], 1
    %s3312 = scalar_lea.sflag [#allocation4], 1
    %3313 = vsyncpa %s3312, 1

// kernel: tpu_custom_call.1
$region0: #{tpu_custom_call.1}
  #allocation0 [shape = 'u32[]', space=smem, size = 0x4, offset = 0x4, fixed_abs, tag = 'smem constant byte address 0x4 - core index']
  #allocation1 [shape = 'u32[72,128]{1,0:T(1,128)}', space=vmem, size = 0x9000, scoped, tag = 'internal scratch']
  %s0 = inlined_call_operand.hbm [shape: f32[2,32,256], index: 0, kind: input, shape index: {}]
  %s1 = inlined_call_operand.hbm [shape: f32[2,8,64], index: 1, kind: input, shape index: {}]
  %s2 = inlined_call_operand.hbm [shape: f32[2,4,32], index: 2, kind: input, shape index: {}]
  %s3 = inlined_call_operand.hbm [shape: f32[2888,128], index: 3, kind: input, shape index: {}]
  %s4 = inlined_call_operand.hbm [shape: f32[904,256], index: 4, kind: input, shape index: {}]
  %s5 = inlined_call_operand.hbm [shape: f32[2,32,256], index: 5, kind: output, shape index: {}]
  %s6 = sld [smem:[#allocation0]]
  $region73: #{tpu_custom_call.1} parent=0
    _
  %s8 = ssub.s32 1, %s6
  %s9 = scalar_select 0, %s8, %s6
  $region1: #{tpu_custom_call.1} parent=0
    #allocation2 [shape = 'u8[65536]{0}', space=vmem, size = 0x10000, scoped, tag = 'input window, operand 0']
    #allocation3 [shape = 's32[2]{0}', space=sflag, size = 0x8, scoped, tag = 'scoped memory for tpu_custom_call.1']
    #allocation4 [shape = 's32[2]{0}', space=sflag, size = 0x8, scoped, tag = 'scoped memory for tpu_custom_call.1']
    #allocation5 [shape = 'u8[8192]{0}', space=vmem, size = 0x2000, scoped, tag = 'input window, operand 1']
    #allocation6 [shape = 's32[2]{0}', space=sflag, size = 0x8, scoped, tag = 'scoped memory for tpu_custom_call.1']
    #allocation7 [shape = 'u8[4096]{0}', space=vmem, size = 0x1000, scoped, tag = 'input window, operand 2']
    #allocation8 [shape = 'u8[1478656]{0}', space=vmem, size = 0x169000, scoped, tag = 'input window, operand 3, single buffered']
    #allocation9 [shape = 's32[1]{0}', space=sflag, size = 0x4, scoped, tag = 'scoped memory for tpu_custom_call.1']
    #allocation10 [shape = 'u8[925696]{0}', space=vmem, size = 0xe2000, scoped, tag = 'input window, operand 4, single buffered']
    #allocation11 [shape = 'u8[65536]{0}', space=vmem, size = 0x10000, scoped, tag = 'output window, operand 0']
    %10 = vsyncpa [#allocation3], 0
    %s11 = scalar_lea.sflag [#allocation3], 1
    %12 = vsyncpa %s11, 0
    %13 = vsyncpa [#allocation6], 0
    %s14 = scalar_lea.sflag [#allocation6], 1
    %15 = vsyncpa %s14, 0
    %16 = vsyncpa [#allocation9], 0
    %17 = vsyncpa [#allocation4], 0
    %s18 = scalar_lea.sflag [#allocation4], 1
    %19 = vsyncpa %s18, 0
    loop: start=0, step=1, limit=4
    $region2: #{tpu_custom_call.1} parent=1 // loop_pre_header
      _
    $region3: #{tpu_custom_call.1} parent=1 // loop_header
      %s21 = sphi 0, %s25
      %p22 = scmp.ge.s32.totalorder %s21, 4
      %s31 = sphi 0, %s33
      %s34 = sphi 0, %s31
      %s35 = sphi 0, %s34
      %s51 = sphi 0, %s35
      %s57 = sphi 0, %s59
      %s60 = sphi 0, %s57
      %s61 = sphi 0, %s60
      %s77 = sphi 0, %s61
      %s83 = sphi 0, %s85
      %s86 = sphi 0, %s83
      %s87 = sphi 0, %s86
      %s103 = sphi 0, %s87
      %s107 = sphi 0, %s107
      %s109 = sphi 0, %s107
      %s110 = sphi 0, %s109
      %s124 = sphi 0, %s110
      %s128 = sphi 0, %s128
      %s130 = sphi 0, %s128
      %s131 = sphi 0, %s130
      %s145 = sphi 0, %s131
      %s151 = sphi 0, %s153
      %s154 = sphi 0, %s151
      %s155 = sphi 0, %s154
      %s171 = sphi 0, %s155
    $region4: #{tpu_custom_call.1} parent=1 // loop_header_branch
      %24 = sbr.rel (%p22) target = $region8
    $region5: #{tpu_custom_call.1} parent=1 // loop_body
      %s26 = ssub.s32 %s21, 1
      %s27 = ssub.s32 %s21, 2
      %s28 = sadd.s32 %s21, 1
      %s29 = ssub.s32 %s21, %s28
      %p30 = scmp.eq.s32.totalorder %s29, 0
      %s32 = sadd.s32 %s31, 1
      %s33 = scalar_select %p30, %s31, %s32
      %p36 = pneg %p30
      %p37 = scmp.eq.s32.totalorder %s21, 1
      %p38 = por %p36, %p37
      %p39 = scmp.ne.s32.totalorder %s31, %s34
      %p40 = scmp.eq.s32.totalorder %s21, 0
      %p41 = por %p39, %p40
      %p42 = scmp.ne.s32.totalorder %s31, %s34
      %p43 = scmp.eq.s32.totalorder %s26, 1
      %p44 = por %p42, %p43
      %p45 = scmp.ne.s32.totalorder %s34, %s35
      %p46 = scmp.eq.s32.totalorder %s26, 0
      %p47 = por %p45, %p46
      %p48 = scmp.ne.s32.totalorder %s34, %s35
      %p49 = scmp.eq.s32.totalorder %s27, 1
      %p50 = por %p48, %p49
      %p52 = scmp.ne.s32.totalorder %s35, %s51
      %p53 = scmp.eq.s32.totalorder %s27, 0
      %p54 = por %p52, %p53
      %s55 = ssub.s32 %s21, %s28
      %p56 = scmp.eq.s32.totalorder %s55, 0
      %s58 = sadd.s32 %s57, 1
      %s59 = scalar_select %p56, %s57, %s58
      %p62 = pneg %p56
      %p63 = scmp.eq.s32.totalorder %s21, 1
      %p64 = por %p62, %p63
      %p65 = scmp.ne.s32.totalorder %s57, %s60
      %p66 = scmp.eq.s32.totalorder %s21, 0
      %p67 = por %p65, %p66
      %p68 = scmp.ne.s32.totalorder %s57, %s60
      %p69 = scmp.eq.s32.totalorder %s26, 1
      %p70 = por %p68, %p69
      %p71 = scmp.ne.s32.totalorder %s60, %s61
      %p72 = scmp.eq.s32.totalorder %s26, 0
      %p73 = por %p71, %p72
      %p74 = scmp.ne.s32.totalorder %s60, %s61
      %p75 = scmp.eq.s32.totalorder %s27, 1
      %p76 = por %p74, %p75
      %p78 = scmp.ne.s32.totalorder %s61, %s77
      %p79 = scmp.eq.s32.totalorder %s27, 0
      %p80 = por %p78, %p79
      %s81 = ssub.s32 %s21, %s28
      %p82 = scmp.eq.s32.totalorder %s81, 0
      %s84 = sadd.s32 %s83, 1
      %s85 = scalar_select %p82, %s83, %s84
      %p88 = pneg %p82
      %p89 = scmp.eq.s32.totalorder %s21, 1
      %p90 = por %p88, %p89
      %p91 = scmp.ne.s32.totalorder %s83, %s86
      %p92 = scmp.eq.s32.totalorder %s21, 0
      %p93 = por %p91, %p92
      %p94 = scmp.ne.s32.totalorder %s83, %s86
      %p95 = scmp.eq.s32.totalorder %s26, 1
      %p96 = por %p94, %p95
      %p97 = scmp.ne.s32.totalorder %s86, %s87
      %p98 = scmp.eq.s32.totalorder %s26, 0
      %p99 = por %p97, %p98
      %p100 = scmp.ne.s32.totalorder %s86, %s87
      %p101 = scmp.eq.s32.totalorder %s27, 1
      %p102 = por %p100, %p101
      %p104 = scmp.ne.s32.totalorder %s87, %s103
      %p105 = scmp.eq.s32.totalorder %s27, 0
      %p106 = por %p104, %p105
      %s108 = sadd.s32 %s107, 1
      %p111 = scmp.eq.s32.totalorder %s21, 1
      %p112 = scmp.ne.s32.totalorder %s107, %s109
      %p113 = scmp.eq.s32.totalorder %s21, 0
      %p114 = por %p112, %p113
      %p115 = scmp.ne.s32.totalorder %s107, %s109
      %p116 = scmp.eq.s32.totalorder %s26, 1
      %p117 = por %p115, %p116
      %p118 = scmp.ne.s32.totalorder %s109, %s110
      %p119 = scmp.eq.s32.totalorder %s26, 0
      %p120 = por %p118, %p119
      %p121 = scmp.ne.s32.totalorder %s109, %s110
      %p122 = scmp.eq.s32.totalorder %s27, 1
      %p123 = por %p121, %p122
      %p125 = scmp.ne.s32.totalorder %s110, %s124
      %p126 = scmp.eq.s32.totalorder %s27, 0
      %p127 = por %p125, %p126
      %s129 = sadd.s32 %s128, 1
      %p132 = scmp.eq.s32.totalorder %s21, 1
      %p133 = scmp.ne.s32.totalorder %s128, %s130
      %p134 = scmp.eq.s32.totalorder %s21, 0
      %p135 = por %p133, %p134
      %p136 = scmp.ne.s32.totalorder %s128, %s130
      %p137 = scmp.eq.s32.totalorder %s26, 1
      %p138 = por %p136, %p137
      %p139 = scmp.ne.s32.totalorder %s130, %s131
      %p140 = scmp.eq.s32.totalorder %s26, 0
      %p141 = por %p139, %p140
      %p142 = scmp.ne.s32.totalorder %s130, %s131
      %p143 = scmp.eq.s32.totalorder %s27, 1
      %p144 = por %p142, %p143
      %p146 = scmp.ne.s32.totalorder %s131, %s145
      %p147 = scmp.eq.s32.totalorder %s27, 0
      %p148 = por %p146, %p147
      %s149 = ssub.s32 %s21, %s28
      %p150 = scmp.eq.s32.totalorder %s149, 0
      %s152 = sadd.s32 %s151, 1
      %s153 = scalar_select %p150, %s151, %s152
      %p156 = pneg %p150
      %p157 = scmp.eq.s32.totalorder %s21, 1
      %p158 = por %p156, %p157
      %p159 = scmp.ne.s32.totalorder %s151, %s154
      %p160 = scmp.eq.s32.totalorder %s21, 0
      %p161 = por %p159, %p160
      %p162 = scmp.ne.s32.totalorder %s151, %s154
      %p163 = scmp.eq.s32.totalorder %s26, 1
      %p164 = por %p162, %p163
      %p165 = scmp.ne.s32.totalorder %s154, %s155
      %p166 = scmp.eq.s32.totalorder %s26, 0
      %p167 = por %p165, %p166
      %p168 = scmp.ne.s32.totalorder %s154, %s155
      %p169 = scmp.eq.s32.totalorder %s27, 1
      %p170 = por %p168, %p169
      %p172 = scmp.ne.s32.totalorder %s155, %s171
      %p173 = scmp.eq.s32.totalorder %s27, 0
      %p174 = por %p172, %p173
      %p175 = scmp.le.s32.totalorder 1, %s21
      %p176 = scmp.lt.s32.totalorder %s21, 3
      %p177 = pnand %p175, %p176
      %p178 = pneg %p177
      // Predicated region
      $region9: #{tpu_custom_call.1} parent=5 // pred_check
        _
      $region10: #{tpu_custom_call.1} parent=5 // pred_check_branch
        %180 = sbr.rel (%p177) target = $region12
      $region11: #{tpu_custom_call.1} parent=5 // pred_region
        %s181 = ssub.s32 %s21, 1
        // Predicated region
        $region13: #{tpu_custom_call.1} parent=11 // pred_check
          %p182 = pneg %p120
        $region14: #{tpu_custom_call.1} parent=11 // pred_check_branch
          %184 = sbr.rel (%p182) target = $region16
        $region15: #{tpu_custom_call.1} parent=11 // pred_region
          %186 = vsyncadd [#allocation9], 0
          %s187 = sshll.u32 %s3, 4
          %s188 = int_to_ptr.hbm [resolvable:$true] %s187
          %s189 = sshll.u32 [#allocation8], 4
          %s190 = int_to_ptr.vmem [resolvable:$true] %s189
          %195 = dma.hbm_to_vmem [thread:$0]  %s188, 46208, %s190, [#allocation9], 128, 128, 8
        $region16: #{tpu_custom_call.1} parent=11 // pred_fallthru
          _
        // Predicated region
        $region17: #{tpu_custom_call.1} parent=11 // pred_check
          %p196 = pneg %p141
        $region18: #{tpu_custom_call.1} parent=11 // pred_check_branch
          %198 = sbr.rel (%p196) target = $region20
        $region19: #{tpu_custom_call.1} parent=11 // pred_region
          %200 = vsyncadd [#allocation9], 0
          %s201 = sshll.u32 %s4, 4
          %s202 = int_to_ptr.hbm [resolvable:$true] %s201
          %s203 = sshll.u32 [#allocation10], 4
          %s204 = int_to_ptr.vmem [resolvable:$true] %s203
          %209 = dma.hbm_to_vmem [thread:$0]  %s202, 28928, %s204, [#allocation9], 256, 256, 16
        $region20: #{tpu_custom_call.1} parent=11 // pred_fallthru
          _
      $region12: #{tpu_custom_call.1} parent=5 // pred_fallthru
        _
      %p210 = scmp.lt.s32.totalorder %s21, 2
      // Predicated region
      $region21: #{tpu_custom_call.1} parent=5 // pred_check
        %p211 = pneg %p210
      $region22: #{tpu_custom_call.1} parent=5 // pred_check_branch
        %213 = sbr.rel (%p211) target = $region24
      $region23: #{tpu_custom_call.1} parent=5 // pred_region
        // Predicated region
        $region25: #{tpu_custom_call.1} parent=23 // pred_check
          %p214 = pneg %p41
        $region26: #{tpu_custom_call.1} parent=23 // pred_check_branch
          %216 = sbr.rel (%p214) target = $region28
        $region27: #{tpu_custom_call.1} parent=23 // pred_region
          %s217 = sand.u32 %s31, 1
          %s218 = scalar_lea.sflag [#allocation3], %s217
          %s219 = sand.u32 %s31, 1
          %s220 = smul.addr %s219, 64
          %s221 = scalar_lea.vmem [#allocation2], %s220
          %223 = vsyncadd %s218, 0
          %s224 = smul.addr %s21, 8
          %s225 = smul.addr %s224, 8
          %s226 = scalar_lea.hbm %s0, %s225
          %s227 = sshll.u32 %s226, 4
          %s228 = int_to_ptr.hbm [resolvable:$true] %s227
          %s229 = sshll.u32 %s221, 4
          %s230 = int_to_ptr.vmem [resolvable:$true] %s229
          %235 = dma.hbm_to_vmem [thread:$0]  %s228, 1024, %s230, %s218, 256, 256, 16
        $region28: #{tpu_custom_call.1} parent=23 // pred_fallthru
          _
        // Predicated region
        $region29: #{tpu_custom_call.1} parent=23 // pred_check
          %p236 = pneg %p67
        $region30: #{tpu_custom_call.1} parent=23 // pred_check_branch
          %238 = sbr.rel (%p236) target = $region32
        $region31: #{tpu_custom_call.1} parent=23 // pred_region
          %s239 = sand.u32 %s21, 1
          %s240 = scalar_lea.sflag [#allocation6], %s239
          %s241 = sand.u32 %s57, 1
          %s242 = smul.addr %s241, 8
          %s243 = scalar_lea.vmem [#allocation5], %s242
          %245 = vsyncadd %s240, 0
          %s246 = smul.addr %s21, 8
          %s247 = scalar_lea.hbm %s1, %s246
          %s249 = sshll.u32 %s247, 4
          %s250 = int_to_ptr.hbm [resolvable:$true] %s249
          %s251 = sshll.u32 %s243, 4
          %s252 = int_to_ptr.vmem [resolvable:$true] %s251
          %254 = dma.hbm_to_vmem [thread:$0]  %s250, 128, %s252, %s240
        $region32: #{tpu_custom_call.1} parent=23 // pred_fallthru
          _
        // Predicated region
        $region33: #{tpu_custom_call.1} parent=23 // pred_check
          %p255 = pneg %p93
        $region34: #{tpu_custom_call.1} parent=23 // pred_check_branch
          %257 = sbr.rel (%p255) target = $region36
        $region35: #{tpu_custom_call.1} parent=23 // pred_region
          %s258 = sand.u32 %s21, 1
          %s259 = scalar_lea.sflag [#allocation6], %s258
          %s260 = sand.u32 %s83, 1
          %s261 = smul.addr %s260, 4
          %s262 = scalar_lea.vmem [#allocation7], %s261
          %264 = vsyncadd %s259, 0
          %s265 = smul.addr %s21, 4
          %s266 = scalar_lea.hbm %s2, %s265
          %s268 = sshll.u32 %s266, 4
          %s269 = int_to_ptr.hbm [resolvable:$true] %s268
          %s270 = sshll.u32 %s262, 4
          %s271 = int_to_ptr.vmem [resolvable:$true] %s270
          %273 = dma.hbm_to_vmem [thread:$0]  %s269, 64, %s271, %s259
        $region36: #{tpu_custom_call.1} parent=23 // pred_fallthru
          _
      $region24: #{tpu_custom_call.1} parent=5 // pred_fallthru
        _
      %p274 = scmp.le.s32.totalorder 1, %s21
      %p275 = scmp.lt.s32.totalorder %s21, 3
      %p276 = pnand %p274, %p275
      %p277 = pneg %p276
      // Predicated region
      $region37: #{tpu_custom_call.1} parent=5 // pred_check
        _
      $region38: #{tpu_custom_call.1} parent=5 // pred_check_branch
        %279 = sbr.rel (%p276) target = $region40
      $region39: #{tpu_custom_call.1} parent=5 // pred_region
        %s280 = ssub.s32 %s21, 1
        %s281 = sand.u32 %s34, 1
        %s282 = scalar_lea.sflag [#allocation3], %s281
        %s283 = sand.u32 %s34, 1
        %s284 = smul.addr %s283, 64
        %s285 = scalar_lea.vmem [#allocation2], %s284
        // Predicated region
        $region41: #{tpu_custom_call.1} parent=39 // pred_check
          %p286 = pneg %p47
        $region42: #{tpu_custom_call.1} parent=39 // pred_check_branch
          %288 = sbr.rel (%p286) target = $region44
        $region43: #{tpu_custom_call.1} parent=39 // pred_region
          %290 = dma.done %s282, 1024
        $region44: #{tpu_custom_call.1} parent=39 // pred_fallthru
          _
        %s291 = sand.u32 %s26, 1
        %s292 = scalar_lea.sflag [#allocation6], %s291
        %s293 = sand.u32 %s60, 1
        %s294 = smul.addr %s293, 8
        %s295 = scalar_lea.vmem [#allocation5], %s294
        // Predicated region
        $region45: #{tpu_custom_call.1} parent=39 // pred_check
          %p296 = pneg %p73
        $region46: #{tpu_custom_call.1} parent=39 // pred_check_branch
          %298 = sbr.rel (%p296) target = $region48
        $region47: #{tpu_custom_call.1} parent=39 // pred_region
          %300 = dma.done %s292, 128
        $region48: #{tpu_custom_call.1} parent=39 // pred_fallthru
          _
        %s301 = sand.u32 %s26, 1
        %s302 = scalar_lea.sflag [#allocation6], %s301
        %s303 = sand.u32 %s86, 1
        %s304 = smul.addr %s303, 4
        %s305 = scalar_lea.vmem [#allocation7], %s304
        // Predicated region
        $region49: #{tpu_custom_call.1} parent=39 // pred_check
          %p306 = pneg %p99
        $region50: #{tpu_custom_call.1} parent=39 // pred_check_branch
          %308 = sbr.rel (%p306) target = $region52
        $region51: #{tpu_custom_call.1} parent=39 // pred_region
          %310 = dma.done %s302, 64
        $region52: #{tpu_custom_call.1} parent=39 // pred_fallthru
          _
        // Predicated region
        $region53: #{tpu_custom_call.1} parent=39 // pred_check
          %p311 = pneg %p120
        $region54: #{tpu_custom_call.1} parent=39 // pred_check_branch
          %313 = sbr.rel (%p311) target = $region56
        $region55: #{tpu_custom_call.1} parent=39 // pred_region
          %315 = dma.done [#allocation9], 46208
        $region56: #{tpu_custom_call.1} parent=39 // pred_fallthru
          _
        // Predicated region
        $region57: #{tpu_custom_call.1} parent=39 // pred_check
          %p316 = pneg %p141
        $region58: #{tpu_custom_call.1} parent=39 // pred_check_branch
          %318 = sbr.rel (%p316) target = $region60
        $region59: #{tpu_custom_call.1} parent=39 // pred_region
          %320 = dma.done [#allocation9], 28928
        $region60: #{tpu_custom_call.1} parent=39 // pred_fallthru
          _
        %s321 = sand.u32 %s34, 1
        %s322 = scalar_lea.sflag [#allocation3], %s321
        %s323 = sand.u32 %s34, 1
        %s324 = smul.addr %s323, 64
        %s325 = scalar_lea.vmem [#allocation2], %s324
        %p326 = pneg %p47
        %p327 = pneg %p44
        %s328 = sand.u32 %s26, 1
        %s329 = scalar_lea.sflag [#allocation6], %s328
        %s330 = sand.u32 %s60, 1
        %s331 = smul.addr %s330, 8
        %s332 = scalar_lea.vmem [#allocation5], %s331
        %p333 = pneg %p73
        %p334 = pneg %p70
        %s335 = sand.u32 %s26, 1
        %s336 = scalar_lea.sflag [#allocation6], %s335
        %s337 = sand.u32 %s86, 1
        %s338 = smul.addr %s337, 4
        %s339 = scalar_lea.vmem [#allocation7], %s338
        %p340 = pneg %p99
        %p341 = pneg %p96
        %p342 = pneg %p120
        %p343 = pneg %p117
        %p344 = pneg %p141
        %p345 = pneg %p138
        %p346 = pneg %p167
        %p347 = pneg %p164
        %s348 = sand.u32 %s154, 1
        %s349 = scalar_lea.sflag [#allocation4], %s348
        %s350 = sand.u32 %s154, 1
        %s351 = smul.addr %s350, 64
        %s352 = scalar_lea.vmem [#allocation11], %s351
        %v353 = vld [vmem:[%s285] sm:$0xff]
        %v354 = vld [vmem:[%s285 + $0x8] sm:$0xff]
        %v355 = vld [vmem:[%s285 + $0x10] sm:$0xff]
        %v356 = vld [vmem:[%s285 + $0x18] sm:$0xff]
        %v357 = vld [vmem:[%s285 + $0x20] sm:$0xff]
        %v358 = vld [vmem:[%s285 + $0x28] sm:$0xff]
        %v359 = vld [vmem:[%s285 + $0x30] sm:$0xff]
        %v360 = vld [vmem:[%s285 + $0x38] sm:$0xff]
        %v361 = vld [vmem:[#allocation8 + $0x300] sm:$0xff]
        %v362 = vld [vmem:[#allocation8 + $0x308] sm:$0xff]
        %vm363 = vcmask 261120
        %v365 = vsel %vm363, %v361, 0
        %v368 = vsel %vm363, %v362, 0
        %370 = vmatpush.msra.mxu0 0.0
        %371 = vmatpush.msra.mxu0 0.0
        %372 = vmatpush.msra.mxu0 0.0
        %373 = vmatpush.msra.mxu0 0.0
        %374 = vmatpush.msra.mxu0 0.0
        %375 = vmatpush.msra.mxu0 0.0
        %376 = vmatpush.msra.mxu0 0.0
        %377 = vmatpush.msra.mxu0 0.0
        %378 = vmatpush.msra.mxu0 0.0
        %379 = vmatpush.msra.mxu0 0.0
        %380 = vmatpush.msra.mxu0 0.0
        %381 = vmatpush.msra.mxu0 0.0
        %382 = vmatpush.msra.mxu0 %v359
        %383 = vmatpush.msra.mxu0 %v357
        %384 = vmatpush.msra.mxu0 %v355
        %385 = vmatpush.msra.mxu0 %v353
        %386 = vmatmul.f32.gmra.mxu0 %v365
        %v387 = vpop.f32.mrf.mxu0
        %v388 = vadd.f32 0.0, %v387
        %389 = vmatmul.f32.gmra.mxu0 %v368
        %v390 = vpop.f32.mrf.mxu0
        %v391 = vadd.f32 0.0, %v390
        %392 = vdwg.mxu0
        %393 = vmatpush.msra.mxu0 0.0
        %394 = vmatpush.msra.mxu0 0.0
        %395 = vmatpush.msra.mxu0 0.0
        %396 = vmatpush.msra.mxu0 0.0
        %397 = vmatpush.msra.mxu0 0.0
        %398 = vmatpush.msra.mxu0 0.0
        %399 = vmatpush.msra.mxu0 0.0
        %400 = vmatpush.msra.mxu0 0.0
        %401 = vmatpush.msra.mxu0 0.0
        %402 = vmatpush.msra.mxu0 0.0
        %403 = vmatpush.msra.mxu0 0.0
        %404 = vmatpush.msra.mxu0 0.0
        %405 = vmatpush.msra.mxu0 %v360
        %406 = vmatpush.msra.mxu0 %v358
        %407 = vmatpush.msra.mxu0 %v356
        %408 = vmatpush.msra.mxu0 %v354
        %409 = vmatmul.f32.gmra.mxu0 %v365
        %v410 = vpop.f32.mrf.mxu0
        %v411 = vadd.f32 0.0, %v410
        %412 = vmatmul.f32.gmra.mxu0 %v368
        %v413 = vpop.f32.mrf.mxu0
        %v414 = vadd.f32 0.0, %v413
        %415 = vdwg.mxu0
        %v416 = vld [vmem:[#allocation8 + $0x310] sm:$0xff]
        %v417 = vld [vmem:[#allocation8 + $0x318] sm:$0xff]
        %v419 = vsel %vm363, %v416, 0
        %v422 = vsel %vm363, %v417, 0
        %424 = vmatpush.msra.mxu0 0.0
        %425 = vmatpush.msra.mxu0 0.0
        %426 = vmatpush.msra.mxu0 0.0
        %427 = vmatpush.msra.mxu0 0.0
        %428 = vmatpush.msra.mxu0 0.0
        %429 = vmatpush.msra.mxu0 0.0
        %430 = vmatpush.msra.mxu0 0.0
        %431 = vmatpush.msra.mxu0 0.0
        %432 = vmatpush.msra.mxu0 0.0
        %433 = vmatpush.msra.mxu0 0.0
        %434 = vmatpush.msra.mxu0 0.0
        %435 = vmatpush.msra.mxu0 0.0
        %436 = vmatpush.msra.mxu0 %v359
        %437 = vmatpush.msra.mxu0 %v357
        %438 = vmatpush.msra.mxu0 %v355
        %439 = vmatpush.msra.mxu0 %v353
        %440 = vmatmul.f32.gmra.mxu0 %v419
        %v441 = vpop.f32.mrf.mxu0
        %v442 = vadd.f32 0.0, %v441
        %443 = vmatmul.f32.gmra.mxu0 %v422
        %v444 = vpop.f32.mrf.mxu0
        %v445 = vadd.f32 0.0, %v444
        %446 = vdwg.mxu0
        %447 = vmatpush.msra.mxu0 0.0
        %448 = vmatpush.msra.mxu0 0.0
        %449 = vmatpush.msra.mxu0 0.0
        %450 = vmatpush.msra.mxu0 0.0
        %451 = vmatpush.msra.mxu0 0.0
        %452 = vmatpush.msra.mxu0 0.0
        %453 = vmatpush.msra.mxu0 0.0
        %454 = vmatpush.msra.mxu0 0.0
        %455 = vmatpush.msra.mxu0 0.0
        %456 = vmatpush.msra.mxu0 0.0
        %457 = vmatpush.msra.mxu0 0.0
        %458 = vmatpush.msra.mxu0 0.0
        %459 = vmatpush.msra.mxu0 %v360
        %460 = vmatpush.msra.mxu0 %v358
        %461 = vmatpush.msra.mxu0 %v356
        %462 = vmatpush.msra.mxu0 %v354
        %463 = vmatmul.f32.gmra.mxu0 %v419
        %v464 = vpop.f32.mrf.mxu0
        %v465 = vadd.f32 0.0, %v464
        %466 = vmatmul.f32.gmra.mxu0 %v422
        %v467 = vpop.f32.mrf.mxu0
        %v468 = vadd.f32 0.0, %v467
        %469 = vdwg.mxu0
        %v470 = vld [vmem:[#allocation8 + $0x320] sm:$0xff]
        %v471 = vld [vmem:[#allocation8 + $0x328] sm:$0xff]
        %v473 = vsel %vm363, %v470, 0
        %v476 = vsel %vm363, %v471, 0
        %478 = vmatpush.msra.mxu0 0.0
        %479 = vmatpush.msra.mxu0 0.0
        %480 = vmatpush.msra.mxu0 0.0
        %481 = vmatpush.msra.mxu0 0.0
        %482 = vmatpush.msra.mxu0 0.0
        %483 = vmatpush.msra.mxu0 0.0
        %484 = vmatpush.msra.mxu0 0.0
        %485 = vmatpush.msra.mxu0 0.0
        %486 = vmatpush.msra.mxu0 0.0
        %487 = vmatpush.msra.mxu0 0.0
        %488 = vmatpush.msra.mxu0 0.0
        %489 = vmatpush.msra.mxu0 0.0
        %490 = vmatpush.msra.mxu0 %v359
        %491 = vmatpush.msra.mxu0 %v357
        %492 = vmatpush.msra.mxu0 %v355
        %493 = vmatpush.msra.mxu0 %v353
        %494 = vmatmul.f32.gmra.mxu0 %v473
        %v495 = vpop.f32.mrf.mxu0
        %v496 = vadd.f32 0.0, %v495
        %497 = vmatmul.f32.gmra.mxu0 %v476
        %v498 = vpop.f32.mrf.mxu0
        %v499 = vadd.f32 0.0, %v498
        %500 = vdwg.mxu0
        %501 = vmatpush.msra.mxu0 0.0
        %502 = vmatpush.msra.mxu0 0.0
        %503 = vmatpush.msra.mxu0 0.0
        %504 = vmatpush.msra.mxu0 0.0
        %505 = vmatpush.msra.mxu0 0.0
        %506 = vmatpush.msra.mxu0 0.0
        %507 = vmatpush.msra.mxu0 0.0
        %508 = vmatpush.msra.mxu0 0.0
        %509 = vmatpush.msra.mxu0 0.0
        %510 = vmatpush.msra.mxu0 0.0
        %511 = vmatpush.msra.mxu0 0.0
        %512 = vmatpush.msra.mxu0 0.0
        %513 = vmatpush.msra.mxu0 %v360
        %514 = vmatpush.msra.mxu0 %v358
        %515 = vmatpush.msra.mxu0 %v356
        %516 = vmatpush.msra.mxu0 %v354
        %517 = vmatmul.f32.gmra.mxu0 %v473
        %v518 = vpop.f32.mrf.mxu0
        %v519 = vadd.f32 0.0, %v518
        %520 = vmatmul.f32.gmra.mxu0 %v476
        %v521 = vpop.f32.mrf.mxu0
        %v522 = vadd.f32 0.0, %v521
        %523 = vdwg.mxu0
        %v524 = vld [vmem:[#allocation8 + $0x330] sm:$0x1]
        %v525 = vld [vmem:[#allocation8] sm:$0xff]
        %v526 = vld [vmem:[#allocation8 + $0x8] sm:$0xff]
        %v527 = vld [vmem:[#allocation8 + $0x10] sm:$0xff]
        %v528 = vld [vmem:[#allocation8 + $0x18] sm:$0xff]
        %v529 = vld [vmem:[#allocation8 + $0x20] sm:$0xff]
        %v530 = vld [vmem:[#allocation8 + $0x28] sm:$0xff]
        %v531 = vld [vmem:[#allocation8 + $0x30] sm:$0xff]
        %v532 = vld [vmem:[#allocation8 + $0x38] sm:$0xff]
        %v533 = vld [vmem:[#allocation8 + $0x40] sm:$0xff]
        %v534 = vld [vmem:[#allocation8 + $0x48] sm:$0xff]
        %v535 = vld [vmem:[#allocation8 + $0x50] sm:$0xff]
        %v536 = vld [vmem:[#allocation8 + $0x58] sm:$0xff]
        %v537 = vld [vmem:[#allocation8 + $0x60] sm:$0xff]
        %v538 = vld [vmem:[#allocation8 + $0x68] sm:$0xff]
        %v539 = vld [vmem:[#allocation8 + $0x70] sm:$0xff]
        %v540 = vld [vmem:[#allocation8 + $0x78] sm:$0xff]
        %v541 = vld [vmem:[#allocation8 + $0x80] sm:$0xff]
        %v542 = vld [vmem:[#allocation8 + $0x88] sm:$0xff]
        %v543 = vld [vmem:[#allocation8 + $0x90] sm:$0xff]
        %v544 = vld [vmem:[#allocation8 + $0x98] sm:$0xff]
        %v545 = vld [vmem:[#allocation8 + $0xa0] sm:$0xff]
        %v546 = vld [vmem:[#allocation8 + $0xa8] sm:$0xff]
        %v547 = vld [vmem:[#allocation8 + $0xb0] sm:$0xff]
        %v548 = vld [vmem:[#allocation8 + $0xb8] sm:$0xff]
        %v549 = vld [vmem:[#allocation8 + $0xc0] sm:$0xff]
        %v550 = vld [vmem:[#allocation8 + $0xc8] sm:$0xff]
        %v551 = vld [vmem:[#allocation8 + $0xd0] sm:$0xff]
        %v552 = vld [vmem:[#allocation8 + $0xd8] sm:$0xff]
        %v553 = vld [vmem:[#allocation8 + $0xe0] sm:$0xff]
        %v554 = vld [vmem:[#allocation8 + $0xe8] sm:$0xff]
        %v555 = vld [vmem:[#allocation8 + $0xf0] sm:$0xff]
        %v556 = vld [vmem:[#allocation8 + $0xf8] sm:$0xff]
        %v557 = vld [vmem:[#allocation8 + $0x100] sm:$0xff]
        %v558 = vld [vmem:[#allocation8 + $0x108] sm:$0xff]
        %v559 = vld [vmem:[#allocation8 + $0x110] sm:$0xff]
        %v560 = vld [vmem:[#allocation8 + $0x118] sm:$0xff]
        %v561 = vld [vmem:[#allocation8 + $0x120] sm:$0xff]
        %v562 = vld [vmem:[#allocation8 + $0x128] sm:$0xff]
        %v563 = vld [vmem:[#allocation8 + $0x130] sm:$0xff]
        %v564 = vld [vmem:[#allocation8 + $0x138] sm:$0xff]
        %v565 = vld [vmem:[#allocation8 + $0x140] sm:$0xff]
        %v566 = vld [vmem:[#allocation8 + $0x148] sm:$0xff]
        %v567 = vld [vmem:[#allocation8 + $0x150] sm:$0xff]
        %v568 = vld [vmem:[#allocation8 + $0x158] sm:$0xff]
        %v569 = vld [vmem:[#allocation8 + $0x160] sm:$0xff]
        %v570 = vld [vmem:[#allocation8 + $0x168] sm:$0xff]
        %v571 = vld [vmem:[#allocation8 + $0x170] sm:$0xff]
        %v572 = vld [vmem:[#allocation8 + $0x178] sm:$0xff]
        %v573 = vld [vmem:[#allocation8 + $0x180] sm:$0xff]
        %v574 = vld [vmem:[#allocation8 + $0x188] sm:$0xff]
        %v575 = vld [vmem:[#allocation8 + $0x190] sm:$0xff]
        %v576 = vld [vmem:[#allocation8 + $0x198] sm:$0xff]
        %v577 = vld [vmem:[#allocation8 + $0x1a0] sm:$0xff]
        %v578 = vld [vmem:[#allocation8 + $0x1a8] sm:$0xff]
        %v579 = vld [vmem:[#allocation8 + $0x1b0] sm:$0xff]
        %v580 = vld [vmem:[#allocation8 + $0x1b8] sm:$0xff]
        %v581 = vld [vmem:[#allocation8 + $0x1c0] sm:$0xff]
        %v582 = vld [vmem:[#allocation8 + $0x1c8] sm:$0xff]
        %v583 = vld [vmem:[#allocation8 + $0x1d0] sm:$0xff]
        %v584 = vld [vmem:[#allocation8 + $0x1d8] sm:$0xff]
        %v585 = vld [vmem:[#allocation8 + $0x1e0] sm:$0xff]
        %v586 = vld [vmem:[#allocation8 + $0x1e8] sm:$0xff]
        %v587 = vld [vmem:[#allocation8 + $0x1f0] sm:$0xff]
        %v588 = vld [vmem:[#allocation8 + $0x1f8] sm:$0xff]
        %v589 = vld [vmem:[#allocation8 + $0x200] sm:$0xff]
        %v590 = vld [vmem:[#allocation8 + $0x208] sm:$0xff]
        %v591 = vld [vmem:[#allocation8 + $0x210] sm:$0xff]
        %v592 = vld [vmem:[#allocation8 + $0x218] sm:$0xff]
        %v593 = vld [vmem:[#allocation8 + $0x220] sm:$0xff]
        %v594 = vld [vmem:[#allocation8 + $0x228] sm:$0xff]
        %v595 = vld [vmem:[#allocation8 + $0x230] sm:$0xff]
        %v596 = vld [vmem:[#allocation8 + $0x238] sm:$0xff]
        %v597 = vld [vmem:[#allocation8 + $0x240] sm:$0xff]
        %v598 = vld [vmem:[#allocation8 + $0x248] sm:$0xff]
        %v599 = vld [vmem:[#allocation8 + $0x250] sm:$0xff]
        %v600 = vld [vmem:[#allocation8 + $0x258] sm:$0xff]
        %v601 = vld [vmem:[#allocation8 + $0x260] sm:$0xff]
        %v602 = vld [vmem:[#allocation8 + $0x268] sm:$0xff]
        %v603 = vld [vmem:[#allocation8 + $0x270] sm:$0xff]
        %v604 = vld [vmem:[#allocation8 + $0x278] sm:$0xff]
        %v605 = vld [vmem:[#allocation8 + $0x280] sm:$0xff]
        %v606 = vld [vmem:[#allocation8 + $0x288] sm:$0xff]
        %v607 = vld [vmem:[#allocation8 + $0x290] sm:$0xff]
        %v608 = vld [vmem:[#allocation8 + $0x298] sm:$0xff]
        %v609 = vld [vmem:[#allocation8 + $0x2a0] sm:$0xff]
        %v610 = vld [vmem:[#allocation8 + $0x2a8] sm:$0xff]
        %v611 = vld [vmem:[#allocation8 + $0x2b0] sm:$0xff]
        %v612 = vld [vmem:[#allocation8 + $0x2b8] sm:$0xff]
        %v613 = vld [vmem:[#allocation8 + $0x2c0] sm:$0xff]
        %v614 = vld [vmem:[#allocation8 + $0x2c8] sm:$0xff]
        %v615 = vld [vmem:[#allocation8 + $0x2d0] sm:$0xff]
        %v616 = vld [vmem:[#allocation8 + $0x2d8] sm:$0xff]
        %v617 = vld [vmem:[#allocation8 + $0x2e0] sm:$0xff]
        %v618 = vld [vmem:[#allocation8 + $0x2e8] sm:$0xff]
        %v619 = vld [vmem:[#allocation8 + $0x2f0] sm:$0xff]
        %v620 = vld [vmem:[#allocation8 + $0x2f8] sm:$0xff]
        %v621 = vperm.slane %v524, 0
        %622 = vmatpush.msra.mxu0 %v540
        %623 = vmatpush.msra.mxu0 %v539
        %624 = vmatpush.msra.mxu0 %v538
        %625 = vmatpush.msra.mxu0 %v537
        %626 = vmatpush.msra.mxu0 %v536
        %627 = vmatpush.msra.mxu0 %v535
        %628 = vmatpush.msra.mxu0 %v534
        %629 = vmatpush.msra.mxu0 %v533
        %630 = vmatpush.msra.mxu0 %v532
        %631 = vmatpush.msra.mxu0 %v531
        %632 = vmatpush.msra.mxu0 %v530
        %633 = vmatpush.msra.mxu0 %v529
        %634 = vmatpush.msra.mxu0 %v528
        %635 = vmatpush.msra.mxu0 %v527
        %636 = vmatpush.msra.mxu0 %v526
        %637 = vmatpush.msra.mxu0 %v525
        %638 = vmatmul.f32.gmra.mxu0 %v388
        %v639 = vpop.f32.mrf.mxu0
        %v640 = vadd.f32 %v621, %v639
        %641 = vmatmul.f32.gmra.mxu0 %v391
        %v642 = vpop.f32.mrf.mxu0
        %v643 = vadd.f32 %v621, %v642
        %644 = vdwg.mxu0
        %645 = vmatpush.msra.mxu0 %v556
        %646 = vmatpush.msra.mxu0 %v555
        %647 = vmatpush.msra.mxu0 %v554
        %648 = vmatpush.msra.mxu0 %v553
        %649 = vmatpush.msra.mxu0 %v552
        %650 = vmatpush.msra.mxu0 %v551
        %651 = vmatpush.msra.mxu0 %v550
        %652 = vmatpush.msra.mxu0 %v549
        %653 = vmatpush.msra.mxu0 %v548
        %654 = vmatpush.msra.mxu0 %v547
        %655 = vmatpush.msra.mxu0 %v546
        %656 = vmatpush.msra.mxu0 %v545
        %657 = vmatpush.msra.mxu0 %v544
        %658 = vmatpush.msra.mxu0 %v543
        %659 = vmatpush.msra.mxu0 %v542
        %660 = vmatpush.msra.mxu0 %v541
        %661 = vmatmul.f32.gmra.mxu0 %v411
        %v662 = vpop.f32.mrf.mxu0
        %v663 = vadd.f32 %v640, %v662
        %664 = vmatmul.f32.gmra.mxu0 %v414
        %v665 = vpop.f32.mrf.mxu0
        %v666 = vadd.f32 %v643, %v665
        %667 = vdwg.mxu0
        %668 = vmatpush.msra.mxu0 %v572
        %669 = vmatpush.msra.mxu0 %v571
        %670 = vmatpush.msra.mxu0 %v570
        %671 = vmatpush.msra.mxu0 %v569
        %672 = vmatpush.msra.mxu0 %v568
        %673 = vmatpush.msra.mxu0 %v567
        %674 = vmatpush.msra.mxu0 %v566
        %675 = vmatpush.msra.mxu0 %v565
        %676 = vmatpush.msra.mxu0 %v564
        %677 = vmatpush.msra.mxu0 %v563
        %678 = vmatpush.msra.mxu0 %v562
        %679 = vmatpush.msra.mxu0 %v561
        %680 = vmatpush.msra.mxu0 %v560
        %681 = vmatpush.msra.mxu0 %v559
        %682 = vmatpush.msra.mxu0 %v558
        %683 = vmatpush.msra.mxu0 %v557
        %684 = vmatmul.f32.gmra.mxu0 %v442
        %v685 = vpop.f32.mrf.mxu0
        %v686 = vadd.f32 %v663, %v685
        %687 = vmatmul.f32.gmra.mxu0 %v445
        %v688 = vpop.f32.mrf.mxu0
        %v689 = vadd.f32 %v666, %v688
        %690 = vdwg.mxu0
        %691 = vmatpush.msra.mxu0 %v588
        %692 = vmatpush.msra.mxu0 %v587
        %693 = vmatpush.msra.mxu0 %v586
        %694 = vmatpush.msra.mxu0 %v585
        %695 = vmatpush.msra.mxu0 %v584
        %696 = vmatpush.msra.mxu0 %v583
        %697 = vmatpush.msra.mxu0 %v582
        %698 = vmatpush.msra.mxu0 %v581
        %699 = vmatpush.msra.mxu0 %v580
        %700 = vmatpush.msra.mxu0 %v579
        %701 = vmatpush.msra.mxu0 %v578
        %702 = vmatpush.msra.mxu0 %v577
        %703 = vmatpush.msra.mxu0 %v576
        %704 = vmatpush.msra.mxu0 %v575
        %705 = vmatpush.msra.mxu0 %v574
        %706 = vmatpush.msra.mxu0 %v573
        %707 = vmatmul.f32.gmra.mxu0 %v465
        %v708 = vpop.f32.mrf.mxu0
        %v709 = vadd.f32 %v686, %v708
        %710 = vmatmul.f32.gmra.mxu0 %v468
        %v711 = vpop.f32.mrf.mxu0
        %v712 = vadd.f32 %v689, %v711
        %713 = vdwg.mxu0
        %714 = vmatpush.msra.mxu0 %v604
        %715 = vmatpush.msra.mxu0 %v603
        %716 = vmatpush.msra.mxu0 %v602
        %717 = vmatpush.msra.mxu0 %v601
        %718 = vmatpush.msra.mxu0 %v600
        %719 = vmatpush.msra.mxu0 %v599
        %720 = vmatpush.msra.mxu0 %v598
        %721 = vmatpush.msra.mxu0 %v597
        %722 = vmatpush.msra.mxu0 %v596
        %723 = vmatpush.msra.mxu0 %v595
        %724 = vmatpush.msra.mxu0 %v594
        %725 = vmatpush.msra.mxu0 %v593
        %726 = vmatpush.msra.mxu0 %v592
        %727 = vmatpush.msra.mxu0 %v591
        %728 = vmatpush.msra.mxu0 %v590
        %729 = vmatpush.msra.mxu0 %v589
        %730 = vmatmul.f32.gmra.mxu0 %v496
        %v731 = vpop.f32.mrf.mxu0
        %v732 = vadd.f32 %v709, %v731
        %733 = vmatmul.f32.gmra.mxu0 %v499
        %v734 = vpop.f32.mrf.mxu0
        %v735 = vadd.f32 %v712, %v734
        %736 = vdwg.mxu0
        %737 = vmatpush.msra.mxu0 %v620
        %738 = vmatpush.msra.mxu0 %v619
        %739 = vmatpush.msra.mxu0 %v618
        %740 = vmatpush.msra.mxu0 %v617
        %741 = vmatpush.msra.mxu0 %v616
        %742 = vmatpush.msra.mxu0 %v615
        %743 = vmatpush.msra.mxu0 %v614
        %744 = vmatpush.msra.mxu0 %v613
        %745 = vmatpush.msra.mxu0 %v612
        %746 = vmatpush.msra.mxu0 %v611
        %747 = vmatpush.msra.mxu0 %v610
        %748 = vmatpush.msra.mxu0 %v609
        %749 = vmatpush.msra.mxu0 %v608
        %750 = vmatpush.msra.mxu0 %v607
        %751 = vmatpush.msra.mxu0 %v606
        %752 = vmatpush.msra.mxu0 %v605
        %753 = vmatmul.f32.gmra.mxu0 %v519
        %v754 = vpop.f32.mrf.mxu0
        %v755 = vadd.f32 %v732, %v754
        %756 = vmatmul.f32.gmra.mxu0 %v522
        %v757 = vpop.f32.mrf.mxu0
        %v758 = vadd.f32 %v735, %v757
        %759 = vdwg.mxu0
        %v760 = vld [vmem:[%s295] sm:$0xff]
        %v761 = vld [vmem:[#allocation8 + $0xa60] sm:$0xff]
        %v762 = vld [vmem:[#allocation8 + $0xa68] sm:$0xff]
        %vm763 = vcmask 64512
        %v765 = vsel %vm763, %v761, 0
        %v768 = vsel %vm763, %v762, 0
        %770 = vmatpush.msra.mxu0 0.0
        %771 = vmatpush.msra.mxu0 0.0
        %772 = vmatpush.msra.mxu0 0.0
        %773 = vmatpush.msra.mxu0 0.0
        %774 = vmatpush.msra.mxu0 0.0
        %775 = vmatpush.msra.mxu0 0.0
        %776 = vmatpush.msra.mxu0 0.0
        %777 = vmatpush.msra.mxu0 0.0
        %778 = vmatpush.msra.mxu0 0.0
        %779 = vmatpush.msra.mxu0 0.0
        %780 = vmatpush.msra.mxu0 0.0
        %781 = vmatpush.msra.mxu0 0.0
        %782 = vmatpush.msra.mxu0 0.0
        %783 = vmatpush.msra.mxu0 0.0
        %784 = vmatpush.msra.mxu0 0.0
        %785 = vmatpush.msra.mxu0 %v760
        %786 = vmatmul.f32.gmra.mxu0 %v765
        %v787 = vpop.f32.mrf.mxu0
        %v788 = vadd.f32 0.0, %v787
        %789 = vmatmul.f32.gmra.mxu0 %v768
        %v790 = vpop.f32.mrf.mxu0
        %v791 = vadd.f32 0.0, %v790
        %792 = vdwg.mxu0
        %v793 = vld [vmem:[#allocation8 + $0xa20] sm:$0xff]
        %v794 = vld [vmem:[#allocation8 + $0xa28] sm:$0xff]
        %v795 = vld [vmem:[#allocation8 + $0xa30] sm:$0xff]
        %v796 = vld [vmem:[#allocation8 + $0xa38] sm:$0xff]
        %v797 = vld [vmem:[#allocation8 + $0xa40] sm:$0xff]
        %v798 = vld [vmem:[#allocation8 + $0xa48] sm:$0xff]
        %v799 = vld [vmem:[#allocation8 + $0xa50] sm:$0xff]
        %v800 = vld [vmem:[#allocation8 + $0xa58] sm:$0xff]
        %vm801 = vcmask 523264
        %v803 = vsel %vm801, %v788, 0
        %v806 = vsel %vm801, %v791, 0
        %808 = vmatpush.msra.mxu0 0.0
        %809 = vmatpush.msra.mxu0 0.0
        %810 = vmatpush.msra.mxu0 0.0
        %811 = vmatpush.msra.mxu0 0.0
        %812 = vmatpush.msra.mxu0 0.0
        %813 = vmatpush.msra.mxu0 0.0
        %814 = vmatpush.msra.mxu0 0.0
        %815 = vmatpush.msra.mxu0 0.0
        %816 = vmatpush.msra.mxu0 %v800
        %817 = vmatpush.msra.mxu0 %v799
        %818 = vmatpush.msra.mxu0 %v798
        %819 = vmatpush.msra.mxu0 %v797
        %820 = vmatpush.msra.mxu0 %v796
        %821 = vmatpush.msra.mxu0 %v795
        %822 = vmatpush.msra.mxu0 %v794
        %823 = vmatpush.msra.mxu0 %v793
        %824 = vmatmul.f32.gmra.mxu0 %v803
        %v825 = vpop.f32.mrf.mxu0
        %v826 = vadd.f32 0.0, %v825
        %827 = vmatmul.f32.gmra.mxu0 %v806
        %v828 = vpop.f32.mrf.mxu0
        %v829 = vadd.f32 0.0, %v828
        %830 = vdwg.mxu0
        %v831 = vadd.f32 %v755, %v826
        %v832 = vadd.f32 %v758, %v829
        %v833 = vld [vmem:[#allocation8 + $0x4b8] sm:$0xff]
        %vm834 = vcmask 130048
        %v836 = vsel %vm834, %v833, 0
        %838 = vmatpush.msra.mxu0 0.0
        %839 = vmatpush.msra.mxu0 0.0
        %840 = vmatpush.msra.mxu0 0.0
        %841 = vmatpush.msra.mxu0 0.0
        %842 = vmatpush.msra.mxu0 0.0
        %843 = vmatpush.msra.mxu0 0.0
        %844 = vmatpush.msra.mxu0 0.0
        %845 = vmatpush.msra.mxu0 0.0
        %846 = vmatpush.msra.mxu0 0.0
        %847 = vmatpush.msra.mxu0 0.0
        %848 = vmatpush.msra.mxu0 0.0
        %849 = vmatpush.msra.mxu0 0.0
        %850 = vmatpush.msra.mxu0 0.0
        %851 = vmatpush.msra.mxu0 0.0
        %852 = vmatpush.msra.mxu0 %v832
        %853 = vmatpush.msra.mxu0 %v831
        %854 = vmatmul.f32.gmra.mxu0 %v836
        %v855 = vpop.f32.mrf.mxu0
        %v856 = vadd.f32 0.0, %v855
        %857 = vdwg.mxu0
        %v858 = vld [vmem:[#allocation8 + $0x4c0] sm:$0xff]
        %v860 = vsel %vm834, %v858, 0
        %862 = vmatpush.msra.mxu0 0.0
        %863 = vmatpush.msra.mxu0 0.0
        %864 = vmatpush.msra.mxu0 0.0
        %865 = vmatpush.msra.mxu0 0.0
        %866 = vmatpush.msra.mxu0 0.0
        %867 = vmatpush.msra.mxu0 0.0
        %868 = vmatpush.msra.mxu0 0.0
        %869 = vmatpush.msra.mxu0 0.0
        %870 = vmatpush.msra.mxu0 0.0
        %871 = vmatpush.msra.mxu0 0.0
        %872 = vmatpush.msra.mxu0 0.0
        %873 = vmatpush.msra.mxu0 0.0
        %874 = vmatpush.msra.mxu0 0.0
        %875 = vmatpush.msra.mxu0 0.0
        %876 = vmatpush.msra.mxu0 %v832
        %877 = vmatpush.msra.mxu0 %v831
        %878 = vmatmul.f32.gmra.mxu0 %v860
        %v879 = vpop.f32.mrf.mxu0
        %v880 = vadd.f32 0.0, %v879
        %881 = vdwg.mxu0
        %v882 = vld [vmem:[#allocation8 + $0x4c8] sm:$0xff]
        %v884 = vsel %vm834, %v882, 0
        %886 = vmatpush.msra.mxu0 0.0
        %887 = vmatpush.msra.mxu0 0.0
        %888 = vmatpush.msra.mxu0 0.0
        %889 = vmatpush.msra.mxu0 0.0
        %890 = vmatpush.msra.mxu0 0.0
        %891 = vmatpush.msra.mxu0 0.0
        %892 = vmatpush.msra.mxu0 0.0
        %893 = vmatpush.msra.mxu0 0.0
        %894 = vmatpush.msra.mxu0 0.0
        %895 = vmatpush.msra.mxu0 0.0
        %896 = vmatpush.msra.mxu0 0.0
        %897 = vmatpush.msra.mxu0 0.0
        %898 = vmatpush.msra.mxu0 0.0
        %899 = vmatpush.msra.mxu0 0.0
        %900 = vmatpush.msra.mxu0 %v832
        %901 = vmatpush.msra.mxu0 %v831
        %902 = vmatmul.f32.gmra.mxu0 %v884
        %v903 = vpop.f32.mrf.mxu0
        %v904 = vadd.f32 0.0, %v903
        %905 = vdwg.mxu0
        %v906 = vld [vmem:[#allocation8 + $0x4d0] sm:$0x1]
        %v907 = vld [vmem:[#allocation8 + $0x338] sm:$0xff]
        %v908 = vld [vmem:[#allocation8 + $0x340] sm:$0xff]
        %v909 = vld [vmem:[#allocation8 + $0x348] sm:$0xff]
        %v910 = vld [vmem:[#allocation8 + $0x350] sm:$0xff]
        %v911 = vld [vmem:[#allocation8 + $0x358] sm:$0xff]
        %v912 = vld [vmem:[#allocation8 + $0x360] sm:$0xff]
        %v913 = vld [vmem:[#allocation8 + $0x368] sm:$0xff]
        %v914 = vld [vmem:[#allocation8 + $0x370] sm:$0xff]
        %v915 = vld [vmem:[#allocation8 + $0x378] sm:$0xff]
        %v916 = vld [vmem:[#allocation8 + $0x380] sm:$0xff]
        %v917 = vld [vmem:[#allocation8 + $0x388] sm:$0xff]
        %v918 = vld [vmem:[#allocation8 + $0x390] sm:$0xff]
        %v919 = vld [vmem:[#allocation8 + $0x398] sm:$0xff]
        %v920 = vld [vmem:[#allocation8 + $0x3a0] sm:$0xff]
        %v921 = vld [vmem:[#allocation8 + $0x3a8] sm:$0xff]
        %v922 = vld [vmem:[#allocation8 + $0x3b0] sm:$0xff]
        %v923 = vld [vmem:[#allocation8 + $0x3b8] sm:$0xff]
        %v924 = vld [vmem:[#allocation8 + $0x3c0] sm:$0xff]
        %v925 = vld [vmem:[#allocation8 + $0x3c8] sm:$0xff]
        %v926 = vld [vmem:[#allocation8 + $0x3d0] sm:$0xff]
        %v927 = vld [vmem:[#allocation8 + $0x3d8] sm:$0xff]
        %v928 = vld [vmem:[#allocation8 + $0x3e0] sm:$0xff]
        %v929 = vld [vmem:[#allocation8 + $0x3e8] sm:$0xff]
        %v930 = vld [vmem:[#allocation8 + $0x3f0] sm:$0xff]
        %v931 = vld [vmem:[#allocation8 + $0x3f8] sm:$0xff]
        %v932 = vld [vmem:[#allocation8 + $0x400] sm:$0xff]
        %v933 = vld [vmem:[#allocation8 + $0x408] sm:$0xff]
        %v934 = vld [vmem:[#allocation8 + $0x410] sm:$0xff]
        %v935 = vld [vmem:[#allocation8 + $0x418] sm:$0xff]
        %v936 = vld [vmem:[#allocation8 + $0x420] sm:$0xff]
        %v937 = vld [vmem:[#allocation8 + $0x428] sm:$0xff]
        %v938 = vld [vmem:[#allocation8 + $0x430] sm:$0xff]
        %v939 = vld [vmem:[#allocation8 + $0x438] sm:$0xff]
        %v940 = vld [vmem:[#allocation8 + $0x440] sm:$0xff]
        %v941 = vld [vmem:[#allocation8 + $0x448] sm:$0xff]
        %v942 = vld [vmem:[#allocation8 + $0x450] sm:$0xff]
        %v943 = vld [vmem:[#allocation8 + $0x458] sm:$0xff]
        %v944 = vld [vmem:[#allocation8 + $0x460] sm:$0xff]
        %v945 = vld [vmem:[#allocation8 + $0x468] sm:$0xff]
        %v946 = vld [vmem:[#allocation8 + $0x470] sm:$0xff]
        %v947 = vld [vmem:[#allocation8 + $0x478] sm:$0xff]
        %v948 = vld [vmem:[#allocation8 + $0x480] sm:$0xff]
        %v949 = vld [vmem:[#allocation8 + $0x488] sm:$0xff]
        %v950 = vld [vmem:[#allocation8 + $0x490] sm:$0xff]
        %v951 = vld [vmem:[#allocation8 + $0x498] sm:$0xff]
        %v952 = vld [vmem:[#allocation8 + $0x4a0] sm:$0xff]
        %v953 = vld [vmem:[#allocation8 + $0x4a8] sm:$0xff]
        %v954 = vld [vmem:[#allocation8 + $0x4b0] sm:$0xff]
        %v955 = vperm.slane %v906, 0
        %956 = vmatpush.msra.mxu0 %v922
        %957 = vmatpush.msra.mxu0 %v921
        %958 = vmatpush.msra.mxu0 %v920
        %959 = vmatpush.msra.mxu0 %v919
        %960 = vmatpush.msra.mxu0 %v918
        %961 = vmatpush.msra.mxu0 %v917
        %962 = vmatpush.msra.mxu0 %v916
        %963 = vmatpush.msra.mxu0 %v915
        %964 = vmatpush.msra.mxu0 %v914
        %965 = vmatpush.msra.mxu0 %v913
        %966 = vmatpush.msra.mxu0 %v912
        %967 = vmatpush.msra.mxu0 %v911
        %968 = vmatpush.msra.mxu0 %v910
        %969 = vmatpush.msra.mxu0 %v909
        %970 = vmatpush.msra.mxu0 %v908
        %971 = vmatpush.msra.mxu0 %v907
        %972 = vmatmul.f32.gmra.mxu0 %v856
        %v973 = vpop.f32.mrf.mxu0
        %v974 = vadd.f32 %v955, %v973
        %975 = vdwg.mxu0
        %976 = vmatpush.msra.mxu0 %v938
        %977 = vmatpush.msra.mxu0 %v937
        %978 = vmatpush.msra.mxu0 %v936
        %979 = vmatpush.msra.mxu0 %v935
        %980 = vmatpush.msra.mxu0 %v934
        %981 = vmatpush.msra.mxu0 %v933
        %982 = vmatpush.msra.mxu0 %v932
        %983 = vmatpush.msra.mxu0 %v931
        %984 = vmatpush.msra.mxu0 %v930
        %985 = vmatpush.msra.mxu0 %v929
        %986 = vmatpush.msra.mxu0 %v928
        %987 = vmatpush.msra.mxu0 %v927
        %988 = vmatpush.msra.mxu0 %v926
        %989 = vmatpush.msra.mxu0 %v925
        %990 = vmatpush.msra.mxu0 %v924
        %991 = vmatpush.msra.mxu0 %v923
        %992 = vmatmul.f32.gmra.mxu0 %v880
        %v993 = vpop.f32.mrf.mxu0
        %v994 = vadd.f32 %v974, %v993
        %995 = vdwg.mxu0
        %996 = vmatpush.msra.mxu0 %v954
        %997 = vmatpush.msra.mxu0 %v953
        %998 = vmatpush.msra.mxu0 %v952
        %999 = vmatpush.msra.mxu0 %v951
        %1000 = vmatpush.msra.mxu0 %v950
        %1001 = vmatpush.msra.mxu0 %v949
        %1002 = vmatpush.msra.mxu0 %v948
        %1003 = vmatpush.msra.mxu0 %v947
        %1004 = vmatpush.msra.mxu0 %v946
        %1005 = vmatpush.msra.mxu0 %v945
        %1006 = vmatpush.msra.mxu0 %v944
        %1007 = vmatpush.msra.mxu0 %v943
        %1008 = vmatpush.msra.mxu0 %v942
        %1009 = vmatpush.msra.mxu0 %v941
        %1010 = vmatpush.msra.mxu0 %v940
        %1011 = vmatpush.msra.mxu0 %v939
        %1012 = vmatmul.f32.gmra.mxu0 %v904
        %v1013 = vpop.f32.mrf.mxu0
        %v1014 = vadd.f32 %v994, %v1013
        %1015 = vdwg.mxu0
        %v1016 = vld [vmem:[%s305] sm:$0xf]
        %v1017 = vld [vmem:[#allocation8 + $0xa90] sm:$0xff]
        %vm1018 = vcmask 31744
        %v1020 = vsel %vm1018, %v1017, 0
        %vm1022 = vcmask 1043456
        %v1024 = vsel %vm1022, %v1016, 0
        %1026 = vmatpush.msra.mxu0 0.0
        %1027 = vmatpush.msra.mxu0 0.0
        %1028 = vmatpush.msra.mxu0 0.0
        %1029 = vmatpush.msra.mxu0 0.0
        %1030 = vmatpush.msra.mxu0 0.0
        %1031 = vmatpush.msra.mxu0 0.0
        %1032 = vmatpush.msra.mxu0 0.0
        %1033 = vmatpush.msra.mxu0 0.0
        %1034 = vmatpush.msra.mxu0 0.0
        %1035 = vmatpush.msra.mxu0 0.0
        %1036 = vmatpush.msra.mxu0 0.0
        %1037 = vmatpush.msra.mxu0 0.0
        %1038 = vmatpush.msra.mxu0 0.0
        %1039 = vmatpush.msra.mxu0 0.0
        %1040 = vmatpush.msra.mxu0 0.0
        %1041 = vmatpush.msra.mxu0 %v1024
        %1042 = vmatmul.f32.gmra.mxu0 %v1020
        %v1043 = vpop.f32.mrf.mxu0
        %v1044 = vadd.f32 0.0, %v1043
        %1045 = vdwg.mxu0
        %v1046 = vld [vmem:[#allocation8 + $0xa70] sm:$0xff]
        %v1047 = vld [vmem:[#allocation8 + $0xa78] sm:$0xff]
        %v1048 = vld [vmem:[#allocation8 + $0xa80] sm:$0xff]
        %v1049 = vld [vmem:[#allocation8 + $0xa88] sm:$0xff]
        %v1051 = vsel %vm363, %v1044, 0
        %1053 = vmatpush.msra.mxu0 0.0
        %1054 = vmatpush.msra.mxu0 0.0
        %1055 = vmatpush.msra.mxu0 0.0
        %1056 = vmatpush.msra.mxu0 0.0
        %1057 = vmatpush.msra.mxu0 0.0
        %1058 = vmatpush.msra.mxu0 0.0
        %1059 = vmatpush.msra.mxu0 0.0
        %1060 = vmatpush.msra.mxu0 0.0
        %1061 = vmatpush.msra.mxu0 0.0
        %1062 = vmatpush.msra.mxu0 0.0
        %1063 = vmatpush.msra.mxu0 0.0
        %1064 = vmatpush.msra.mxu0 0.0
        %1065 = vmatpush.msra.mxu0 %v1049
        %1066 = vmatpush.msra.mxu0 %v1048
        %1067 = vmatpush.msra.mxu0 %v1047
        %1068 = vmatpush.msra.mxu0 %v1046
        %1069 = vmatmul.f32.gmra.mxu0 %v1051
        %v1070 = vpop.f32.mrf.mxu0
        %v1071 = vadd.f32 0.0, %v1070
        %1072 = vdwg.mxu0
        %v1073 = vadd.f32 %v1014, %v1071
        %v1074 = vld [vmem:[#allocation8 + $0x598] sm:$0xf]
        %v1076 = vsel %vm763, %v1074, 0
        %1078 = vmatpush.msra.mxu0 0.0
        %1079 = vmatpush.msra.mxu0 0.0
        %1080 = vmatpush.msra.mxu0 0.0
        %1081 = vmatpush.msra.mxu0 0.0
        %1082 = vmatpush.msra.mxu0 0.0
        %1083 = vmatpush.msra.mxu0 0.0
        %1084 = vmatpush.msra.mxu0 0.0
        %1085 = vmatpush.msra.mxu0 0.0
        %1086 = vmatpush.msra.mxu0 0.0
        %1087 = vmatpush.msra.mxu0 0.0
        %1088 = vmatpush.msra.mxu0 0.0
        %1089 = vmatpush.msra.mxu0 0.0
        %1090 = vmatpush.msra.mxu0 0.0
        %1091 = vmatpush.msra.mxu0 0.0
        %1092 = vmatpush.msra.mxu0 0.0
        %1093 = vmatpush.msra.mxu0 %v1073
        %1094 = vmatmul.f32.gmra.mxu0 %v1076
        %v1095 = vpop.f32.mrf.mxu0
        %v1096 = vadd.f32 0.0, %v1095
        %1097 = vdwg.mxu0
        %v1098 = vld [vmem:[#allocation8 + $0x5a0] sm:$0xf]
        %v1100 = vsel %vm763, %v1098, 0
        %1102 = vmatpush.msra.mxu0 0.0
        %1103 = vmatpush.msra.mxu0 0.0
        %1104 = vmatpush.msra.mxu0 0.0
        %1105 = vmatpush.msra.mxu0 0.0
        %1106 = vmatpush.msra.mxu0 0.0
        %1107 = vmatpush.msra.mxu0 0.0
        %1108 = vmatpush.msra.mxu0 0.0
        %1109 = vmatpush.msra.mxu0 0.0
        %1110 = vmatpush.msra.mxu0 0.0
        %1111 = vmatpush.msra.mxu0 0.0
        %1112 = vmatpush.msra.mxu0 0.0
        %1113 = vmatpush.msra.mxu0 0.0
        %1114 = vmatpush.msra.mxu0 0.0
        %1115 = vmatpush.msra.mxu0 0.0
        %1116 = vmatpush.msra.mxu0 0.0
        %1117 = vmatpush.msra.mxu0 %v1073
        %1118 = vmatmul.f32.gmra.mxu0 %v1100
        %v1119 = vpop.f32.mrf.mxu0
        %v1120 = vadd.f32 0.0, %v1119
        %1121 = vdwg.mxu0
        %v1122 = vld [vmem:[#allocation8 + $0x5a8] sm:$0xf]
        %v1124 = vsel %vm763, %v1122, 0
        %1126 = vmatpush.msra.mxu0 0.0
        %1127 = vmatpush.msra.mxu0 0.0
        %1128 = vmatpush.msra.mxu0 0.0
        %1129 = vmatpush.msra.mxu0 0.0
        %1130 = vmatpush.msra.mxu0 0.0
        %1131 = vmatpush.msra.mxu0 0.0
        %1132 = vmatpush.msra.mxu0 0.0
        %1133 = vmatpush.msra.mxu0 0.0
        %1134 = vmatpush.msra.mxu0 0.0
        %1135 = vmatpush.msra.mxu0 0.0
        %1136 = vmatpush.msra.mxu0 0.0
        %1137 = vmatpush.msra.mxu0 0.0
        %1138 = vmatpush.msra.mxu0 0.0
        %1139 = vmatpush.msra.mxu0 0.0
        %1140 = vmatpush.msra.mxu0 0.0
        %1141 = vmatpush.msra.mxu0 %v1073
        %1142 = vmatmul.f32.gmra.mxu0 %v1124
        %v1143 = vpop.f32.mrf.mxu0
        %v1144 = vadd.f32 0.0, %v1143
        %1145 = vdwg.mxu0
        %v1146 = vld [vmem:[#allocation8 + $0x5b0] sm:$0x1]
        %v1147 = vld [vmem:[#allocation8 + $0x4d8] sm:$0xff]
        %v1148 = vld [vmem:[#allocation8 + $0x4e0] sm:$0xff]
        %v1149 = vld [vmem:[#allocation8 + $0x4e8] sm:$0xff]
        %v1150 = vld [vmem:[#allocation8 + $0x4f0] sm:$0xff]
        %v1151 = vld [vmem:[#allocation8 + $0x4f8] sm:$0xff]
        %v1152 = vld [vmem:[#allocation8 + $0x500] sm:$0xff]
        %v1153 = vld [vmem:[#allocation8 + $0x508] sm:$0xff]
        %v1154 = vld [vmem:[#allocation8 + $0x510] sm:$0xff]
        %v1156 = vsel %vm801, %v1096, 0
        %1158 = vmatpush.msra.mxu0 0.0
        %1159 = vmatpush.msra.mxu0 0.0
        %1160 = vmatpush.msra.mxu0 0.0
        %1161 = vmatpush.msra.mxu0 0.0
        %1162 = vmatpush.msra.mxu0 0.0
        %1163 = vmatpush.msra.mxu0 0.0
        %1164 = vmatpush.msra.mxu0 0.0
        %1165 = vmatpush.msra.mxu0 0.0
        %1166 = vmatpush.msra.mxu0 %v1154
        %1167 = vmatpush.msra.mxu0 %v1153
        %1168 = vmatpush.msra.mxu0 %v1152
        %1169 = vmatpush.msra.mxu0 %v1151
        %1170 = vmatpush.msra.mxu0 %v1150
        %1171 = vmatpush.msra.mxu0 %v1149
        %1172 = vmatpush.msra.mxu0 %v1148
        %1173 = vmatpush.msra.mxu0 %v1147
        %1174 = vmatmul.f32.gmra.mxu0 %v1156
        %v1175 = vpop.f32.mrf.mxu0
        %v1176 = vadd.f32 0.0, %v1175
        %1177 = vdwg.mxu0
        %v1178 = vperm.slane %v1146, 0
        %v1179 = vadd.f32 %v1178, %v1176
        %v1180 = vld [vmem:[#allocation8 + $0x518] sm:$0xff]
        %v1181 = vld [vmem:[#allocation8 + $0x520] sm:$0xff]
        %v1182 = vld [vmem:[#allocation8 + $0x528] sm:$0xff]
        %v1183 = vld [vmem:[#allocation8 + $0x530] sm:$0xff]
        %v1184 = vld [vmem:[#allocation8 + $0x538] sm:$0xff]
        %v1185 = vld [vmem:[#allocation8 + $0x540] sm:$0xff]
        %v1186 = vld [vmem:[#allocation8 + $0x548] sm:$0xff]
        %v1187 = vld [vmem:[#allocation8 + $0x550] sm:$0xff]
        %v1189 = vsel %vm801, %v1120, 0
        %1191 = vmatpush.msra.mxu0 0.0
        %1192 = vmatpush.msra.mxu0 0.0
        %1193 = vmatpush.msra.mxu0 0.0
        %1194 = vmatpush.msra.mxu0 0.0
        %1195 = vmatpush.msra.mxu0 0.0
        %1196 = vmatpush.msra.mxu0 0.0
        %1197 = vmatpush.msra.mxu0 0.0
        %1198 = vmatpush.msra.mxu0 0.0
        %1199 = vmatpush.msra.mxu0 %v1187
        %1200 = vmatpush.msra.mxu0 %v1186
        %1201 = vmatpush.msra.mxu0 %v1185
        %1202 = vmatpush.msra.mxu0 %v1184
        %1203 = vmatpush.msra.mxu0 %v1183
        %1204 = vmatpush.msra.mxu0 %v1182
        %1205 = vmatpush.msra.mxu0 %v1181
        %1206 = vmatpush.msra.mxu0 %v1180
        %1207 = vmatmul.f32.gmra.mxu0 %v1189
        %v1208 = vpop.f32.mrf.mxu0
        %v1209 = vadd.f32 0.0, %v1208
        %1210 = vdwg.mxu0
        %v1211 = vadd.f32 %v1179, %v1209
        %v1212 = vld [vmem:[#allocation8 + $0x558] sm:$0xff]
        %v1213 = vld [vmem:[#allocation8 + $0x560] sm:$0xff]
        %v1214 = vld [vmem:[#allocation8 + $0x568] sm:$0xff]
        %v1215 = vld [vmem:[#allocation8 + $0x570] sm:$0xff]
        %v1216 = vld [vmem:[#allocation8 + $0x578] sm:$0xff]
        %v1217 = vld [vmem:[#allocation8 + $0x580] sm:$0xff]
        %v1218 = vld [vmem:[#allocation8 + $0x588] sm:$0xff]
        %v1219 = vld [vmem:[#allocation8 + $0x590] sm:$0xff]
        %v1221 = vsel %vm801, %v1144, 0
        %1223 = vmatpush.msra.mxu0 0.0
        %1224 = vmatpush.msra.mxu0 0.0
        %1225 = vmatpush.msra.mxu0 0.0
        %1226 = vmatpush.msra.mxu0 0.0
        %1227 = vmatpush.msra.mxu0 0.0
        %1228 = vmatpush.msra.mxu0 0.0
        %1229 = vmatpush.msra.mxu0 0.0
        %1230 = vmatpush.msra.mxu0 0.0
        %1231 = vmatpush.msra.mxu0 %v1219
        %1232 = vmatpush.msra.mxu0 %v1218
        %1233 = vmatpush.msra.mxu0 %v1217
        %1234 = vmatpush.msra.mxu0 %v1216
        %1235 = vmatpush.msra.mxu0 %v1215
        %1236 = vmatpush.msra.mxu0 %v1214
        %1237 = vmatpush.msra.mxu0 %v1213
        %1238 = vmatpush.msra.mxu0 %v1212
        %1239 = vmatmul.f32.gmra.mxu0 %v1221
        %v1240 = vpop.f32.mrf.mxu0
        %v1241 = vadd.f32 0.0, %v1240
        %1242 = vdwg.mxu0
        %v1243 = vadd.f32 %v1211, %v1241
        %v1244 = vld [vmem:[#allocation8 + $0x618] sm:$0x3]
        %v1246 = vsel %vm1018, %v1244, 0
        %v1249 = vsel %vm1022, %v1243, 0
        %1251 = vmatpush.msra.mxu0 0.0
        %1252 = vmatpush.msra.mxu0 0.0
        %1253 = vmatpush.msra.mxu0 0.0
        %1254 = vmatpush.msra.mxu0 0.0
        %1255 = vmatpush.msra.mxu0 0.0
        %1256 = vmatpush.msra.mxu0 0.0
        %1257 = vmatpush.msra.mxu0 0.0
        %1258 = vmatpush.msra.mxu0 0.0
        %1259 = vmatpush.msra.mxu0 0.0
        %1260 = vmatpush.msra.mxu0 0.0
        %1261 = vmatpush.msra.mxu0 0.0
        %1262 = vmatpush.msra.mxu0 0.0
        %1263 = vmatpush.msra.mxu0 0.0
        %1264 = vmatpush.msra.mxu0 0.0
        %1265 = vmatpush.msra.mxu0 0.0
        %1266 = vmatpush.msra.mxu0 %v1249
        %1267 = vmatmul.f32.gmra.mxu0 %v1246
        %v1268 = vpop.f32.mrf.mxu0
        %v1269 = vadd.f32 0.0, %v1268
        %1270 = vdwg.mxu0
        %v1271 = vld [vmem:[#allocation8 + $0x620] sm:$0x3]
        %v1273 = vsel %vm1018, %v1271, 0
        %1275 = vmatpush.msra.mxu0 0.0
        %1276 = vmatpush.msra.mxu0 0.0
        %1277 = vmatpush.msra.mxu0 0.0
        %1278 = vmatpush.msra.mxu0 0.0
        %1279 = vmatpush.msra.mxu0 0.0
        %1280 = vmatpush.msra.mxu0 0.0
        %1281 = vmatpush.msra.mxu0 0.0
        %1282 = vmatpush.msra.mxu0 0.0
        %1283 = vmatpush.msra.mxu0 0.0
        %1284 = vmatpush.msra.mxu0 0.0
        %1285 = vmatpush.msra.mxu0 0.0
        %1286 = vmatpush.msra.mxu0 0.0
        %1287 = vmatpush.msra.mxu0 0.0
        %1288 = vmatpush.msra.mxu0 0.0
        %1289 = vmatpush.msra.mxu0 0.0
        %1290 = vmatpush.msra.mxu0 %v1249
        %1291 = vmatmul.f32.gmra.mxu0 %v1273
        %v1292 = vpop.f32.mrf.mxu0
        %v1293 = vadd.f32 0.0, %v1292
        %1294 = vdwg.mxu0
        %v1295 = vld [vmem:[#allocation8 + $0x628] sm:$0x3]
        %v1297 = vsel %vm1018, %v1295, 0
        %1299 = vmatpush.msra.mxu0 0.0
        %1300 = vmatpush.msra.mxu0 0.0
        %1301 = vmatpush.msra.mxu0 0.0
        %1302 = vmatpush.msra.mxu0 0.0
        %1303 = vmatpush.msra.mxu0 0.0
        %1304 = vmatpush.msra.mxu0 0.0
        %1305 = vmatpush.msra.mxu0 0.0
        %1306 = vmatpush.msra.mxu0 0.0
        %1307 = vmatpush.msra.mxu0 0.0
        %1308 = vmatpush.msra.mxu0 0.0
        %1309 = vmatpush.msra.mxu0 0.0
        %1310 = vmatpush.msra.mxu0 0.0
        %1311 = vmatpush.msra.mxu0 0.0
        %1312 = vmatpush.msra.mxu0 0.0
        %1313 = vmatpush.msra.mxu0 0.0
        %1314 = vmatpush.msra.mxu0 %v1249
        %1315 = vmatmul.f32.gmra.mxu0 %v1297
        %v1316 = vpop.f32.mrf.mxu0
        %v1317 = vadd.f32 0.0, %v1316
        %1318 = vdwg.mxu0
        %v1319 = vld [vmem:[#allocation8 + $0x630] sm:$0x1]
        %v1320 = vld [vmem:[#allocation8 + $0x5b8] sm:$0xff]
        %v1321 = vld [vmem:[#allocation8 + $0x5c0] sm:$0xff]
        %v1322 = vld [vmem:[#allocation8 + $0x5c8] sm:$0xff]
        %v1323 = vld [vmem:[#allocation8 + $0x5d0] sm:$0xff]
        %v1325 = vsel %vm363, %v1269, 0
        %1327 = vmatpush.msra.mxu0 0.0
        %1328 = vmatpush.msra.mxu0 0.0
        %1329 = vmatpush.msra.mxu0 0.0
        %1330 = vmatpush.msra.mxu0 0.0
        %1331 = vmatpush.msra.mxu0 0.0
        %1332 = vmatpush.msra.mxu0 0.0
        %1333 = vmatpush.msra.mxu0 0.0
        %1334 = vmatpush.msra.mxu0 0.0
        %1335 = vmatpush.msra.mxu0 0.0
        %1336 = vmatpush.msra.mxu0 0.0
        %1337 = vmatpush.msra.mxu0 0.0
        %1338 = vmatpush.msra.mxu0 0.0
        %1339 = vmatpush.msra.mxu0 %v1323
        %1340 = vmatpush.msra.mxu0 %v1322
        %1341 = vmatpush.msra.mxu0 %v1321
        %1342 = vmatpush.msra.mxu0 %v1320
        %1343 = vmatmul.f32.gmra.mxu0 %v1325
        %v1344 = vpop.f32.mrf.mxu0
        %v1345 = vadd.f32 0.0, %v1344
        %1346 = vdwg.mxu0
        %v1347 = vperm.slane %v1319, 0
        %v1348 = vadd.f32 %v1347, %v1345
        %v1349 = vld [vmem:[#allocation8 + $0x5d8] sm:$0xff]
        %v1350 = vld [vmem:[#allocation8 + $0x5e0] sm:$0xff]
        %v1351 = vld [vmem:[#allocation8 + $0x5e8] sm:$0xff]
        %v1352 = vld [vmem:[#allocation8 + $0x5f0] sm:$0xff]
        %v1354 = vsel %vm363, %v1293, 0
        %1356 = vmatpush.msra.mxu0 0.0
        %1357 = vmatpush.msra.mxu0 0.0
        %1358 = vmatpush.msra.mxu0 0.0
        %1359 = vmatpush.msra.mxu0 0.0
        %1360 = vmatpush.msra.mxu0 0.0
        %1361 = vmatpush.msra.mxu0 0.0
        %1362 = vmatpush.msra.mxu0 0.0
        %1363 = vmatpush.msra.mxu0 0.0
        %1364 = vmatpush.msra.mxu0 0.0
        %1365 = vmatpush.msra.mxu0 0.0
        %1366 = vmatpush.msra.mxu0 0.0
        %1367 = vmatpush.msra.mxu0 0.0
        %1368 = vmatpush.msra.mxu0 %v1352
        %1369 = vmatpush.msra.mxu0 %v1351
        %1370 = vmatpush.msra.mxu0 %v1350
        %1371 = vmatpush.msra.mxu0 %v1349
        %1372 = vmatmul.f32.gmra.mxu0 %v1354
        %v1373 = vpop.f32.mrf.mxu0
        %v1374 = vadd.f32 0.0, %v1373
        %1375 = vdwg.mxu0
        %v1376 = vadd.f32 %v1348, %v1374
        %v1377 = vld [vmem:[#allocation8 + $0x5f8] sm:$0xff]
        %v1378 = vld [vmem:[#allocation8 + $0x600] sm:$0xff]
        %v1379 = vld [vmem:[#allocation8 + $0x608] sm:$0xff]
        %v1380 = vld [vmem:[#allocation8 + $0x610] sm:$0xff]
        %v1382 = vsel %vm363, %v1317, 0
        %1384 = vmatpush.msra.mxu0 0.0
        %1385 = vmatpush.msra.mxu0 0.0
        %1386 = vmatpush.msra.mxu0 0.0
        %1387 = vmatpush.msra.mxu0 0.0
        %1388 = vmatpush.msra.mxu0 0.0
        %1389 = vmatpush.msra.mxu0 0.0
        %1390 = vmatpush.msra.mxu0 0.0
        %1391 = vmatpush.msra.mxu0 0.0
        %1392 = vmatpush.msra.mxu0 0.0
        %1393 = vmatpush.msra.mxu0 0.0
        %1394 = vmatpush.msra.mxu0 0.0
        %1395 = vmatpush.msra.mxu0 0.0
        %1396 = vmatpush.msra.mxu0 %v1380
        %1397 = vmatpush.msra.mxu0 %v1379
        %1398 = vmatpush.msra.mxu0 %v1378
        %1399 = vmatpush.msra.mxu0 %v1377
        %1400 = vmatmul.f32.gmra.mxu0 %v1382
        %v1401 = vpop.f32.mrf.mxu0
        %v1402 = vadd.f32 0.0, %v1401
        %1403 = vdwg.mxu0
        %v1404 = vadd.f32 %v1376, %v1402
        %v1405 = vld [vmem:[#allocation8 + $0x648] sm:$0x3]
        %vm1406 = vcmask 15360
        %v1408 = vsel %vm1406, %v1405, 0
        %vm1410 = vcmask 1041408
        %v1412 = vsel %vm1410, %v1404, 0
        %1414 = vmatpush.msra.mxu0 0.0
        %1415 = vmatpush.msra.mxu0 0.0
        %1416 = vmatpush.msra.mxu0 0.0
        %1417 = vmatpush.msra.mxu0 0.0
        %1418 = vmatpush.msra.mxu0 0.0
        %1419 = vmatpush.msra.mxu0 0.0
        %1420 = vmatpush.msra.mxu0 0.0
        %1421 = vmatpush.msra.mxu0 0.0
        %1422 = vmatpush.msra.mxu0 0.0
        %1423 = vmatpush.msra.mxu0 0.0
        %1424 = vmatpush.msra.mxu0 0.0
        %1425 = vmatpush.msra.mxu0 0.0
        %1426 = vmatpush.msra.mxu0 0.0
        %1427 = vmatpush.msra.mxu0 0.0
        %1428 = vmatpush.msra.mxu0 0.0
        %1429 = vmatpush.msra.mxu0 %v1412
        %1430 = vmatmul.f32.gmra.mxu0 %v1408
        %v1431 = vpop.f32.mrf.mxu0
        %v1432 = vadd.f32 0.0, %v1431
        %1433 = vdwg.mxu0
        %v1434 = vld [vmem:[#allocation8 + $0x650] sm:$0x1]
        %v1435 = vld [vmem:[#allocation8 + $0x638] sm:$0xff]
        %v1436 = vld [vmem:[#allocation8 + $0x640] sm:$0xff]
        %v1438 = vsel %vm834, %v1432, 0
        %1440 = vmatpush.msra.mxu0 0.0
        %1441 = vmatpush.msra.mxu0 0.0
        %1442 = vmatpush.msra.mxu0 0.0
        %1443 = vmatpush.msra.mxu0 0.0
        %1444 = vmatpush.msra.mxu0 0.0
        %1445 = vmatpush.msra.mxu0 0.0
        %1446 = vmatpush.msra.mxu0 0.0
        %1447 = vmatpush.msra.mxu0 0.0
        %1448 = vmatpush.msra.mxu0 0.0
        %1449 = vmatpush.msra.mxu0 0.0
        %1450 = vmatpush.msra.mxu0 0.0
        %1451 = vmatpush.msra.mxu0 0.0
        %1452 = vmatpush.msra.mxu0 0.0
        %1453 = vmatpush.msra.mxu0 0.0
        %1454 = vmatpush.msra.mxu0 %v1436
        %1455 = vmatpush.msra.mxu0 %v1435
        %1456 = vmatmul.f32.gmra.mxu0 %v1438
        %v1457 = vpop.f32.mrf.mxu0
        %v1458 = vadd.f32 0.0, %v1457
        %1459 = vdwg.mxu0
        %v1460 = vperm.slane %v1434, 0
        %v1461 = vadd.f32 %v1460, %v1458
        %v1462 = vadd.f32 %v1404, %v1461
        %v1463 = vld [vmem:[#allocation8 + $0x688] sm:$0x3]
        %v1465 = vsel %vm1406, %v1463, 0
        %v1468 = vsel %vm1410, %v1462, 0
        %1470 = vmatpush.msra.mxu0 0.0
        %1471 = vmatpush.msra.mxu0 0.0
        %1472 = vmatpush.msra.mxu0 0.0
        %1473 = vmatpush.msra.mxu0 0.0
        %1474 = vmatpush.msra.mxu0 0.0
        %1475 = vmatpush.msra.mxu0 0.0
        %1476 = vmatpush.msra.mxu0 0.0
        %1477 = vmatpush.msra.mxu0 0.0
        %1478 = vmatpush.msra.mxu0 0.0
        %1479 = vmatpush.msra.mxu0 0.0
        %1480 = vmatpush.msra.mxu0 0.0
        %1481 = vmatpush.msra.mxu0 0.0
        %1482 = vmatpush.msra.mxu0 0.0
        %1483 = vmatpush.msra.mxu0 0.0
        %1484 = vmatpush.msra.mxu0 0.0
        %1485 = vmatpush.msra.mxu0 %v1468
        %1486 = vmatmul.f32.gmra.mxu0 %v1465
        %v1487 = vpop.f32.mrf.mxu0
        %v1488 = vadd.f32 0.0, %v1487
        %1489 = vdwg.mxu0
        %v1490 = vld [vmem:[#allocation8 + $0x690] sm:$0x3]
        %v1492 = vsel %vm1406, %v1490, 0
        %1494 = vmatpush.msra.mxu0 0.0
        %1495 = vmatpush.msra.mxu0 0.0
        %1496 = vmatpush.msra.mxu0 0.0
        %1497 = vmatpush.msra.mxu0 0.0
        %1498 = vmatpush.msra.mxu0 0.0
        %1499 = vmatpush.msra.mxu0 0.0
        %1500 = vmatpush.msra.mxu0 0.0
        %1501 = vmatpush.msra.mxu0 0.0
        %1502 = vmatpush.msra.mxu0 0.0
        %1503 = vmatpush.msra.mxu0 0.0
        %1504 = vmatpush.msra.mxu0 0.0
        %1505 = vmatpush.msra.mxu0 0.0
        %1506 = vmatpush.msra.mxu0 0.0
        %1507 = vmatpush.msra.mxu0 0.0
        %1508 = vmatpush.msra.mxu0 0.0
        %1509 = vmatpush.msra.mxu0 %v1468
        %1510 = vmatmul.f32.gmra.mxu0 %v1492
        %v1511 = vpop.f32.mrf.mxu0
        %v1512 = vadd.f32 0.0, %v1511
        %1513 = vdwg.mxu0
        %v1514 = vld [vmem:[#allocation8 + $0x698] sm:$0x3]
        %v1516 = vsel %vm1406, %v1514, 0
        %1518 = vmatpush.msra.mxu0 0.0
        %1519 = vmatpush.msra.mxu0 0.0
        %1520 = vmatpush.msra.mxu0 0.0
        %1521 = vmatpush.msra.mxu0 0.0
        %1522 = vmatpush.msra.mxu0 0.0
        %1523 = vmatpush.msra.mxu0 0.0
        %1524 = vmatpush.msra.mxu0 0.0
        %1525 = vmatpush.msra.mxu0 0.0
        %1526 = vmatpush.msra.mxu0 0.0
        %1527 = vmatpush.msra.mxu0 0.0
        %1528 = vmatpush.msra.mxu0 0.0
        %1529 = vmatpush.msra.mxu0 0.0
        %1530 = vmatpush.msra.mxu0 0.0
        %1531 = vmatpush.msra.mxu0 0.0
        %1532 = vmatpush.msra.mxu0 0.0
        %1533 = vmatpush.msra.mxu0 %v1468
        %1534 = vmatmul.f32.gmra.mxu0 %v1516
        %v1535 = vpop.f32.mrf.mxu0
        %v1536 = vadd.f32 0.0, %v1535
        %1537 = vdwg.mxu0
        %v1538 = vld [vmem:[#allocation8 + $0x6a0] sm:$0x1]
        %v1539 = vld [vmem:[#allocation8 + $0x658] sm:$0xff]
        %v1540 = vld [vmem:[#allocation8 + $0x660] sm:$0xff]
        %v1542 = vsel %vm834, %v1488, 0
        %1544 = vmatpush.msra.mxu0 0.0
        %1545 = vmatpush.msra.mxu0 0.0
        %1546 = vmatpush.msra.mxu0 0.0
        %1547 = vmatpush.msra.mxu0 0.0
        %1548 = vmatpush.msra.mxu0 0.0
        %1549 = vmatpush.msra.mxu0 0.0
        %1550 = vmatpush.msra.mxu0 0.0
        %1551 = vmatpush.msra.mxu0 0.0
        %1552 = vmatpush.msra.mxu0 0.0
        %1553 = vmatpush.msra.mxu0 0.0
        %1554 = vmatpush.msra.mxu0 0.0
        %1555 = vmatpush.msra.mxu0 0.0
        %1556 = vmatpush.msra.mxu0 0.0
        %1557 = vmatpush.msra.mxu0 0.0
        %1558 = vmatpush.msra.mxu0 %v1540
        %1559 = vmatpush.msra.mxu0 %v1539
        %1560 = vmatmul.f32.gmra.mxu0 %v1542
        %v1561 = vpop.f32.mrf.mxu0
        %v1562 = vadd.f32 0.0, %v1561
        %1563 = vdwg.mxu0
        %v1564 = vperm.slane %v1538, 0
        %v1565 = vadd.f32 %v1564, %v1562
        %v1566 = vld [vmem:[#allocation8 + $0x668] sm:$0xff]
        %v1567 = vld [vmem:[#allocation8 + $0x670] sm:$0xff]
        %v1569 = vsel %vm834, %v1512, 0
        %1571 = vmatpush.msra.mxu0 0.0
        %1572 = vmatpush.msra.mxu0 0.0
        %1573 = vmatpush.msra.mxu0 0.0
        %1574 = vmatpush.msra.mxu0 0.0
        %1575 = vmatpush.msra.mxu0 0.0
        %1576 = vmatpush.msra.mxu0 0.0
        %1577 = vmatpush.msra.mxu0 0.0
        %1578 = vmatpush.msra.mxu0 0.0
        %1579 = vmatpush.msra.mxu0 0.0
        %1580 = vmatpush.msra.mxu0 0.0
        %1581 = vmatpush.msra.mxu0 0.0
        %1582 = vmatpush.msra.mxu0 0.0
        %1583 = vmatpush.msra.mxu0 0.0
        %1584 = vmatpush.msra.mxu0 0.0
        %1585 = vmatpush.msra.mxu0 %v1567
        %1586 = vmatpush.msra.mxu0 %v1566
        %1587 = vmatmul.f32.gmra.mxu0 %v1569
        %v1588 = vpop.f32.mrf.mxu0
        %v1589 = vadd.f32 0.0, %v1588
        %1590 = vdwg.mxu0
        %v1591 = vadd.f32 %v1565, %v1589
        %v1592 = vld [vmem:[#allocation8 + $0x678] sm:$0xff]
        %v1593 = vld [vmem:[#allocation8 + $0x680] sm:$0xff]
        %v1595 = vsel %vm834, %v1536, 0
        %1597 = vmatpush.msra.mxu0 0.0
        %1598 = vmatpush.msra.mxu0 0.0
        %1599 = vmatpush.msra.mxu0 0.0
        %1600 = vmatpush.msra.mxu0 0.0
        %1601 = vmatpush.msra.mxu0 0.0
        %1602 = vmatpush.msra.mxu0 0.0
        %1603 = vmatpush.msra.mxu0 0.0
        %1604 = vmatpush.msra.mxu0 0.0
        %1605 = vmatpush.msra.mxu0 0.0
        %1606 = vmatpush.msra.mxu0 0.0
        %1607 = vmatpush.msra.mxu0 0.0
        %1608 = vmatpush.msra.mxu0 0.0
        %1609 = vmatpush.msra.mxu0 0.0
        %1610 = vmatpush.msra.mxu0 0.0
        %1611 = vmatpush.msra.mxu0 %v1593
        %1612 = vmatpush.msra.mxu0 %v1592
        %1613 = vmatmul.f32.gmra.mxu0 %v1595
        %v1614 = vpop.f32.mrf.mxu0
        %v1615 = vadd.f32 0.0, %v1614
        %1616 = vdwg.mxu0
        %v1617 = vadd.f32 %v1591, %v1615
        %v1618 = vld [vmem:[#allocation8 + $0xaa8] sm:$0xf]
        %v1620 = vsel %vm1406, %v1618, 0
        %v1623 = vsel %vm1410, %v1617, 0
        %1625 = vmatpush.msra.mxu0 0.0
        %1626 = vmatpush.msra.mxu0 0.0
        %1627 = vmatpush.msra.mxu0 0.0
        %1628 = vmatpush.msra.mxu0 0.0
        %1629 = vmatpush.msra.mxu0 0.0
        %1630 = vmatpush.msra.mxu0 0.0
        %1631 = vmatpush.msra.mxu0 0.0
        %1632 = vmatpush.msra.mxu0 0.0
        %1633 = vmatpush.msra.mxu0 0.0
        %1634 = vmatpush.msra.mxu0 0.0
        %1635 = vmatpush.msra.mxu0 0.0
        %1636 = vmatpush.msra.mxu0 0.0
        %1637 = vmatpush.msra.mxu0 0.0
        %1638 = vmatpush.msra.mxu0 0.0
        %1639 = vmatpush.msra.mxu0 0.0
        %1640 = vmatpush.msra.mxu0 %v1623
        %1641 = vmatmul.f32.gmra.mxu0 %v1620
        %v1642 = vpop.f32.mrf.mxu0
        %v1643 = vadd.f32 0.0, %v1642
        %1644 = vdwg.mxu0
        %v1645 = vld [vmem:[#allocation8 + $0xa98] sm:$0xff]
        %v1646 = vld [vmem:[#allocation8 + $0xaa0] sm:$0xff]
        %v1648 = vsel %vm834, %v1643, 0
        %1650 = vmatpush.msra.mxu0 0.0
        %1651 = vmatpush.msra.mxu0 0.0
        %1652 = vmatpush.msra.mxu0 0.0
        %1653 = vmatpush.msra.mxu0 0.0
        %1654 = vmatpush.msra.mxu0 0.0
        %1655 = vmatpush.msra.mxu0 0.0
        %1656 = vmatpush.msra.mxu0 0.0
        %1657 = vmatpush.msra.mxu0 0.0
        %1658 = vmatpush.msra.mxu0 0.0
        %1659 = vmatpush.msra.mxu0 0.0
        %1660 = vmatpush.msra.mxu0 0.0
        %1661 = vmatpush.msra.mxu0 0.0
        %1662 = vmatpush.msra.mxu0 0.0
        %1663 = vmatpush.msra.mxu0 0.0
        %1664 = vmatpush.msra.mxu0 %v1646
        %1665 = vmatpush.msra.mxu0 %v1645
        %1666 = vmatmul.f32.gmra.mxu0 %v1648
        %v1667 = vpop.f32.mrf.mxu0
        %v1668 = vadd.f32 0.0, %v1667
        %1669 = vdwg.mxu0
        %v1670 = vadd.f32 %v1243, %v1668
        %v1671 = vld [vmem:[#allocation8 + $0x708] sm:$0xf]
        %v1673 = vsel %vm1018, %v1671, 0
        %v1676 = vsel %vm1022, %v1670, 0
        %1678 = vmatpush.msra.mxu0 0.0
        %1679 = vmatpush.msra.mxu0 0.0
        %1680 = vmatpush.msra.mxu0 0.0
        %1681 = vmatpush.msra.mxu0 0.0
        %1682 = vmatpush.msra.mxu0 0.0
        %1683 = vmatpush.msra.mxu0 0.0
        %1684 = vmatpush.msra.mxu0 0.0
        %1685 = vmatpush.msra.mxu0 0.0
        %1686 = vmatpush.msra.mxu0 0.0
        %1687 = vmatpush.msra.mxu0 0.0
        %1688 = vmatpush.msra.mxu0 0.0
        %1689 = vmatpush.msra.mxu0 0.0
        %1690 = vmatpush.msra.mxu0 0.0
        %1691 = vmatpush.msra.mxu0 0.0
        %1692 = vmatpush.msra.mxu0 0.0
        %1693 = vmatpush.msra.mxu0 %v1676
        %1694 = vmatmul.f32.gmra.mxu0 %v1673
        %v1695 = vpop.f32.mrf.mxu0
        %v1696 = vadd.f32 0.0, %v1695
        %1697 = vdwg.mxu0
        %v1698 = vld [vmem:[#allocation8 + $0x710] sm:$0xf]
        %v1700 = vsel %vm1018, %v1698, 0
        %1702 = vmatpush.msra.mxu0 0.0
        %1703 = vmatpush.msra.mxu0 0.0
        %1704 = vmatpush.msra.mxu0 0.0
        %1705 = vmatpush.msra.mxu0 0.0
        %1706 = vmatpush.msra.mxu0 0.0
        %1707 = vmatpush.msra.mxu0 0.0
        %1708 = vmatpush.msra.mxu0 0.0
        %1709 = vmatpush.msra.mxu0 0.0
        %1710 = vmatpush.msra.mxu0 0.0
        %1711 = vmatpush.msra.mxu0 0.0
        %1712 = vmatpush.msra.mxu0 0.0
        %1713 = vmatpush.msra.mxu0 0.0
        %1714 = vmatpush.msra.mxu0 0.0
        %1715 = vmatpush.msra.mxu0 0.0
        %1716 = vmatpush.msra.mxu0 0.0
        %1717 = vmatpush.msra.mxu0 %v1676
        %1718 = vmatmul.f32.gmra.mxu0 %v1700
        %v1719 = vpop.f32.mrf.mxu0
        %v1720 = vadd.f32 0.0, %v1719
        %1721 = vdwg.mxu0
        %v1722 = vld [vmem:[#allocation8 + $0x718] sm:$0xf]
        %v1724 = vsel %vm1018, %v1722, 0
        %1726 = vmatpush.msra.mxu0 0.0
        %1727 = vmatpush.msra.mxu0 0.0
        %1728 = vmatpush.msra.mxu0 0.0
        %1729 = vmatpush.msra.mxu0 0.0
        %1730 = vmatpush.msra.mxu0 0.0
        %1731 = vmatpush.msra.mxu0 0.0
        %1732 = vmatpush.msra.mxu0 0.0
        %1733 = vmatpush.msra.mxu0 0.0
        %1734 = vmatpush.msra.mxu0 0.0
        %1735 = vmatpush.msra.mxu0 0.0
        %1736 = vmatpush.msra.mxu0 0.0
        %1737 = vmatpush.msra.mxu0 0.0
        %1738 = vmatpush.msra.mxu0 0.0
        %1739 = vmatpush.msra.mxu0 0.0
        %1740 = vmatpush.msra.mxu0 0.0
        %1741 = vmatpush.msra.mxu0 %v1676
        %1742 = vmatmul.f32.gmra.mxu0 %v1724
        %v1743 = vpop.f32.mrf.mxu0
        %v1744 = vadd.f32 0.0, %v1743
        %1745 = vdwg.mxu0
        %v1746 = vld [vmem:[#allocation8 + $0x720] sm:$0x1]
        %v1747 = vld [vmem:[#allocation8 + $0x6a8] sm:$0xff]
        %v1748 = vld [vmem:[#allocation8 + $0x6b0] sm:$0xff]
        %v1749 = vld [vmem:[#allocation8 + $0x6b8] sm:$0xff]
        %v1750 = vld [vmem:[#allocation8 + $0x6c0] sm:$0xff]
        %v1752 = vsel %vm363, %v1696, 0
        %1754 = vmatpush.msra.mxu0 0.0
        %1755 = vmatpush.msra.mxu0 0.0
        %1756 = vmatpush.msra.mxu0 0.0
        %1757 = vmatpush.msra.mxu0 0.0
        %1758 = vmatpush.msra.mxu0 0.0
        %1759 = vmatpush.msra.mxu0 0.0
        %1760 = vmatpush.msra.mxu0 0.0
        %1761 = vmatpush.msra.mxu0 0.0
        %1762 = vmatpush.msra.mxu0 0.0
        %1763 = vmatpush.msra.mxu0 0.0
        %1764 = vmatpush.msra.mxu0 0.0
        %1765 = vmatpush.msra.mxu0 0.0
        %1766 = vmatpush.msra.mxu0 %v1750
        %1767 = vmatpush.msra.mxu0 %v1749
        %1768 = vmatpush.msra.mxu0 %v1748
        %1769 = vmatpush.msra.mxu0 %v1747
        %1770 = vmatmul.f32.gmra.mxu0 %v1752
        %v1771 = vpop.f32.mrf.mxu0
        %v1772 = vadd.f32 0.0, %v1771
        %1773 = vdwg.mxu0
        %v1774 = vperm.slane %v1746, 0
        %v1775 = vadd.f32 %v1774, %v1772
        %v1776 = vld [vmem:[#allocation8 + $0x6c8] sm:$0xff]
        %v1777 = vld [vmem:[#allocation8 + $0x6d0] sm:$0xff]
        %v1778 = vld [vmem:[#allocation8 + $0x6d8] sm:$0xff]
        %v1779 = vld [vmem:[#allocation8 + $0x6e0] sm:$0xff]
        %v1781 = vsel %vm363, %v1720, 0
        %1783 = vmatpush.msra.mxu0 0.0
        %1784 = vmatpush.msra.mxu0 0.0
        %1785 = vmatpush.msra.mxu0 0.0
        %1786 = vmatpush.msra.mxu0 0.0
        %1787 = vmatpush.msra.mxu0 0.0
        %1788 = vmatpush.msra.mxu0 0.0
        %1789 = vmatpush.msra.mxu0 0.0
        %1790 = vmatpush.msra.mxu0 0.0
        %1791 = vmatpush.msra.mxu0 0.0
        %1792 = vmatpush.msra.mxu0 0.0
        %1793 = vmatpush.msra.mxu0 0.0
        %1794 = vmatpush.msra.mxu0 0.0
        %1795 = vmatpush.msra.mxu0 %v1779
        %1796 = vmatpush.msra.mxu0 %v1778
        %1797 = vmatpush.msra.mxu0 %v1777
        %1798 = vmatpush.msra.mxu0 %v1776
        %1799 = vmatmul.f32.gmra.mxu0 %v1781
        %v1800 = vpop.f32.mrf.mxu0
        %v1801 = vadd.f32 0.0, %v1800
        %1802 = vdwg.mxu0
        %v1803 = vadd.f32 %v1775, %v1801
        %v1804 = vld [vmem:[#allocation8 + $0x6e8] sm:$0xff]
        %v1805 = vld [vmem:[#allocation8 + $0x6f0] sm:$0xff]
        %v1806 = vld [vmem:[#allocation8 + $0x6f8] sm:$0xff]
        %v1807 = vld [vmem:[#allocation8 + $0x700] sm:$0xff]
        %v1809 = vsel %vm363, %v1744, 0
        %1811 = vmatpush.msra.mxu0 0.0
        %1812 = vmatpush.msra.mxu0 0.0
        %1813 = vmatpush.msra.mxu0 0.0
        %1814 = vmatpush.msra.mxu0 0.0
        %1815 = vmatpush.msra.mxu0 0.0
        %1816 = vmatpush.msra.mxu0 0.0
        %1817 = vmatpush.msra.mxu0 0.0
        %1818 = vmatpush.msra.mxu0 0.0
        %1819 = vmatpush.msra.mxu0 0.0
        %1820 = vmatpush.msra.mxu0 0.0
        %1821 = vmatpush.msra.mxu0 0.0
        %1822 = vmatpush.msra.mxu0 0.0
        %1823 = vmatpush.msra.mxu0 %v1807
        %1824 = vmatpush.msra.mxu0 %v1806
        %1825 = vmatpush.msra.mxu0 %v1805
        %1826 = vmatpush.msra.mxu0 %v1804
        %1827 = vmatmul.f32.gmra.mxu0 %v1809
        %v1828 = vpop.f32.mrf.mxu0
        %v1829 = vadd.f32 0.0, %v1828
        %1830 = vdwg.mxu0
        %v1831 = vadd.f32 %v1803, %v1829
        %v1832 = vld [vmem:[#allocation8 + $0xad0] sm:$0xff]
        %v1834 = vsel %vm1018, %v1832, 0
        %v1837 = vsel %vm1022, %v1831, 0
        %1839 = vmatpush.msra.mxu0 0.0
        %1840 = vmatpush.msra.mxu0 0.0
        %1841 = vmatpush.msra.mxu0 0.0
        %1842 = vmatpush.msra.mxu0 0.0
        %1843 = vmatpush.msra.mxu0 0.0
        %1844 = vmatpush.msra.mxu0 0.0
        %1845 = vmatpush.msra.mxu0 0.0
        %1846 = vmatpush.msra.mxu0 0.0
        %1847 = vmatpush.msra.mxu0 0.0
        %1848 = vmatpush.msra.mxu0 0.0
        %1849 = vmatpush.msra.mxu0 0.0
        %1850 = vmatpush.msra.mxu0 0.0
        %1851 = vmatpush.msra.mxu0 0.0
        %1852 = vmatpush.msra.mxu0 0.0
        %1853 = vmatpush.msra.mxu0 0.0
        %1854 = vmatpush.msra.mxu0 %v1837
        %1855 = vmatmul.f32.gmra.mxu0 %v1834
        %v1856 = vpop.f32.mrf.mxu0
        %v1857 = vadd.f32 0.0, %v1856
        %1858 = vdwg.mxu0
        %v1859 = vld [vmem:[#allocation8 + $0xab0] sm:$0xff]
        %v1860 = vld [vmem:[#allocation8 + $0xab8] sm:$0xff]
        %v1861 = vld [vmem:[#allocation8 + $0xac0] sm:$0xff]
        %v1862 = vld [vmem:[#allocation8 + $0xac8] sm:$0xff]
        %v1864 = vsel %vm363, %v1857, 0
        %1866 = vmatpush.msra.mxu0 0.0
        %1867 = vmatpush.msra.mxu0 0.0
        %1868 = vmatpush.msra.mxu0 0.0
        %1869 = vmatpush.msra.mxu0 0.0
        %1870 = vmatpush.msra.mxu0 0.0
        %1871 = vmatpush.msra.mxu0 0.0
        %1872 = vmatpush.msra.mxu0 0.0
        %1873 = vmatpush.msra.mxu0 0.0
        %1874 = vmatpush.msra.mxu0 0.0
        %1875 = vmatpush.msra.mxu0 0.0
        %1876 = vmatpush.msra.mxu0 0.0
        %1877 = vmatpush.msra.mxu0 0.0
        %1878 = vmatpush.msra.mxu0 %v1862
        %1879 = vmatpush.msra.mxu0 %v1861
        %1880 = vmatpush.msra.mxu0 %v1860
        %1881 = vmatpush.msra.mxu0 %v1859
        %1882 = vmatmul.f32.gmra.mxu0 %v1864
        %v1883 = vpop.f32.mrf.mxu0
        %v1884 = vadd.f32 0.0, %v1883
        %1885 = vdwg.mxu0
        %v1886 = vadd.f32 %v1073, %v1884
        %v1887 = vld [vmem:[#allocation8 + $0x7e8] sm:$0xff]
        %v1889 = vsel %vm763, %v1887, 0
        %1891 = vmatpush.msra.mxu0 0.0
        %1892 = vmatpush.msra.mxu0 0.0
        %1893 = vmatpush.msra.mxu0 0.0
        %1894 = vmatpush.msra.mxu0 0.0
        %1895 = vmatpush.msra.mxu0 0.0
        %1896 = vmatpush.msra.mxu0 0.0
        %1897 = vmatpush.msra.mxu0 0.0
        %1898 = vmatpush.msra.mxu0 0.0
        %1899 = vmatpush.msra.mxu0 0.0
        %1900 = vmatpush.msra.mxu0 0.0
        %1901 = vmatpush.msra.mxu0 0.0
        %1902 = vmatpush.msra.mxu0 0.0
        %1903 = vmatpush.msra.mxu0 0.0
        %1904 = vmatpush.msra.mxu0 0.0
        %1905 = vmatpush.msra.mxu0 0.0
        %1906 = vmatpush.msra.mxu0 %v1886
        %1907 = vmatmul.f32.gmra.mxu0 %v1889
        %v1908 = vpop.f32.mrf.mxu0
        %v1909 = vadd.f32 0.0, %v1908
        %1910 = vdwg.mxu0
        %v1911 = vld [vmem:[#allocation8 + $0x7f0] sm:$0xff]
        %v1913 = vsel %vm763, %v1911, 0
        %1915 = vmatpush.msra.mxu0 0.0
        %1916 = vmatpush.msra.mxu0 0.0
        %1917 = vmatpush.msra.mxu0 0.0
        %1918 = vmatpush.msra.mxu0 0.0
        %1919 = vmatpush.msra.mxu0 0.0
        %1920 = vmatpush.msra.mxu0 0.0
        %1921 = vmatpush.msra.mxu0 0.0
        %1922 = vmatpush.msra.mxu0 0.0
        %1923 = vmatpush.msra.mxu0 0.0
        %1924 = vmatpush.msra.mxu0 0.0
        %1925 = vmatpush.msra.mxu0 0.0
        %1926 = vmatpush.msra.mxu0 0.0
        %1927 = vmatpush.msra.mxu0 0.0
        %1928 = vmatpush.msra.mxu0 0.0
        %1929 = vmatpush.msra.mxu0 0.0
        %1930 = vmatpush.msra.mxu0 %v1886
        %1931 = vmatmul.f32.gmra.mxu0 %v1913
        %v1932 = vpop.f32.mrf.mxu0
        %v1933 = vadd.f32 0.0, %v1932
        %1934 = vdwg.mxu0
        %v1935 = vld [vmem:[#allocation8 + $0x7f8] sm:$0xff]
        %v1937 = vsel %vm763, %v1935, 0
        %1939 = vmatpush.msra.mxu0 0.0
        %1940 = vmatpush.msra.mxu0 0.0
        %1941 = vmatpush.msra.mxu0 0.0
        %1942 = vmatpush.msra.mxu0 0.0
        %1943 = vmatpush.msra.mxu0 0.0
        %1944 = vmatpush.msra.mxu0 0.0
        %1945 = vmatpush.msra.mxu0 0.0
        %1946 = vmatpush.msra.mxu0 0.0
        %1947 = vmatpush.msra.mxu0 0.0
        %1948 = vmatpush.msra.mxu0 0.0
        %1949 = vmatpush.msra.mxu0 0.0
        %1950 = vmatpush.msra.mxu0 0.0
        %1951 = vmatpush.msra.mxu0 0.0
        %1952 = vmatpush.msra.mxu0 0.0
        %1953 = vmatpush.msra.mxu0 0.0
        %1954 = vmatpush.msra.mxu0 %v1886
        %1955 = vmatmul.f32.gmra.mxu0 %v1937
        %v1956 = vpop.f32.mrf.mxu0
        %v1957 = vadd.f32 0.0, %v1956
        %1958 = vdwg.mxu0
        %v1959 = vld [vmem:[#allocation8 + $0x800] sm:$0x1]
        %v1960 = vld [vmem:[#allocation8 + $0x728] sm:$0xff]
        %v1961 = vld [vmem:[#allocation8 + $0x730] sm:$0xff]
        %v1962 = vld [vmem:[#allocation8 + $0x738] sm:$0xff]
        %v1963 = vld [vmem:[#allocation8 + $0x740] sm:$0xff]
        %v1964 = vld [vmem:[#allocation8 + $0x748] sm:$0xff]
        %v1965 = vld [vmem:[#allocation8 + $0x750] sm:$0xff]
        %v1966 = vld [vmem:[#allocation8 + $0x758] sm:$0xff]
        %v1967 = vld [vmem:[#allocation8 + $0x760] sm:$0xff]
        %v1969 = vsel %vm801, %v1909, 0
        %1971 = vmatpush.msra.mxu0 0.0
        %1972 = vmatpush.msra.mxu0 0.0
        %1973 = vmatpush.msra.mxu0 0.0
        %1974 = vmatpush.msra.mxu0 0.0
        %1975 = vmatpush.msra.mxu0 0.0
        %1976 = vmatpush.msra.mxu0 0.0
        %1977 = vmatpush.msra.mxu0 0.0
        %1978 = vmatpush.msra.mxu0 0.0
        %1979 = vmatpush.msra.mxu0 %v1967
        %1980 = vmatpush.msra.mxu0 %v1966
        %1981 = vmatpush.msra.mxu0 %v1965
        %1982 = vmatpush.msra.mxu0 %v1964
        %1983 = vmatpush.msra.mxu0 %v1963
        %1984 = vmatpush.msra.mxu0 %v1962
        %1985 = vmatpush.msra.mxu0 %v1961
        %1986 = vmatpush.msra.mxu0 %v1960
        %1987 = vmatmul.f32.gmra.mxu0 %v1969
        %v1988 = vpop.f32.mrf.mxu0
        %v1989 = vadd.f32 0.0, %v1988
        %1990 = vdwg.mxu0
        %v1991 = vperm.slane %v1959, 0
        %v1992 = vadd.f32 %v1991, %v1989
        %v1993 = vld [vmem:[#allocation8 + $0x768] sm:$0xff]
        %v1994 = vld [vmem:[#allocation8 + $0x770] sm:$0xff]
        %v1995 = vld [vmem:[#allocation8 + $0x778] sm:$0xff]
        %v1996 = vld [vmem:[#allocation8 + $0x780] sm:$0xff]
        %v1997 = vld [vmem:[#allocation8 + $0x788] sm:$0xff]
        %v1998 = vld [vmem:[#allocation8 + $0x790] sm:$0xff]
        %v1999 = vld [vmem:[#allocation8 + $0x798] sm:$0xff]
        %v2000 = vld [vmem:[#allocation8 + $0x7a0] sm:$0xff]
        %v2002 = vsel %vm801, %v1933, 0
        %2004 = vmatpush.msra.mxu0 0.0
        %2005 = vmatpush.msra.mxu0 0.0
        %2006 = vmatpush.msra.mxu0 0.0
        %2007 = vmatpush.msra.mxu0 0.0
        %2008 = vmatpush.msra.mxu0 0.0
        %2009 = vmatpush.msra.mxu0 0.0
        %2010 = vmatpush.msra.mxu0 0.0
        %2011 = vmatpush.msra.mxu0 0.0
        %2012 = vmatpush.msra.mxu0 %v2000
        %2013 = vmatpush.msra.mxu0 %v1999
        %2014 = vmatpush.msra.mxu0 %v1998
        %2015 = vmatpush.msra.mxu0 %v1997
        %2016 = vmatpush.msra.mxu0 %v1996
        %2017 = vmatpush.msra.mxu0 %v1995
        %2018 = vmatpush.msra.mxu0 %v1994
        %2019 = vmatpush.msra.mxu0 %v1993
        %2020 = vmatmul.f32.gmra.mxu0 %v2002
        %v2021 = vpop.f32.mrf.mxu0
        %v2022 = vadd.f32 0.0, %v2021
        %2023 = vdwg.mxu0
        %v2024 = vadd.f32 %v1992, %v2022
        %v2025 = vld [vmem:[#allocation8 + $0x7a8] sm:$0xff]
        %v2026 = vld [vmem:[#allocation8 + $0x7b0] sm:$0xff]
        %v2027 = vld [vmem:[#allocation8 + $0x7b8] sm:$0xff]
        %v2028 = vld [vmem:[#allocation8 + $0x7c0] sm:$0xff]
        %v2029 = vld [vmem:[#allocation8 + $0x7c8] sm:$0xff]
        %v2030 = vld [vmem:[#allocation8 + $0x7d0] sm:$0xff]
        %v2031 = vld [vmem:[#allocation8 + $0x7d8] sm:$0xff]
        %v2032 = vld [vmem:[#allocation8 + $0x7e0] sm:$0xff]
        %v2034 = vsel %vm801, %v1957, 0
        %2036 = vmatpush.msra.mxu0 0.0
        %2037 = vmatpush.msra.mxu0 0.0
        %2038 = vmatpush.msra.mxu0 0.0
        %2039 = vmatpush.msra.mxu0 0.0
        %2040 = vmatpush.msra.mxu0 0.0
        %2041 = vmatpush.msra.mxu0 0.0
        %2042 = vmatpush.msra.mxu0 0.0
        %2043 = vmatpush.msra.mxu0 0.0
        %2044 = vmatpush.msra.mxu0 %v2032
        %2045 = vmatpush.msra.mxu0 %v2031
        %2046 = vmatpush.msra.mxu0 %v2030
        %2047 = vmatpush.msra.mxu0 %v2029
        %2048 = vmatpush.msra.mxu0 %v2028
        %2049 = vmatpush.msra.mxu0 %v2027
        %2050 = vmatpush.msra.mxu0 %v2026
        %2051 = vmatpush.msra.mxu0 %v2025
        %2052 = vmatmul.f32.gmra.mxu0 %v2034
        %v2053 = vpop.f32.mrf.mxu0
        %v2054 = vadd.f32 0.0, %v2053
        %2055 = vdwg.mxu0
        %v2056 = vadd.f32 %v2024, %v2054
        %v2057 = vld [vmem:[#allocation8 + $0xb18] sm:$0xff]
        %v2058 = vld [vmem:[#allocation8 + $0xb20] sm:$0xff]
        %v2060 = vsel %vm763, %v2057, 0
        %v2063 = vsel %vm763, %v2058, 0
        %2065 = vmatpush.msra.mxu0 0.0
        %2066 = vmatpush.msra.mxu0 0.0
        %2067 = vmatpush.msra.mxu0 0.0
        %2068 = vmatpush.msra.mxu0 0.0
        %2069 = vmatpush.msra.mxu0 0.0
        %2070 = vmatpush.msra.mxu0 0.0
        %2071 = vmatpush.msra.mxu0 0.0
        %2072 = vmatpush.msra.mxu0 0.0
        %2073 = vmatpush.msra.mxu0 0.0
        %2074 = vmatpush.msra.mxu0 0.0
        %2075 = vmatpush.msra.mxu0 0.0
        %2076 = vmatpush.msra.mxu0 0.0
        %2077 = vmatpush.msra.mxu0 0.0
        %2078 = vmatpush.msra.mxu0 0.0
        %2079 = vmatpush.msra.mxu0 0.0
        %2080 = vmatpush.msra.mxu0 %v2056
        %2081 = vmatmul.f32.gmra.mxu0 %v2060
        %v2082 = vpop.f32.mrf.mxu0
        %v2083 = vadd.f32 0.0, %v2082
        %2084 = vmatmul.f32.gmra.mxu0 %v2063
        %v2085 = vpop.f32.mrf.mxu0
        %v2086 = vadd.f32 0.0, %v2085
        %2087 = vdwg.mxu0
        %v2088 = vld [vmem:[#allocation8 + $0xad8] sm:$0xff]
        %v2089 = vld [vmem:[#allocation8 + $0xae0] sm:$0xff]
        %v2090 = vld [vmem:[#allocation8 + $0xae8] sm:$0xff]
        %v2091 = vld [vmem:[#allocation8 + $0xaf0] sm:$0xff]
        %v2092 = vld [vmem:[#allocation8 + $0xaf8] sm:$0xff]
        %v2093 = vld [vmem:[#allocation8 + $0xb00] sm:$0xff]
        %v2094 = vld [vmem:[#allocation8 + $0xb08] sm:$0xff]
        %v2095 = vld [vmem:[#allocation8 + $0xb10] sm:$0xff]
        %v2097 = vsel %vm801, %v2083, 0
        %v2100 = vsel %vm801, %v2086, 0
        %2102 = vmatpush.msra.mxu0 0.0
        %2103 = vmatpush.msra.mxu0 0.0
        %2104 = vmatpush.msra.mxu0 0.0
        %2105 = vmatpush.msra.mxu0 0.0
        %2106 = vmatpush.msra.mxu0 0.0
        %2107 = vmatpush.msra.mxu0 0.0
        %2108 = vmatpush.msra.mxu0 0.0
        %2109 = vmatpush.msra.mxu0 0.0
        %2110 = vmatpush.msra.mxu0 %v2095
        %2111 = vmatpush.msra.mxu0 %v2094
        %2112 = vmatpush.msra.mxu0 %v2093
        %2113 = vmatpush.msra.mxu0 %v2092
        %2114 = vmatpush.msra.mxu0 %v2091
        %2115 = vmatpush.msra.mxu0 %v2090
        %2116 = vmatpush.msra.mxu0 %v2089
        %2117 = vmatpush.msra.mxu0 %v2088
        %2118 = vmatmul.f32.gmra.mxu0 %v2097
        %v2119 = vpop.f32.mrf.mxu0
        %v2120 = vadd.f32 0.0, %v2119
        %2121 = vmatmul.f32.gmra.mxu0 %v2100
        %v2122 = vpop.f32.mrf.mxu0
        %v2123 = vadd.f32 0.0, %v2122
        %2124 = vdwg.mxu0
        %v2125 = vadd.f32 %v831, %v2120
        %v2126 = vadd.f32 %v832, %v2123
        %v2127 = vld [vmem:[#allocation8 + $0x988] sm:$0xff]
        %v2128 = vld [vmem:[#allocation8 + $0x990] sm:$0xff]
        %v2130 = vsel %vm834, %v2127, 0
        %v2133 = vsel %vm834, %v2128, 0
        %2135 = vmatpush.msra.mxu0 0.0
        %2136 = vmatpush.msra.mxu0 0.0
        %2137 = vmatpush.msra.mxu0 0.0
        %2138 = vmatpush.msra.mxu0 0.0
        %2139 = vmatpush.msra.mxu0 0.0
        %2140 = vmatpush.msra.mxu0 0.0
        %2141 = vmatpush.msra.mxu0 0.0
        %2142 = vmatpush.msra.mxu0 0.0
        %2143 = vmatpush.msra.mxu0 0.0
        %2144 = vmatpush.msra.mxu0 0.0
        %2145 = vmatpush.msra.mxu0 0.0
        %2146 = vmatpush.msra.mxu0 0.0
        %2147 = vmatpush.msra.mxu0 0.0
        %2148 = vmatpush.msra.mxu0 0.0
        %2149 = vmatpush.msra.mxu0 %v2126
        %2150 = vmatpush.msra.mxu0 %v2125
        %2151 = vmatmul.f32.gmra.mxu0 %v2130
        %v2152 = vpop.f32.mrf.mxu0
        %v2153 = vadd.f32 0.0, %v2152
        %2154 = vmatmul.f32.gmra.mxu0 %v2133
        %v2155 = vpop.f32.mrf.mxu0
        %v2156 = vadd.f32 0.0, %v2155
        %2157 = vdwg.mxu0
        %v2158 = vld [vmem:[#allocation8 + $0x998] sm:$0xff]
        %v2159 = vld [vmem:[#allocation8 + $0x9a0] sm:$0xff]
        %v2161 = vsel %vm834, %v2158, 0
        %v2164 = vsel %vm834, %v2159, 0
        %2166 = vmatpush.msra.mxu0 0.0
        %2167 = vmatpush.msra.mxu0 0.0
        %2168 = vmatpush.msra.mxu0 0.0
        %2169 = vmatpush.msra.mxu0 0.0
        %2170 = vmatpush.msra.mxu0 0.0
        %2171 = vmatpush.msra.mxu0 0.0
        %2172 = vmatpush.msra.mxu0 0.0
        %2173 = vmatpush.msra.mxu0 0.0
        %2174 = vmatpush.msra.mxu0 0.0
        %2175 = vmatpush.msra.mxu0 0.0
        %2176 = vmatpush.msra.mxu0 0.0
        %2177 = vmatpush.msra.mxu0 0.0
        %2178 = vmatpush.msra.mxu0 0.0
        %2179 = vmatpush.msra.mxu0 0.0
        %2180 = vmatpush.msra.mxu0 %v2126
        %2181 = vmatpush.msra.mxu0 %v2125
        %2182 = vmatmul.f32.gmra.mxu0 %v2161
        %v2183 = vpop.f32.mrf.mxu0
        %v2184 = vadd.f32 0.0, %v2183
        %2185 = vmatmul.f32.gmra.mxu0 %v2164
        %v2186 = vpop.f32.mrf.mxu0
        %v2187 = vadd.f32 0.0, %v2186
        %2188 = vdwg.mxu0
        %v2189 = vld [vmem:[#allocation8 + $0x9a8] sm:$0xff]
        %v2190 = vld [vmem:[#allocation8 + $0x9b0] sm:$0xff]
        %v2192 = vsel %vm834, %v2189, 0
        %v2195 = vsel %vm834, %v2190, 0
        %2197 = vmatpush.msra.mxu0 0.0
        %2198 = vmatpush.msra.mxu0 0.0
        %2199 = vmatpush.msra.mxu0 0.0
        %2200 = vmatpush.msra.mxu0 0.0
        %2201 = vmatpush.msra.mxu0 0.0
        %2202 = vmatpush.msra.mxu0 0.0
        %2203 = vmatpush.msra.mxu0 0.0
        %2204 = vmatpush.msra.mxu0 0.0
        %2205 = vmatpush.msra.mxu0 0.0
        %2206 = vmatpush.msra.mxu0 0.0
        %2207 = vmatpush.msra.mxu0 0.0
        %2208 = vmatpush.msra.mxu0 0.0
        %2209 = vmatpush.msra.mxu0 0.0
        %2210 = vmatpush.msra.mxu0 0.0
        %2211 = vmatpush.msra.mxu0 %v2126
        %2212 = vmatpush.msra.mxu0 %v2125
        %2213 = vmatmul.f32.gmra.mxu0 %v2192
        %v2214 = vpop.f32.mrf.mxu0
        %v2215 = vadd.f32 0.0, %v2214
        %2216 = vmatmul.f32.gmra.mxu0 %v2195
        %v2217 = vpop.f32.mrf.mxu0
        %v2218 = vadd.f32 0.0, %v2217
        %2219 = vdwg.mxu0
        %v2220 = vld [vmem:[#allocation8 + $0x9b8] sm:$0x1]
        %v2221 = vld [vmem:[#allocation8 + $0x808] sm:$0xff]
        %v2222 = vld [vmem:[#allocation8 + $0x810] sm:$0xff]
        %v2223 = vld [vmem:[#allocation8 + $0x818] sm:$0xff]
        %v2224 = vld [vmem:[#allocation8 + $0x820] sm:$0xff]
        %v2225 = vld [vmem:[#allocation8 + $0x828] sm:$0xff]
        %v2226 = vld [vmem:[#allocation8 + $0x830] sm:$0xff]
        %v2227 = vld [vmem:[#allocation8 + $0x838] sm:$0xff]
        %v2228 = vld [vmem:[#allocation8 + $0x840] sm:$0xff]
        %v2229 = vld [vmem:[#allocation8 + $0x848] sm:$0xff]
        %v2230 = vld [vmem:[#allocation8 + $0x850] sm:$0xff]
        %v2231 = vld [vmem:[#allocation8 + $0x858] sm:$0xff]
        %v2232 = vld [vmem:[#allocation8 + $0x860] sm:$0xff]
        %v2233 = vld [vmem:[#allocation8 + $0x868] sm:$0xff]
        %v2234 = vld [vmem:[#allocation8 + $0x870] sm:$0xff]
        %v2235 = vld [vmem:[#allocation8 + $0x878] sm:$0xff]
        %v2236 = vld [vmem:[#allocation8 + $0x880] sm:$0xff]
        %v2237 = vld [vmem:[#allocation8 + $0x888] sm:$0xff]
        %v2238 = vld [vmem:[#allocation8 + $0x890] sm:$0xff]
        %v2239 = vld [vmem:[#allocation8 + $0x898] sm:$0xff]
        %v2240 = vld [vmem:[#allocation8 + $0x8a0] sm:$0xff]
        %v2241 = vld [vmem:[#allocation8 + $0x8a8] sm:$0xff]
        %v2242 = vld [vmem:[#allocation8 + $0x8b0] sm:$0xff]
        %v2243 = vld [vmem:[#allocation8 + $0x8b8] sm:$0xff]
        %v2244 = vld [vmem:[#allocation8 + $0x8c0] sm:$0xff]
        %v2245 = vld [vmem:[#allocation8 + $0x8c8] sm:$0xff]
        %v2246 = vld [vmem:[#allocation8 + $0x8d0] sm:$0xff]
        %v2247 = vld [vmem:[#allocation8 + $0x8d8] sm:$0xff]
        %v2248 = vld [vmem:[#allocation8 + $0x8e0] sm:$0xff]
        %v2249 = vld [vmem:[#allocation8 + $0x8e8] sm:$0xff]
        %v2250 = vld [vmem:[#allocation8 + $0x8f0] sm:$0xff]
        %v2251 = vld [vmem:[#allocation8 + $0x8f8] sm:$0xff]
        %v2252 = vld [vmem:[#allocation8 + $0x900] sm:$0xff]
        %v2253 = vld [vmem:[#allocation8 + $0x908] sm:$0xff]
        %v2254 = vld [vmem:[#allocation8 + $0x910] sm:$0xff]
        %v2255 = vld [vmem:[#allocation8 + $0x918] sm:$0xff]
        %v2256 = vld [vmem:[#allocation8 + $0x920] sm:$0xff]
        %v2257 = vld [vmem:[#allocation8 + $0x928] sm:$0xff]
        %v2258 = vld [vmem:[#allocation8 + $0x930] sm:$0xff]
        %v2259 = vld [vmem:[#allocation8 + $0x938] sm:$0xff]
        %v2260 = vld [vmem:[#allocation8 + $0x940] sm:$0xff]
        %v2261 = vld [vmem:[#allocation8 + $0x948] sm:$0xff]
        %v2262 = vld [vmem:[#allocation8 + $0x950] sm:$0xff]
        %v2263 = vld [vmem:[#allocation8 + $0x958] sm:$0xff]
        %v2264 = vld [vmem:[#allocation8 + $0x960] sm:$0xff]
        %v2265 = vld [vmem:[#allocation8 + $0x968] sm:$0xff]
        %v2266 = vld [vmem:[#allocation8 + $0x970] sm:$0xff]
        %v2267 = vld [vmem:[#allocation8 + $0x978] sm:$0xff]
        %v2268 = vld [vmem:[#allocation8 + $0x980] sm:$0xff]
        %v2269 = vperm.slane %v2220, 0
        %2270 = vmatpush.msra.mxu0 %v2236
        %2271 = vmatpush.msra.mxu0 %v2235
        %2272 = vmatpush.msra.mxu0 %v2234
        %2273 = vmatpush.msra.mxu0 %v2233
        %2274 = vmatpush.msra.mxu0 %v2232
        %2275 = vmatpush.msra.mxu0 %v2231
        %2276 = vmatpush.msra.mxu0 %v2230
        %2277 = vmatpush.msra.mxu0 %v2229
        %2278 = vmatpush.msra.mxu0 %v2228
        %2279 = vmatpush.msra.mxu0 %v2227
        %2280 = vmatpush.msra.mxu0 %v2226
        %2281 = vmatpush.msra.mxu0 %v2225
        %2282 = vmatpush.msra.mxu0 %v2224
        %2283 = vmatpush.msra.mxu0 %v2223
        %2284 = vmatpush.msra.mxu0 %v2222
        %2285 = vmatpush.msra.mxu0 %v2221
        %2286 = vmatmul.f32.gmra.mxu0 %v2153
        %v2287 = vpop.f32.mrf.mxu0
        %v2288 = vadd.f32 %v2269, %v2287
        %2289 = vmatmul.f32.gmra.mxu0 %v2156
        %v2290 = vpop.f32.mrf.mxu0
        %v2291 = vadd.f32 %v2269, %v2290
        %2292 = vdwg.mxu0
        %2293 = vmatpush.msra.mxu0 %v2252
        %2294 = vmatpush.msra.mxu0 %v2251
        %2295 = vmatpush.msra.mxu0 %v2250
        %2296 = vmatpush.msra.mxu0 %v2249
        %2297 = vmatpush.msra.mxu0 %v2248
        %2298 = vmatpush.msra.mxu0 %v2247
        %2299 = vmatpush.msra.mxu0 %v2246
        %2300 = vmatpush.msra.mxu0 %v2245
        %2301 = vmatpush.msra.mxu0 %v2244
        %2302 = vmatpush.msra.mxu0 %v2243
        %2303 = vmatpush.msra.mxu0 %v2242
        %2304 = vmatpush.msra.mxu0 %v2241
        %2305 = vmatpush.msra.mxu0 %v2240
        %2306 = vmatpush.msra.mxu0 %v2239
        %2307 = vmatpush.msra.mxu0 %v2238
        %2308 = vmatpush.msra.mxu0 %v2237
        %2309 = vmatmul.f32.gmra.mxu0 %v2184
        %v2310 = vpop.f32.mrf.mxu0
        %v2311 = vadd.f32 %v2288, %v2310
        %2312 = vmatmul.f32.gmra.mxu0 %v2187
        %v2313 = vpop.f32.mrf.mxu0
        %v2314 = vadd.f32 %v2291, %v2313
        %2315 = vdwg.mxu0
        %2316 = vmatpush.msra.mxu0 %v2268
        %2317 = vmatpush.msra.mxu0 %v2267
        %2318 = vmatpush.msra.mxu0 %v2266
        %2319 = vmatpush.msra.mxu0 %v2265
        %2320 = vmatpush.msra.mxu0 %v2264
        %2321 = vmatpush.msra.mxu0 %v2263
        %2322 = vmatpush.msra.mxu0 %v2262
        %2323 = vmatpush.msra.mxu0 %v2261
        %2324 = vmatpush.msra.mxu0 %v2260
        %2325 = vmatpush.msra.mxu0 %v2259
        %2326 = vmatpush.msra.mxu0 %v2258
        %2327 = vmatpush.msra.mxu0 %v2257
        %2328 = vmatpush.msra.mxu0 %v2256
        %2329 = vmatpush.msra.mxu0 %v2255
        %2330 = vmatpush.msra.mxu0 %v2254
        %2331 = vmatpush.msra.mxu0 %v2253
        %2332 = vmatmul.f32.gmra.mxu0 %v2215
        %v2333 = vpop.f32.mrf.mxu0
        %v2334 = vadd.f32 %v2311, %v2333
        %2335 = vmatmul.f32.gmra.mxu0 %v2218
        %v2336 = vpop.f32.mrf.mxu0
        %v2337 = vadd.f32 %v2314, %v2336
        %2338 = vdwg.mxu0
        %v2339 = vld [vmem:[#allocation8 + $0xb28] sm:$0xff]
        %v2340 = vld [vmem:[#allocation8 + $0xb30] sm:$0xff]
        %v2341 = vld [vmem:[#allocation8 + $0xb38] sm:$0xff]
        %v2342 = vld [vmem:[#allocation8 + $0xb40] sm:$0xff]
        %v2344 = vsel %vm834, %v2339, 0
        %v2347 = vsel %vm834, %v2340, 0
        %v2350 = vsel %vm834, %v2341, 0
        %v2353 = vsel %vm834, %v2342, 0
        %2355 = vmatpush.msra.mxu0 0.0
        %2356 = vmatpush.msra.mxu0 0.0
        %2357 = vmatpush.msra.mxu0 0.0
        %2358 = vmatpush.msra.mxu0 0.0
        %2359 = vmatpush.msra.mxu0 0.0
        %2360 = vmatpush.msra.mxu0 0.0
        %2361 = vmatpush.msra.mxu0 0.0
        %2362 = vmatpush.msra.mxu0 0.0
        %2363 = vmatpush.msra.mxu0 0.0
        %2364 = vmatpush.msra.mxu0 0.0
        %2365 = vmatpush.msra.mxu0 0.0
        %2366 = vmatpush.msra.mxu0 0.0
        %2367 = vmatpush.msra.mxu0 0.0
        %2368 = vmatpush.msra.mxu0 0.0
        %2369 = vmatpush.msra.mxu0 %v2337
        %2370 = vmatpush.msra.mxu0 %v2334
        %2371 = vmatmul.f32.gmra.mxu0 %v2344
        %v2372 = vpop.f32.mrf.mxu0
        %v2373 = vadd.f32 0.0, %v2372
        %2374 = vmatmul.f32.gmra.mxu0 %v2347
        %v2375 = vpop.f32.mrf.mxu0
        %v2376 = vadd.f32 0.0, %v2375
        %2377 = vmatmul.f32.gmra.mxu0 %v2350
        %v2378 = vpop.f32.mrf.mxu0
        %v2379 = vadd.f32 0.0, %v2378
        %2380 = vmatmul.f32.gmra.mxu0 %v2353
        %v2381 = vpop.f32.mrf.mxu0
        %v2382 = vadd.f32 0.0, %v2381
        %2383 = vdwg.mxu0
        %v2384 = vld [vmem:[#allocation10 + $0x610] sm:$0xff]
        %v2385 = vld [vmem:[#allocation10 + $0x618] sm:$0xff]
        %v2386 = vld [vmem:[#allocation10 + $0x620] sm:$0xff]
        %v2387 = vld [vmem:[#allocation10 + $0x628] sm:$0xff]
        %v2388 = vld [vmem:[#allocation10 + $0x630] sm:$0xff]
        %v2389 = vld [vmem:[#allocation10 + $0x638] sm:$0xff]
        %v2390 = vld [vmem:[#allocation10 + $0x640] sm:$0xff]
        %v2391 = vld [vmem:[#allocation10 + $0x648] sm:$0xff]
        %v2392 = vld [vmem:[#allocation10 + $0x650] sm:$0xff]
        %v2393 = vld [vmem:[#allocation10 + $0x658] sm:$0xff]
        %v2394 = vld [vmem:[#allocation10 + $0x660] sm:$0xff]
        %v2395 = vld [vmem:[#allocation10 + $0x668] sm:$0xff]
        %v2396 = vld [vmem:[#allocation10 + $0x670] sm:$0xff]
        %v2397 = vld [vmem:[#allocation10 + $0x678] sm:$0xff]
        %v2398 = vld [vmem:[#allocation10 + $0x680] sm:$0xff]
        %v2399 = vld [vmem:[#allocation10 + $0x688] sm:$0xff]
        %v2400 = vld [vmem:[#allocation10 + $0x690] sm:$0xff]
        %v2401 = vld [vmem:[#allocation10 + $0x698] sm:$0xff]
        %v2402 = vld [vmem:[#allocation10 + $0x6a0] sm:$0xff]
        %v2403 = vld [vmem:[#allocation10 + $0x6a8] sm:$0xff]
        %v2404 = vld [vmem:[#allocation10 + $0x6b0] sm:$0xff]
        %v2405 = vld [vmem:[#allocation10 + $0x6b8] sm:$0xff]
        %v2406 = vld [vmem:[#allocation10 + $0x6c0] sm:$0xff]
        %v2407 = vld [vmem:[#allocation10 + $0x6c8] sm:$0xff]
        %v2408 = vld [vmem:[#allocation10 + $0x6d0] sm:$0xff]
        %v2409 = vld [vmem:[#allocation10 + $0x6d8] sm:$0xff]
        %v2410 = vld [vmem:[#allocation10 + $0x6e0] sm:$0xff]
        %v2411 = vld [vmem:[#allocation10 + $0x6e8] sm:$0xff]
        %v2412 = vld [vmem:[#allocation10 + $0x6f0] sm:$0xff]
        %v2413 = vld [vmem:[#allocation10 + $0x6f8] sm:$0xff]
        %v2414 = vld [vmem:[#allocation10 + $0x700] sm:$0xff]
        %v2415 = vld [vmem:[#allocation10 + $0x708] sm:$0xff]
        %2416 = vmatpush.msra.mxu0 %v2414
        %2417 = vmatpush.msra.mxu0 %v2412
        %2418 = vmatpush.msra.mxu0 %v2410
        %2419 = vmatpush.msra.mxu0 %v2408
        %2420 = vmatpush.msra.mxu0 %v2406
        %2421 = vmatpush.msra.mxu0 %v2404
        %2422 = vmatpush.msra.mxu0 %v2402
        %2423 = vmatpush.msra.mxu0 %v2400
        %2424 = vmatpush.msra.mxu0 %v2398
        %2425 = vmatpush.msra.mxu0 %v2396
        %2426 = vmatpush.msra.mxu0 %v2394
        %2427 = vmatpush.msra.mxu0 %v2392
        %2428 = vmatpush.msra.mxu0 %v2390
        %2429 = vmatpush.msra.mxu0 %v2388
        %2430 = vmatpush.msra.mxu0 %v2386
        %2431 = vmatpush.msra.mxu0 %v2384
        %2432 = vmatmul.f32.gmra.mxu0 %v2373
        %v2433 = vpop.f32.mrf.mxu0
        %v2434 = vadd.f32 0.0, %v2433
        %2435 = vmatmul.f32.gmra.mxu0 %v2376
        %v2436 = vpop.f32.mrf.mxu0
        %v2437 = vadd.f32 0.0, %v2436
        %2438 = vmatmul.f32.gmra.mxu0 %v2379
        %v2439 = vpop.f32.mrf.mxu0
        %v2440 = vadd.f32 0.0, %v2439
        %2441 = vmatmul.f32.gmra.mxu0 %v2382
        %v2442 = vpop.f32.mrf.mxu0
        %v2443 = vadd.f32 0.0, %v2442
        %2444 = vdwg.mxu0
        %2445 = vmatpush.msra.mxu0 %v2415
        %2446 = vmatpush.msra.mxu0 %v2413
        %2447 = vmatpush.msra.mxu0 %v2411
        %2448 = vmatpush.msra.mxu0 %v2409
        %2449 = vmatpush.msra.mxu0 %v2407
        %2450 = vmatpush.msra.mxu0 %v2405
        %2451 = vmatpush.msra.mxu0 %v2403
        %2452 = vmatpush.msra.mxu0 %v2401
        %2453 = vmatpush.msra.mxu0 %v2399
        %2454 = vmatpush.msra.mxu0 %v2397
        %2455 = vmatpush.msra.mxu0 %v2395
        %2456 = vmatpush.msra.mxu0 %v2393
        %2457 = vmatpush.msra.mxu0 %v2391
        %2458 = vmatpush.msra.mxu0 %v2389
        %2459 = vmatpush.msra.mxu0 %v2387
        %2460 = vmatpush.msra.mxu0 %v2385
        %2461 = vmatmul.f32.gmra.mxu0 %v2373
        %v2462 = vpop.f32.mrf.mxu0
        %v2463 = vadd.f32 0.0, %v2462
        %2464 = vmatmul.f32.gmra.mxu0 %v2376
        %v2465 = vpop.f32.mrf.mxu0
        %v2466 = vadd.f32 0.0, %v2465
        %2467 = vmatmul.f32.gmra.mxu0 %v2379
        %v2468 = vpop.f32.mrf.mxu0
        %v2469 = vadd.f32 0.0, %v2468
        %2470 = vmatmul.f32.gmra.mxu0 %v2382
        %v2471 = vpop.f32.mrf.mxu0
        %v2472 = vadd.f32 0.0, %v2471
        %2473 = vdwg.mxu0
        %v2474 = vadd.f32 %v353, %v2434
        %v2475 = vadd.f32 %v354, %v2463
        %v2476 = vadd.f32 %v355, %v2437
        %v2477 = vadd.f32 %v356, %v2466
        %v2478 = vadd.f32 %v357, %v2440
        %v2479 = vadd.f32 %v358, %v2469
        %v2480 = vadd.f32 %v359, %v2443
        %v2481 = vadd.f32 %v360, %v2472
        %v2482 = vmax.f32 %v2474, 0.0
        %v2483 = vmax.f32 %v2475, 0.0
        %v2484 = vmax.f32 %v2476, 0.0
        %v2485 = vmax.f32 %v2477, 0.0
        %v2486 = vmax.f32 %v2478, 0.0
        %v2487 = vmax.f32 %v2479, 0.0
        %v2488 = vmax.f32 %v2480, 0.0
        %v2489 = vmax.f32 %v2481, 0.0
        %v2490 = vld [vmem:[#allocation8 + $0x9c0] sm:$0xff]
        %v2491 = vld [vmem:[#allocation8 + $0x9c8] sm:$0xff]
        %v2492 = vld [vmem:[#allocation8 + $0x9d0] sm:$0xff]
        %v2493 = vld [vmem:[#allocation8 + $0x9d8] sm:$0xff]
        %v2495 = vsel %vm363, %v2490, 0
        %v2498 = vsel %vm363, %v2491, 0
        %v2501 = vsel %vm363, %v2492, 0
        %v2504 = vsel %vm363, %v2493, 0
        %2506 = vmatpush.msra.mxu0 0.0
        %2507 = vmatpush.msra.mxu0 0.0
        %2508 = vmatpush.msra.mxu0 0.0
        %2509 = vmatpush.msra.mxu0 0.0
        %2510 = vmatpush.msra.mxu0 0.0
        %2511 = vmatpush.msra.mxu0 0.0
        %2512 = vmatpush.msra.mxu0 0.0
        %2513 = vmatpush.msra.mxu0 0.0
        %2514 = vmatpush.msra.mxu0 0.0
        %2515 = vmatpush.msra.mxu0 0.0
        %2516 = vmatpush.msra.mxu0 0.0
        %2517 = vmatpush.msra.mxu0 0.0
        %2518 = vmatpush.msra.mxu0 %v2488
        %2519 = vmatpush.msra.mxu0 %v2486
        %2520 = vmatpush.msra.mxu0 %v2484
        %2521 = vmatpush.msra.mxu0 %v2482
        %2522 = vmatmul.f32.gmra.mxu0 %v2495
        %v2523 = vpop.f32.mrf.mxu0
        %v2524 = vadd.f32 0.0, %v2523
        %2525 = vmatmul.f32.gmra.mxu0 %v2498
        %v2526 = vpop.f32.mrf.mxu0
        %v2527 = vadd.f32 0.0, %v2526
        %2528 = vmatmul.f32.gmra.mxu0 %v2501
        %v2529 = vpop.f32.mrf.mxu0
        %v2530 = vadd.f32 0.0, %v2529
        %2531 = vmatmul.f32.gmra.mxu0 %v2504
        %v2532 = vpop.f32.mrf.mxu0
        %v2533 = vadd.f32 0.0, %v2532
        %2534 = vdwg.mxu0
        %2535 = vmatpush.msra.mxu0 0.0
        %2536 = vmatpush.msra.mxu0 0.0
        %2537 = vmatpush.msra.mxu0 0.0
        %2538 = vmatpush.msra.mxu0 0.0
        %2539 = vmatpush.msra.mxu0 0.0
        %2540 = vmatpush.msra.mxu0 0.0
        %2541 = vmatpush.msra.mxu0 0.0
        %2542 = vmatpush.msra.mxu0 0.0
        %2543 = vmatpush.msra.mxu0 0.0
        %2544 = vmatpush.msra.mxu0 0.0
        %2545 = vmatpush.msra.mxu0 0.0
        %2546 = vmatpush.msra.mxu0 0.0
        %2547 = vmatpush.msra.mxu0 %v2489
        %2548 = vmatpush.msra.mxu0 %v2487
        %2549 = vmatpush.msra.mxu0 %v2485
        %2550 = vmatpush.msra.mxu0 %v2483
        %2551 = vmatmul.f32.gmra.mxu0 %v2495
        %v2552 = vpop.f32.mrf.mxu0
        %v2553 = vadd.f32 0.0, %v2552
        %2554 = vmatmul.f32.gmra.mxu0 %v2498
        %v2555 = vpop.f32.mrf.mxu0
        %v2556 = vadd.f32 0.0, %v2555
        %2557 = vmatmul.f32.gmra.mxu0 %v2501
        %v2558 = vpop.f32.mrf.mxu0
        %v2559 = vadd.f32 0.0, %v2558
        %2560 = vmatmul.f32.gmra.mxu0 %v2504
        %v2561 = vpop.f32.mrf.mxu0
        %v2562 = vadd.f32 0.0, %v2561
        %2563 = vdwg.mxu0
        %v2564 = vld [vmem:[#allocation8 + $0x9e0] sm:$0xff]
        %v2565 = vld [vmem:[#allocation8 + $0x9e8] sm:$0xff]
        %v2566 = vld [vmem:[#allocation8 + $0x9f0] sm:$0xff]
        %v2567 = vld [vmem:[#allocation8 + $0x9f8] sm:$0xff]
        %v2569 = vsel %vm363, %v2564, 0
        %v2572 = vsel %vm363, %v2565, 0
        %v2575 = vsel %vm363, %v2566, 0
        %v2578 = vsel %vm363, %v2567, 0
        %2580 = vmatpush.msra.mxu0 0.0
        %2581 = vmatpush.msra.mxu0 0.0
        %2582 = vmatpush.msra.mxu0 0.0
        %2583 = vmatpush.msra.mxu0 0.0
        %2584 = vmatpush.msra.mxu0 0.0
        %2585 = vmatpush.msra.mxu0 0.0
        %2586 = vmatpush.msra.mxu0 0.0
        %2587 = vmatpush.msra.mxu0 0.0
        %2588 = vmatpush.msra.mxu0 0.0
        %2589 = vmatpush.msra.mxu0 0.0
        %2590 = vmatpush.msra.mxu0 0.0
        %2591 = vmatpush.msra.mxu0 0.0
        %2592 = vmatpush.msra.mxu0 %v2488
        %2593 = vmatpush.msra.mxu0 %v2486
        %2594 = vmatpush.msra.mxu0 %v2484
        %2595 = vmatpush.msra.mxu0 %v2482
        %2596 = vmatmul.f32.gmra.mxu0 %v2569
        %v2597 = vpop.f32.mrf.mxu0
        %v2598 = vadd.f32 0.0, %v2597
        %2599 = vmatmul.f32.gmra.mxu0 %v2572
        %v2600 = vpop.f32.mrf.mxu0
        %v2601 = vadd.f32 0.0, %v2600
        %2602 = vmatmul.f32.gmra.mxu0 %v2575
        %v2603 = vpop.f32.mrf.mxu0
        %v2604 = vadd.f32 0.0, %v2603
        %2605 = vmatmul.f32.gmra.mxu0 %v2578
        %v2606 = vpop.f32.mrf.mxu0
        %v2607 = vadd.f32 0.0, %v2606
        %2608 = vdwg.mxu0
        %2609 = vmatpush.msra.mxu0 0.0
        %2610 = vmatpush.msra.mxu0 0.0
        %2611 = vmatpush.msra.mxu0 0.0
        %2612 = vmatpush.msra.mxu0 0.0
        %2613 = vmatpush.msra.mxu0 0.0
        %2614 = vmatpush.msra.mxu0 0.0
        %2615 = vmatpush.msra.mxu0 0.0
        %2616 = vmatpush.msra.mxu0 0.0
        %2617 = vmatpush.msra.mxu0 0.0
        %2618 = vmatpush.msra.mxu0 0.0
        %2619 = vmatpush.msra.mxu0 0.0
        %2620 = vmatpush.msra.mxu0 0.0
        %2621 = vmatpush.msra.mxu0 %v2489
        %2622 = vmatpush.msra.mxu0 %v2487
        %2623 = vmatpush.msra.mxu0 %v2485
        %2624 = vmatpush.msra.mxu0 %v2483
        %2625 = vmatmul.f32.gmra.mxu0 %v2569
        %v2626 = vpop.f32.mrf.mxu0
        %v2627 = vadd.f32 0.0, %v2626
        %2628 = vmatmul.f32.gmra.mxu0 %v2572
        %v2629 = vpop.f32.mrf.mxu0
        %v2630 = vadd.f32 0.0, %v2629
        %2631 = vmatmul.f32.gmra.mxu0 %v2575
        %v2632 = vpop.f32.mrf.mxu0
        %v2633 = vadd.f32 0.0, %v2632
        %2634 = vmatmul.f32.gmra.mxu0 %v2578
        %v2635 = vpop.f32.mrf.mxu0
        %v2636 = vadd.f32 0.0, %v2635
        %2637 = vdwg.mxu0
        %v2638 = vld [vmem:[#allocation8 + $0xa00] sm:$0xff]
        %v2639 = vld [vmem:[#allocation8 + $0xa08] sm:$0xff]
        %v2640 = vld [vmem:[#allocation8 + $0xa10] sm:$0xff]
        %v2641 = vld [vmem:[#allocation8 + $0xa18] sm:$0xff]
        %v2643 = vsel %vm363, %v2638, 0
        %v2646 = vsel %vm363, %v2639, 0
        %v2649 = vsel %vm363, %v2640, 0
        %v2652 = vsel %vm363, %v2641, 0
        %2654 = vmatpush.msra.mxu0 0.0
        %2655 = vmatpush.msra.mxu0 0.0
        %2656 = vmatpush.msra.mxu0 0.0
        %2657 = vmatpush.msra.mxu0 0.0
        %2658 = vmatpush.msra.mxu0 0.0
        %2659 = vmatpush.msra.mxu0 0.0
        %2660 = vmatpush.msra.mxu0 0.0
        %2661 = vmatpush.msra.mxu0 0.0
        %2662 = vmatpush.msra.mxu0 0.0
        %2663 = vmatpush.msra.mxu0 0.0
        %2664 = vmatpush.msra.mxu0 0.0
        %2665 = vmatpush.msra.mxu0 0.0
        %2666 = vmatpush.msra.mxu0 %v2488
        %2667 = vmatpush.msra.mxu0 %v2486
        %2668 = vmatpush.msra.mxu0 %v2484
        %2669 = vmatpush.msra.mxu0 %v2482
        %2670 = vmatmul.f32.gmra.mxu0 %v2643
        %v2671 = vpop.f32.mrf.mxu0
        %v2672 = vadd.f32 0.0, %v2671
        %2673 = vmatmul.f32.gmra.mxu0 %v2646
        %v2674 = vpop.f32.mrf.mxu0
        %v2675 = vadd.f32 0.0, %v2674
        %2676 = vmatmul.f32.gmra.mxu0 %v2649
        %v2677 = vpop.f32.mrf.mxu0
        %v2678 = vadd.f32 0.0, %v2677
        %2679 = vmatmul.f32.gmra.mxu0 %v2652
        %v2680 = vpop.f32.mrf.mxu0
        %v2681 = vadd.f32 0.0, %v2680
        %2682 = vdwg.mxu0
        %2683 = vmatpush.msra.mxu0 0.0
        %2684 = vmatpush.msra.mxu0 0.0
        %2685 = vmatpush.msra.mxu0 0.0
        %2686 = vmatpush.msra.mxu0 0.0
        %2687 = vmatpush.msra.mxu0 0.0
        %2688 = vmatpush.msra.mxu0 0.0
        %2689 = vmatpush.msra.mxu0 0.0
        %2690 = vmatpush.msra.mxu0 0.0
        %2691 = vmatpush.msra.mxu0 0.0
        %2692 = vmatpush.msra.mxu0 0.0
        %2693 = vmatpush.msra.mxu0 0.0
        %2694 = vmatpush.msra.mxu0 0.0
        %2695 = vmatpush.msra.mxu0 %v2489
        %2696 = vmatpush.msra.mxu0 %v2487
        %2697 = vmatpush.msra.mxu0 %v2485
        %2698 = vmatpush.msra.mxu0 %v2483
        %2699 = vmatmul.f32.gmra.mxu0 %v2643
        %v2700 = vpop.f32.mrf.mxu0
        %v2701 = vadd.f32 0.0, %v2700
        %2702 = vmatmul.f32.gmra.mxu0 %v2646
        %v2703 = vpop.f32.mrf.mxu0
        %v2704 = vadd.f32 0.0, %v2703
        %2705 = vmatmul.f32.gmra.mxu0 %v2649
        %v2706 = vpop.f32.mrf.mxu0
        %v2707 = vadd.f32 0.0, %v2706
        %2708 = vmatmul.f32.gmra.mxu0 %v2652
        %v2709 = vpop.f32.mrf.mxu0
        %v2710 = vadd.f32 0.0, %v2709
        %2711 = vdwg.mxu0
        %s2712 = scalar_lea.vmem [#allocation10], 1536
        %v2713 = vld [vmem:[%s2712] ss:$8 sm:$0x3]
        %v2714 = vld [vmem:[#allocation10] sm:$0xff]
        %v2715 = vld [vmem:[#allocation10 + $0x8] sm:$0xff]
        %v2716 = vld [vmem:[#allocation10 + $0x10] sm:$0xff]
        %v2717 = vld [vmem:[#allocation10 + $0x18] sm:$0xff]
        %v2718 = vld [vmem:[#allocation10 + $0x20] sm:$0xff]
        %v2719 = vld [vmem:[#allocation10 + $0x28] sm:$0xff]
        %v2720 = vld [vmem:[#allocation10 + $0x30] sm:$0xff]
        %v2721 = vld [vmem:[#allocation10 + $0x38] sm:$0xff]
        %v2722 = vld [vmem:[#allocation10 + $0x40] sm:$0xff]
        %v2723 = vld [vmem:[#allocation10 + $0x48] sm:$0xff]
        %v2724 = vld [vmem:[#allocation10 + $0x50] sm:$0xff]
        %v2725 = vld [vmem:[#allocation10 + $0x58] sm:$0xff]
        %v2726 = vld [vmem:[#allocation10 + $0x60] sm:$0xff]
        %v2727 = vld [vmem:[#allocation10 + $0x68] sm:$0xff]
        %v2728 = vld [vmem:[#allocation10 + $0x70] sm:$0xff]
        %v2729 = vld [vmem:[#allocation10 + $0x78] sm:$0xff]
        %v2730 = vld [vmem:[#allocation10 + $0x80] sm:$0xff]
        %v2731 = vld [vmem:[#allocation10 + $0x88] sm:$0xff]
        %v2732 = vld [vmem:[#allocation10 + $0x90] sm:$0xff]
        %v2733 = vld [vmem:[#allocation10 + $0x98] sm:$0xff]
        %v2734 = vld [vmem:[#allocation10 + $0xa0] sm:$0xff]
        %v2735 = vld [vmem:[#allocation10 + $0xa8] sm:$0xff]
        %v2736 = vld [vmem:[#allocation10 + $0xb0] sm:$0xff]
        %v2737 = vld [vmem:[#allocation10 + $0xb8] sm:$0xff]
        %v2738 = vld [vmem:[#allocation10 + $0xc0] sm:$0xff]
        %v2739 = vld [vmem:[#allocation10 + $0xc8] sm:$0xff]
        %v2740 = vld [vmem:[#allocation10 + $0xd0] sm:$0xff]
        %v2741 = vld [vmem:[#allocation10 + $0xd8] sm:$0xff]
        %v2742 = vld [vmem:[#allocation10 + $0xe0] sm:$0xff]
        %v2743 = vld [vmem:[#allocation10 + $0xe8] sm:$0xff]
        %v2744 = vld [vmem:[#allocation10 + $0xf0] sm:$0xff]
        %v2745 = vld [vmem:[#allocation10 + $0xf8] sm:$0xff]
        %v2746 = vld [vmem:[#allocation10 + $0x100] sm:$0xff]
        %v2747 = vld [vmem:[#allocation10 + $0x108] sm:$0xff]
        %v2748 = vld [vmem:[#allocation10 + $0x110] sm:$0xff]
        %v2749 = vld [vmem:[#allocation10 + $0x118] sm:$0xff]
        %v2750 = vld [vmem:[#allocation10 + $0x120] sm:$0xff]
        %v2751 = vld [vmem:[#allocation10 + $0x128] sm:$0xff]
        %v2752 = vld [vmem:[#allocation10 + $0x130] sm:$0xff]
        %v2753 = vld [vmem:[#allocation10 + $0x138] sm:$0xff]
        %v2754 = vld [vmem:[#allocation10 + $0x140] sm:$0xff]
        %v2755 = vld [vmem:[#allocation10 + $0x148] sm:$0xff]
        %v2756 = vld [vmem:[#allocation10 + $0x150] sm:$0xff]
        %v2757 = vld [vmem:[#allocation10 + $0x158] sm:$0xff]
        %v2758 = vld [vmem:[#allocation10 + $0x160] sm:$0xff]
        %v2759 = vld [vmem:[#allocation10 + $0x168] sm:$0xff]
        %v2760 = vld [vmem:[#allocation10 + $0x170] sm:$0xff]
        %v2761 = vld [vmem:[#allocation10 + $0x178] sm:$0xff]
        %v2762 = vld [vmem:[#allocation10 + $0x180] sm:$0xff]
        %v2763 = vld [vmem:[#allocation10 + $0x188] sm:$0xff]
        %v2764 = vld [vmem:[#allocation10 + $0x190] sm:$0xff]
        %v2765 = vld [vmem:[#allocation10 + $0x198] sm:$0xff]
        %v2766 = vld [vmem:[#allocation10 + $0x1a0] sm:$0xff]
        %v2767 = vld [vmem:[#allocation10 + $0x1a8] sm:$0xff]
        %v2768 = vld [vmem:[#allocation10 + $0x1b0] sm:$0xff]
        %v2769 = vld [vmem:[#allocation10 + $0x1b8] sm:$0xff]
        %v2770 = vld [vmem:[#allocation10 + $0x1c0] sm:$0xff]
        %v2771 = vld [vmem:[#allocation10 + $0x1c8] sm:$0xff]
        %v2772 = vld [vmem:[#allocation10 + $0x1d0] sm:$0xff]
        %v2773 = vld [vmem:[#allocation10 + $0x1d8] sm:$0xff]
        %v2774 = vld [vmem:[#allocation10 + $0x1e0] sm:$0xff]
        %v2775 = vld [vmem:[#allocation10 + $0x1e8] sm:$0xff]
        %v2776 = vld [vmem:[#allocation10 + $0x1f0] sm:$0xff]
        %v2777 = vld [vmem:[#allocation10 + $0x1f8] sm:$0xff]
        %v2778 = vld [vmem:[#allocation10 + $0x200] sm:$0xff]
        %v2779 = vld [vmem:[#allocation10 + $0x208] sm:$0xff]
        %v2780 = vld [vmem:[#allocation10 + $0x210] sm:$0xff]
        %v2781 = vld [vmem:[#allocation10 + $0x218] sm:$0xff]
        %v2782 = vld [vmem:[#allocation10 + $0x220] sm:$0xff]
        %v2783 = vld [vmem:[#allocation10 + $0x228] sm:$0xff]
        %v2784 = vld [vmem:[#allocation10 + $0x230] sm:$0xff]
        %v2785 = vld [vmem:[#allocation10 + $0x238] sm:$0xff]
        %v2786 = vld [vmem:[#allocation10 + $0x240] sm:$0xff]
        %v2787 = vld [vmem:[#allocation10 + $0x248] sm:$0xff]
        %v2788 = vld [vmem:[#allocation10 + $0x250] sm:$0xff]
        %v2789 = vld [vmem:[#allocation10 + $0x258] sm:$0xff]
        %v2790 = vld [vmem:[#allocation10 + $0x260] sm:$0xff]
        %v2791 = vld [vmem:[#allocation10 + $0x268] sm:$0xff]
        %v2792 = vld [vmem:[#allocation10 + $0x270] sm:$0xff]
        %v2793 = vld [vmem:[#allocation10 + $0x278] sm:$0xff]
        %v2794 = vld [vmem:[#allocation10 + $0x280] sm:$0xff]
        %v2795 = vld [vmem:[#allocation10 + $0x288] sm:$0xff]
        %v2796 = vld [vmem:[#allocation10 + $0x290] sm:$0xff]
        %v2797 = vld [vmem:[#allocation10 + $0x298] sm:$0xff]
        %v2798 = vld [vmem:[#allocation10 + $0x2a0] sm:$0xff]
        %v2799 = vld [vmem:[#allocation10 + $0x2a8] sm:$0xff]
        %v2800 = vld [vmem:[#allocation10 + $0x2b0] sm:$0xff]
        %v2801 = vld [vmem:[#allocation10 + $0x2b8] sm:$0xff]
        %v2802 = vld [vmem:[#allocation10 + $0x2c0] sm:$0xff]
        %v2803 = vld [vmem:[#allocation10 + $0x2c8] sm:$0xff]
        %v2804 = vld [vmem:[#allocation10 + $0x2d0] sm:$0xff]
        %v2805 = vld [vmem:[#allocation10 + $0x2d8] sm:$0xff]
        %v2806 = vld [vmem:[#allocation10 + $0x2e0] sm:$0xff]
        %v2807 = vld [vmem:[#allocation10 + $0x2e8] sm:$0xff]
        %v2808 = vld [vmem:[#allocation10 + $0x2f0] sm:$0xff]
        %v2809 = vld [vmem:[#allocation10 + $0x2f8] sm:$0xff]
        %v2810 = vld [vmem:[#allocation10 + $0x300] sm:$0xff]
        %v2811 = vld [vmem:[#allocation10 + $0x308] sm:$0xff]
        %v2812 = vld [vmem:[#allocation10 + $0x310] sm:$0xff]
        %v2813 = vld [vmem:[#allocation10 + $0x318] sm:$0xff]
        %v2814 = vld [vmem:[#allocation10 + $0x320] sm:$0xff]
        %v2815 = vld [vmem:[#allocation10 + $0x328] sm:$0xff]
        %v2816 = vld [vmem:[#allocation10 + $0x330] sm:$0xff]
        %v2817 = vld [vmem:[#allocation10 + $0x338] sm:$0xff]
        %v2818 = vld [vmem:[#allocation10 + $0x340] sm:$0xff]
        %v2819 = vld [vmem:[#allocation10 + $0x348] sm:$0xff]
        %v2820 = vld [vmem:[#allocation10 + $0x350] sm:$0xff]
        %v2821 = vld [vmem:[#allocation10 + $0x358] sm:$0xff]
        %v2822 = vld [vmem:[#allocation10 + $0x360] sm:$0xff]
        %v2823 = vld [vmem:[#allocation10 + $0x368] sm:$0xff]
        %v2824 = vld [vmem:[#allocation10 + $0x370] sm:$0xff]
        %v2825 = vld [vmem:[#allocation10 + $0x378] sm:$0xff]
        %v2826 = vld [vmem:[#allocation10 + $0x380] sm:$0xff]
        %v2827 = vld [vmem:[#allocation10 + $0x388] sm:$0xff]
        %v2828 = vld [vmem:[#allocation10 + $0x390] sm:$0xff]
        %v2829 = vld [vmem:[#allocation10 + $0x398] sm:$0xff]
        %v2830 = vld [vmem:[#allocation10 + $0x3a0] sm:$0xff]
        %v2831 = vld [vmem:[#allocation10 + $0x3a8] sm:$0xff]
        %v2832 = vld [vmem:[#allocation10 + $0x3b0] sm:$0xff]
        %v2833 = vld [vmem:[#allocation10 + $0x3b8] sm:$0xff]
        %v2834 = vld [vmem:[#allocation10 + $0x3c0] sm:$0xff]
        %v2835 = vld [vmem:[#allocation10 + $0x3c8] sm:$0xff]
        %v2836 = vld [vmem:[#allocation10 + $0x3d0] sm:$0xff]
        %v2837 = vld [vmem:[#allocation10 + $0x3d8] sm:$0xff]
        %v2838 = vld [vmem:[#allocation10 + $0x3e0] sm:$0xff]
        %v2839 = vld [vmem:[#allocation10 + $0x3e8] sm:$0xff]
        %v2840 = vld [vmem:[#allocation10 + $0x3f0] sm:$0xff]
        %v2841 = vld [vmem:[#allocation10 + $0x3f8] sm:$0xff]
        %v2842 = vld [vmem:[#allocation10 + $0x400] sm:$0xff]
        %v2843 = vld [vmem:[#allocation10 + $0x408] sm:$0xff]
        %v2844 = vld [vmem:[#allocation10 + $0x410] sm:$0xff]
        %v2845 = vld [vmem:[#allocation10 + $0x418] sm:$0xff]
        %v2846 = vld [vmem:[#allocation10 + $0x420] sm:$0xff]
        %v2847 = vld [vmem:[#allocation10 + $0x428] sm:$0xff]
        %v2848 = vld [vmem:[#allocation10 + $0x430] sm:$0xff]
        %v2849 = vld [vmem:[#allocation10 + $0x438] sm:$0xff]
        %v2850 = vld [vmem:[#allocation10 + $0x440] sm:$0xff]
        %v2851 = vld [vmem:[#allocation10 + $0x448] sm:$0xff]
        %v2852 = vld [vmem:[#allocation10 + $0x450] sm:$0xff]
        %v2853 = vld [vmem:[#allocation10 + $0x458] sm:$0xff]
        %v2854 = vld [vmem:[#allocation10 + $0x460] sm:$0xff]
        %v2855 = vld [vmem:[#allocation10 + $0x468] sm:$0xff]
        %v2856 = vld [vmem:[#allocation10 + $0x470] sm:$0xff]
        %v2857 = vld [vmem:[#allocation10 + $0x478] sm:$0xff]
        %v2858 = vld [vmem:[#allocation10 + $0x480] sm:$0xff]
        %v2859 = vld [vmem:[#allocation10 + $0x488] sm:$0xff]
        %v2860 = vld [vmem:[#allocation10 + $0x490] sm:$0xff]
        %v2861 = vld [vmem:[#allocation10 + $0x498] sm:$0xff]
        %v2862 = vld [vmem:[#allocation10 + $0x4a0] sm:$0xff]
        %v2863 = vld [vmem:[#allocation10 + $0x4a8] sm:$0xff]
        %v2864 = vld [vmem:[#allocation10 + $0x4b0] sm:$0xff]
        %v2865 = vld [vmem:[#allocation10 + $0x4b8] sm:$0xff]
        %v2866 = vld [vmem:[#allocation10 + $0x4c0] sm:$0xff]
        %v2867 = vld [vmem:[#allocation10 + $0x4c8] sm:$0xff]
        %v2868 = vld [vmem:[#allocation10 + $0x4d0] sm:$0xff]
        %v2869 = vld [vmem:[#allocation10 + $0x4d8] sm:$0xff]
        %v2870 = vld [vmem:[#allocation10 + $0x4e0] sm:$0xff]
        %v2871 = vld [vmem:[#allocation10 + $0x4e8] sm:$0xff]
        %v2872 = vld [vmem:[#allocation10 + $0x4f0] sm:$0xff]
        %v2873 = vld [vmem:[#allocation10 + $0x4f8] sm:$0xff]
        %v2874 = vld [vmem:[#allocation10 + $0x500] sm:$0xff]
        %v2875 = vld [vmem:[#allocation10 + $0x508] sm:$0xff]
        %v2876 = vld [vmem:[#allocation10 + $0x510] sm:$0xff]
        %v2877 = vld [vmem:[#allocation10 + $0x518] sm:$0xff]
        %v2878 = vld [vmem:[#allocation10 + $0x520] sm:$0xff]
        %v2879 = vld [vmem:[#allocation10 + $0x528] sm:$0xff]
        %v2880 = vld [vmem:[#allocation10 + $0x530] sm:$0xff]
        %v2881 = vld [vmem:[#allocation10 + $0x538] sm:$0xff]
        %v2882 = vld [vmem:[#allocation10 + $0x540] sm:$0xff]
        %v2883 = vld [vmem:[#allocation10 + $0x548] sm:$0xff]
        %v2884 = vld [vmem:[#allocation10 + $0x550] sm:$0xff]
        %v2885 = vld [vmem:[#allocation10 + $0x558] sm:$0xff]
        %v2886 = vld [vmem:[#allocation10 + $0x560] sm:$0xff]
        %v2887 = vld [vmem:[#allocation10 + $0x568] sm:$0xff]
        %v2888 = vld [vmem:[#allocation10 + $0x570] sm:$0xff]
        %v2889 = vld [vmem:[#allocation10 + $0x578] sm:$0xff]
        %v2890 = vld [vmem:[#allocation10 + $0x580] sm:$0xff]
        %v2891 = vld [vmem:[#allocation10 + $0x588] sm:$0xff]
        %v2892 = vld [vmem:[#allocation10 + $0x590] sm:$0xff]
        %v2893 = vld [vmem:[#allocation10 + $0x598] sm:$0xff]
        %v2894 = vld [vmem:[#allocation10 + $0x5a0] sm:$0xff]
        %v2895 = vld [vmem:[#allocation10 + $0x5a8] sm:$0xff]
        %v2896 = vld [vmem:[#allocation10 + $0x5b0] sm:$0xff]
        %v2897 = vld [vmem:[#allocation10 + $0x5b8] sm:$0xff]
        %v2898 = vld [vmem:[#allocation10 + $0x5c0] sm:$0xff]
        %v2899 = vld [vmem:[#allocation10 + $0x5c8] sm:$0xff]
        %v2900 = vld [vmem:[#allocation10 + $0x5d0] sm:$0xff]
        %v2901 = vld [vmem:[#allocation10 + $0x5d8] sm:$0xff]
        %v2902 = vld [vmem:[#allocation10 + $0x5e0] sm:$0xff]
        %v2903 = vld [vmem:[#allocation10 + $0x5e8] sm:$0xff]
        %v2904 = vld [vmem:[#allocation10 + $0x5f0] sm:$0xff]
        %v2905 = vld [vmem:[#allocation10 + $0x5f8] sm:$0xff]
        %v2907 = vperm.slane %v2713, 0
        %v2908 = vperm.slane %v2713, 1
        %2911 = vmatpush.msra.mxu0 %v2744
        %2912 = vmatpush.msra.mxu0 %v2742
        %2913 = vmatpush.msra.mxu0 %v2740
        %2914 = vmatpush.msra.mxu0 %v2738
        %2915 = vmatpush.msra.mxu0 %v2736
        %2916 = vmatpush.msra.mxu0 %v2734
        %2917 = vmatpush.msra.mxu0 %v2732
        %2918 = vmatpush.msra.mxu0 %v2730
        %2919 = vmatpush.msra.mxu0 %v2728
        %2920 = vmatpush.msra.mxu0 %v2726
        %2921 = vmatpush.msra.mxu0 %v2724
        %2922 = vmatpush.msra.mxu0 %v2722
        %2923 = vmatpush.msra.mxu0 %v2720
        %2924 = vmatpush.msra.mxu0 %v2718
        %2925 = vmatpush.msra.mxu0 %v2716
        %2926 = vmatpush.msra.mxu0 %v2714
        %2927 = vmatmul.f32.gmra.mxu0 %v2524
        %v2928 = vpop.f32.mrf.mxu0
        %v2929 = vadd.f32 %v2907, %v2928
        %2930 = vmatmul.f32.gmra.mxu0 %v2527
        %v2931 = vpop.f32.mrf.mxu0
        %v2932 = vadd.f32 %v2907, %v2931
        %2933 = vmatmul.f32.gmra.mxu0 %v2530
        %v2934 = vpop.f32.mrf.mxu0
        %v2935 = vadd.f32 %v2907, %v2934
        %2936 = vmatmul.f32.gmra.mxu0 %v2533
        %v2937 = vpop.f32.mrf.mxu0
        %v2938 = vadd.f32 %v2907, %v2937
        %2939 = vdwg.mxu0
        %2940 = vmatpush.msra.mxu0 %v2776
        %2941 = vmatpush.msra.mxu0 %v2774
        %2942 = vmatpush.msra.mxu0 %v2772
        %2943 = vmatpush.msra.mxu0 %v2770
        %2944 = vmatpush.msra.mxu0 %v2768
        %2945 = vmatpush.msra.mxu0 %v2766
        %2946 = vmatpush.msra.mxu0 %v2764
        %2947 = vmatpush.msra.mxu0 %v2762
        %2948 = vmatpush.msra.mxu0 %v2760
        %2949 = vmatpush.msra.mxu0 %v2758
        %2950 = vmatpush.msra.mxu0 %v2756
        %2951 = vmatpush.msra.mxu0 %v2754
        %2952 = vmatpush.msra.mxu0 %v2752
        %2953 = vmatpush.msra.mxu0 %v2750
        %2954 = vmatpush.msra.mxu0 %v2748
        %2955 = vmatpush.msra.mxu0 %v2746
        %2956 = vmatmul.f32.gmra.mxu0 %v2553
        %v2957 = vpop.f32.mrf.mxu0
        %v2958 = vadd.f32 %v2929, %v2957
        %2959 = vmatmul.f32.gmra.mxu0 %v2556
        %v2960 = vpop.f32.mrf.mxu0
        %v2961 = vadd.f32 %v2932, %v2960
        %2962 = vmatmul.f32.gmra.mxu0 %v2559
        %v2963 = vpop.f32.mrf.mxu0
        %v2964 = vadd.f32 %v2935, %v2963
        %2965 = vmatmul.f32.gmra.mxu0 %v2562
        %v2966 = vpop.f32.mrf.mxu0
        %v2967 = vadd.f32 %v2938, %v2966
        %2968 = vdwg.mxu0
        %2969 = vmatpush.msra.mxu0 %v2808
        %2970 = vmatpush.msra.mxu0 %v2806
        %2971 = vmatpush.msra.mxu0 %v2804
        %2972 = vmatpush.msra.mxu0 %v2802
        %2973 = vmatpush.msra.mxu0 %v2800
        %2974 = vmatpush.msra.mxu0 %v2798
        %2975 = vmatpush.msra.mxu0 %v2796
        %2976 = vmatpush.msra.mxu0 %v2794
        %2977 = vmatpush.msra.mxu0 %v2792
        %2978 = vmatpush.msra.mxu0 %v2790
        %2979 = vmatpush.msra.mxu0 %v2788
        %2980 = vmatpush.msra.mxu0 %v2786
        %2981 = vmatpush.msra.mxu0 %v2784
        %2982 = vmatpush.msra.mxu0 %v2782
        %2983 = vmatpush.msra.mxu0 %v2780
        %2984 = vmatpush.msra.mxu0 %v2778
        %2985 = vmatmul.f32.gmra.mxu0 %v2598
        %v2986 = vpop.f32.mrf.mxu0
        %v2987 = vadd.f32 %v2958, %v2986
        %2988 = vmatmul.f32.gmra.mxu0 %v2601
        %v2989 = vpop.f32.mrf.mxu0
        %v2990 = vadd.f32 %v2961, %v2989
        %2991 = vmatmul.f32.gmra.mxu0 %v2604
        %v2992 = vpop.f32.mrf.mxu0
        %v2993 = vadd.f32 %v2964, %v2992
        %2994 = vmatmul.f32.gmra.mxu0 %v2607
        %v2995 = vpop.f32.mrf.mxu0
        %v2996 = vadd.f32 %v2967, %v2995
        %2997 = vdwg.mxu0
        %2998 = vmatpush.msra.mxu0 %v2840
        %2999 = vmatpush.msra.mxu0 %v2838
        %3000 = vmatpush.msra.mxu0 %v2836
        %3001 = vmatpush.msra.mxu0 %v2834
        %3002 = vmatpush.msra.mxu0 %v2832
        %3003 = vmatpush.msra.mxu0 %v2830
        %3004 = vmatpush.msra.mxu0 %v2828
        %3005 = vmatpush.msra.mxu0 %v2826
        %3006 = vmatpush.msra.mxu0 %v2824
        %3007 = vmatpush.msra.mxu0 %v2822
        %3008 = vmatpush.msra.mxu0 %v2820
        %3009 = vmatpush.msra.mxu0 %v2818
        %3010 = vmatpush.msra.mxu0 %v2816
        %3011 = vmatpush.msra.mxu0 %v2814
        %3012 = vmatpush.msra.mxu0 %v2812
        %3013 = vmatpush.msra.mxu0 %v2810
        %3014 = vmatmul.f32.gmra.mxu0 %v2627
        %v3015 = vpop.f32.mrf.mxu0
        %v3016 = vadd.f32 %v2987, %v3015
        %3017 = vmatmul.f32.gmra.mxu0 %v2630
        %v3018 = vpop.f32.mrf.mxu0
        %v3019 = vadd.f32 %v2990, %v3018
        %3020 = vmatmul.f32.gmra.mxu0 %v2633
        %v3021 = vpop.f32.mrf.mxu0
        %v3022 = vadd.f32 %v2993, %v3021
        %3023 = vmatmul.f32.gmra.mxu0 %v2636
        %v3024 = vpop.f32.mrf.mxu0
        %v3025 = vadd.f32 %v2996, %v3024
        %3026 = vdwg.mxu0
        %3027 = vmatpush.msra.mxu0 %v2872
        %3028 = vmatpush.msra.mxu0 %v2870
        %3029 = vmatpush.msra.mxu0 %v2868
        %3030 = vmatpush.msra.mxu0 %v2866
        %3031 = vmatpush.msra.mxu0 %v2864
        %3032 = vmatpush.msra.mxu0 %v2862
        %3033 = vmatpush.msra.mxu0 %v2860
        %3034 = vmatpush.msra.mxu0 %v2858
        %3035 = vmatpush.msra.mxu0 %v2856
        %3036 = vmatpush.msra.mxu0 %v2854
        %3037 = vmatpush.msra.mxu0 %v2852
        %3038 = vmatpush.msra.mxu0 %v2850
        %3039 = vmatpush.msra.mxu0 %v2848
        %3040 = vmatpush.msra.mxu0 %v2846
        %3041 = vmatpush.msra.mxu0 %v2844
        %3042 = vmatpush.msra.mxu0 %v2842
        %3043 = vmatmul.f32.gmra.mxu0 %v2672
        %v3044 = vpop.f32.mrf.mxu0
        %v3045 = vadd.f32 %v3016, %v3044
        %3046 = vmatmul.f32.gmra.mxu0 %v2675
        %v3047 = vpop.f32.mrf.mxu0
        %v3048 = vadd.f32 %v3019, %v3047
        %3049 = vmatmul.f32.gmra.mxu0 %v2678
        %v3050 = vpop.f32.mrf.mxu0
        %v3051 = vadd.f32 %v3022, %v3050
        %3052 = vmatmul.f32.gmra.mxu0 %v2681
        %v3053 = vpop.f32.mrf.mxu0
        %v3054 = vadd.f32 %v3025, %v3053
        %3055 = vdwg.mxu0
        %3056 = vmatpush.msra.mxu0 %v2904
        %3057 = vmatpush.msra.mxu0 %v2902
        %3058 = vmatpush.msra.mxu0 %v2900
        %3059 = vmatpush.msra.mxu0 %v2898
        %3060 = vmatpush.msra.mxu0 %v2896
        %3061 = vmatpush.msra.mxu0 %v2894
        %3062 = vmatpush.msra.mxu0 %v2892
        %3063 = vmatpush.msra.mxu0 %v2890
        %3064 = vmatpush.msra.mxu0 %v2888
        %3065 = vmatpush.msra.mxu0 %v2886
        %3066 = vmatpush.msra.mxu0 %v2884
        %3067 = vmatpush.msra.mxu0 %v2882
        %3068 = vmatpush.msra.mxu0 %v2880
        %3069 = vmatpush.msra.mxu0 %v2878
        %3070 = vmatpush.msra.mxu0 %v2876
        %3071 = vmatpush.msra.mxu0 %v2874
        %3072 = vmatmul.f32.gmra.mxu0 %v2701
        %v3073 = vpop.f32.mrf.mxu0
        %v3074 = vadd.f32 %v3045, %v3073
        %3075 = vmatmul.f32.gmra.mxu0 %v2704
        %v3076 = vpop.f32.mrf.mxu0
        %v3077 = vadd.f32 %v3048, %v3076
        %3078 = vmatmul.f32.gmra.mxu0 %v2707
        %v3079 = vpop.f32.mrf.mxu0
        %v3080 = vadd.f32 %v3051, %v3079
        %3081 = vmatmul.f32.gmra.mxu0 %v2710
        %v3082 = vpop.f32.mrf.mxu0
        %v3083 = vadd.f32 %v3054, %v3082
        %3084 = vdwg.mxu0
        %3085 = vmatpush.msra.mxu0 %v2745
        %3086 = vmatpush.msra.mxu0 %v2743
        %3087 = vmatpush.msra.mxu0 %v2741
        %3088 = vmatpush.msra.mxu0 %v2739
        %3089 = vmatpush.msra.mxu0 %v2737
        %3090 = vmatpush.msra.mxu0 %v2735
        %3091 = vmatpush.msra.mxu0 %v2733
        %3092 = vmatpush.msra.mxu0 %v2731
        %3093 = vmatpush.msra.mxu0 %v2729
        %3094 = vmatpush.msra.mxu0 %v2727
        %3095 = vmatpush.msra.mxu0 %v2725
        %3096 = vmatpush.msra.mxu0 %v2723
        %3097 = vmatpush.msra.mxu0 %v2721
        %3098 = vmatpush.msra.mxu0 %v2719
        %3099 = vmatpush.msra.mxu0 %v2717
        %3100 = vmatpush.msra.mxu0 %v2715
        %3101 = vmatmul.f32.gmra.mxu0 %v2524
        %v3102 = vpop.f32.mrf.mxu0
        %v3103 = vadd.f32 %v2908, %v3102
        %3104 = vmatmul.f32.gmra.mxu0 %v2527
        %v3105 = vpop.f32.mrf.mxu0
        %v3106 = vadd.f32 %v2908, %v3105
        %3107 = vmatmul.f32.gmra.mxu0 %v2530
        %v3108 = vpop.f32.mrf.mxu0
        %v3109 = vadd.f32 %v2908, %v3108
        %3110 = vmatmul.f32.gmra.mxu0 %v2533
        %v3111 = vpop.f32.mrf.mxu0
        %v3112 = vadd.f32 %v2908, %v3111
        %3113 = vdwg.mxu0
        %3114 = vmatpush.msra.mxu0 %v2777
        %3115 = vmatpush.msra.mxu0 %v2775
        %3116 = vmatpush.msra.mxu0 %v2773
        %3117 = vmatpush.msra.mxu0 %v2771
        %3118 = vmatpush.msra.mxu0 %v2769
        %3119 = vmatpush.msra.mxu0 %v2767
        %3120 = vmatpush.msra.mxu0 %v2765
        %3121 = vmatpush.msra.mxu0 %v2763
        %3122 = vmatpush.msra.mxu0 %v2761
        %3123 = vmatpush.msra.mxu0 %v2759
        %3124 = vmatpush.msra.mxu0 %v2757
        %3125 = vmatpush.msra.mxu0 %v2755
        %3126 = vmatpush.msra.mxu0 %v2753
        %3127 = vmatpush.msra.mxu0 %v2751
        %3128 = vmatpush.msra.mxu0 %v2749
        %3129 = vmatpush.msra.mxu0 %v2747
        %3130 = vmatmul.f32.gmra.mxu0 %v2553
        %v3131 = vpop.f32.mrf.mxu0
        %v3132 = vadd.f32 %v3103, %v3131
        %3133 = vmatmul.f32.gmra.mxu0 %v2556
        %v3134 = vpop.f32.mrf.mxu0
        %v3135 = vadd.f32 %v3106, %v3134
        %3136 = vmatmul.f32.gmra.mxu0 %v2559
        %v3137 = vpop.f32.mrf.mxu0
        %v3138 = vadd.f32 %v3109, %v3137
        %3139 = vmatmul.f32.gmra.mxu0 %v2562
        %v3140 = vpop.f32.mrf.mxu0
        %v3141 = vadd.f32 %v3112, %v3140
        %3142 = vdwg.mxu0
        %3143 = vmatpush.msra.mxu0 %v2809
        %3144 = vmatpush.msra.mxu0 %v2807
        %3145 = vmatpush.msra.mxu0 %v2805
        %3146 = vmatpush.msra.mxu0 %v2803
        %3147 = vmatpush.msra.mxu0 %v2801
        %3148 = vmatpush.msra.mxu0 %v2799
        %3149 = vmatpush.msra.mxu0 %v2797
        %3150 = vmatpush.msra.mxu0 %v2795
        %3151 = vmatpush.msra.mxu0 %v2793
        %3152 = vmatpush.msra.mxu0 %v2791
        %3153 = vmatpush.msra.mxu0 %v2789
        %3154 = vmatpush.msra.mxu0 %v2787
        %3155 = vmatpush.msra.mxu0 %v2785
        %3156 = vmatpush.msra.mxu0 %v2783
        %3157 = vmatpush.msra.mxu0 %v2781
        %3158 = vmatpush.msra.mxu0 %v2779
        %3159 = vmatmul.f32.gmra.mxu0 %v2598
        %v3160 = vpop.f32.mrf.mxu0
        %v3161 = vadd.f32 %v3132, %v3160
        %3162 = vmatmul.f32.gmra.mxu0 %v2601
        %v3163 = vpop.f32.mrf.mxu0
        %v3164 = vadd.f32 %v3135, %v3163
        %3165 = vmatmul.f32.gmra.mxu0 %v2604
        %v3166 = vpop.f32.mrf.mxu0
        %v3167 = vadd.f32 %v3138, %v3166
        %3168 = vmatmul.f32.gmra.mxu0 %v2607
        %v3169 = vpop.f32.mrf.mxu0
        %v3170 = vadd.f32 %v3141, %v3169
        %3171 = vdwg.mxu0
        %3172 = vmatpush.msra.mxu0 %v2841
        %3173 = vmatpush.msra.mxu0 %v2839
        %3174 = vmatpush.msra.mxu0 %v2837
        %3175 = vmatpush.msra.mxu0 %v2835
        %3176 = vmatpush.msra.mxu0 %v2833
        %3177 = vmatpush.msra.mxu0 %v2831
        %3178 = vmatpush.msra.mxu0 %v2829
        %3179 = vmatpush.msra.mxu0 %v2827
        %3180 = vmatpush.msra.mxu0 %v2825
        %3181 = vmatpush.msra.mxu0 %v2823
        %3182 = vmatpush.msra.mxu0 %v2821
        %3183 = vmatpush.msra.mxu0 %v2819
        %3184 = vmatpush.msra.mxu0 %v2817
        %3185 = vmatpush.msra.mxu0 %v2815
        %3186 = vmatpush.msra.mxu0 %v2813
        %3187 = vmatpush.msra.mxu0 %v2811
        %3188 = vmatmul.f32.gmra.mxu0 %v2627
        %v3189 = vpop.f32.mrf.mxu0
        %v3190 = vadd.f32 %v3161, %v3189
        %3191 = vmatmul.f32.gmra.mxu0 %v2630
        %v3192 = vpop.f32.mrf.mxu0
        %v3193 = vadd.f32 %v3164, %v3192
        %3194 = vmatmul.f32.gmra.mxu0 %v2633
        %v3195 = vpop.f32.mrf.mxu0
        %v3196 = vadd.f32 %v3167, %v3195
        %3197 = vmatmul.f32.gmra.mxu0 %v2636
        %v3198 = vpop.f32.mrf.mxu0
        %v3199 = vadd.f32 %v3170, %v3198
        %3200 = vdwg.mxu0
        %3201 = vmatpush.msra.mxu0 %v2873
        %3202 = vmatpush.msra.mxu0 %v2871
        %3203 = vmatpush.msra.mxu0 %v2869
        %3204 = vmatpush.msra.mxu0 %v2867
        %3205 = vmatpush.msra.mxu0 %v2865
        %3206 = vmatpush.msra.mxu0 %v2863
        %3207 = vmatpush.msra.mxu0 %v2861
        %3208 = vmatpush.msra.mxu0 %v2859
        %3209 = vmatpush.msra.mxu0 %v2857
        %3210 = vmatpush.msra.mxu0 %v2855
        %3211 = vmatpush.msra.mxu0 %v2853
        %3212 = vmatpush.msra.mxu0 %v2851
        %3213 = vmatpush.msra.mxu0 %v2849
        %3214 = vmatpush.msra.mxu0 %v2847
        %3215 = vmatpush.msra.mxu0 %v2845
        %3216 = vmatpush.msra.mxu0 %v2843
        %3217 = vmatmul.f32.gmra.mxu0 %v2672
        %v3218 = vpop.f32.mrf.mxu0
        %v3219 = vadd.f32 %v3190, %v3218
        %3220 = vmatmul.f32.gmra.mxu0 %v2675
        %v3221 = vpop.f32.mrf.mxu0
        %v3222 = vadd.f32 %v3193, %v3221
        %3223 = vmatmul.f32.gmra.mxu0 %v2678
        %v3224 = vpop.f32.mrf.mxu0
        %v3225 = vadd.f32 %v3196, %v3224
        %3226 = vmatmul.f32.gmra.mxu0 %v2681
        %v3227 = vpop.f32.mrf.mxu0
        %v3228 = vadd.f32 %v3199, %v3227
        %3229 = vdwg.mxu0
        %3230 = vmatpush.msra.mxu0 %v2905
        %3231 = vmatpush.msra.mxu0 %v2903
        %3232 = vmatpush.msra.mxu0 %v2901
        %3233 = vmatpush.msra.mxu0 %v2899
        %3234 = vmatpush.msra.mxu0 %v2897
        %3235 = vmatpush.msra.mxu0 %v2895
        %3236 = vmatpush.msra.mxu0 %v2893
        %3237 = vmatpush.msra.mxu0 %v2891
        %3238 = vmatpush.msra.mxu0 %v2889
        %3239 = vmatpush.msra.mxu0 %v2887
        %3240 = vmatpush.msra.mxu0 %v2885
        %3241 = vmatpush.msra.mxu0 %v2883
        %3242 = vmatpush.msra.mxu0 %v2881
        %3243 = vmatpush.msra.mxu0 %v2879
        %3244 = vmatpush.msra.mxu0 %v2877
        %3245 = vmatpush.msra.mxu0 %v2875
        %3246 = vmatmul.f32.gmra.mxu0 %v2701
        %v3247 = vpop.f32.mrf.mxu0
        %v3248 = vadd.f32 %v3219, %v3247
        %3249 = vmatmul.f32.gmra.mxu0 %v2704
        %v3250 = vpop.f32.mrf.mxu0
        %v3251 = vadd.f32 %v3222, %v3250
        %3252 = vmatmul.f32.gmra.mxu0 %v2707
        %v3253 = vpop.f32.mrf.mxu0
        %v3254 = vadd.f32 %v3225, %v3253
        %3255 = vmatmul.f32.gmra.mxu0 %v2710
        %v3256 = vpop.f32.mrf.mxu0
        %v3257 = vadd.f32 %v3228, %v3256
        %3258 = vdwg.mxu0
        %3259 = vst [vmem:[%s352] sm:$0xff] %v3074
        %3260 = vst [vmem:[%s352 + $0x8] sm:$0xff] %v3248
        %3261 = vst [vmem:[%s352 + $0x10] sm:$0xff] %v3077
        %3262 = vst [vmem:[%s352 + $0x18] sm:$0xff] %v3251
        %3263 = vst [vmem:[%s352 + $0x20] sm:$0xff] %v3080
        %3264 = vst [vmem:[%s352 + $0x28] sm:$0xff] %v3254
        %3265 = vst [vmem:[%s352 + $0x30] sm:$0xff] %v3083
        %3266 = vst [vmem:[%s352 + $0x38] sm:$0xff] %v3257
        %s3267 = sand.u32 %s154, 1
        %s3268 = scalar_lea.sflag [#allocation4], %s3267
        %s3269 = sand.u32 %s154, 1
        %s3270 = smul.addr %s3269, 64
        %s3271 = scalar_lea.vmem [#allocation11], %s3270
        // Predicated region
        $region61: #{tpu_custom_call.1} parent=39 // pred_check
          %p3272 = pneg %p164
        $region62: #{tpu_custom_call.1} parent=39 // pred_check_branch
          %3274 = sbr.rel (%p3272) target = $region64
        $region63: #{tpu_custom_call.1} parent=39 // pred_region
          %3276 = vsyncadd %s3268, 0
          %s3277 = smul.addr %s26, 8
          %s3278 = smul.addr %s3277, 8
          %s3279 = scalar_lea.hbm %s5, %s3278
          %s3280 = sshll.u32 %s3271, 4
          %s3281 = int_to_ptr.vmem [resolvable:$true] %s3280
          %s3282 = sshll.u32 %s3279, 4
          %s3283 = int_to_ptr.hbm [resolvable:$true] %s3282
          %3288 = dma.vmem_to_hbm [thread:$0]  %s3281, 1024, %s3283, %s3268, 256, 256, 16
        $region64: #{tpu_custom_call.1} parent=39 // pred_fallthru
          _
      $region40: #{tpu_custom_call.1} parent=5 // pred_fallthru
        _
      %p3289 = scmp.le.s32.totalorder 2, %s21
      // Predicated region
      $region65: #{tpu_custom_call.1} parent=5 // pred_check
        %p3290 = pneg %p3289
      $region66: #{tpu_custom_call.1} parent=5 // pred_check_branch
        %3292 = sbr.rel (%p3290) target = $region68
      $region67: #{tpu_custom_call.1} parent=5 // pred_region
        %s3293 = ssub.s32 %s21, 2
        // Predicated region
        $region69: #{tpu_custom_call.1} parent=67 // pred_check
          %p3294 = pneg %p170
        $region70: #{tpu_custom_call.1} parent=67 // pred_check_branch
          %3296 = sbr.rel (%p3294) target = $region72
        $region71: #{tpu_custom_call.1} parent=67 // pred_region
          %s3297 = sand.u32 %s155, 1
          %s3298 = scalar_lea.sflag [#allocation4], %s3297
          %s3299 = sand.u32 %s155, 1
          %s3300 = smul.addr %s3299, 64
          %s3301 = scalar_lea.vmem [#allocation11], %s3300
          %3303 = dma.done %s3298, 1024
        $region72: #{tpu_custom_call.1} parent=67 // pred_fallthru
          _
      $region68: #{tpu_custom_call.1} parent=5 // pred_fallthru
        _
    $region6: #{tpu_custom_call.1} parent=1 // loop_footer
      %s25 = sadd.s32 1, %s21
    $region7: #{tpu_custom_call.1} parent=1 // loop_footer_branch
      %20 = sbr.rel target = $region3
    $region8: #{tpu_custom_call.1} parent=1 // loop_exit
      _
    %3304 = vsyncpa [#allocation3], 1
    %s3305 = scalar_lea.sflag [#allocation3], 1
    %3306 = vsyncpa %s3305, 1
    %3307 = vsyncpa [#allocation6], 1
    %s3308 = scalar_lea.sflag [#allocation6], 1
    %3309 = vsyncpa %s3308, 1
    %3310 = vsyncpa [#allocation9], 1
    %3311 = vsyncpa [#allocation4], 1
    %s3312 = scalar_lea.sflag [#allocation4], 1
    %3313 = vsyncpa %s3312, 1

</llo_original>
